<compile_context>
chip_gen: v6e
topology: v6e:2x2x1
jax: 0.10.0
libtpu: 0.0.40
codegen_flags: <defaults>
</compile_context>

<pallas_src>
import numpy as np
import jax
import jax.numpy as jnp
from jax.experimental import pallas as pl
from jax.experimental.pallas import tpu as pltpu

EMB = 32                 # embedding_dim == hidden_dim1
IMG = EMB                # image is (IMG, IMG) grayscale
SEQ = 2 * EMB            # row tokens + column tokens
HID2 = 64                # hidden_dim2
N_LAYERS = 2
N_HEADS = 4
HEAD_DIM = EMB // N_HEADS
N_CLASSES = 10
LANE = 128               # TPU lane width (lane-dense classifier output)
LN_EPS = 1e-12


# ---------------------------------------------------------------------------
# BertLayerNorm
# ---------------------------------------------------------------------------
def _bert_layernorm(x, g, b):
    """In-kernel BertLayerNorm (eps inside the sqrt); rsqrt goes to the EUP."""
    u = jnp.mean(x, axis=-1, keepdims=True)
    xc = x - u
    s = jnp.mean(xc * xc, axis=-1, keepdims=True)
    return g * (xc * jax.lax.rsqrt(s + LN_EPS)) + b


def _bert_layernorm_ref(x, g, b):
    """Reference transcription of the PyTorch module (divide by sqrt)."""
    u = jnp.mean(x, axis=-1, keepdims=True)
    xc = x - u
    s = jnp.mean(xc * xc, axis=-1, keepdims=True)
    return g * (xc / jnp.sqrt(s + LN_EPS)) + b


def _concat_lanes(parts):
    """Lane (last-axis) concatenation as a tree of 2-operand concats."""
    while len(parts) > 1:
        nxt = []
        for i in range(0, len(parts), 2):
            if i + 1 < len(parts):
                nxt.append(jnp.concatenate(parts[i:i + 2], axis=-1))
            else:
                nxt.append(parts[i])
        parts = nxt
    return parts[0]


# ---------------------------------------------------------------------------
# Fused forward kernel: one grid step processes Bp examples end-to-end.
# lvec rows (lane-padded to 3*EMB): 0 bqkv, 1 bo1, 2 g1, 3 b1, 4 bo2,
#                                   5 bo3, 6 g3, 7 b3
# hvec rows: 0 bp (pooler), 1 bf (flat), 2 gf, 3 bbf (bn_flat)
# ---------------------------------------------------------------------------
def _fused_forward_kernel(x_ref, xT_ref, pos_ref, wqkv_ref, lvec_ref, wo1_ref,
                          wo2_ref, wo3_ref, wp_ref, hvec_ref, wf_ref, wc_ref,
                          bc_ref, out_ref, ctx_ref):
    f32 = jnp.float32
    Bp = x_ref.shape[0]

    # --- token construction: [image rows ; image columns] + learned positions ---
    tok_blocks = []
    for b in range(Bp):                       # Bp <= 2: static unroll is fine
        tok_blocks.append(x_ref[b] + pos_ref[0:IMG, :])
        tok_blocks.append(xT_ref[b] + pos_ref[IMG:SEQ, :])
    x = jnp.concatenate(tok_blocks, axis=0)                 # (Bp*SEQ, EMB)

    # --- per-head lane masks: hoisted, compile-time constants ---
    lane = jax.lax.broadcasted_iota(jnp.int32, (1, EMB), 1)
    masks = [((lane >= h * HEAD_DIM) & (lane < (h + 1) * HEAD_DIM)).astype(f32)
             for h in range(N_HEADS)]

    # --- transformer layers (static unroll, weights stacked on the leading axis) ---
    for l in range(N_LAYERS):
        bqkv = lvec_ref[l, 0:1, 0:3 * EMB]
        bo1 = lvec_ref[l, 1:2, 0:EMB]
        g1 = lvec_ref[l, 2:3, 0:EMB]
        b1 = lvec_ref[l, 3:4, 0:EMB]
        bo2 = lvec_ref[l, 4:5, 0:HID2]
        bo3 = lvec_ref[l, 5:6, 0:EMB]
        g3 = lvec_ref[l, 6:7, 0:EMB]
        b3 = lvec_ref[l, 7:8, 0:EMB]

        # Fused QKV: one (Bp*SEQ,32)@(32,96) matmul; wq/bq pre-scaled by
        # 1/sqrt(head_dim) at pack time.
        qkv = jnp.dot(x, wqkv_ref[l], preferred_element_type=f32) + bqkv
        q = qkv[:, 0:EMB]
        k = qkv[:, EMB:2 * EMB]
        v = qkv[:, 2 * EMB:3 * EMB]

        # Head masking hoisted over the full (Bp*SEQ, EMB) block.  The masks are
        # disjoint diagonal projections, so q @ (k*m_h)^T is exactly the head-h
        # score matrix and softmax(s_h) @ (v*m_h) summed over heads equals the
        # concatenated per-head context.
        kh = [k * m for m in masks]
        vh = [v * m for m in masks]

        for b in range(Bp):
            rs = slice(b * SEQ, (b + 1) * SEQ)
            k_stack = jnp.concatenate([t[rs] for t in kh], axis=0)   # (4*SEQ, EMB)
            v_stack = jnp.concatenate([t[rs] for t in vh], axis=0)   # (4*SEQ, EMB)
            # One K=EMB, N=4*SEQ score matmul for all heads of this example.
            s_all = jax.lax.dot_general(q[rs], k_stack,
                                        (((1,), (1,)), ((), ())),
                                        preferred_element_type=f32)  # (SEQ, 4*SEQ)
            probs = []
            for h in range(N_HEADS):
                s = s_all[:, h * SEQ:(h + 1) * SEQ]
                s = s - jnp.max(s, axis=-1, keepdims=True)
                e = jnp.exp(s)
                probs.append(e * pl.reciprocal(
                    jnp.sum(e, axis=-1, keepdims=True), approx=True))
            p_all = _concat_lanes(probs)                             # (SEQ, 4*SEQ)
            # One K=4*SEQ=256 context matmul (fills the 256-wide v6e/v7x MXU).
            ctx_ref[rs, :] = jnp.dot(p_all, v_stack,
                                     preferred_element_type=f32)
        ctx = ctx_ref[...]                                           # (Bp*SEQ, EMB)

        a1 = jnp.dot(ctx, wo1_ref[l], preferred_element_type=f32) + bo1
        h1 = _bert_layernorm(a1 + x, g1, b1)                  # bn_attn_out1
        a2 = jnp.maximum(
            jnp.dot(h1, wo2_ref[l], preferred_element_type=f32) + bo2, 0.0)
        a3 = jnp.dot(a2, wo3_ref[l], preferred_element_type=f32) + bo3
        x = _bert_layernorm(a3 + h1, g3, b3)                  # bn_attn_out3

    # --- pooler: Linear + tanh over every token (kept as a value, no scratch) ---
    bp = hvec_ref[0:1, :]
    bf = hvec_ref[1:2, :]
    gf = hvec_ref[2:3, :]
    bbf = hvec_ref[3:4, :]
    pooled = jnp.tanh(
        jnp.dot(x, wp_ref[...], preferred_element_type=f32) + bp)    # (Bp*SEQ, EMB)

    # --- flatten (torch .view(B, -1)) -> dense (Bp, SEQ*EMB): token s of example
    #     b lands at lanes [s*EMB, (s+1)*EMB).  Built by lane-concatenating the
    #     pooled rows; wf keeps its natural (SEQ*EMB, EMB) shape.
    flat_rows = []
    for b in range(Bp):
        rows = [pooled[r:r + 1, :] for r in range(b * SEQ, (b + 1) * SEQ)]
        flat_rows.append(_concat_lanes(rows))                        # (1, SEQ*EMB)
    flat = flat_rows[0] if Bp == 1 else jnp.concatenate(flat_rows, axis=0)

    # --- classification head: flat Linear -> ReLU -> BertLayerNorm -> cls ---
    h = jnp.maximum(
        jnp.dot(flat, wf_ref[...], preferred_element_type=f32) + bf, 0.0)
    h = _bert_layernorm(h, gf, bbf)                                  # bn_flat
    out_ref[0] = jnp.dot(h, wc_ref[...], preferred_element_type=f32) + bc_ref[...]


# ---------------------------------------------------------------------------
# Wrapper
# ---------------------------------------------------------------------------
def _const_spec(shape):
    nd = len(shape)
    return pl.BlockSpec(shape, lambda g, _nd=nd: (0,) * _nd)


def _num_parallel_cores():
    """2-way 'parallel' grid only on 2-TensorCore chips (v7x); else 1."""
    try:
        kind = jax.devices()[0].device_kind.lower()
    except Exception:
        return 1
    return 2 if "7" in kind else 1


def pixel_attention_forward(x_img, packed):
    B = x_img.shape[0]
    ncores = _num_parallel_cores()
    G = ncores if (ncores > 1 and B % ncores == 0) else 1
    Bp = B // G

    # TODO(synk): the 32x32 image transpose for the column tokens stays as one
    # tiny XLA op; a materialized in-kernel 2-D transpose of a 32x32 tile is not
    # guaranteed to lower in Mosaic.  Everything else is fused into one kernel.
    x_imgT = jnp.transpose(x_img, (0, 2, 1))

    weights = [packed["pos"], packed["wqkv"], packed["lvec"], packed["wo1"],
               packed["wo2"], packed["wo3"], packed["wp"], packed["hvec"],
               packed["wf"], packed["wc"], packed["bc"]]

    img_spec = pl.BlockSpec((Bp, IMG, IMG), lambda g: (g, 0, 0))
    in_specs = [img_spec, img_spec] + [_const_spec(w.shape) for w in weights]

    out = pl.pallas_call(
        _fused_forward_kernel,
        out_shape=jax.ShapeDtypeStruct((G, Bp, LANE), jnp.float32),
        grid=(G,),
        in_specs=in_specs,
        out_specs=pl.BlockSpec((1, Bp, LANE), lambda g: (g, 0, 0)),
        scratch_shapes=[
            pltpu.VMEM((Bp * SEQ, EMB), jnp.float32),   # per-layer context
        ],
        compiler_params=pltpu.CompilerParams(dimension_semantics=("parallel",)),
    )(x_img, x_imgT, *weights)

    return out.reshape(B, LANE)[:, :N_CLASSES]


# ---------------------------------------------------------------------------
# Parameter packing (done once, outside the kernel): fuse QKV (+ fold the
# 1/sqrt(head_dim) scale into wq/bq), stack per-layer weights, merge the many
# tiny bias / LayerNorm vectors, keep wf dense, lane-pad the classifier.
# ---------------------------------------------------------------------------
def pack_params(p):
    inv_scale = 1.0 / float(np.sqrt(HEAD_DIM))

    def pad_lanes(v, w):
        return jnp.pad(v, ((0, 0), (0, w - v.shape[-1])))

    wqkv, wo1, wo2, wo3, lvec = [], [], [], [], []
    for lp in p["layers"]:
        wqkv.append(jnp.concatenate(
            [lp["wq"] * inv_scale, lp["wk"], lp["wv"]], axis=1))     # (EMB, 96)
        wo1.append(lp["wo1"])
        wo2.append(lp["wo2"])
        wo3.append(lp["wo3"])
        bqkv = jnp.concatenate(
            [lp["bq"] * inv_scale, lp["bk"], lp["bv"]], axis=1)      # (1, 96)
        rows = [bqkv, lp["bo1"], lp["g1"], lp["b1"],
                lp["bo2"], lp["bo3"], lp["g3"], lp["b3"]]
        lvec.append(jnp.concatenate([pad_lanes(r, 3 * EMB) for r in rows], axis=0))

    return dict(
        pos=p["pos_table"],                     # (SEQ, EMB)
        wqkv=jnp.stack(wqkv, axis=0),           # (L, EMB, 3*EMB)
        lvec=jnp.stack(lvec, axis=0),           # (L, 8, 3*EMB)
        wo1=jnp.stack(wo1, axis=0),             # (L, EMB, EMB)
        wo2=jnp.stack(wo2, axis=0),             # (L, EMB, HID2)
        wo3=jnp.stack(wo3, axis=0),             # (L, HID2, EMB)
        wp=p["wp"],                             # (EMB, EMB)
        hvec=jnp.concatenate([p["bp"], p["bf"], p["gf"], p["bbf"]], axis=0),
        wf=p["wf"],                             # (SEQ*EMB, EMB)  dense, unpadded
        wc=pad_lanes(p["wc"], LANE),            # (EMB, 128)  lane-dense classifier
        bc=pad_lanes(p["bc"], LANE),            # (1, 128)
    )


# ---------------------------------------------------------------------------
# Pure-JAX reference (direct transcription of the PyTorch forward)
# ---------------------------------------------------------------------------
def _attention_layer_ref(x, p):
    B, S, E = x.shape
    q = x @ p["wq"] + p["bq"]
    k = x @ p["wk"] + p["bk"]
    v = x @ p["wv"] + p["bv"]

    def split(t):  # (B,S,E) -> (B,H,S,d)
        return t.reshape(B, S, N_HEADS, HEAD_DIM).transpose(0, 2, 1, 3)

    qh, kh, vh = split(q), split(k), split(v)
    s = jnp.einsum("bhqd,bhkd->bhqk", qh, kh) / np.sqrt(HEAD_DIM)
    probs = jax.nn.softmax(s, axis=-1)
    ctx = jnp.einsum("bhqk,bhkd->bhqd", probs, vh)
    ctx = ctx.transpose(0, 2, 1, 3).reshape(B, S, E)
    a1 = ctx @ p["wo1"] + p["bo1"]
    h1 = _bert_layernorm_ref(a1 + x, p["g1"], p["b1"])
    a2 = jnp.maximum(h1 @ p["wo2"] + p["bo2"], 0.0)
    a3 = a2 @ p["wo3"] + p["bo3"]
    return _bert_layernorm_ref(a3 + h1, p["g3"], p["b3"])


def pixel_attention_forward_ref(x_img, params):
    x = jnp.concatenate([x_img, jnp.transpose(x_img, (0, 2, 1))], axis=1)
    x = x + params["pos_table"][None, :, :]
    for lp in params["layers"]:
        x = _attention_layer_ref(x, lp)
    pooled = jnp.tanh(x @ params["wp"] + params["bp"])
    flat = pooled.reshape(pooled.shape[0], -1)
    h = jnp.maximum(flat @ params["wf"] + params["bf"], 0.0)
    h = _bert_layernorm_ref(h, params["gf"], params["bbf"])
    return h @ params["wc"] + params["bc"]


# ---------------------------------------------------------------------------
# Deterministic synthetic parameters (shapes follow PixelAttention.__init__;
# Linear weights are stored pre-transposed: (in, out) so kernels do x @ W + b)
# ---------------------------------------------------------------------------
def make_params(key):
    keys = jax.random.split(key, 64)
    it = iter(keys)

    def nrm(shape, scale=0.05):
        return (scale * jax.random.normal(next(it), shape)).astype(jnp.float32)

    ones = lambda s: jnp.ones(s, jnp.float32)
    zeros = lambda s: jnp.zeros(s, jnp.float32)

    layers = []
    for _ in range(N_LAYERS):
        layers.append(dict(
            wq=nrm((EMB, EMB)), bq=nrm((1, EMB)),
            wk=nrm((EMB, EMB)), bk=nrm((1, EMB)),
            wv=nrm((EMB, EMB)), bv=nrm((1, EMB)),
            wo1=nrm((EMB, EMB)), bo1=nrm((1, EMB)),
            g1=ones((1, EMB)), b1=zeros((1, EMB)),
            wo2=nrm((EMB, HID2)), bo2=nrm((1, HID2)),
            wo3=nrm((HID2, EMB)), bo3=nrm((1, EMB)),
            g3=ones((1, EMB)), b3=zeros((1, EMB)),
        ))
    return dict(
        pos_table=nrm((SEQ, EMB)),                  # pos_embedding (2*EMB, EMB)
        layers=layers,
        wp=nrm((EMB, EMB)), bp=nrm((1, EMB)),       # pooler
        wf=nrm((SEQ * EMB, EMB)), bf=nrm((1, EMB)),  # flat (2*E*E, E)
        gf=ones((1, EMB)), bbf=zeros((1, EMB)),     # bn_flat
        wc=nrm((EMB, N_CLASSES)), bc=nrm((1, N_CLASSES)),  # cls
    )


if __name__ == "__main__":
    key = jax.random.PRNGKey(0)
    pkey, xkey = jax.random.split(key)
    params = make_params(pkey)
    packed = pack_params(params)

    # (B, H, W) grayscale image; rows are tokens of embedding dim W == EMB
    x = jax.random.normal(xkey, (2, IMG, IMG), dtype=jnp.float32)

    fwd = jax.jit(pixel_attention_forward)
    out = jax.block_until_ready(fwd(x, packed))
    ref = jax.block_until_ready(pixel_attention_forward_ref(x, params))

    np.testing.assert_allclose(np.asarray(out), np.asarray(ref),
                               rtol=2e-3, atol=2e-3)
    print("KERNEL_OK")
</pallas_src>

<mosaic_0001>
module attributes {stable_mosaic.version = 11 : i64} {
  func.func @_fused_forward_kernel(%arg0: i32, %arg1: memref<2x32x32xf32, #tpu.memory_space<vmem>>, %arg2: memref<2x32x32xf32, #tpu.memory_space<vmem>>, %arg3: memref<64x32xf32, #tpu.memory_space<vmem>>, %arg4: memref<2x32x96xf32, #tpu.memory_space<vmem>>, %arg5: memref<2x8x96xf32, #tpu.memory_space<vmem>>, %arg6: memref<2x32x32xf32, #tpu.memory_space<vmem>>, %arg7: memref<2x32x64xf32, #tpu.memory_space<vmem>>, %arg8: memref<2x64x32xf32, #tpu.memory_space<vmem>>, %arg9: memref<32x32xf32, #tpu.memory_space<vmem>>, %arg10: memref<4x32xf32, #tpu.memory_space<vmem>>, %arg11: memref<2048x32xf32, #tpu.memory_space<vmem>>, %arg12: memref<32x128xf32, #tpu.memory_space<vmem>>, %arg13: memref<1x128xf32, #tpu.memory_space<vmem>>, %arg14: memref<1x2x128xf32, #tpu.memory_space<vmem>>, %arg15: memref<128x32xf32, #tpu.memory_space<vmem>>) attributes {dimension_semantics = [#tpu.dimension_semantics<parallel>], iteration_bounds = array<i64: 1>, scalar_prefetch = 0 : i64, scratch_operands = 1 : i64, tpu.core_type = #tpu.core_type<tc>, window_params = [{transform_indices = @transform_0, window_bounds = array<i64: 2, 32, 32>}, {transform_indices = @transform_1, window_bounds = array<i64: 2, 32, 32>}, {pipeline_mode = #tpu.pipeline_mode<synchronous>, transform_indices = @transform_2, window_bounds = array<i64: 64, 32>}, {pipeline_mode = #tpu.pipeline_mode<synchronous>, transform_indices = @transform_3, window_bounds = array<i64: 2, 32, 96>}, {pipeline_mode = #tpu.pipeline_mode<synchronous>, transform_indices = @transform_4, window_bounds = array<i64: 2, 8, 96>}, {pipeline_mode = #tpu.pipeline_mode<synchronous>, transform_indices = @transform_5, window_bounds = array<i64: 2, 32, 32>}, {pipeline_mode = #tpu.pipeline_mode<synchronous>, transform_indices = @transform_6, window_bounds = array<i64: 2, 32, 64>}, {pipeline_mode = #tpu.pipeline_mode<synchronous>, transform_indices = @transform_7, window_bounds = array<i64: 2, 64, 32>}, {pipeline_mode = #tpu.pipeline_mode<synchronous>, transform_indices = @transform_8, window_bounds = array<i64: 32, 32>}, {pipeline_mode = #tpu.pipeline_mode<synchronous>, transform_indices = @transform_9, window_bounds = array<i64: 4, 32>}, {pipeline_mode = #tpu.pipeline_mode<synchronous>, transform_indices = @transform_10, window_bounds = array<i64: 2048, 32>}, {pipeline_mode = #tpu.pipeline_mode<synchronous>, transform_indices = @transform_11, window_bounds = array<i64: 32, 128>}, {pipeline_mode = #tpu.pipeline_mode<synchronous>, transform_indices = @transform_12, window_bounds = array<i64: 1, 128>}, {transform_indices = @transform_13, window_bounds = array<i64: 1, 2, 128>}]} {
    %c0 = arith.constant 0 : index
    %c0_0 = arith.constant 0 : index
    %c0_1 = arith.constant 0 : index
    %0 = vector.load %arg1[%c0, %c0_0, %c0_1] : memref<2x32x32xf32, #tpu.memory_space<vmem>>, vector<1x32x32xf32>
    %1 = vector.shape_cast %0 : vector<1x32x32xf32> to vector<32x32xf32>
    %c0_2 = arith.constant 0 : index
    %c0_3 = arith.constant 0 : index
    %2 = vector.load %arg3[%c0_2, %c0_3] : memref<64x32xf32, #tpu.memory_space<vmem>>, vector<32x32xf32>
    %3 = arith.addf %1, %2 : vector<32x32xf32>
    %c0_4 = arith.constant 0 : index
    %c0_5 = arith.constant 0 : index
    %c0_6 = arith.constant 0 : index
    %4 = vector.load %arg2[%c0_4, %c0_5, %c0_6] : memref<2x32x32xf32, #tpu.memory_space<vmem>>, vector<1x32x32xf32>
    %5 = vector.shape_cast %4 : vector<1x32x32xf32> to vector<32x32xf32>
    %c32 = arith.constant 32 : index
    %c0_7 = arith.constant 0 : index
    %6 = vector.load %arg3[%c32, %c0_7] : memref<64x32xf32, #tpu.memory_space<vmem>>, vector<32x32xf32>
    %7 = arith.addf %5, %6 : vector<32x32xf32>
    %c1 = arith.constant 1 : index
    %c0_8 = arith.constant 0 : index
    %c0_9 = arith.constant 0 : index
    %8 = vector.load %arg1[%c1, %c0_8, %c0_9] : memref<2x32x32xf32, #tpu.memory_space<vmem>>, vector<1x32x32xf32>
    %9 = vector.shape_cast %8 : vector<1x32x32xf32> to vector<32x32xf32>
    %c0_10 = arith.constant 0 : index
    %c0_11 = arith.constant 0 : index
    %10 = vector.load %arg3[%c0_10, %c0_11] : memref<64x32xf32, #tpu.memory_space<vmem>>, vector<32x32xf32>
    %11 = arith.addf %9, %10 : vector<32x32xf32>
    %c1_12 = arith.constant 1 : index
    %c0_13 = arith.constant 0 : index
    %c0_14 = arith.constant 0 : index
    %12 = vector.load %arg2[%c1_12, %c0_13, %c0_14] : memref<2x32x32xf32, #tpu.memory_space<vmem>>, vector<1x32x32xf32>
    %13 = vector.shape_cast %12 : vector<1x32x32xf32> to vector<32x32xf32>
    %c32_15 = arith.constant 32 : index
    %c0_16 = arith.constant 0 : index
    %14 = vector.load %arg3[%c32_15, %c0_16] : memref<64x32xf32, #tpu.memory_space<vmem>>, vector<32x32xf32>
    %15 = arith.addf %13, %14 : vector<32x32xf32>
    %16 = tpu.concatenate %3, %7, %11, %15 in 0 : vector<32x32xf32>, vector<32x32xf32>, vector<32x32xf32>, vector<32x32xf32> -> vector<128x32xf32>
    %17 = tpu.iota {dimensions = array<i32: 1>} : vector<1x32xi32>
    %c0_i32 = arith.constant 0 : i32
    %18 = vector.broadcast %c0_i32 : i32 to vector<1x32xi32>
    %19 = arith.cmpi sge, %17, %18 : vector<1x32xi32>
    %c8_i32 = arith.constant 8 : i32
    %20 = vector.broadcast %c8_i32 : i32 to vector<1x32xi32>
    %21 = arith.cmpi slt, %17, %20 : vector<1x32xi32>
    %22 = arith.andi %19, %21 : vector<1x32xi1>
    %23 = arith.extui %22 : vector<1x32xi1> to vector<1x32xi32>
    %24 = arith.sitofp %23 : vector<1x32xi32> to vector<1x32xf32>
    %c8_i32_17 = arith.constant 8 : i32
    %25 = vector.broadcast %c8_i32_17 : i32 to vector<1x32xi32>
    %26 = arith.cmpi sge, %17, %25 : vector<1x32xi32>
    %c16_i32 = arith.constant 16 : i32
    %27 = vector.broadcast %c16_i32 : i32 to vector<1x32xi32>
    %28 = arith.cmpi slt, %17, %27 : vector<1x32xi32>
    %29 = arith.andi %26, %28 : vector<1x32xi1>
    %30 = arith.extui %29 : vector<1x32xi1> to vector<1x32xi32>
    %31 = arith.sitofp %30 : vector<1x32xi32> to vector<1x32xf32>
    %c16_i32_18 = arith.constant 16 : i32
    %32 = vector.broadcast %c16_i32_18 : i32 to vector<1x32xi32>
    %33 = arith.cmpi sge, %17, %32 : vector<1x32xi32>
    %c24_i32 = arith.constant 24 : i32
    %34 = vector.broadcast %c24_i32 : i32 to vector<1x32xi32>
    %35 = arith.cmpi slt, %17, %34 : vector<1x32xi32>
    %36 = arith.andi %33, %35 : vector<1x32xi1>
    %37 = arith.extui %36 : vector<1x32xi1> to vector<1x32xi32>
    %38 = arith.sitofp %37 : vector<1x32xi32> to vector<1x32xf32>
    %c24_i32_19 = arith.constant 24 : i32
    %39 = vector.broadcast %c24_i32_19 : i32 to vector<1x32xi32>
    %40 = arith.cmpi sge, %17, %39 : vector<1x32xi32>
    %c32_i32 = arith.constant 32 : i32
    %41 = vector.broadcast %c32_i32 : i32 to vector<1x32xi32>
    %42 = arith.cmpi slt, %17, %41 : vector<1x32xi32>
    %43 = arith.andi %40, %42 : vector<1x32xi1>
    %44 = arith.extui %43 : vector<1x32xi1> to vector<1x32xi32>
    %45 = arith.sitofp %44 : vector<1x32xi32> to vector<1x32xf32>
    %c0_20 = arith.constant 0 : index
    %c0_21 = arith.constant 0 : index
    %c0_22 = arith.constant 0 : index
    %46 = vector.load %arg5[%c0_20, %c0_21, %c0_22] : memref<2x8x96xf32, #tpu.memory_space<vmem>>, vector<1x1x96xf32>
    %47 = vector.shape_cast %46 : vector<1x1x96xf32> to vector<1x96xf32>
    %c0_23 = arith.constant 0 : index
    %c1_24 = arith.constant 1 : index
    %c0_25 = arith.constant 0 : index
    %48 = vector.load %arg5[%c0_23, %c1_24, %c0_25] : memref<2x8x96xf32, #tpu.memory_space<vmem>>, vector<1x1x32xf32>
    %49 = vector.shape_cast %48 : vector<1x1x32xf32> to vector<1x32xf32>
    %c0_26 = arith.constant 0 : index
    %c2 = arith.constant 2 : index
    %c0_27 = arith.constant 0 : index
    %50 = vector.load %arg5[%c0_26, %c2, %c0_27] : memref<2x8x96xf32, #tpu.memory_space<vmem>>, vector<1x1x32xf32>
    %51 = vector.shape_cast %50 : vector<1x1x32xf32> to vector<1x32xf32>
    %c0_28 = arith.constant 0 : index
    %c3 = arith.constant 3 : index
    %c0_29 = arith.constant 0 : index
    %52 = vector.load %arg5[%c0_28, %c3, %c0_29] : memref<2x8x96xf32, #tpu.memory_space<vmem>>, vector<1x1x32xf32>
    %53 = vector.shape_cast %52 : vector<1x1x32xf32> to vector<1x32xf32>
    %c0_30 = arith.constant 0 : index
    %c4 = arith.constant 4 : index
    %c0_31 = arith.constant 0 : index
    %54 = vector.load %arg5[%c0_30, %c4, %c0_31] : memref<2x8x96xf32, #tpu.memory_space<vmem>>, vector<1x1x64xf32>
    %55 = vector.shape_cast %54 : vector<1x1x64xf32> to vector<1x64xf32>
    %c0_32 = arith.constant 0 : index
    %c5 = arith.constant 5 : index
    %c0_33 = arith.constant 0 : index
    %56 = vector.load %arg5[%c0_32, %c5, %c0_33] : memref<2x8x96xf32, #tpu.memory_space<vmem>>, vector<1x1x32xf32>
    %57 = vector.shape_cast %56 : vector<1x1x32xf32> to vector<1x32xf32>
    %c0_34 = arith.constant 0 : index
    %c6 = arith.constant 6 : index
    %c0_35 = arith.constant 0 : index
    %58 = vector.load %arg5[%c0_34, %c6, %c0_35] : memref<2x8x96xf32, #tpu.memory_space<vmem>>, vector<1x1x32xf32>
    %59 = vector.shape_cast %58 : vector<1x1x32xf32> to vector<1x32xf32>
    %c0_36 = arith.constant 0 : index
    %c7 = arith.constant 7 : index
    %c0_37 = arith.constant 0 : index
    %60 = vector.load %arg5[%c0_36, %c7, %c0_37] : memref<2x8x96xf32, #tpu.memory_space<vmem>>, vector<1x1x32xf32>
    %61 = vector.shape_cast %60 : vector<1x1x32xf32> to vector<1x32xf32>
    %c0_38 = arith.constant 0 : index
    %c0_39 = arith.constant 0 : index
    %c0_40 = arith.constant 0 : index
    %62 = vector.load %arg4[%c0_38, %c0_39, %c0_40] : memref<2x32x96xf32, #tpu.memory_space<vmem>>, vector<1x32x96xf32>
    %63 = vector.shape_cast %62 : vector<1x32x96xf32> to vector<32x96xf32>
    %cst = arith.constant dense<0.000000e+00> : vector<128x96xf32>
    %64 = tpu.matmul %16, %63, %cst {dimension_numbers = #tpu.dot_dimension_numbers<[1], [0], [0], [1], [0, 0, 1, 1], [], []>} : vector<128x32xf32>, vector<32x96xf32>, vector<128x96xf32> -> vector<128x96xf32>
    %65 = vector.broadcast %47 : vector<1x96xf32> to vector<128x96xf32>
    %66 = arith.addf %64, %65 : vector<128x96xf32>
    %67 = vector.extract_strided_slice %66 {offsets = [0, 0], sizes = [128, 32], strides = [1, 1]} : vector<128x96xf32> to vector<128x32xf32>
    %68 = vector.extract_strided_slice %66 {offsets = [0, 32], sizes = [128, 32], strides = [1, 1]} : vector<128x96xf32> to vector<128x32xf32>
    %69 = vector.extract_strided_slice %66 {offsets = [0, 64], sizes = [128, 32], strides = [1, 1]} : vector<128x96xf32> to vector<128x32xf32>
    %70 = vector.broadcast %24 : vector<1x32xf32> to vector<128x32xf32>
    %71 = arith.mulf %68, %70 : vector<128x32xf32>
    %72 = vector.broadcast %31 : vector<1x32xf32> to vector<128x32xf32>
    %73 = arith.mulf %68, %72 : vector<128x32xf32>
    %74 = vector.broadcast %38 : vector<1x32xf32> to vector<128x32xf32>
    %75 = arith.mulf %68, %74 : vector<128x32xf32>
    %76 = vector.broadcast %45 : vector<1x32xf32> to vector<128x32xf32>
    %77 = arith.mulf %68, %76 : vector<128x32xf32>
    %78 = vector.broadcast %24 : vector<1x32xf32> to vector<128x32xf32>
    %79 = arith.mulf %69, %78 : vector<128x32xf32>
    %80 = vector.broadcast %31 : vector<1x32xf32> to vector<128x32xf32>
    %81 = arith.mulf %69, %80 : vector<128x32xf32>
    %82 = vector.broadcast %38 : vector<1x32xf32> to vector<128x32xf32>
    %83 = arith.mulf %69, %82 : vector<128x32xf32>
    %84 = vector.broadcast %45 : vector<1x32xf32> to vector<128x32xf32>
    %85 = arith.mulf %69, %84 : vector<128x32xf32>
    %86 = vector.extract_strided_slice %71 {offsets = [0, 0], sizes = [64, 32], strides = [1, 1]} : vector<128x32xf32> to vector<64x32xf32>
    %87 = vector.extract_strided_slice %73 {offsets = [0, 0], sizes = [64, 32], strides = [1, 1]} : vector<128x32xf32> to vector<64x32xf32>
    %88 = vector.extract_strided_slice %75 {offsets = [0, 0], sizes = [64, 32], strides = [1, 1]} : vector<128x32xf32> to vector<64x32xf32>
    %89 = vector.extract_strided_slice %77 {offsets = [0, 0], sizes = [64, 32], strides = [1, 1]} : vector<128x32xf32> to vector<64x32xf32>
    %90 = tpu.concatenate %86, %87, %88, %89 in 0 : vector<64x32xf32>, vector<64x32xf32>, vector<64x32xf32>, vector<64x32xf32> -> vector<256x32xf32>
    %91 = vector.extract_strided_slice %79 {offsets = [0, 0], sizes = [64, 32], strides = [1, 1]} : vector<128x32xf32> to vector<64x32xf32>
    %92 = vector.extract_strided_slice %81 {offsets = [0, 0], sizes = [64, 32], strides = [1, 1]} : vector<128x32xf32> to vector<64x32xf32>
    %93 = vector.extract_strided_slice %83 {offsets = [0, 0], sizes = [64, 32], strides = [1, 1]} : vector<128x32xf32> to vector<64x32xf32>
    %94 = vector.extract_strided_slice %85 {offsets = [0, 0], sizes = [64, 32], strides = [1, 1]} : vector<128x32xf32> to vector<64x32xf32>
    %95 = tpu.concatenate %91, %92, %93, %94 in 0 : vector<64x32xf32>, vector<64x32xf32>, vector<64x32xf32>, vector<64x32xf32> -> vector<256x32xf32>
    %96 = vector.extract_strided_slice %67 {offsets = [0, 0], sizes = [64, 32], strides = [1, 1]} : vector<128x32xf32> to vector<64x32xf32>
    %cst_41 = arith.constant dense<0.000000e+00> : vector<64x256xf32>
    %97 = tpu.matmul %96, %90, %cst_41 {dimension_numbers = #tpu.dot_dimension_numbers<[1], [1], [0], [0], [0, 0, 1, 0], [], []>} : vector<64x32xf32>, vector<256x32xf32>, vector<64x256xf32> -> vector<64x256xf32>
    %98 = vector.extract_strided_slice %97 {offsets = [0, 0], sizes = [64, 64], strides = [1, 1]} : vector<64x256xf32> to vector<64x64xf32>
    %cst_42 = arith.constant dense<0xFF800000> : vector<64xf32>
    %99 = vector.multi_reduction <maximumf>, %98, %cst_42 [1] : vector<64x64xf32> to vector<64xf32>
    %100 = vector.shape_cast %99 : vector<64xf32> to vector<64x1xf32>
    %101 = vector.broadcast %100 : vector<64x1xf32> to vector<64x64xf32>
    %102 = arith.subf %98, %101 : vector<64x64xf32>
    %103 = math.exp %102 : vector<64x64xf32>
    %cst_43 = arith.constant dense<0.000000e+00> : vector<64xf32>
    %104 = vector.multi_reduction <add>, %103, %cst_43 [1] : vector<64x64xf32> to vector<64xf32>
    %105 = vector.shape_cast %104 : vector<64xf32> to vector<64x1xf32>
    %106 = tpu.reciprocal %105 {approx = true} : vector<64x1xf32> -> vector<64x1xf32>
    %107 = vector.broadcast %106 : vector<64x1xf32> to vector<64x64xf32>
    %108 = arith.mulf %103, %107 : vector<64x64xf32>
    %109 = vector.extract_strided_slice %97 {offsets = [0, 64], sizes = [64, 64], strides = [1, 1]} : vector<64x256xf32> to vector<64x64xf32>
    %cst_44 = arith.constant dense<0xFF800000> : vector<64xf32>
    %110 = vector.multi_reduction <maximumf>, %109, %cst_44 [1] : vector<64x64xf32> to vector<64xf32>
    %111 = vector.shape_cast %110 : vector<64xf32> to vector<64x1xf32>
    %112 = vector.broadcast %111 : vector<64x1xf32> to vector<64x64xf32>
    %113 = arith.subf %109, %112 : vector<64x64xf32>
    %114 = math.exp %113 : vector<64x64xf32>
    %cst_45 = arith.constant dense<0.000000e+00> : vector<64xf32>
    %115 = vector.multi_reduction <add>, %114, %cst_45 [1] : vector<64x64xf32> to vector<64xf32>
    %116 = vector.shape_cast %115 : vector<64xf32> to vector<64x1xf32>
    %117 = tpu.reciprocal %116 {approx = true} : vector<64x1xf32> -> vector<64x1xf32>
    %118 = vector.broadcast %117 : vector<64x1xf32> to vector<64x64xf32>
    %119 = arith.mulf %114, %118 : vector<64x64xf32>
    %120 = vector.extract_strided_slice %97 {offsets = [0, 128], sizes = [64, 64], strides = [1, 1]} : vector<64x256xf32> to vector<64x64xf32>
    %cst_46 = arith.constant dense<0xFF800000> : vector<64xf32>
    %121 = vector.multi_reduction <maximumf>, %120, %cst_46 [1] : vector<64x64xf32> to vector<64xf32>
    %122 = vector.shape_cast %121 : vector<64xf32> to vector<64x1xf32>
    %123 = vector.broadcast %122 : vector<64x1xf32> to vector<64x64xf32>
    %124 = arith.subf %120, %123 : vector<64x64xf32>
    %125 = math.exp %124 : vector<64x64xf32>
    %cst_47 = arith.constant dense<0.000000e+00> : vector<64xf32>
    %126 = vector.multi_reduction <add>, %125, %cst_47 [1] : vector<64x64xf32> to vector<64xf32>
    %127 = vector.shape_cast %126 : vector<64xf32> to vector<64x1xf32>
    %128 = tpu.reciprocal %127 {approx = true} : vector<64x1xf32> -> vector<64x1xf32>
    %129 = vector.broadcast %128 : vector<64x1xf32> to vector<64x64xf32>
    %130 = arith.mulf %125, %129 : vector<64x64xf32>
    %131 = vector.extract_strided_slice %97 {offsets = [0, 192], sizes = [64, 64], strides = [1, 1]} : vector<64x256xf32> to vector<64x64xf32>
    %cst_48 = arith.constant dense<0xFF800000> : vector<64xf32>
    %132 = vector.multi_reduction <maximumf>, %131, %cst_48 [1] : vector<64x64xf32> to vector<64xf32>
    %133 = vector.shape_cast %132 : vector<64xf32> to vector<64x1xf32>
    %134 = vector.broadcast %133 : vector<64x1xf32> to vector<64x64xf32>
    %135 = arith.subf %131, %134 : vector<64x64xf32>
    %136 = math.exp %135 : vector<64x64xf32>
    %cst_49 = arith.constant dense<0.000000e+00> : vector<64xf32>
    %137 = vector.multi_reduction <add>, %136, %cst_49 [1] : vector<64x64xf32> to vector<64xf32>
    %138 = vector.shape_cast %137 : vector<64xf32> to vector<64x1xf32>
    %139 = tpu.reciprocal %138 {approx = true} : vector<64x1xf32> -> vector<64x1xf32>
    %140 = vector.broadcast %139 : vector<64x1xf32> to vector<64x64xf32>
    %141 = arith.mulf %136, %140 : vector<64x64xf32>
    %142 = tpu.concatenate %108, %119 in 1 : vector<64x64xf32>, vector<64x64xf32> -> vector<64x128xf32>
    %143 = tpu.concatenate %130, %141 in 1 : vector<64x64xf32>, vector<64x64xf32> -> vector<64x128xf32>
    %144 = tpu.concatenate %142, %143 in 1 : vector<64x128xf32>, vector<64x128xf32> -> vector<64x256xf32>
    %cst_50 = arith.constant dense<0.000000e+00> : vector<64x32xf32>
    %145 = tpu.matmul %144, %95, %cst_50 {dimension_numbers = #tpu.dot_dimension_numbers<[1], [0], [0], [1], [0, 0, 1, 1], [], []>} : vector<64x256xf32>, vector<256x32xf32>, vector<64x32xf32> -> vector<64x32xf32>
    %c0_51 = arith.constant 0 : index
    %c0_52 = arith.constant 0 : index
    %146 = vector.load %arg15[%c0_51, %c0_52] : memref<128x32xf32, #tpu.memory_space<vmem>>, vector<64x32xf32>
    tpu.vector_store %arg15[%c0_51, %c0_52], %145 {strides = array<i32>} : memref<128x32xf32, #tpu.memory_space<vmem>>, vector<64x32xf32>,
    %147 = vector.extract_strided_slice %71 {offsets = [64, 0], sizes = [64, 32], strides = [1, 1]} : vector<128x32xf32> to vector<64x32xf32>
    %148 = vector.extract_strided_slice %73 {offsets = [64, 0], sizes = [64, 32], strides = [1, 1]} : vector<128x32xf32> to vector<64x32xf32>
    %149 = vector.extract_strided_slice %75 {offsets = [64, 0], sizes = [64, 32], strides = [1, 1]} : vector<128x32xf32> to vector<64x32xf32>
    %150 = vector.extract_strided_slice %77 {offsets = [64, 0], sizes = [64, 32], strides = [1, 1]} : vector<128x32xf32> to vector<64x32xf32>
    %151 = tpu.concatenate %147, %148, %149, %150 in 0 : vector<64x32xf32>, vector<64x32xf32>, vector<64x32xf32>, vector<64x32xf32> -> vector<256x32xf32>
    %152 = vector.extract_strided_slice %79 {offsets = [64, 0], sizes = [64, 32], strides = [1, 1]} : vector<128x32xf32> to vector<64x32xf32>
    %153 = vector.extract_strided_slice %81 {offsets = [64, 0], sizes = [64, 32], strides = [1, 1]} : vector<128x32xf32> to vector<64x32xf32>
    %154 = vector.extract_strided_slice %83 {offsets = [64, 0], sizes = [64, 32], strides = [1, 1]} : vector<128x32xf32> to vector<64x32xf32>
    %155 = vector.extract_strided_slice %85 {offsets = [64, 0], sizes = [64, 32], strides = [1, 1]} : vector<128x32xf32> to vector<64x32xf32>
    %156 = tpu.concatenate %152, %153, %154, %155 in 0 : vector<64x32xf32>, vector<64x32xf32>, vector<64x32xf32>, vector<64x32xf32> -> vector<256x32xf32>
    %157 = vector.extract_strided_slice %67 {offsets = [64, 0], sizes = [64, 32], strides = [1, 1]} : vector<128x32xf32> to vector<64x32xf32>
    %cst_53 = arith.constant dense<0.000000e+00> : vector<64x256xf32>
    %158 = tpu.matmul %157, %151, %cst_53 {dimension_numbers = #tpu.dot_dimension_numbers<[1], [1], [0], [0], [0, 0, 1, 0], [], []>} : vector<64x32xf32>, vector<256x32xf32>, vector<64x256xf32> -> vector<64x256xf32>
    %159 = vector.extract_strided_slice %158 {offsets = [0, 0], sizes = [64, 64], strides = [1, 1]} : vector<64x256xf32> to vector<64x64xf32>
    %cst_54 = arith.constant dense<0xFF800000> : vector<64xf32>
    %160 = vector.multi_reduction <maximumf>, %159, %cst_54 [1] : vector<64x64xf32> to vector<64xf32>
    %161 = vector.shape_cast %160 : vector<64xf32> to vector<64x1xf32>
    %162 = vector.broadcast %161 : vector<64x1xf32> to vector<64x64xf32>
    %163 = arith.subf %159, %162 : vector<64x64xf32>
    %164 = math.exp %163 : vector<64x64xf32>
    %cst_55 = arith.constant dense<0.000000e+00> : vector<64xf32>
    %165 = vector.multi_reduction <add>, %164, %cst_55 [1] : vector<64x64xf32> to vector<64xf32>
    %166 = vector.shape_cast %165 : vector<64xf32> to vector<64x1xf32>
    %167 = tpu.reciprocal %166 {approx = true} : vector<64x1xf32> -> vector<64x1xf32>
    %168 = vector.broadcast %167 : vector<64x1xf32> to vector<64x64xf32>
    %169 = arith.mulf %164, %168 : vector<64x64xf32>
    %170 = vector.extract_strided_slice %158 {offsets = [0, 64], sizes = [64, 64], strides = [1, 1]} : vector<64x256xf32> to vector<64x64xf32>
    %cst_56 = arith.constant dense<0xFF800000> : vector<64xf32>
    %171 = vector.multi_reduction <maximumf>, %170, %cst_56 [1] : vector<64x64xf32> to vector<64xf32>
    %172 = vector.shape_cast %171 : vector<64xf32> to vector<64x1xf32>
    %173 = vector.broadcast %172 : vector<64x1xf32> to vector<64x64xf32>
    %174 = arith.subf %170, %173 : vector<64x64xf32>
    %175 = math.exp %174 : vector<64x64xf32>
    %cst_57 = arith.constant dense<0.000000e+00> : vector<64xf32>
    %176 = vector.multi_reduction <add>, %175, %cst_57 [1] : vector<64x64xf32> to vector<64xf32>
    %177 = vector.shape_cast %176 : vector<64xf32> to vector<64x1xf32>
    %178 = tpu.reciprocal %177 {approx = true} : vector<64x1xf32> -> vector<64x1xf32>
    %179 = vector.broadcast %178 : vector<64x1xf32> to vector<64x64xf32>
    %180 = arith.mulf %175, %179 : vector<64x64xf32>
    %181 = vector.extract_strided_slice %158 {offsets = [0, 128], sizes = [64, 64], strides = [1, 1]} : vector<64x256xf32> to vector<64x64xf32>
    %cst_58 = arith.constant dense<0xFF800000> : vector<64xf32>
    %182 = vector.multi_reduction <maximumf>, %181, %cst_58 [1] : vector<64x64xf32> to vector<64xf32>
    %183 = vector.shape_cast %182 : vector<64xf32> to vector<64x1xf32>
    %184 = vector.broadcast %183 : vector<64x1xf32> to vector<64x64xf32>
    %185 = arith.subf %181, %184 : vector<64x64xf32>
    %186 = math.exp %185 : vector<64x64xf32>
    %cst_59 = arith.constant dense<0.000000e+00> : vector<64xf32>
    %187 = vector.multi_reduction <add>, %186, %cst_59 [1] : vector<64x64xf32> to vector<64xf32>
    %188 = vector.shape_cast %187 : vector<64xf32> to vector<64x1xf32>
    %189 = tpu.reciprocal %188 {approx = true} : vector<64x1xf32> -> vector<64x1xf32>
    %190 = vector.broadcast %189 : vector<64x1xf32> to vector<64x64xf32>
    %191 = arith.mulf %186, %190 : vector<64x64xf32>
    %192 = vector.extract_strided_slice %158 {offsets = [0, 192], sizes = [64, 64], strides = [1, 1]} : vector<64x256xf32> to vector<64x64xf32>
    %cst_60 = arith.constant dense<0xFF800000> : vector<64xf32>
    %193 = vector.multi_reduction <maximumf>, %192, %cst_60 [1] : vector<64x64xf32> to vector<64xf32>
    %194 = vector.shape_cast %193 : vector<64xf32> to vector<64x1xf32>
    %195 = vector.broadcast %194 : vector<64x1xf32> to vector<64x64xf32>
    %196 = arith.subf %192, %195 : vector<64x64xf32>
    %197 = math.exp %196 : vector<64x64xf32>
    %cst_61 = arith.constant dense<0.000000e+00> : vector<64xf32>
    %198 = vector.multi_reduction <add>, %197, %cst_61 [1] : vector<64x64xf32> to vector<64xf32>
    %199 = vector.shape_cast %198 : vector<64xf32> to vector<64x1xf32>
    %200 = tpu.reciprocal %199 {approx = true} : vector<64x1xf32> -> vector<64x1xf32>
    %201 = vector.broadcast %200 : vector<64x1xf32> to vector<64x64xf32>
    %202 = arith.mulf %197, %201 : vector<64x64xf32>
    %203 = tpu.concatenate %169, %180 in 1 : vector<64x64xf32>, vector<64x64xf32> -> vector<64x128xf32>
    %204 = tpu.concatenate %191, %202 in 1 : vector<64x64xf32>, vector<64x64xf32> -> vector<64x128xf32>
    %205 = tpu.concatenate %203, %204 in 1 : vector<64x128xf32>, vector<64x128xf32> -> vector<64x256xf32>
    %cst_62 = arith.constant dense<0.000000e+00> : vector<64x32xf32>
    %206 = tpu.matmul %205, %156, %cst_62 {dimension_numbers = #tpu.dot_dimension_numbers<[1], [0], [0], [1], [0, 0, 1, 1], [], []>} : vector<64x256xf32>, vector<256x32xf32>, vector<64x32xf32> -> vector<64x32xf32>
    %c64 = arith.constant 64 : index
    %c0_63 = arith.constant 0 : index
    %207 = vector.load %arg15[%c64, %c0_63] : memref<128x32xf32, #tpu.memory_space<vmem>>, vector<64x32xf32>
    tpu.vector_store %arg15[%c64, %c0_63], %206 {strides = array<i32>} : memref<128x32xf32, #tpu.memory_space<vmem>>, vector<64x32xf32>,
    %c0_64 = arith.constant 0 : index
    %c0_65 = arith.constant 0 : index
    %208 = vector.load %arg15[%c0_64, %c0_65] : memref<128x32xf32, #tpu.memory_space<vmem>>, vector<128x32xf32>
    %c0_66 = arith.constant 0 : index
    %c0_67 = arith.constant 0 : index
    %c0_68 = arith.constant 0 : index
    %209 = vector.load %arg6[%c0_66, %c0_67, %c0_68] : memref<2x32x32xf32, #tpu.memory_space<vmem>>, vector<1x32x32xf32>
    %210 = vector.shape_cast %209 : vector<1x32x32xf32> to vector<32x32xf32>
    %cst_69 = arith.constant dense<0.000000e+00> : vector<128x32xf32>
    %211 = tpu.matmul %208, %210, %cst_69 {dimension_numbers = #tpu.dot_dimension_numbers<[1], [0], [0], [1], [0, 0, 1, 1], [], []>} : vector<128x32xf32>, vector<32x32xf32>, vector<128x32xf32> -> vector<128x32xf32>
    %212 = vector.broadcast %49 : vector<1x32xf32> to vector<128x32xf32>
    %213 = arith.addf %211, %212 : vector<128x32xf32>
    %214 = arith.addf %213, %16 : vector<128x32xf32>
    %cst_70 = arith.constant dense<0.000000e+00> : vector<128xf32>
    %215 = vector.multi_reduction <add>, %214, %cst_70 [1] : vector<128x32xf32> to vector<128xf32>
    %216 = vector.shape_cast %215 : vector<128xf32> to vector<128x1xf32>
    %cst_71 = arith.constant 3.200000e+01 : f32
    %217 = vector.broadcast %cst_71 : f32 to vector<128x1xf32>
    %218 = arith.divf %216, %217 : vector<128x1xf32>
    %219 = vector.broadcast %218 : vector<128x1xf32> to vector<128x32xf32>
    %220 = arith.subf %214, %219 : vector<128x32xf32>
    %221 = arith.mulf %220, %220 : vector<128x32xf32>
    %cst_72 = arith.constant dense<0.000000e+00> : vector<128xf32>
    %222 = vector.multi_reduction <add>, %221, %cst_72 [1] : vector<128x32xf32> to vector<128xf32>
    %223 = vector.shape_cast %222 : vector<128xf32> to vector<128x1xf32>
    %cst_73 = arith.constant 3.200000e+01 : f32
    %224 = vector.broadcast %cst_73 : f32 to vector<128x1xf32>
    %225 = arith.divf %223, %224 : vector<128x1xf32>
    %cst_74 = arith.constant 9.99999996E-13 : f32
    %226 = vector.broadcast %cst_74 : f32 to vector<128x1xf32>
    %227 = arith.addf %225, %226 : vector<128x1xf32>
    %228 = math.rsqrt %227 : vector<128x1xf32>
    %229 = vector.broadcast %228 : vector<128x1xf32> to vector<128x32xf32>
    %230 = arith.mulf %220, %229 : vector<128x32xf32>
    %231 = vector.broadcast %51 : vector<1x32xf32> to vector<128x32xf32>
    %232 = arith.mulf %231, %230 : vector<128x32xf32>
    %233 = vector.broadcast %53 : vector<1x32xf32> to vector<128x32xf32>
    %234 = arith.addf %232, %233 : vector<128x32xf32>
    %c0_75 = arith.constant 0 : index
    %c0_76 = arith.constant 0 : index
    %c0_77 = arith.constant 0 : index
    %235 = vector.load %arg7[%c0_75, %c0_76, %c0_77] : memref<2x32x64xf32, #tpu.memory_space<vmem>>, vector<1x32x64xf32>
    %236 = vector.shape_cast %235 : vector<1x32x64xf32> to vector<32x64xf32>
    %cst_78 = arith.constant dense<0.000000e+00> : vector<128x64xf32>
    %237 = tpu.matmul %234, %236, %cst_78 {dimension_numbers = #tpu.dot_dimension_numbers<[1], [0], [0], [1], [0, 0, 1, 1], [], []>} : vector<128x32xf32>, vector<32x64xf32>, vector<128x64xf32> -> vector<128x64xf32>
    %238 = vector.broadcast %55 : vector<1x64xf32> to vector<128x64xf32>
    %239 = arith.addf %237, %238 : vector<128x64xf32>
    %cst_79 = arith.constant 0.000000e+00 : f32
    %240 = vector.broadcast %cst_79 : f32 to vector<128x64xf32>
    %241 = arith.maximumf %239, %240 : vector<128x64xf32>
    %c0_80 = arith.constant 0 : index
    %c0_81 = arith.constant 0 : index
    %c0_82 = arith.constant 0 : index
    %242 = vector.load %arg8[%c0_80, %c0_81, %c0_82] : memref<2x64x32xf32, #tpu.memory_space<vmem>>, vector<1x64x32xf32>
    %243 = vector.shape_cast %242 : vector<1x64x32xf32> to vector<64x32xf32>
    %cst_83 = arith.constant dense<0.000000e+00> : vector<128x32xf32>
    %244 = tpu.matmul %241, %243, %cst_83 {dimension_numbers = #tpu.dot_dimension_numbers<[1], [0], [0], [1], [0, 0, 1, 1], [], []>} : vector<128x64xf32>, vector<64x32xf32>, vector<128x32xf32> -> vector<128x32xf32>
    %245 = vector.broadcast %57 : vector<1x32xf32> to vector<128x32xf32>
    %246 = arith.addf %244, %245 : vector<128x32xf32>
    %247 = arith.addf %246, %234 : vector<128x32xf32>
    %cst_84 = arith.constant dense<0.000000e+00> : vector<128xf32>
    %248 = vector.multi_reduction <add>, %247, %cst_84 [1] : vector<128x32xf32> to vector<128xf32>
    %249 = vector.shape_cast %248 : vector<128xf32> to vector<128x1xf32>
    %cst_85 = arith.constant 3.200000e+01 : f32
    %250 = vector.broadcast %cst_85 : f32 to vector<128x1xf32>
    %251 = arith.divf %249, %250 : vector<128x1xf32>
    %252 = vector.broadcast %251 : vector<128x1xf32> to vector<128x32xf32>
    %253 = arith.subf %247, %252 : vector<128x32xf32>
    %254 = arith.mulf %253, %253 : vector<128x32xf32>
    %cst_86 = arith.constant dense<0.000000e+00> : vector<128xf32>
    %255 = vector.multi_reduction <add>, %254, %cst_86 [1] : vector<128x32xf32> to vector<128xf32>
    %256 = vector.shape_cast %255 : vector<128xf32> to vector<128x1xf32>
    %cst_87 = arith.constant 3.200000e+01 : f32
    %257 = vector.broadcast %cst_87 : f32 to vector<128x1xf32>
    %258 = arith.divf %256, %257 : vector<128x1xf32>
    %cst_88 = arith.constant 9.99999996E-13 : f32
    %259 = vector.broadcast %cst_88 : f32 to vector<128x1xf32>
    %260 = arith.addf %258, %259 : vector<128x1xf32>
    %261 = math.rsqrt %260 : vector<128x1xf32>
    %262 = vector.broadcast %261 : vector<128x1xf32> to vector<128x32xf32>
    %263 = arith.mulf %253, %262 : vector<128x32xf32>
    %264 = vector.broadcast %59 : vector<1x32xf32> to vector<128x32xf32>
    %265 = arith.mulf %264, %263 : vector<128x32xf32>
    %266 = vector.broadcast %61 : vector<1x32xf32> to vector<128x32xf32>
    %267 = arith.addf %265, %266 : vector<128x32xf32>
    %c1_89 = arith.constant 1 : index
    %c0_90 = arith.constant 0 : index
    %c0_91 = arith.constant 0 : index
    %268 = vector.load %arg5[%c1_89, %c0_90, %c0_91] : memref<2x8x96xf32, #tpu.memory_space<vmem>>, vector<1x1x96xf32>
    %269 = vector.shape_cast %268 : vector<1x1x96xf32> to vector<1x96xf32>
    %c1_92 = arith.constant 1 : index
    %c1_93 = arith.constant 1 : index
    %c0_94 = arith.constant 0 : index
    %270 = vector.load %arg5[%c1_92, %c1_93, %c0_94] : memref<2x8x96xf32, #tpu.memory_space<vmem>>, vector<1x1x32xf32>
    %271 = vector.shape_cast %270 : vector<1x1x32xf32> to vector<1x32xf32>
    %c1_95 = arith.constant 1 : index
    %c2_96 = arith.constant 2 : index
    %c0_97 = arith.constant 0 : index
    %272 = vector.load %arg5[%c1_95, %c2_96, %c0_97] : memref<2x8x96xf32, #tpu.memory_space<vmem>>, vector<1x1x32xf32>
    %273 = vector.shape_cast %272 : vector<1x1x32xf32> to vector<1x32xf32>
    %c1_98 = arith.constant 1 : index
    %c3_99 = arith.constant 3 : index
    %c0_100 = arith.constant 0 : index
    %274 = vector.load %arg5[%c1_98, %c3_99, %c0_100] : memref<2x8x96xf32, #tpu.memory_space<vmem>>, vector<1x1x32xf32>
    %275 = vector.shape_cast %274 : vector<1x1x32xf32> to vector<1x32xf32>
    %c1_101 = arith.constant 1 : index
    %c4_102 = arith.constant 4 : index
    %c0_103 = arith.constant 0 : index
    %276 = vector.load %arg5[%c1_101, %c4_102, %c0_103] : memref<2x8x96xf32, #tpu.memory_space<vmem>>, vector<1x1x64xf32>
    %277 = vector.shape_cast %276 : vector<1x1x64xf32> to vector<1x64xf32>
    %c1_104 = arith.constant 1 : index
    %c5_105 = arith.constant 5 : index
    %c0_106 = arith.constant 0 : index
    %278 = vector.load %arg5[%c1_104, %c5_105, %c0_106] : memref<2x8x96xf32, #tpu.memory_space<vmem>>, vector<1x1x32xf32>
    %279 = vector.shape_cast %278 : vector<1x1x32xf32> to vector<1x32xf32>
    %c1_107 = arith.constant 1 : index
    %c6_108 = arith.constant 6 : index
    %c0_109 = arith.constant 0 : index
    %280 = vector.load %arg5[%c1_107, %c6_108, %c0_109] : memref<2x8x96xf32, #tpu.memory_space<vmem>>, vector<1x1x32xf32>
    %281 = vector.shape_cast %280 : vector<1x1x32xf32> to vector<1x32xf32>
    %c1_110 = arith.constant 1 : index
    %c7_111 = arith.constant 7 : index
    %c0_112 = arith.constant 0 : index
    %282 = vector.load %arg5[%c1_110, %c7_111, %c0_112] : memref<2x8x96xf32, #tpu.memory_space<vmem>>, vector<1x1x32xf32>
    %283 = vector.shape_cast %282 : vector<1x1x32xf32> to vector<1x32xf32>
    %c1_113 = arith.constant 1 : index
    %c0_114 = arith.constant 0 : index
    %c0_115 = arith.constant 0 : index
    %284 = vector.load %arg4[%c1_113, %c0_114, %c0_115] : memref<2x32x96xf32, #tpu.memory_space<vmem>>, vector<1x32x96xf32>
    %285 = vector.shape_cast %284 : vector<1x32x96xf32> to vector<32x96xf32>
    %cst_116 = arith.constant dense<0.000000e+00> : vector<128x96xf32>
    %286 = tpu.matmul %267, %285, %cst_116 {dimension_numbers = #tpu.dot_dimension_numbers<[1], [0], [0], [1], [0, 0, 1, 1], [], []>} : vector<128x32xf32>, vector<32x96xf32>, vector<128x96xf32> -> vector<128x96xf32>
    %287 = vector.broadcast %269 : vector<1x96xf32> to vector<128x96xf32>
    %288 = arith.addf %286, %287 : vector<128x96xf32>
    %289 = vector.extract_strided_slice %288 {offsets = [0, 0], sizes = [128, 32], strides = [1, 1]} : vector<128x96xf32> to vector<128x32xf32>
    %290 = vector.extract_strided_slice %288 {offsets = [0, 32], sizes = [128, 32], strides = [1, 1]} : vector<128x96xf32> to vector<128x32xf32>
    %291 = vector.extract_strided_slice %288 {offsets = [0, 64], sizes = [128, 32], strides = [1, 1]} : vector<128x96xf32> to vector<128x32xf32>
    %292 = vector.broadcast %24 : vector<1x32xf32> to vector<128x32xf32>
    %293 = arith.mulf %290, %292 : vector<128x32xf32>
    %294 = vector.broadcast %31 : vector<1x32xf32> to vector<128x32xf32>
    %295 = arith.mulf %290, %294 : vector<128x32xf32>
    %296 = vector.broadcast %38 : vector<1x32xf32> to vector<128x32xf32>
    %297 = arith.mulf %290, %296 : vector<128x32xf32>
    %298 = vector.broadcast %45 : vector<1x32xf32> to vector<128x32xf32>
    %299 = arith.mulf %290, %298 : vector<128x32xf32>
    %300 = vector.broadcast %24 : vector<1x32xf32> to vector<128x32xf32>
    %301 = arith.mulf %291, %300 : vector<128x32xf32>
    %302 = vector.broadcast %31 : vector<1x32xf32> to vector<128x32xf32>
    %303 = arith.mulf %291, %302 : vector<128x32xf32>
    %304 = vector.broadcast %38 : vector<1x32xf32> to vector<128x32xf32>
    %305 = arith.mulf %291, %304 : vector<128x32xf32>
    %306 = vector.broadcast %45 : vector<1x32xf32> to vector<128x32xf32>
    %307 = arith.mulf %291, %306 : vector<128x32xf32>
    %308 = vector.extract_strided_slice %293 {offsets = [0, 0], sizes = [64, 32], strides = [1, 1]} : vector<128x32xf32> to vector<64x32xf32>
    %309 = vector.extract_strided_slice %295 {offsets = [0, 0], sizes = [64, 32], strides = [1, 1]} : vector<128x32xf32> to vector<64x32xf32>
    %310 = vector.extract_strided_slice %297 {offsets = [0, 0], sizes = [64, 32], strides = [1, 1]} : vector<128x32xf32> to vector<64x32xf32>
    %311 = vector.extract_strided_slice %299 {offsets = [0, 0], sizes = [64, 32], strides = [1, 1]} : vector<128x32xf32> to vector<64x32xf32>
    %312 = tpu.concatenate %308, %309, %310, %311 in 0 : vector<64x32xf32>, vector<64x32xf32>, vector<64x32xf32>, vector<64x32xf32> -> vector<256x32xf32>
    %313 = vector.extract_strided_slice %301 {offsets = [0, 0], sizes = [64, 32], strides = [1, 1]} : vector<128x32xf32> to vector<64x32xf32>
    %314 = vector.extract_strided_slice %303 {offsets = [0, 0], sizes = [64, 32], strides = [1, 1]} : vector<128x32xf32> to vector<64x32xf32>
    %315 = vector.extract_strided_slice %305 {offsets = [0, 0], sizes = [64, 32], strides = [1, 1]} : vector<128x32xf32> to vector<64x32xf32>
    %316 = vector.extract_strided_slice %307 {offsets = [0, 0], sizes = [64, 32], strides = [1, 1]} : vector<128x32xf32> to vector<64x32xf32>
    %317 = tpu.concatenate %313, %314, %315, %316 in 0 : vector<64x32xf32>, vector<64x32xf32>, vector<64x32xf32>, vector<64x32xf32> -> vector<256x32xf32>
    %318 = vector.extract_strided_slice %289 {offsets = [0, 0], sizes = [64, 32], strides = [1, 1]} : vector<128x32xf32> to vector<64x32xf32>
    %cst_117 = arith.constant dense<0.000000e+00> : vector<64x256xf32>
    %319 = tpu.matmul %318, %312, %cst_117 {dimension_numbers = #tpu.dot_dimension_numbers<[1], [1], [0], [0], [0, 0, 1, 0], [], []>} : vector<64x32xf32>, vector<256x32xf32>, vector<64x256xf32> -> vector<64x256xf32>
    %320 = vector.extract_strided_slice %319 {offsets = [0, 0], sizes = [64, 64], strides = [1, 1]} : vector<64x256xf32> to vector<64x64xf32>
    %cst_118 = arith.constant dense<0xFF800000> : vector<64xf32>
    %321 = vector.multi_reduction <maximumf>, %320, %cst_118 [1] : vector<64x64xf32> to vector<64xf32>
    %322 = vector.shape_cast %321 : vector<64xf32> to vector<64x1xf32>
    %323 = vector.broadcast %322 : vector<64x1xf32> to vector<64x64xf32>
    %324 = arith.subf %320, %323 : vector<64x64xf32>
    %325 = math.exp %324 : vector<64x64xf32>
    %cst_119 = arith.constant dense<0.000000e+00> : vector<64xf32>
    %326 = vector.multi_reduction <add>, %325, %cst_119 [1] : vector<64x64xf32> to vector<64xf32>
    %327 = vector.shape_cast %326 : vector<64xf32> to vector<64x1xf32>
    %328 = tpu.reciprocal %327 {approx = true} : vector<64x1xf32> -> vector<64x1xf32>
    %329 = vector.broadcast %328 : vector<64x1xf32> to vector<64x64xf32>
    %330 = arith.mulf %325, %329 : vector<64x64xf32>
    %331 = vector.extract_strided_slice %319 {offsets = [0, 64], sizes = [64, 64], strides = [1, 1]} : vector<64x256xf32> to vector<64x64xf32>
    %cst_120 = arith.constant dense<0xFF800000> : vector<64xf32>
    %332 = vector.multi_reduction <maximumf>, %331, %cst_120 [1] : vector<64x64xf32> to vector<64xf32>
    %333 = vector.shape_cast %332 : vector<64xf32> to vector<64x1xf32>
    %334 = vector.broadcast %333 : vector<64x1xf32> to vector<64x64xf32>
    %335 = arith.subf %331, %334 : vector<64x64xf32>
    %336 = math.exp %335 : vector<64x64xf32>
    %cst_121 = arith.constant dense<0.000000e+00> : vector<64xf32>
    %337 = vector.multi_reduction <add>, %336, %cst_121 [1] : vector<64x64xf32> to vector<64xf32>
    %338 = vector.shape_cast %337 : vector<64xf32> to vector<64x1xf32>
    %339 = tpu.reciprocal %338 {approx = true} : vector<64x1xf32> -> vector<64x1xf32>
    %340 = vector.broadcast %339 : vector<64x1xf32> to vector<64x64xf32>
    %341 = arith.mulf %336, %340 : vector<64x64xf32>
    %342 = vector.extract_strided_slice %319 {offsets = [0, 128], sizes = [64, 64], strides = [1, 1]} : vector<64x256xf32> to vector<64x64xf32>
    %cst_122 = arith.constant dense<0xFF800000> : vector<64xf32>
    %343 = vector.multi_reduction <maximumf>, %342, %cst_122 [1] : vector<64x64xf32> to vector<64xf32>
    %344 = vector.shape_cast %343 : vector<64xf32> to vector<64x1xf32>
    %345 = vector.broadcast %344 : vector<64x1xf32> to vector<64x64xf32>
    %346 = arith.subf %342, %345 : vector<64x64xf32>
    %347 = math.exp %346 : vector<64x64xf32>
    %cst_123 = arith.constant dense<0.000000e+00> : vector<64xf32>
    %348 = vector.multi_reduction <add>, %347, %cst_123 [1] : vector<64x64xf32> to vector<64xf32>
    %349 = vector.shape_cast %348 : vector<64xf32> to vector<64x1xf32>
    %350 = tpu.reciprocal %349 {approx = true} : vector<64x1xf32> -> vector<64x1xf32>
    %351 = vector.broadcast %350 : vector<64x1xf32> to vector<64x64xf32>
    %352 = arith.mulf %347, %351 : vector<64x64xf32>
    %353 = vector.extract_strided_slice %319 {offsets = [0, 192], sizes = [64, 64], strides = [1, 1]} : vector<64x256xf32> to vector<64x64xf32>
    %cst_124 = arith.constant dense<0xFF800000> : vector<64xf32>
    %354 = vector.multi_reduction <maximumf>, %353, %cst_124 [1] : vector<64x64xf32> to vector<64xf32>
    %355 = vector.shape_cast %354 : vector<64xf32> to vector<64x1xf32>
    %356 = vector.broadcast %355 : vector<64x1xf32> to vector<64x64xf32>
    %357 = arith.subf %353, %356 : vector<64x64xf32>
    %358 = math.exp %357 : vector<64x64xf32>
    %cst_125 = arith.constant dense<0.000000e+00> : vector<64xf32>
    %359 = vector.multi_reduction <add>, %358, %cst_125 [1] : vector<64x64xf32> to vector<64xf32>
    %360 = vector.shape_cast %359 : vector<64xf32> to vector<64x1xf32>
    %361 = tpu.reciprocal %360 {approx = true} : vector<64x1xf32> -> vector<64x1xf32>
    %362 = vector.broadcast %361 : vector<64x1xf32> to vector<64x64xf32>
    %363 = arith.mulf %358, %362 : vector<64x64xf32>
    %364 = tpu.concatenate %330, %341 in 1 : vector<64x64xf32>, vector<64x64xf32> -> vector<64x128xf32>
    %365 = tpu.concatenate %352, %363 in 1 : vector<64x64xf32>, vector<64x64xf32> -> vector<64x128xf32>
    %366 = tpu.concatenate %364, %365 in 1 : vector<64x128xf32>, vector<64x128xf32> -> vector<64x256xf32>
    %cst_126 = arith.constant dense<0.000000e+00> : vector<64x32xf32>
    %367 = tpu.matmul %366, %317, %cst_126 {dimension_numbers = #tpu.dot_dimension_numbers<[1], [0], [0], [1], [0, 0, 1, 1], [], []>} : vector<64x256xf32>, vector<256x32xf32>, vector<64x32xf32> -> vector<64x32xf32>
    %c0_127 = arith.constant 0 : index
    %c0_128 = arith.constant 0 : index
    %368 = vector.load %arg15[%c0_127, %c0_128] : memref<128x32xf32, #tpu.memory_space<vmem>>, vector<64x32xf32>
    tpu.vector_store %arg15[%c0_127, %c0_128], %367 {strides = array<i32>} : memref<128x32xf32, #tpu.memory_space<vmem>>, vector<64x32xf32>,
    %369 = vector.extract_strided_slice %293 {offsets = [64, 0], sizes = [64, 32], strides = [1, 1]} : vector<128x32xf32> to vector<64x32xf32>
    %370 = vector.extract_strided_slice %295 {offsets = [64, 0], sizes = [64, 32], strides = [1, 1]} : vector<128x32xf32> to vector<64x32xf32>
    %371 = vector.extract_strided_slice %297 {offsets = [64, 0], sizes = [64, 32], strides = [1, 1]} : vector<128x32xf32> to vector<64x32xf32>
    %372 = vector.extract_strided_slice %299 {offsets = [64, 0], sizes = [64, 32], strides = [1, 1]} : vector<128x32xf32> to vector<64x32xf32>
    %373 = tpu.concatenate %369, %370, %371, %372 in 0 : vector<64x32xf32>, vector<64x32xf32>, vector<64x32xf32>, vector<64x32xf32> -> vector<256x32xf32>
    %374 = vector.extract_strided_slice %301 {offsets = [64, 0], sizes = [64, 32], strides = [1, 1]} : vector<128x32xf32> to vector<64x32xf32>
    %375 = vector.extract_strided_slice %303 {offsets = [64, 0], sizes = [64, 32], strides = [1, 1]} : vector<128x32xf32> to vector<64x32xf32>
    %376 = vector.extract_strided_slice %305 {offsets = [64, 0], sizes = [64, 32], strides = [1, 1]} : vector<128x32xf32> to vector<64x32xf32>
    %377 = vector.extract_strided_slice %307 {offsets = [64, 0], sizes = [64, 32], strides = [1, 1]} : vector<128x32xf32> to vector<64x32xf32>
    %378 = tpu.concatenate %374, %375, %376, %377 in 0 : vector<64x32xf32>, vector<64x32xf32>, vector<64x32xf32>, vector<64x32xf32> -> vector<256x32xf32>
    %379 = vector.extract_strided_slice %289 {offsets = [64, 0], sizes = [64, 32], strides = [1, 1]} : vector<128x32xf32> to vector<64x32xf32>
    %cst_129 = arith.constant dense<0.000000e+00> : vector<64x256xf32>
    %380 = tpu.matmul %379, %373, %cst_129 {dimension_numbers = #tpu.dot_dimension_numbers<[1], [1], [0], [0], [0, 0, 1, 0], [], []>} : vector<64x32xf32>, vector<256x32xf32>, vector<64x256xf32> -> vector<64x256xf32>
    %381 = vector.extract_strided_slice %380 {offsets = [0, 0], sizes = [64, 64], strides = [1, 1]} : vector<64x256xf32> to vector<64x64xf32>
    %cst_130 = arith.constant dense<0xFF800000> : vector<64xf32>
    %382 = vector.multi_reduction <maximumf>, %381, %cst_130 [1] : vector<64x64xf32> to vector<64xf32>
    %383 = vector.shape_cast %382 : vector<64xf32> to vector<64x1xf32>
    %384 = vector.broadcast %383 : vector<64x1xf32> to vector<64x64xf32>
    %385 = arith.subf %381, %384 : vector<64x64xf32>
    %386 = math.exp %385 : vector<64x64xf32>
    %cst_131 = arith.constant dense<0.000000e+00> : vector<64xf32>
    %387 = vector.multi_reduction <add>, %386, %cst_131 [1] : vector<64x64xf32> to vector<64xf32>
    %388 = vector.shape_cast %387 : vector<64xf32> to vector<64x1xf32>
    %389 = tpu.reciprocal %388 {approx = true} : vector<64x1xf32> -> vector<64x1xf32>
    %390 = vector.broadcast %389 : vector<64x1xf32> to vector<64x64xf32>
    %391 = arith.mulf %386, %390 : vector<64x64xf32>
    %392 = vector.extract_strided_slice %380 {offsets = [0, 64], sizes = [64, 64], strides = [1, 1]} : vector<64x256xf32> to vector<64x64xf32>
    %cst_132 = arith.constant dense<0xFF800000> : vector<64xf32>
    %393 = vector.multi_reduction <maximumf>, %392, %cst_132 [1] : vector<64x64xf32> to vector<64xf32>
    %394 = vector.shape_cast %393 : vector<64xf32> to vector<64x1xf32>
    %395 = vector.broadcast %394 : vector<64x1xf32> to vector<64x64xf32>
    %396 = arith.subf %392, %395 : vector<64x64xf32>
    %397 = math.exp %396 : vector<64x64xf32>
    %cst_133 = arith.constant dense<0.000000e+00> : vector<64xf32>
    %398 = vector.multi_reduction <add>, %397, %cst_133 [1] : vector<64x64xf32> to vector<64xf32>
    %399 = vector.shape_cast %398 : vector<64xf32> to vector<64x1xf32>
    %400 = tpu.reciprocal %399 {approx = true} : vector<64x1xf32> -> vector<64x1xf32>
    %401 = vector.broadcast %400 : vector<64x1xf32> to vector<64x64xf32>
    %402 = arith.mulf %397, %401 : vector<64x64xf32>
    %403 = vector.extract_strided_slice %380 {offsets = [0, 128], sizes = [64, 64], strides = [1, 1]} : vector<64x256xf32> to vector<64x64xf32>
    %cst_134 = arith.constant dense<0xFF800000> : vector<64xf32>
    %404 = vector.multi_reduction <maximumf>, %403, %cst_134 [1] : vector<64x64xf32> to vector<64xf32>
    %405 = vector.shape_cast %404 : vector<64xf32> to vector<64x1xf32>
    %406 = vector.broadcast %405 : vector<64x1xf32> to vector<64x64xf32>
    %407 = arith.subf %403, %406 : vector<64x64xf32>
    %408 = math.exp %407 : vector<64x64xf32>
    %cst_135 = arith.constant dense<0.000000e+00> : vector<64xf32>
    %409 = vector.multi_reduction <add>, %408, %cst_135 [1] : vector<64x64xf32> to vector<64xf32>
    %410 = vector.shape_cast %409 : vector<64xf32> to vector<64x1xf32>
    %411 = tpu.reciprocal %410 {approx = true} : vector<64x1xf32> -> vector<64x1xf32>
    %412 = vector.broadcast %411 : vector<64x1xf32> to vector<64x64xf32>
    %413 = arith.mulf %408, %412 : vector<64x64xf32>
    %414 = vector.extract_strided_slice %380 {offsets = [0, 192], sizes = [64, 64], strides = [1, 1]} : vector<64x256xf32> to vector<64x64xf32>
    %cst_136 = arith.constant dense<0xFF800000> : vector<64xf32>
    %415 = vector.multi_reduction <maximumf>, %414, %cst_136 [1] : vector<64x64xf32> to vector<64xf32>
    %416 = vector.shape_cast %415 : vector<64xf32> to vector<64x1xf32>
    %417 = vector.broadcast %416 : vector<64x1xf32> to vector<64x64xf32>
    %418 = arith.subf %414, %417 : vector<64x64xf32>
    %419 = math.exp %418 : vector<64x64xf32>
    %cst_137 = arith.constant dense<0.000000e+00> : vector<64xf32>
    %420 = vector.multi_reduction <add>, %419, %cst_137 [1] : vector<64x64xf32> to vector<64xf32>
    %421 = vector.shape_cast %420 : vector<64xf32> to vector<64x1xf32>
    %422 = tpu.reciprocal %421 {approx = true} : vector<64x1xf32> -> vector<64x1xf32>
    %423 = vector.broadcast %422 : vector<64x1xf32> to vector<64x64xf32>
    %424 = arith.mulf %419, %423 : vector<64x64xf32>
    %425 = tpu.concatenate %391, %402 in 1 : vector<64x64xf32>, vector<64x64xf32> -> vector<64x128xf32>
    %426 = tpu.concatenate %413, %424 in 1 : vector<64x64xf32>, vector<64x64xf32> -> vector<64x128xf32>
    %427 = tpu.concatenate %425, %426 in 1 : vector<64x128xf32>, vector<64x128xf32> -> vector<64x256xf32>
    %cst_138 = arith.constant dense<0.000000e+00> : vector<64x32xf32>
    %428 = tpu.matmul %427, %378, %cst_138 {dimension_numbers = #tpu.dot_dimension_numbers<[1], [0], [0], [1], [0, 0, 1, 1], [], []>} : vector<64x256xf32>, vector<256x32xf32>, vector<64x32xf32> -> vector<64x32xf32>
    %c64_139 = arith.constant 64 : index
    %c0_140 = arith.constant 0 : index
    %429 = vector.load %arg15[%c64_139, %c0_140] : memref<128x32xf32, #tpu.memory_space<vmem>>, vector<64x32xf32>
    tpu.vector_store %arg15[%c64_139, %c0_140], %428 {strides = array<i32>} : memref<128x32xf32, #tpu.memory_space<vmem>>, vector<64x32xf32>,
    %c0_141 = arith.constant 0 : index
    %c0_142 = arith.constant 0 : index
    %430 = vector.load %arg15[%c0_141, %c0_142] : memref<128x32xf32, #tpu.memory_space<vmem>>, vector<128x32xf32>
    %c1_143 = arith.constant 1 : index
    %c0_144 = arith.constant 0 : index
    %c0_145 = arith.constant 0 : index
    %431 = vector.load %arg6[%c1_143, %c0_144, %c0_145] : memref<2x32x32xf32, #tpu.memory_space<vmem>>, vector<1x32x32xf32>
    %432 = vector.shape_cast %431 : vector<1x32x32xf32> to vector<32x32xf32>
    %cst_146 = arith.constant dense<0.000000e+00> : vector<128x32xf32>
    %433 = tpu.matmul %430, %432, %cst_146 {dimension_numbers = #tpu.dot_dimension_numbers<[1], [0], [0], [1], [0, 0, 1, 1], [], []>} : vector<128x32xf32>, vector<32x32xf32>, vector<128x32xf32> -> vector<128x32xf32>
    %434 = vector.broadcast %271 : vector<1x32xf32> to vector<128x32xf32>
    %435 = arith.addf %433, %434 : vector<128x32xf32>
    %436 = arith.addf %435, %267 : vector<128x32xf32>
    %cst_147 = arith.constant dense<0.000000e+00> : vector<128xf32>
    %437 = vector.multi_reduction <add>, %436, %cst_147 [1] : vector<128x32xf32> to vector<128xf32>
    %438 = vector.shape_cast %437 : vector<128xf32> to vector<128x1xf32>
    %cst_148 = arith.constant 3.200000e+01 : f32
    %439 = vector.broadcast %cst_148 : f32 to vector<128x1xf32>
    %440 = arith.divf %438, %439 : vector<128x1xf32>
    %441 = vector.broadcast %440 : vector<128x1xf32> to vector<128x32xf32>
    %442 = arith.subf %436, %441 : vector<128x32xf32>
    %443 = arith.mulf %442, %442 : vector<128x32xf32>
    %cst_149 = arith.constant dense<0.000000e+00> : vector<128xf32>
    %444 = vector.multi_reduction <add>, %443, %cst_149 [1] : vector<128x32xf32> to vector<128xf32>
    %445 = vector.shape_cast %444 : vector<128xf32> to vector<128x1xf32>
    %cst_150 = arith.constant 3.200000e+01 : f32
    %446 = vector.broadcast %cst_150 : f32 to vector<128x1xf32>
    %447 = arith.divf %445, %446 : vector<128x1xf32>
    %cst_151 = arith.constant 9.99999996E-13 : f32
    %448 = vector.broadcast %cst_151 : f32 to vector<128x1xf32>
    %449 = arith.addf %447, %448 : vector<128x1xf32>
    %450 = math.rsqrt %449 : vector<128x1xf32>
    %451 = vector.broadcast %450 : vector<128x1xf32> to vector<128x32xf32>
    %452 = arith.mulf %442, %451 : vector<128x32xf32>
    %453 = vector.broadcast %273 : vector<1x32xf32> to vector<128x32xf32>
    %454 = arith.mulf %453, %452 : vector<128x32xf32>
    %455 = vector.broadcast %275 : vector<1x32xf32> to vector<128x32xf32>
    %456 = arith.addf %454, %455 : vector<128x32xf32>
    %c1_152 = arith.constant 1 : index
    %c0_153 = arith.constant 0 : index
    %c0_154 = arith.constant 0 : index
    %457 = vector.load %arg7[%c1_152, %c0_153, %c0_154] : memref<2x32x64xf32, #tpu.memory_space<vmem>>, vector<1x32x64xf32>
    %458 = vector.shape_cast %457 : vector<1x32x64xf32> to vector<32x64xf32>
    %cst_155 = arith.constant dense<0.000000e+00> : vector<128x64xf32>
    %459 = tpu.matmul %456, %458, %cst_155 {dimension_numbers = #tpu.dot_dimension_numbers<[1], [0], [0], [1], [0, 0, 1, 1], [], []>} : vector<128x32xf32>, vector<32x64xf32>, vector<128x64xf32> -> vector<128x64xf32>
    %460 = vector.broadcast %277 : vector<1x64xf32> to vector<128x64xf32>
    %461 = arith.addf %459, %460 : vector<128x64xf32>
    %cst_156 = arith.constant 0.000000e+00 : f32
    %462 = vector.broadcast %cst_156 : f32 to vector<128x64xf32>
    %463 = arith.maximumf %461, %462 : vector<128x64xf32>
    %c1_157 = arith.constant 1 : index
    %c0_158 = arith.constant 0 : index
    %c0_159 = arith.constant 0 : index
    %464 = vector.load %arg8[%c1_157, %c0_158, %c0_159] : memref<2x64x32xf32, #tpu.memory_space<vmem>>, vector<1x64x32xf32>
    %465 = vector.shape_cast %464 : vector<1x64x32xf32> to vector<64x32xf32>
    %cst_160 = arith.constant dense<0.000000e+00> : vector<128x32xf32>
    %466 = tpu.matmul %463, %465, %cst_160 {dimension_numbers = #tpu.dot_dimension_numbers<[1], [0], [0], [1], [0, 0, 1, 1], [], []>} : vector<128x64xf32>, vector<64x32xf32>, vector<128x32xf32> -> vector<128x32xf32>
    %467 = vector.broadcast %279 : vector<1x32xf32> to vector<128x32xf32>
    %468 = arith.addf %466, %467 : vector<128x32xf32>
    %469 = arith.addf %468, %456 : vector<128x32xf32>
    %cst_161 = arith.constant dense<0.000000e+00> : vector<128xf32>
    %470 = vector.multi_reduction <add>, %469, %cst_161 [1] : vector<128x32xf32> to vector<128xf32>
    %471 = vector.shape_cast %470 : vector<128xf32> to vector<128x1xf32>
    %cst_162 = arith.constant 3.200000e+01 : f32
    %472 = vector.broadcast %cst_162 : f32 to vector<128x1xf32>
    %473 = arith.divf %471, %472 : vector<128x1xf32>
    %474 = vector.broadcast %473 : vector<128x1xf32> to vector<128x32xf32>
    %475 = arith.subf %469, %474 : vector<128x32xf32>
    %476 = arith.mulf %475, %475 : vector<128x32xf32>
    %cst_163 = arith.constant dense<0.000000e+00> : vector<128xf32>
    %477 = vector.multi_reduction <add>, %476, %cst_163 [1] : vector<128x32xf32> to vector<128xf32>
    %478 = vector.shape_cast %477 : vector<128xf32> to vector<128x1xf32>
    %cst_164 = arith.constant 3.200000e+01 : f32
    %479 = vector.broadcast %cst_164 : f32 to vector<128x1xf32>
    %480 = arith.divf %478, %479 : vector<128x1xf32>
    %cst_165 = arith.constant 9.99999996E-13 : f32
    %481 = vector.broadcast %cst_165 : f32 to vector<128x1xf32>
    %482 = arith.addf %480, %481 : vector<128x1xf32>
    %483 = math.rsqrt %482 : vector<128x1xf32>
    %484 = vector.broadcast %483 : vector<128x1xf32> to vector<128x32xf32>
    %485 = arith.mulf %475, %484 : vector<128x32xf32>
    %486 = vector.broadcast %281 : vector<1x32xf32> to vector<128x32xf32>
    %487 = arith.mulf %486, %485 : vector<128x32xf32>
    %488 = vector.broadcast %283 : vector<1x32xf32> to vector<128x32xf32>
    %489 = arith.addf %487, %488 : vector<128x32xf32>
    %c0_166 = arith.constant 0 : index
    %c0_167 = arith.constant 0 : index
    %490 = vector.load %arg10[%c0_166, %c0_167] : memref<4x32xf32, #tpu.memory_space<vmem>>, vector<1x32xf32>
    %c1_168 = arith.constant 1 : index
    %c0_169 = arith.constant 0 : index
    %491 = vector.load %arg10[%c1_168, %c0_169] : memref<4x32xf32, #tpu.memory_space<vmem>>, vector<1x32xf32>
    %c2_170 = arith.constant 2 : index
    %c0_171 = arith.constant 0 : index
    %492 = vector.load %arg10[%c2_170, %c0_171] : memref<4x32xf32, #tpu.memory_space<vmem>>, vector<1x32xf32>
    %c3_172 = arith.constant 3 : index
    %c0_173 = arith.constant 0 : index
    %493 = vector.load %arg10[%c3_172, %c0_173] : memref<4x32xf32, #tpu.memory_space<vmem>>, vector<1x32xf32>
    %c0_174 = arith.constant 0 : index
    %c0_175 = arith.constant 0 : index
    %494 = vector.load %arg9[%c0_174, %c0_175] : memref<32x32xf32, #tpu.memory_space<vmem>>, vector<32x32xf32>
    %cst_176 = arith.constant dense<0.000000e+00> : vector<128x32xf32>
    %495 = tpu.matmul %489, %494, %cst_176 {dimension_numbers = #tpu.dot_dimension_numbers<[1], [0], [0], [1], [0, 0, 1, 1], [], []>} : vector<128x32xf32>, vector<32x32xf32>, vector<128x32xf32> -> vector<128x32xf32>
    %496 = vector.broadcast %490 : vector<1x32xf32> to vector<128x32xf32>
    %497 = arith.addf %495, %496 : vector<128x32xf32>
    %498 = math.tanh %497 : vector<128x32xf32>
    %499 = vector.extract_strided_slice %498 {offsets = [0, 0], sizes = [1, 32], strides = [1, 1]} : vector<128x32xf32> to vector<1x32xf32>
    %500 = vector.extract_strided_slice %498 {offsets = [1, 0], sizes = [1, 32], strides = [1, 1]} : vector<128x32xf32> to vector<1x32xf32>
    %501 = vector.extract_strided_slice %498 {offsets = [2, 0], sizes = [1, 32], strides = [1, 1]} : vector<128x32xf32> to vector<1x32xf32>
    %502 = vector.extract_strided_slice %498 {offsets = [3, 0], sizes = [1, 32], strides = [1, 1]} : vector<128x32xf32> to vector<1x32xf32>
    %503 = vector.extract_strided_slice %498 {offsets = [4, 0], sizes = [1, 32], strides = [1, 1]} : vector<128x32xf32> to vector<1x32xf32>
    %504 = vector.extract_strided_slice %498 {offsets = [5, 0], sizes = [1, 32], strides = [1, 1]} : vector<128x32xf32> to vector<1x32xf32>
    %505 = vector.extract_strided_slice %498 {offsets = [6, 0], sizes = [1, 32], strides = [1, 1]} : vector<128x32xf32> to vector<1x32xf32>
    %506 = vector.extract_strided_slice %498 {offsets = [7, 0], sizes = [1, 32], strides = [1, 1]} : vector<128x32xf32> to vector<1x32xf32>
    %507 = vector.extract_strided_slice %498 {offsets = [8, 0], sizes = [1, 32], strides = [1, 1]} : vector<128x32xf32> to vector<1x32xf32>
    %508 = vector.extract_strided_slice %498 {offsets = [9, 0], sizes = [1, 32], strides = [1, 1]} : vector<128x32xf32> to vector<1x32xf32>
    %509 = vector.extract_strided_slice %498 {offsets = [10, 0], sizes = [1, 32], strides = [1, 1]} : vector<128x32xf32> to vector<1x32xf32>
    %510 = vector.extract_strided_slice %498 {offsets = [11, 0], sizes = [1, 32], strides = [1, 1]} : vector<128x32xf32> to vector<1x32xf32>
    %511 = vector.extract_strided_slice %498 {offsets = [12, 0], sizes = [1, 32], strides = [1, 1]} : vector<128x32xf32> to vector<1x32xf32>
    %512 = vector.extract_strided_slice %498 {offsets = [13, 0], sizes = [1, 32], strides = [1, 1]} : vector<128x32xf32> to vector<1x32xf32>
    %513 = vector.extract_strided_slice %498 {offsets = [14, 0], sizes = [1, 32], strides = [1, 1]} : vector<128x32xf32> to vector<1x32xf32>
    %514 = vector.extract_strided_slice %498 {offsets = [15, 0], sizes = [1, 32], strides = [1, 1]} : vector<128x32xf32> to vector<1x32xf32>
    %515 = vector.extract_strided_slice %498 {offsets = [16, 0], sizes = [1, 32], strides = [1, 1]} : vector<128x32xf32> to vector<1x32xf32>
    %516 = vector.extract_strided_slice %498 {offsets = [17, 0], sizes = [1, 32], strides = [1, 1]} : vector<128x32xf32> to vector<1x32xf32>
    %517 = vector.extract_strided_slice %498 {offsets = [18, 0], sizes = [1, 32], strides = [1, 1]} : vector<128x32xf32> to vector<1x32xf32>
    %518 = vector.extract_strided_slice %498 {offsets = [19, 0], sizes = [1, 32], strides = [1, 1]} : vector<128x32xf32> to vector<1x32xf32>
    %519 = vector.extract_strided_slice %498 {offsets = [20, 0], sizes = [1, 32], strides = [1, 1]} : vector<128x32xf32> to vector<1x32xf32>
    %520 = vector.extract_strided_slice %498 {offsets = [21, 0], sizes = [1, 32], strides = [1, 1]} : vector<128x32xf32> to vector<1x32xf32>
    %521 = vector.extract_strided_slice %498 {offsets = [22, 0], sizes = [1, 32], strides = [1, 1]} : vector<128x32xf32> to vector<1x32xf32>
    %522 = vector.extract_strided_slice %498 {offsets = [23, 0], sizes = [1, 32], strides = [1, 1]} : vector<128x32xf32> to vector<1x32xf32>
    %523 = vector.extract_strided_slice %498 {offsets = [24, 0], sizes = [1, 32], strides = [1, 1]} : vector<128x32xf32> to vector<1x32xf32>
    %524 = vector.extract_strided_slice %498 {offsets = [25, 0], sizes = [1, 32], strides = [1, 1]} : vector<128x32xf32> to vector<1x32xf32>
    %525 = vector.extract_strided_slice %498 {offsets = [26, 0], sizes = [1, 32], strides = [1, 1]} : vector<128x32xf32> to vector<1x32xf32>
    %526 = vector.extract_strided_slice %498 {offsets = [27, 0], sizes = [1, 32], strides = [1, 1]} : vector<128x32xf32> to vector<1x32xf32>
    %527 = vector.extract_strided_slice %498 {offsets = [28, 0], sizes = [1, 32], strides = [1, 1]} : vector<128x32xf32> to vector<1x32xf32>
    %528 = vector.extract_strided_slice %498 {offsets = [29, 0], sizes = [1, 32], strides = [1, 1]} : vector<128x32xf32> to vector<1x32xf32>
    %529 = vector.extract_strided_slice %498 {offsets = [30, 0], sizes = [1, 32], strides = [1, 1]} : vector<128x32xf32> to vector<1x32xf32>
    %530 = vector.extract_strided_slice %498 {offsets = [31, 0], sizes = [1, 32], strides = [1, 1]} : vector<128x32xf32> to vector<1x32xf32>
    %531 = vector.extract_strided_slice %498 {offsets = [32, 0], sizes = [1, 32], strides = [1, 1]} : vector<128x32xf32> to vector<1x32xf32>
    %532 = vector.extract_strided_slice %498 {offsets = [33, 0], sizes = [1, 32], strides = [1, 1]} : vector<128x32xf32> to vector<1x32xf32>
    %533 = vector.extract_strided_slice %498 {offsets = [34, 0], sizes = [1, 32], strides = [1, 1]} : vector<128x32xf32> to vector<1x32xf32>
    %534 = vector.extract_strided_slice %498 {offsets = [35, 0], sizes = [1, 32], strides = [1, 1]} : vector<128x32xf32> to vector<1x32xf32>
    %535 = vector.extract_strided_slice %498 {offsets = [36, 0], sizes = [1, 32], strides = [1, 1]} : vector<128x32xf32> to vector<1x32xf32>
    %536 = vector.extract_strided_slice %498 {offsets = [37, 0], sizes = [1, 32], strides = [1, 1]} : vector<128x32xf32> to vector<1x32xf32>
    %537 = vector.extract_strided_slice %498 {offsets = [38, 0], sizes = [1, 32], strides = [1, 1]} : vector<128x32xf32> to vector<1x32xf32>
    %538 = vector.extract_strided_slice %498 {offsets = [39, 0], sizes = [1, 32], strides = [1, 1]} : vector<128x32xf32> to vector<1x32xf32>
    %539 = vector.extract_strided_slice %498 {offsets = [40, 0], sizes = [1, 32], strides = [1, 1]} : vector<128x32xf32> to vector<1x32xf32>
    %540 = vector.extract_strided_slice %498 {offsets = [41, 0], sizes = [1, 32], strides = [1, 1]} : vector<128x32xf32> to vector<1x32xf32>
    %541 = vector.extract_strided_slice %498 {offsets = [42, 0], sizes = [1, 32], strides = [1, 1]} : vector<128x32xf32> to vector<1x32xf32>
    %542 = vector.extract_strided_slice %498 {offsets = [43, 0], sizes = [1, 32], strides = [1, 1]} : vector<128x32xf32> to vector<1x32xf32>
    %543 = vector.extract_strided_slice %498 {offsets = [44, 0], sizes = [1, 32], strides = [1, 1]} : vector<128x32xf32> to vector<1x32xf32>
    %544 = vector.extract_strided_slice %498 {offsets = [45, 0], sizes = [1, 32], strides = [1, 1]} : vector<128x32xf32> to vector<1x32xf32>
    %545 = vector.extract_strided_slice %498 {offsets = [46, 0], sizes = [1, 32], strides = [1, 1]} : vector<128x32xf32> to vector<1x32xf32>
    %546 = vector.extract_strided_slice %498 {offsets = [47, 0], sizes = [1, 32], strides = [1, 1]} : vector<128x32xf32> to vector<1x32xf32>
    %547 = vector.extract_strided_slice %498 {offsets = [48, 0], sizes = [1, 32], strides = [1, 1]} : vector<128x32xf32> to vector<1x32xf32>
    %548 = vector.extract_strided_slice %498 {offsets = [49, 0], sizes = [1, 32], strides = [1, 1]} : vector<128x32xf32> to vector<1x32xf32>
    %549 = vector.extract_strided_slice %498 {offsets = [50, 0], sizes = [1, 32], strides = [1, 1]} : vector<128x32xf32> to vector<1x32xf32>
    %550 = vector.extract_strided_slice %498 {offsets = [51, 0], sizes = [1, 32], strides = [1, 1]} : vector<128x32xf32> to vector<1x32xf32>
    %551 = vector.extract_strided_slice %498 {offsets = [52, 0], sizes = [1, 32], strides = [1, 1]} : vector<128x32xf32> to vector<1x32xf32>
    %552 = vector.extract_strided_slice %498 {offsets = [53, 0], sizes = [1, 32], strides = [1, 1]} : vector<128x32xf32> to vector<1x32xf32>
    %553 = vector.extract_strided_slice %498 {offsets = [54, 0], sizes = [1, 32], strides = [1, 1]} : vector<128x32xf32> to vector<1x32xf32>
    %554 = vector.extract_strided_slice %498 {offsets = [55, 0], sizes = [1, 32], strides = [1, 1]} : vector<128x32xf32> to vector<1x32xf32>
    %555 = vector.extract_strided_slice %498 {offsets = [56, 0], sizes = [1, 32], strides = [1, 1]} : vector<128x32xf32> to vector<1x32xf32>
    %556 = vector.extract_strided_slice %498 {offsets = [57, 0], sizes = [1, 32], strides = [1, 1]} : vector<128x32xf32> to vector<1x32xf32>
    %557 = vector.extract_strided_slice %498 {offsets = [58, 0], sizes = [1, 32], strides = [1, 1]} : vector<128x32xf32> to vector<1x32xf32>
    %558 = vector.extract_strided_slice %498 {offsets = [59, 0], sizes = [1, 32], strides = [1, 1]} : vector<128x32xf32> to vector<1x32xf32>
    %559 = vector.extract_strided_slice %498 {offsets = [60, 0], sizes = [1, 32], strides = [1, 1]} : vector<128x32xf32> to vector<1x32xf32>
    %560 = vector.extract_strided_slice %498 {offsets = [61, 0], sizes = [1, 32], strides = [1, 1]} : vector<128x32xf32> to vector<1x32xf32>
    %561 = vector.extract_strided_slice %498 {offsets = [62, 0], sizes = [1, 32], strides = [1, 1]} : vector<128x32xf32> to vector<1x32xf32>
    %562 = vector.extract_strided_slice %498 {offsets = [63, 0], sizes = [1, 32], strides = [1, 1]} : vector<128x32xf32> to vector<1x32xf32>
    %563 = tpu.concatenate %499, %500 in 1 : vector<1x32xf32>, vector<1x32xf32> -> vector<1x64xf32>
    %564 = tpu.concatenate %501, %502 in 1 : vector<1x32xf32>, vector<1x32xf32> -> vector<1x64xf32>
    %565 = tpu.concatenate %503, %504 in 1 : vector<1x32xf32>, vector<1x32xf32> -> vector<1x64xf32>
    %566 = tpu.concatenate %505, %506 in 1 : vector<1x32xf32>, vector<1x32xf32> -> vector<1x64xf32>
    %567 = tpu.concatenate %507, %508 in 1 : vector<1x32xf32>, vector<1x32xf32> -> vector<1x64xf32>
    %568 = tpu.concatenate %509, %510 in 1 : vector<1x32xf32>, vector<1x32xf32> -> vector<1x64xf32>
    %569 = tpu.concatenate %511, %512 in 1 : vector<1x32xf32>, vector<1x32xf32> -> vector<1x64xf32>
    %570 = tpu.concatenate %513, %514 in 1 : vector<1x32xf32>, vector<1x32xf32> -> vector<1x64xf32>
    %571 = tpu.concatenate %515, %516 in 1 : vector<1x32xf32>, vector<1x32xf32> -> vector<1x64xf32>
    %572 = tpu.concatenate %517, %518 in 1 : vector<1x32xf32>, vector<1x32xf32> -> vector<1x64xf32>
    %573 = tpu.concatenate %519, %520 in 1 : vector<1x32xf32>, vector<1x32xf32> -> vector<1x64xf32>
    %574 = tpu.concatenate %521, %522 in 1 : vector<1x32xf32>, vector<1x32xf32> -> vector<1x64xf32>
    %575 = tpu.concatenate %523, %524 in 1 : vector<1x32xf32>, vector<1x32xf32> -> vector<1x64xf32>
    %576 = tpu.concatenate %525, %526 in 1 : vector<1x32xf32>, vector<1x32xf32> -> vector<1x64xf32>
    %577 = tpu.concatenate %527, %528 in 1 : vector<1x32xf32>, vector<1x32xf32> -> vector<1x64xf32>
    %578 = tpu.concatenate %529, %530 in 1 : vector<1x32xf32>, vector<1x32xf32> -> vector<1x64xf32>
    %579 = tpu.concatenate %531, %532 in 1 : vector<1x32xf32>, vector<1x32xf32> -> vector<1x64xf32>
    %580 = tpu.concatenate %533, %534 in 1 : vector<1x32xf32>, vector<1x32xf32> -> vector<1x64xf32>
    %581 = tpu.concatenate %535, %536 in 1 : vector<1x32xf32>, vector<1x32xf32> -> vector<1x64xf32>
    %582 = tpu.concatenate %537, %538 in 1 : vector<1x32xf32>, vector<1x32xf32> -> vector<1x64xf32>
    %583 = tpu.concatenate %539, %540 in 1 : vector<1x32xf32>, vector<1x32xf32> -> vector<1x64xf32>
    %584 = tpu.concatenate %541, %542 in 1 : vector<1x32xf32>, vector<1x32xf32> -> vector<1x64xf32>
    %585 = tpu.concatenate %543, %544 in 1 : vector<1x32xf32>, vector<1x32xf32> -> vector<1x64xf32>
    %586 = tpu.concatenate %545, %546 in 1 : vector<1x32xf32>, vector<1x32xf32> -> vector<1x64xf32>
    %587 = tpu.concatenate %547, %548 in 1 : vector<1x32xf32>, vector<1x32xf32> -> vector<1x64xf32>
    %588 = tpu.concatenate %549, %550 in 1 : vector<1x32xf32>, vector<1x32xf32> -> vector<1x64xf32>
    %589 = tpu.concatenate %551, %552 in 1 : vector<1x32xf32>, vector<1x32xf32> -> vector<1x64xf32>
    %590 = tpu.concatenate %553, %554 in 1 : vector<1x32xf32>, vector<1x32xf32> -> vector<1x64xf32>
    %591 = tpu.concatenate %555, %556 in 1 : vector<1x32xf32>, vector<1x32xf32> -> vector<1x64xf32>
    %592 = tpu.concatenate %557, %558 in 1 : vector<1x32xf32>, vector<1x32xf32> -> vector<1x64xf32>
    %593 = tpu.concatenate %559, %560 in 1 : vector<1x32xf32>, vector<1x32xf32> -> vector<1x64xf32>
    %594 = tpu.concatenate %561, %562 in 1 : vector<1x32xf32>, vector<1x32xf32> -> vector<1x64xf32>
    %595 = tpu.concatenate %563, %564 in 1 : vector<1x64xf32>, vector<1x64xf32> -> vector<1x128xf32>
    %596 = tpu.concatenate %565, %566 in 1 : vector<1x64xf32>, vector<1x64xf32> -> vector<1x128xf32>
    %597 = tpu.concatenate %567, %568 in 1 : vector<1x64xf32>, vector<1x64xf32> -> vector<1x128xf32>
    %598 = tpu.concatenate %569, %570 in 1 : vector<1x64xf32>, vector<1x64xf32> -> vector<1x128xf32>
    %599 = tpu.concatenate %571, %572 in 1 : vector<1x64xf32>, vector<1x64xf32> -> vector<1x128xf32>
    %600 = tpu.concatenate %573, %574 in 1 : vector<1x64xf32>, vector<1x64xf32> -> vector<1x128xf32>
    %601 = tpu.concatenate %575, %576 in 1 : vector<1x64xf32>, vector<1x64xf32> -> vector<1x128xf32>
    %602 = tpu.concatenate %577, %578 in 1 : vector<1x64xf32>, vector<1x64xf32> -> vector<1x128xf32>
    %603 = tpu.concatenate %579, %580 in 1 : vector<1x64xf32>, vector<1x64xf32> -> vector<1x128xf32>
    %604 = tpu.concatenate %581, %582 in 1 : vector<1x64xf32>, vector<1x64xf32> -> vector<1x128xf32>
    %605 = tpu.concatenate %583, %584 in 1 : vector<1x64xf32>, vector<1x64xf32> -> vector<1x128xf32>
    %606 = tpu.concatenate %585, %586 in 1 : vector<1x64xf32>, vector<1x64xf32> -> vector<1x128xf32>
    %607 = tpu.concatenate %587, %588 in 1 : vector<1x64xf32>, vector<1x64xf32> -> vector<1x128xf32>
    %608 = tpu.concatenate %589, %590 in 1 : vector<1x64xf32>, vector<1x64xf32> -> vector<1x128xf32>
    %609 = tpu.concatenate %591, %592 in 1 : vector<1x64xf32>, vector<1x64xf32> -> vector<1x128xf32>
    %610 = tpu.concatenate %593, %594 in 1 : vector<1x64xf32>, vector<1x64xf32> -> vector<1x128xf32>
    %611 = tpu.concatenate %595, %596 in 1 : vector<1x128xf32>, vector<1x128xf32> -> vector<1x256xf32>
    %612 = tpu.concatenate %597, %598 in 1 : vector<1x128xf32>, vector<1x128xf32> -> vector<1x256xf32>
    %613 = tpu.concatenate %599, %600 in 1 : vector<1x128xf32>, vector<1x128xf32> -> vector<1x256xf32>
    %614 = tpu.concatenate %601, %602 in 1 : vector<1x128xf32>, vector<1x128xf32> -> vector<1x256xf32>
    %615 = tpu.concatenate %603, %604 in 1 : vector<1x128xf32>, vector<1x128xf32> -> vector<1x256xf32>
    %616 = tpu.concatenate %605, %606 in 1 : vector<1x128xf32>, vector<1x128xf32> -> vector<1x256xf32>
    %617 = tpu.concatenate %607, %608 in 1 : vector<1x128xf32>, vector<1x128xf32> -> vector<1x256xf32>
    %618 = tpu.concatenate %609, %610 in 1 : vector<1x128xf32>, vector<1x128xf32> -> vector<1x256xf32>
    %619 = tpu.concatenate %611, %612 in 1 : vector<1x256xf32>, vector<1x256xf32> -> vector<1x512xf32>
    %620 = tpu.concatenate %613, %614 in 1 : vector<1x256xf32>, vector<1x256xf32> -> vector<1x512xf32>
    %621 = tpu.concatenate %615, %616 in 1 : vector<1x256xf32>, vector<1x256xf32> -> vector<1x512xf32>
    %622 = tpu.concatenate %617, %618 in 1 : vector<1x256xf32>, vector<1x256xf32> -> vector<1x512xf32>
    %623 = tpu.concatenate %619, %620 in 1 : vector<1x512xf32>, vector<1x512xf32> -> vector<1x1024xf32>
    %624 = tpu.concatenate %621, %622 in 1 : vector<1x512xf32>, vector<1x512xf32> -> vector<1x1024xf32>
    %625 = tpu.concatenate %623, %624 in 1 : vector<1x1024xf32>, vector<1x1024xf32> -> vector<1x2048xf32>
    %626 = vector.extract_strided_slice %498 {offsets = [64, 0], sizes = [1, 32], strides = [1, 1]} : vector<128x32xf32> to vector<1x32xf32>
    %627 = vector.extract_strided_slice %498 {offsets = [65, 0], sizes = [1, 32], strides = [1, 1]} : vector<128x32xf32> to vector<1x32xf32>
    %628 = vector.extract_strided_slice %498 {offsets = [66, 0], sizes = [1, 32], strides = [1, 1]} : vector<128x32xf32> to vector<1x32xf32>
    %629 = vector.extract_strided_slice %498 {offsets = [67, 0], sizes = [1, 32], strides = [1, 1]} : vector<128x32xf32> to vector<1x32xf32>
    %630 = vector.extract_strided_slice %498 {offsets = [68, 0], sizes = [1, 32], strides = [1, 1]} : vector<128x32xf32> to vector<1x32xf32>
    %631 = vector.extract_strided_slice %498 {offsets = [69, 0], sizes = [1, 32], strides = [1, 1]} : vector<128x32xf32> to vector<1x32xf32>
    %632 = vector.extract_strided_slice %498 {offsets = [70, 0], sizes = [1, 32], strides = [1, 1]} : vector<128x32xf32> to vector<1x32xf32>
    %633 = vector.extract_strided_slice %498 {offsets = [71, 0], sizes = [1, 32], strides = [1, 1]} : vector<128x32xf32> to vector<1x32xf32>
    %634 = vector.extract_strided_slice %498 {offsets = [72, 0], sizes = [1, 32], strides = [1, 1]} : vector<128x32xf32> to vector<1x32xf32>
    %635 = vector.extract_strided_slice %498 {offsets = [73, 0], sizes = [1, 32], strides = [1, 1]} : vector<128x32xf32> to vector<1x32xf32>
    %636 = vector.extract_strided_slice %498 {offsets = [74, 0], sizes = [1, 32], strides = [1, 1]} : vector<128x32xf32> to vector<1x32xf32>
    %637 = vector.extract_strided_slice %498 {offsets = [75, 0], sizes = [1, 32], strides = [1, 1]} : vector<128x32xf32> to vector<1x32xf32>
    %638 = vector.extract_strided_slice %498 {offsets = [76, 0], sizes = [1, 32], strides = [1, 1]} : vector<128x32xf32> to vector<1x32xf32>
    %639 = vector.extract_strided_slice %498 {offsets = [77, 0], sizes = [1, 32], strides = [1, 1]} : vector<128x32xf32> to vector<1x32xf32>
    %640 = vector.extract_strided_slice %498 {offsets = [78, 0], sizes = [1, 32], strides = [1, 1]} : vector<128x32xf32> to vector<1x32xf32>
    %641 = vector.extract_strided_slice %498 {offsets = [79, 0], sizes = [1, 32], strides = [1, 1]} : vector<128x32xf32> to vector<1x32xf32>
    %642 = vector.extract_strided_slice %498 {offsets = [80, 0], sizes = [1, 32], strides = [1, 1]} : vector<128x32xf32> to vector<1x32xf32>
    %643 = vector.extract_strided_slice %498 {offsets = [81, 0], sizes = [1, 32], strides = [1, 1]} : vector<128x32xf32> to vector<1x32xf32>
    %644 = vector.extract_strided_slice %498 {offsets = [82, 0], sizes = [1, 32], strides = [1, 1]} : vector<128x32xf32> to vector<1x32xf32>
    %645 = vector.extract_strided_slice %498 {offsets = [83, 0], sizes = [1, 32], strides = [1, 1]} : vector<128x32xf32> to vector<1x32xf32>
    %646 = vector.extract_strided_slice %498 {offsets = [84, 0], sizes = [1, 32], strides = [1, 1]} : vector<128x32xf32> to vector<1x32xf32>
    %647 = vector.extract_strided_slice %498 {offsets = [85, 0], sizes = [1, 32], strides = [1, 1]} : vector<128x32xf32> to vector<1x32xf32>
    %648 = vector.extract_strided_slice %498 {offsets = [86, 0], sizes = [1, 32], strides = [1, 1]} : vector<128x32xf32> to vector<1x32xf32>
    %649 = vector.extract_strided_slice %498 {offsets = [87, 0], sizes = [1, 32], strides = [1, 1]} : vector<128x32xf32> to vector<1x32xf32>
    %650 = vector.extract_strided_slice %498 {offsets = [88, 0], sizes = [1, 32], strides = [1, 1]} : vector<128x32xf32> to vector<1x32xf32>
    %651 = vector.extract_strided_slice %498 {offsets = [89, 0], sizes = [1, 32], strides = [1, 1]} : vector<128x32xf32> to vector<1x32xf32>
    %652 = vector.extract_strided_slice %498 {offsets = [90, 0], sizes = [1, 32], strides = [1, 1]} : vector<128x32xf32> to vector<1x32xf32>
    %653 = vector.extract_strided_slice %498 {offsets = [91, 0], sizes = [1, 32], strides = [1, 1]} : vector<128x32xf32> to vector<1x32xf32>
    %654 = vector.extract_strided_slice %498 {offsets = [92, 0], sizes = [1, 32], strides = [1, 1]} : vector<128x32xf32> to vector<1x32xf32>
    %655 = vector.extract_strided_slice %498 {offsets = [93, 0], sizes = [1, 32], strides = [1, 1]} : vector<128x32xf32> to vector<1x32xf32>
    %656 = vector.extract_strided_slice %498 {offsets = [94, 0], sizes = [1, 32], strides = [1, 1]} : vector<128x32xf32> to vector<1x32xf32>
    %657 = vector.extract_strided_slice %498 {offsets = [95, 0], sizes = [1, 32], strides = [1, 1]} : vector<128x32xf32> to vector<1x32xf32>
    %658 = vector.extract_strided_slice %498 {offsets = [96, 0], sizes = [1, 32], strides = [1, 1]} : vector<128x32xf32> to vector<1x32xf32>
    %659 = vector.extract_strided_slice %498 {offsets = [97, 0], sizes = [1, 32], strides = [1, 1]} : vector<128x32xf32> to vector<1x32xf32>
    %660 = vector.extract_strided_slice %498 {offsets = [98, 0], sizes = [1, 32], strides = [1, 1]} : vector<128x32xf32> to vector<1x32xf32>
    %661 = vector.extract_strided_slice %498 {offsets = [99, 0], sizes = [1, 32], strides = [1, 1]} : vector<128x32xf32> to vector<1x32xf32>
    %662 = vector.extract_strided_slice %498 {offsets = [100, 0], sizes = [1, 32], strides = [1, 1]} : vector<128x32xf32> to vector<1x32xf32>
    %663 = vector.extract_strided_slice %498 {offsets = [101, 0], sizes = [1, 32], strides = [1, 1]} : vector<128x32xf32> to vector<1x32xf32>
    %664 = vector.extract_strided_slice %498 {offsets = [102, 0], sizes = [1, 32], strides = [1, 1]} : vector<128x32xf32> to vector<1x32xf32>
    %665 = vector.extract_strided_slice %498 {offsets = [103, 0], sizes = [1, 32], strides = [1, 1]} : vector<128x32xf32> to vector<1x32xf32>
    %666 = vector.extract_strided_slice %498 {offsets = [104, 0], sizes = [1, 32], strides = [1, 1]} : vector<128x32xf32> to vector<1x32xf32>
    %667 = vector.extract_strided_slice %498 {offsets = [105, 0], sizes = [1, 32], strides = [1, 1]} : vector<128x32xf32> to vector<1x32xf32>
    %668 = vector.extract_strided_slice %498 {offsets = [106, 0], sizes = [1, 32], strides = [1, 1]} : vector<128x32xf32> to vector<1x32xf32>
    %669 = vector.extract_strided_slice %498 {offsets = [107, 0], sizes = [1, 32], strides = [1, 1]} : vector<128x32xf32> to vector<1x32xf32>
    %670 = vector.extract_strided_slice %498 {offsets = [108, 0], sizes = [1, 32], strides = [1, 1]} : vector<128x32xf32> to vector<1x32xf32>
    %671 = vector.extract_strided_slice %498 {offsets = [109, 0], sizes = [1, 32], strides = [1, 1]} : vector<128x32xf32> to vector<1x32xf32>
    %672 = vector.extract_strided_slice %498 {offsets = [110, 0], sizes = [1, 32], strides = [1, 1]} : vector<128x32xf32> to vector<1x32xf32>
    %673 = vector.extract_strided_slice %498 {offsets = [111, 0], sizes = [1, 32], strides = [1, 1]} : vector<128x32xf32> to vector<1x32xf32>
    %674 = vector.extract_strided_slice %498 {offsets = [112, 0], sizes = [1, 32], strides = [1, 1]} : vector<128x32xf32> to vector<1x32xf32>
    %675 = vector.extract_strided_slice %498 {offsets = [113, 0], sizes = [1, 32], strides = [1, 1]} : vector<128x32xf32> to vector<1x32xf32>
    %676 = vector.extract_strided_slice %498 {offsets = [114, 0], sizes = [1, 32], strides = [1, 1]} : vector<128x32xf32> to vector<1x32xf32>
    %677 = vector.extract_strided_slice %498 {offsets = [115, 0], sizes = [1, 32], strides = [1, 1]} : vector<128x32xf32> to vector<1x32xf32>
    %678 = vector.extract_strided_slice %498 {offsets = [116, 0], sizes = [1, 32], strides = [1, 1]} : vector<128x32xf32> to vector<1x32xf32>
    %679 = vector.extract_strided_slice %498 {offsets = [117, 0], sizes = [1, 32], strides = [1, 1]} : vector<128x32xf32> to vector<1x32xf32>
    %680 = vector.extract_strided_slice %498 {offsets = [118, 0], sizes = [1, 32], strides = [1, 1]} : vector<128x32xf32> to vector<1x32xf32>
    %681 = vector.extract_strided_slice %498 {offsets = [119, 0], sizes = [1, 32], strides = [1, 1]} : vector<128x32xf32> to vector<1x32xf32>
    %682 = vector.extract_strided_slice %498 {offsets = [120, 0], sizes = [1, 32], strides = [1, 1]} : vector<128x32xf32> to vector<1x32xf32>
    %683 = vector.extract_strided_slice %498 {offsets = [121, 0], sizes = [1, 32], strides = [1, 1]} : vector<128x32xf32> to vector<1x32xf32>
    %684 = vector.extract_strided_slice %498 {offsets = [122, 0], sizes = [1, 32], strides = [1, 1]} : vector<128x32xf32> to vector<1x32xf32>
    %685 = vector.extract_strided_slice %498 {offsets = [123, 0], sizes = [1, 32], strides = [1, 1]} : vector<128x32xf32> to vector<1x32xf32>
    %686 = vector.extract_strided_slice %498 {offsets = [124, 0], sizes = [1, 32], strides = [1, 1]} : vector<128x32xf32> to vector<1x32xf32>
    %687 = vector.extract_strided_slice %498 {offsets = [125, 0], sizes = [1, 32], strides = [1, 1]} : vector<128x32xf32> to vector<1x32xf32>
    %688 = vector.extract_strided_slice %498 {offsets = [126, 0], sizes = [1, 32], strides = [1, 1]} : vector<128x32xf32> to vector<1x32xf32>
    %689 = vector.extract_strided_slice %498 {offsets = [127, 0], sizes = [1, 32], strides = [1, 1]} : vector<128x32xf32> to vector<1x32xf32>
    %690 = tpu.concatenate %626, %627 in 1 : vector<1x32xf32>, vector<1x32xf32> -> vector<1x64xf32>
    %691 = tpu.concatenate %628, %629 in 1 : vector<1x32xf32>, vector<1x32xf32> -> vector<1x64xf32>
    %692 = tpu.concatenate %630, %631 in 1 : vector<1x32xf32>, vector<1x32xf32> -> vector<1x64xf32>
    %693 = tpu.concatenate %632, %633 in 1 : vector<1x32xf32>, vector<1x32xf32> -> vector<1x64xf32>
    %694 = tpu.concatenate %634, %635 in 1 : vector<1x32xf32>, vector<1x32xf32> -> vector<1x64xf32>
    %695 = tpu.concatenate %636, %637 in 1 : vector<1x32xf32>, vector<1x32xf32> -> vector<1x64xf32>
    %696 = tpu.concatenate %638, %639 in 1 : vector<1x32xf32>, vector<1x32xf32> -> vector<1x64xf32>
    %697 = tpu.concatenate %640, %641 in 1 : vector<1x32xf32>, vector<1x32xf32> -> vector<1x64xf32>
    %698 = tpu.concatenate %642, %643 in 1 : vector<1x32xf32>, vector<1x32xf32> -> vector<1x64xf32>
    %699 = tpu.concatenate %644, %645 in 1 : vector<1x32xf32>, vector<1x32xf32> -> vector<1x64xf32>
    %700 = tpu.concatenate %646, %647 in 1 : vector<1x32xf32>, vector<1x32xf32> -> vector<1x64xf32>
    %701 = tpu.concatenate %648, %649 in 1 : vector<1x32xf32>, vector<1x32xf32> -> vector<1x64xf32>
    %702 = tpu.concatenate %650, %651 in 1 : vector<1x32xf32>, vector<1x32xf32> -> vector<1x64xf32>
    %703 = tpu.concatenate %652, %653 in 1 : vector<1x32xf32>, vector<1x32xf32> -> vector<1x64xf32>
    %704 = tpu.concatenate %654, %655 in 1 : vector<1x32xf32>, vector<1x32xf32> -> vector<1x64xf32>
    %705 = tpu.concatenate %656, %657 in 1 : vector<1x32xf32>, vector<1x32xf32> -> vector<1x64xf32>
    %706 = tpu.concatenate %658, %659 in 1 : vector<1x32xf32>, vector<1x32xf32> -> vector<1x64xf32>
    %707 = tpu.concatenate %660, %661 in 1 : vector<1x32xf32>, vector<1x32xf32> -> vector<1x64xf32>
    %708 = tpu.concatenate %662, %663 in 1 : vector<1x32xf32>, vector<1x32xf32> -> vector<1x64xf32>
    %709 = tpu.concatenate %664, %665 in 1 : vector<1x32xf32>, vector<1x32xf32> -> vector<1x64xf32>
    %710 = tpu.concatenate %666, %667 in 1 : vector<1x32xf32>, vector<1x32xf32> -> vector<1x64xf32>
    %711 = tpu.concatenate %668, %669 in 1 : vector<1x32xf32>, vector<1x32xf32> -> vector<1x64xf32>
    %712 = tpu.concatenate %670, %671 in 1 : vector<1x32xf32>, vector<1x32xf32> -> vector<1x64xf32>
    %713 = tpu.concatenate %672, %673 in 1 : vector<1x32xf32>, vector<1x32xf32> -> vector<1x64xf32>
    %714 = tpu.concatenate %674, %675 in 1 : vector<1x32xf32>, vector<1x32xf32> -> vector<1x64xf32>
    %715 = tpu.concatenate %676, %677 in 1 : vector<1x32xf32>, vector<1x32xf32> -> vector<1x64xf32>
    %716 = tpu.concatenate %678, %679 in 1 : vector<1x32xf32>, vector<1x32xf32> -> vector<1x64xf32>
    %717 = tpu.concatenate %680, %681 in 1 : vector<1x32xf32>, vector<1x32xf32> -> vector<1x64xf32>
    %718 = tpu.concatenate %682, %683 in 1 : vector<1x32xf32>, vector<1x32xf32> -> vector<1x64xf32>
    %719 = tpu.concatenate %684, %685 in 1 : vector<1x32xf32>, vector<1x32xf32> -> vector<1x64xf32>
    %720 = tpu.concatenate %686, %687 in 1 : vector<1x32xf32>, vector<1x32xf32> -> vector<1x64xf32>
    %721 = tpu.concatenate %688, %689 in 1 : vector<1x32xf32>, vector<1x32xf32> -> vector<1x64xf32>
    %722 = tpu.concatenate %690, %691 in 1 : vector<1x64xf32>, vector<1x64xf32> -> vector<1x128xf32>
    %723 = tpu.concatenate %692, %693 in 1 : vector<1x64xf32>, vector<1x64xf32> -> vector<1x128xf32>
    %724 = tpu.concatenate %694, %695 in 1 : vector<1x64xf32>, vector<1x64xf32> -> vector<1x128xf32>
    %725 = tpu.concatenate %696, %697 in 1 : vector<1x64xf32>, vector<1x64xf32> -> vector<1x128xf32>
    %726 = tpu.concatenate %698, %699 in 1 : vector<1x64xf32>, vector<1x64xf32> -> vector<1x128xf32>
    %727 = tpu.concatenate %700, %701 in 1 : vector<1x64xf32>, vector<1x64xf32> -> vector<1x128xf32>
    %728 = tpu.concatenate %702, %703 in 1 : vector<1x64xf32>, vector<1x64xf32> -> vector<1x128xf32>
    %729 = tpu.concatenate %704, %705 in 1 : vector<1x64xf32>, vector<1x64xf32> -> vector<1x128xf32>
    %730 = tpu.concatenate %706, %707 in 1 : vector<1x64xf32>, vector<1x64xf32> -> vector<1x128xf32>
    %731 = tpu.concatenate %708, %709 in 1 : vector<1x64xf32>, vector<1x64xf32> -> vector<1x128xf32>
    %732 = tpu.concatenate %710, %711 in 1 : vector<1x64xf32>, vector<1x64xf32> -> vector<1x128xf32>
    %733 = tpu.concatenate %712, %713 in 1 : vector<1x64xf32>, vector<1x64xf32> -> vector<1x128xf32>
    %734 = tpu.concatenate %714, %715 in 1 : vector<1x64xf32>, vector<1x64xf32> -> vector<1x128xf32>
    %735 = tpu.concatenate %716, %717 in 1 : vector<1x64xf32>, vector<1x64xf32> -> vector<1x128xf32>
    %736 = tpu.concatenate %718, %719 in 1 : vector<1x64xf32>, vector<1x64xf32> -> vector<1x128xf32>
    %737 = tpu.concatenate %720, %721 in 1 : vector<1x64xf32>, vector<1x64xf32> -> vector<1x128xf32>
    %738 = tpu.concatenate %722, %723 in 1 : vector<1x128xf32>, vector<1x128xf32> -> vector<1x256xf32>
    %739 = tpu.concatenate %724, %725 in 1 : vector<1x128xf32>, vector<1x128xf32> -> vector<1x256xf32>
    %740 = tpu.concatenate %726, %727 in 1 : vector<1x128xf32>, vector<1x128xf32> -> vector<1x256xf32>
    %741 = tpu.concatenate %728, %729 in 1 : vector<1x128xf32>, vector<1x128xf32> -> vector<1x256xf32>
    %742 = tpu.concatenate %730, %731 in 1 : vector<1x128xf32>, vector<1x128xf32> -> vector<1x256xf32>
    %743 = tpu.concatenate %732, %733 in 1 : vector<1x128xf32>, vector<1x128xf32> -> vector<1x256xf32>
    %744 = tpu.concatenate %734, %735 in 1 : vector<1x128xf32>, vector<1x128xf32> -> vector<1x256xf32>
    %745 = tpu.concatenate %736, %737 in 1 : vector<1x128xf32>, vector<1x128xf32> -> vector<1x256xf32>
    %746 = tpu.concatenate %738, %739 in 1 : vector<1x256xf32>, vector<1x256xf32> -> vector<1x512xf32>
    %747 = tpu.concatenate %740, %741 in 1 : vector<1x256xf32>, vector<1x256xf32> -> vector<1x512xf32>
    %748 = tpu.concatenate %742, %743 in 1 : vector<1x256xf32>, vector<1x256xf32> -> vector<1x512xf32>
    %749 = tpu.concatenate %744, %745 in 1 : vector<1x256xf32>, vector<1x256xf32> -> vector<1x512xf32>
    %750 = tpu.concatenate %746, %747 in 1 : vector<1x512xf32>, vector<1x512xf32> -> vector<1x1024xf32>
    %751 = tpu.concatenate %748, %749 in 1 : vector<1x512xf32>, vector<1x512xf32> -> vector<1x1024xf32>
    %752 = tpu.concatenate %750, %751 in 1 : vector<1x1024xf32>, vector<1x1024xf32> -> vector<1x2048xf32>
    %753 = tpu.concatenate %625, %752 in 0 : vector<1x2048xf32>, vector<1x2048xf32> -> vector<2x2048xf32>
    %c0_177 = arith.constant 0 : index
    %c0_178 = arith.constant 0 : index
    %754 = vector.load %arg11[%c0_177, %c0_178] : memref<2048x32xf32, #tpu.memory_space<vmem>>, vector<2048x32xf32>
    %cst_179 = arith.constant dense<0.000000e+00> : vector<2x32xf32>
    %755 = tpu.matmul %753, %754, %cst_179 {dimension_numbers = #tpu.dot_dimension_numbers<[1], [0], [0], [1], [0, 0, 1, 1], [], []>} : vector<2x2048xf32>, vector<2048x32xf32>, vector<2x32xf32> -> vector<2x32xf32>
    %756 = vector.broadcast %491 : vector<1x32xf32> to vector<2x32xf32>
    %757 = arith.addf %755, %756 : vector<2x32xf32>
    %cst_180 = arith.constant 0.000000e+00 : f32
    %758 = vector.broadcast %cst_180 : f32 to vector<2x32xf32>
    %759 = arith.maximumf %757, %758 : vector<2x32xf32>
    %cst_181 = arith.constant dense<0.000000e+00> : vector<2xf32>
    %760 = vector.multi_reduction <add>, %759, %cst_181 [1] : vector<2x32xf32> to vector<2xf32>
    %761 = vector.shape_cast %760 : vector<2xf32> to vector<2x1xf32>
    %cst_182 = arith.constant 3.200000e+01 : f32
    %762 = vector.broadcast %cst_182 : f32 to vector<2x1xf32>
    %763 = arith.divf %761, %762 : vector<2x1xf32>
    %764 = vector.broadcast %763 : vector<2x1xf32> to vector<2x32xf32>
    %765 = arith.subf %759, %764 : vector<2x32xf32>
    %766 = arith.mulf %765, %765 : vector<2x32xf32>
    %cst_183 = arith.constant dense<0.000000e+00> : vector<2xf32>
    %767 = vector.multi_reduction <add>, %766, %cst_183 [1] : vector<2x32xf32> to vector<2xf32>
    %768 = vector.shape_cast %767 : vector<2xf32> to vector<2x1xf32>
    %cst_184 = arith.constant 3.200000e+01 : f32
    %769 = vector.broadcast %cst_184 : f32 to vector<2x1xf32>
    %770 = arith.divf %768, %769 : vector<2x1xf32>
    %cst_185 = arith.constant 9.99999996E-13 : f32
    %771 = vector.broadcast %cst_185 : f32 to vector<2x1xf32>
    %772 = arith.addf %770, %771 : vector<2x1xf32>
    %773 = math.rsqrt %772 : vector<2x1xf32>
    %774 = vector.broadcast %773 : vector<2x1xf32> to vector<2x32xf32>
    %775 = arith.mulf %765, %774 : vector<2x32xf32>
    %776 = vector.broadcast %492 : vector<1x32xf32> to vector<2x32xf32>
    %777 = arith.mulf %776, %775 : vector<2x32xf32>
    %778 = vector.broadcast %493 : vector<1x32xf32> to vector<2x32xf32>
    %779 = arith.addf %777, %778 : vector<2x32xf32>
    %c0_186 = arith.constant 0 : index
    %c0_187 = arith.constant 0 : index
    %780 = vector.load %arg12[%c0_186, %c0_187] : memref<32x128xf32, #tpu.memory_space<vmem>>, vector<32x128xf32>
    %cst_188 = arith.constant dense<0.000000e+00> : vector<2x128xf32>
    %781 = tpu.matmul %779, %780, %cst_188 {dimension_numbers = #tpu.dot_dimension_numbers<[1], [0], [0], [1], [0, 0, 1, 1], [], []>} : vector<2x32xf32>, vector<32x128xf32>, vector<2x128xf32> -> vector<2x128xf32>
    %c0_189 = arith.constant 0 : index
    %c0_190 = arith.constant 0 : index
    %782 = vector.load %arg13[%c0_189, %c0_190] : memref<1x128xf32, #tpu.memory_space<vmem>>, vector<1x128xf32>
    %783 = vector.broadcast %782 : vector<1x128xf32> to vector<2x128xf32>
    %784 = arith.addf %781, %783 : vector<2x128xf32>
    %c0_191 = arith.constant 0 : index
    %c0_192 = arith.constant 0 : index
    %c0_193 = arith.constant 0 : index
    %785 = vector.load %arg14[%c0_191, %c0_192, %c0_193] : memref<1x2x128xf32, #tpu.memory_space<vmem>>, vector<1x2x128xf32>
    %786 = vector.shape_cast %785 : vector<1x2x128xf32> to vector<2x128xf32>
    %787 = vector.shape_cast %784 : vector<2x128xf32> to vector<1x2x128xf32>
    tpu.vector_store %arg14[%c0_191, %c0_192, %c0_193], %787 {strides = array<i32>} : memref<1x2x128xf32, #tpu.memory_space<vmem>>, vector<1x2x128xf32>,
    return
  }
  func.func @transform_0(%arg0: i32) -> (i32, i32, i32) {
    %c0_i32 = arith.constant 0 : i32
    %c0_i32_0 = arith.constant 0 : i32
    %c0_i32_1 = arith.constant 0 : i32
    return %arg0, %c0_i32, %c0_i32_0 : i32, i32, i32
  }
  func.func @transform_1(%arg0: i32) -> (i32, i32, i32) {
    %c0_i32 = arith.constant 0 : i32
    %c0_i32_0 = arith.constant 0 : i32
    %c0_i32_1 = arith.constant 0 : i32
    return %arg0, %c0_i32, %c0_i32_0 : i32, i32, i32
  }
  func.func @transform_2(%arg0: i32) -> (i32, i32) {
    %c0_i32 = arith.constant 0 : i32
    %c0_i32_0 = arith.constant 0 : i32
    %c0_i32_1 = arith.constant 0 : i32
    return %c0_i32, %c0_i32_0 : i32, i32
  }
  func.func @transform_3(%arg0: i32) -> (i32, i32, i32) {
    %c0_i32 = arith.constant 0 : i32
    %c0_i32_0 = arith.constant 0 : i32
    %c0_i32_1 = arith.constant 0 : i32
    %c0_i32_2 = arith.constant 0 : i32
    return %c0_i32, %c0_i32_0, %c0_i32_1 : i32, i32, i32
  }
  func.func @transform_4(%arg0: i32) -> (i32, i32, i32) {
    %c0_i32 = arith.constant 0 : i32
    %c0_i32_0 = arith.constant 0 : i32
    %c0_i32_1 = arith.constant 0 : i32
    %c0_i32_2 = arith.constant 0 : i32
    return %c0_i32, %c0_i32_0, %c0_i32_1 : i32, i32, i32
  }
  func.func @transform_5(%arg0: i32) -> (i32, i32, i32) {
    %c0_i32 = arith.constant 0 : i32
    %c0_i32_0 = arith.constant 0 : i32
    %c0_i32_1 = arith.constant 0 : i32
    %c0_i32_2 = arith.constant 0 : i32
    return %c0_i32, %c0_i32_0, %c0_i32_1 : i32, i32, i32
  }
  func.func @transform_6(%arg0: i32) -> (i32, i32, i32) {
    %c0_i32 = arith.constant 0 : i32
    %c0_i32_0 = arith.constant 0 : i32
    %c0_i32_1 = arith.constant 0 : i32
    %c0_i32_2 = arith.constant 0 : i32
    return %c0_i32, %c0_i32_0, %c0_i32_1 : i32, i32, i32
  }
  func.func @transform_7(%arg0: i32) -> (i32, i32, i32) {
    %c0_i32 = arith.constant 0 : i32
    %c0_i32_0 = arith.constant 0 : i32
    %c0_i32_1 = arith.constant 0 : i32
    %c0_i32_2 = arith.constant 0 : i32
    return %c0_i32, %c0_i32_0, %c0_i32_1 : i32, i32, i32
  }
  func.func @transform_8(%arg0: i32) -> (i32, i32) {
    %c0_i32 = arith.constant 0 : i32
    %c0_i32_0 = arith.constant 0 : i32
    %c0_i32_1 = arith.constant 0 : i32
    return %c0_i32, %c0_i32_0 : i32, i32
  }
  func.func @transform_9(%arg0: i32) -> (i32, i32) {
    %c0_i32 = arith.constant 0 : i32
    %c0_i32_0 = arith.constant 0 : i32
    %c0_i32_1 = arith.constant 0 : i32
    return %c0_i32, %c0_i32_0 : i32, i32
  }
  func.func @transform_10(%arg0: i32) -> (i32, i32) {
    %c0_i32 = arith.constant 0 : i32
    %c0_i32_0 = arith.constant 0 : i32
    %c0_i32_1 = arith.constant 0 : i32
    return %c0_i32, %c0_i32_0 : i32, i32
  }
  func.func @transform_11(%arg0: i32) -> (i32, i32) {
    %c0_i32 = arith.constant 0 : i32
    %c0_i32_0 = arith.constant 0 : i32
    %c0_i32_1 = arith.constant 0 : i32
    return %c0_i32, %c0_i32_0 : i32, i32
  }
  func.func @transform_12(%arg0: i32) -> (i32, i32) {
    %c0_i32 = arith.constant 0 : i32
    %c0_i32_0 = arith.constant 0 : i32
    %c0_i32_1 = arith.constant 0 : i32
    return %c0_i32, %c0_i32_0 : i32, i32
  }
  func.func @transform_13(%arg0: i32) -> (i32, i32, i32) {
    %c0_i32 = arith.constant 0 : i32
    %c0_i32_0 = arith.constant 0 : i32
    %c0_i32_1 = arith.constant 0 : i32
    return %arg0, %c0_i32, %c0_i32_0 : i32, i32, i32
  }
}

</mosaic_0001>

<llo_original>
// kernel: pixel_attention_forward.1
$region0: #{pixel_attention_forward.1}
  #allocation0 [shape = 'u32[]', space=smem, size = 0x4, offset = 0x4, fixed_abs, tag = 'smem constant byte address 0x4 - core index']
  #allocation1 [shape = 'u32[144,128]{1,0:T(1,128)}', space=vmem, size = 0x12000, scoped, tag = 'internal scratch']
  #allocation2 [shape = 'f32[128,32]{1,0:T(8,128)}', space=vmem, size = 0x10000, scoped, tag = 'scratch operand']
  %s0 = inlined_call_operand.vmem [shape: f32[2,32,32], index: 0, kind: input, shape index: {}]
  %s1 = inlined_call_operand.vmem [shape: f32[2,32,32], index: 1, kind: input, shape index: {}]
  %s2 = inlined_call_operand.vmem [shape: f32[64,32], index: 2, kind: input, shape index: {}]
  %s3 = inlined_call_operand.vmem [shape: f32[2,32,96], index: 3, kind: input, shape index: {}]
  %s4 = inlined_call_operand.vmem [shape: f32[2,8,96], index: 4, kind: input, shape index: {}]
  %s5 = inlined_call_operand.vmem [shape: f32[2,32,32], index: 5, kind: input, shape index: {}]
  %s6 = inlined_call_operand.vmem [shape: f32[2,32,64], index: 6, kind: input, shape index: {}]
  %s7 = inlined_call_operand.vmem [shape: f32[2,64,32], index: 7, kind: input, shape index: {}]
  %s8 = inlined_call_operand.vmem [shape: f32[32,32], index: 8, kind: input, shape index: {}]
  %s9 = inlined_call_operand.vmem [shape: f32[4,32], index: 9, kind: input, shape index: {}]
  %s10 = inlined_call_operand.vmem [shape: f32[2048,32], index: 10, kind: input, shape index: {}]
  %s11 = inlined_call_operand.vmem [shape: f32[32,128], index: 11, kind: input, shape index: {}]
  %s12 = inlined_call_operand.vmem [shape: f32[1,128], index: 12, kind: input, shape index: {}]
  %s13 = inlined_call_operand.hbm [shape: f32[1,2,128], index: 13, kind: output, shape index: {}]
  %s14 = sld [smem:[#allocation0]]
  $region62: #{pixel_attention_forward.1} parent=0
    _
  %s16 = ssub.s32 1, %s14
  %s17 = scalar_select 0, %s16, %s14
  $region1: #{pixel_attention_forward.1} parent=0
    #allocation3 [shape = 'u8[1024]{0}', space=vmem, size = 0x400, scoped, tag = 'output window, operand 0, single buffered']
    #allocation4 [shape = 's32[1]{0}', space=sflag, size = 0x4, scoped, tag = 'scoped memory for pixel_attention_forward.1']
    %18 = vsyncpa [#allocation4], 0
    // Predicated region
    $region2: #{pixel_attention_forward.1} parent=1 // pred_check
      _
    $region3: #{pixel_attention_forward.1} parent=1 // pred_check_branch
      %20 = sbr.rel (0) target = $region5
    $region4: #{pixel_attention_forward.1} parent=1 // pred_region
      _
    $region5: #{pixel_attention_forward.1} parent=1 // pred_fallthru
      _
    // Predicated region
    $region6: #{pixel_attention_forward.1} parent=1 // pred_check
      _
    $region7: #{pixel_attention_forward.1} parent=1 // pred_check_branch
      %22 = sbr.rel (0) target = $region9
    $region8: #{pixel_attention_forward.1} parent=1 // pred_region
      _
    $region9: #{pixel_attention_forward.1} parent=1 // pred_fallthru
      _
    // Predicated region
    $region10: #{pixel_attention_forward.1} parent=1 // pred_check
      _
    $region11: #{pixel_attention_forward.1} parent=1 // pred_check_branch
      %24 = sbr.rel (0) target = $region13
    $region12: #{pixel_attention_forward.1} parent=1 // pred_region
      _
    $region13: #{pixel_attention_forward.1} parent=1 // pred_fallthru
      _
    // Predicated region
    $region14: #{pixel_attention_forward.1} parent=1 // pred_check
      _
    $region15: #{pixel_attention_forward.1} parent=1 // pred_check_branch
      %26 = sbr.rel (0) target = $region17
    $region16: #{pixel_attention_forward.1} parent=1 // pred_region
      _
    $region17: #{pixel_attention_forward.1} parent=1 // pred_fallthru
      _
    // Predicated region
    $region18: #{pixel_attention_forward.1} parent=1 // pred_check
      _
    $region19: #{pixel_attention_forward.1} parent=1 // pred_check_branch
      %28 = sbr.rel (0) target = $region21
    $region20: #{pixel_attention_forward.1} parent=1 // pred_region
      _
    $region21: #{pixel_attention_forward.1} parent=1 // pred_fallthru
      _
    // Predicated region
    $region22: #{pixel_attention_forward.1} parent=1 // pred_check
      _
    $region23: #{pixel_attention_forward.1} parent=1 // pred_check_branch
      %30 = sbr.rel (0) target = $region25
    $region24: #{pixel_attention_forward.1} parent=1 // pred_region
      _
    $region25: #{pixel_attention_forward.1} parent=1 // pred_fallthru
      _
    // Predicated region
    $region26: #{pixel_attention_forward.1} parent=1 // pred_check
      _
    $region27: #{pixel_attention_forward.1} parent=1 // pred_check_branch
      %32 = sbr.rel (0) target = $region29
    $region28: #{pixel_attention_forward.1} parent=1 // pred_region
      _
    $region29: #{pixel_attention_forward.1} parent=1 // pred_fallthru
      _
    // Predicated region
    $region30: #{pixel_attention_forward.1} parent=1 // pred_check
      _
    $region31: #{pixel_attention_forward.1} parent=1 // pred_check_branch
      %34 = sbr.rel (0) target = $region33
    $region32: #{pixel_attention_forward.1} parent=1 // pred_region
      _
    $region33: #{pixel_attention_forward.1} parent=1 // pred_fallthru
      _
    // Predicated region
    $region34: #{pixel_attention_forward.1} parent=1 // pred_check
      _
    $region35: #{pixel_attention_forward.1} parent=1 // pred_check_branch
      %36 = sbr.rel (0) target = $region37
    $region36: #{pixel_attention_forward.1} parent=1 // pred_region
      _
    $region37: #{pixel_attention_forward.1} parent=1 // pred_fallthru
      _
    // Predicated region
    $region38: #{pixel_attention_forward.1} parent=1 // pred_check
      _
    $region39: #{pixel_attention_forward.1} parent=1 // pred_check_branch
      %38 = sbr.rel (0) target = $region41
    $region40: #{pixel_attention_forward.1} parent=1 // pred_region
      _
    $region41: #{pixel_attention_forward.1} parent=1 // pred_fallthru
      _
    // Predicated region
    $region42: #{pixel_attention_forward.1} parent=1 // pred_check
      _
    $region43: #{pixel_attention_forward.1} parent=1 // pred_check_branch
      %40 = sbr.rel (0) target = $region45
    $region44: #{pixel_attention_forward.1} parent=1 // pred_region
      _
    $region45: #{pixel_attention_forward.1} parent=1 // pred_fallthru
      _
    // Predicated region
    $region46: #{pixel_attention_forward.1} parent=1 // pred_check
      _
    $region47: #{pixel_attention_forward.1} parent=1 // pred_check_branch
      %42 = sbr.rel (0) target = $region49
    $region48: #{pixel_attention_forward.1} parent=1 // pred_region
      _
    $region49: #{pixel_attention_forward.1} parent=1 // pred_fallthru
      _
    // Predicated region
    $region50: #{pixel_attention_forward.1} parent=1 // pred_check
      _
    $region51: #{pixel_attention_forward.1} parent=1 // pred_check_branch
      %44 = sbr.rel (0) target = $region53
    $region52: #{pixel_attention_forward.1} parent=1 // pred_region
      _
    $region53: #{pixel_attention_forward.1} parent=1 // pred_fallthru
      _
    %v45 = vld [vmem:[%s0] sm:$0xff]
    %v46 = vld [vmem:[%s0 + $0x8] sm:$0xff]
    %v47 = vld [vmem:[%s0 + $0x10] sm:$0xff]
    %v48 = vld [vmem:[%s0 + $0x18] sm:$0xff]
    %v49 = vld [vmem:[%s2] sm:$0xff]
    %v50 = vld [vmem:[%s2 + $0x8] sm:$0xff]
    %v51 = vld [vmem:[%s2 + $0x10] sm:$0xff]
    %v52 = vld [vmem:[%s2 + $0x18] sm:$0xff]
    %v53 = vadd.f32 %v45, %v49
    %v54 = vadd.f32 %v46, %v50
    %v55 = vadd.f32 %v47, %v51
    %v56 = vadd.f32 %v48, %v52
    %v57 = vld [vmem:[%s1] sm:$0xff]
    %v58 = vld [vmem:[%s1 + $0x8] sm:$0xff]
    %v59 = vld [vmem:[%s1 + $0x10] sm:$0xff]
    %v60 = vld [vmem:[%s1 + $0x18] sm:$0xff]
    %v61 = vld [vmem:[%s2 + $0x20] sm:$0xff]
    %v62 = vld [vmem:[%s2 + $0x28] sm:$0xff]
    %v63 = vld [vmem:[%s2 + $0x30] sm:$0xff]
    %v64 = vld [vmem:[%s2 + $0x38] sm:$0xff]
    %v65 = vadd.f32 %v57, %v61
    %v66 = vadd.f32 %v58, %v62
    %v67 = vadd.f32 %v59, %v63
    %v68 = vadd.f32 %v60, %v64
    %s69 = scalar_lea.vmem %s0, 32
    %v70 = vld [vmem:[%s69] sm:$0xff]
    %v71 = vld [vmem:[%s69 + $0x8] sm:$0xff]
    %v72 = vld [vmem:[%s69 + $0x10] sm:$0xff]
    %v73 = vld [vmem:[%s69 + $0x18] sm:$0xff]
    %v74 = vadd.f32 %v70, %v49
    %v75 = vadd.f32 %v71, %v50
    %v76 = vadd.f32 %v72, %v51
    %v77 = vadd.f32 %v73, %v52
    %s78 = scalar_lea.vmem %s1, 32
    %v79 = vld [vmem:[%s78] sm:$0xff]
    %v80 = vld [vmem:[%s78 + $0x8] sm:$0xff]
    %v81 = vld [vmem:[%s78 + $0x10] sm:$0xff]
    %v82 = vld [vmem:[%s78 + $0x18] sm:$0xff]
    %v83 = vadd.f32 %v79, %v61
    %v84 = vadd.f32 %v80, %v62
    %v85 = vadd.f32 %v81, %v63
    %v86 = vadd.f32 %v82, %v64
    %v87 = vlaneseq
    %v88 = vand.u32 %v87, 127
    %vm89 = vcmp.ge.s32.totalorder %v88, 0
    %vm90 = vcmp.lt.s32.totalorder %v88, 8
    %vm91 = vmand %vm89, %vm90
    %v92 = vsel %vm91, 1, 0
    %v93 = vcvt.s32.f32 %v92
    %vm94 = vcmp.ge.s32.totalorder %v88, 8
    %vm95 = vcmp.lt.s32.totalorder %v88, 16
    %vm96 = vmand %vm94, %vm95
    %v97 = vsel %vm96, 1, 0
    %v98 = vcvt.s32.f32 %v97
    %vm99 = vcmp.ge.s32.totalorder %v88, 16
    %vm100 = vcmp.lt.s32.totalorder %v88, 24
    %vm101 = vmand %vm99, %vm100
    %v102 = vsel %vm101, 1, 0
    %v103 = vcvt.s32.f32 %v102
    %vm104 = vcmp.ge.s32.totalorder %v88, 24
    %vm105 = vcmp.lt.s32.totalorder %v88, 32
    %vm106 = vmand %vm104, %vm105
    %v107 = vsel %vm106, 1, 0
    %v108 = vcvt.s32.f32 %v107
    %v109 = vld [vmem:[%s4] sm:$0x1]
    %v110 = vld [vmem:[%s4 + $0x1] sm:$0x1]
    %v111 = vld [vmem:[%s4 + $0x2] sm:$0x1]
    %v112 = vld [vmem:[%s4 + $0x3] sm:$0x1]
    %v113 = vld [vmem:[%s4 + $0x4] sm:$0x1]
    %v114 = vld [vmem:[%s4 + $0x5] sm:$0x1]
    %v115 = vld [vmem:[%s4 + $0x6] sm:$0x1]
    %v116 = vld [vmem:[%s4 + $0x7] sm:$0x1]
    %v117 = vld [vmem:[%s3] sm:$0xff]
    %v118 = vld [vmem:[%s3 + $0x8] sm:$0xff]
    %v119 = vld [vmem:[%s3 + $0x10] sm:$0xff]
    %v120 = vld [vmem:[%s3 + $0x18] sm:$0xff]
    %v121 = vlaneseq
    %v122 = vshrl.u32 %v121, 7
    %v123 = vsub.s32 0, %v122
    %v124 = vrot.slane %v109, %v123
    %vm125 = vcmask 261120
    %v127 = vsel %vm125, %v53, 0
    %v130 = vsel %vm125, %v54, 0
    %v133 = vsel %vm125, %v55, 0
    %v136 = vsel %vm125, %v56, 0
    %v139 = vsel %vm125, %v65, 0
    %v142 = vsel %vm125, %v66, 0
    %v145 = vsel %vm125, %v67, 0
    %v148 = vsel %vm125, %v68, 0
    %v151 = vsel %vm125, %v74, 0
    %v154 = vsel %vm125, %v75, 0
    %v157 = vsel %vm125, %v76, 0
    %v160 = vsel %vm125, %v77, 0
    %v163 = vsel %vm125, %v83, 0
    %v166 = vsel %vm125, %v84, 0
    %v169 = vsel %vm125, %v85, 0
    %v172 = vsel %vm125, %v86, 0
    %174 = vmatprep.subr.mxu0 0.0
    %175 = vmatpush1.msra.mxu0 0.0
    %176 = vmatprep.subr.mxu0 0.0
    %177 = vmatpush1.msra.mxu0 0.0
    %178 = vmatprep.subr.mxu0 0.0
    %179 = vmatpush1.msra.mxu0 0.0
    %180 = vmatprep.subr.mxu0 0.0
    %181 = vmatpush1.msra.mxu0 0.0
    %182 = vmatprep.subr.mxu0 0.0
    %183 = vmatpush1.msra.mxu0 0.0
    %184 = vmatprep.subr.mxu0 0.0
    %185 = vmatpush1.msra.mxu0 0.0
    %186 = vmatprep.subr.mxu0 0.0
    %187 = vmatpush1.msra.mxu0 0.0
    %188 = vmatprep.subr.mxu0 0.0
    %189 = vmatpush1.msra.mxu0 0.0
    %190 = vmatprep.subr.mxu0 0.0
    %191 = vmatpush1.msra.mxu0 0.0
    %192 = vmatprep.subr.mxu0 0.0
    %193 = vmatpush1.msra.mxu0 0.0
    %194 = vmatprep.subr.mxu0 0.0
    %195 = vmatpush1.msra.mxu0 0.0
    %196 = vmatprep.subr.mxu0 0.0
    %197 = vmatpush1.msra.mxu0 0.0
    %198 = vmatprep.subr.mxu0 0.0
    %199 = vmatpush1.msra.mxu0 %v120
    %200 = vmatprep.subr.mxu0 0.0
    %201 = vmatpush1.msra.mxu0 %v119
    %202 = vmatprep.subr.mxu0 0.0
    %203 = vmatpush1.msra.mxu0 %v118
    %204 = vmatprep.subr.mxu0 0.0
    %205 = vmatpush1.msra.mxu0 %v117
    %206 = vmatprep.subr.mxu0 0.0
    %207 = vmatpush2.msra.mxu0 0.0
    %208 = vmatprep.subr.mxu0 0.0
    %209 = vmatpush2.msra.mxu0 0.0
    %210 = vmatprep.subr.mxu0 0.0
    %211 = vmatpush2.msra.mxu0 0.0
    %212 = vmatprep.subr.mxu0 0.0
    %213 = vmatpush2.msra.mxu0 0.0
    %214 = vmatprep.subr.mxu0 0.0
    %215 = vmatpush2.msra.mxu0 0.0
    %216 = vmatprep.subr.mxu0 0.0
    %217 = vmatpush2.msra.mxu0 0.0
    %218 = vmatprep.subr.mxu0 0.0
    %219 = vmatpush2.msra.mxu0 0.0
    %220 = vmatprep.subr.mxu0 0.0
    %221 = vmatpush2.msra.mxu0 0.0
    %222 = vmatprep.subr.mxu0 0.0
    %223 = vmatpush2.msra.mxu0 0.0
    %224 = vmatprep.subr.mxu0 0.0
    %225 = vmatpush2.msra.mxu0 0.0
    %226 = vmatprep.subr.mxu0 0.0
    %227 = vmatpush2.msra.mxu0 0.0
    %228 = vmatprep.subr.mxu0 0.0
    %229 = vmatpush2.msra.mxu0 0.0
    %230 = vmatprep.subr.mxu0 0.0
    %231 = vmatpush2.msra.mxu0 0.0
    %232 = vmatprep.subr.mxu0 0.0
    %233 = vmatpush2.msra.mxu0 0.0
    %234 = vmatprep.subr.mxu0 0.0
    %235 = vmatpush2.msra.mxu0 0.0
    %236 = vmatprep.subr.mxu0 0.0
    %237 = vmatpush2.msra.mxu0 0.0
    %238 = vmatprep.mubr.f32.mxu0 0.0
    %239 = vmatmul.mubr.f32.gmra.mxu0 %v127
    %v240 = vpop.f32.mrf.mxu0
    %v241 = vadd.f32 %v124, %v240
    %v242 = vpop.f32.mrf.mxu0
    %243 = vmatprep.mubr.f32.mxu0 0.0
    %244 = vmatmul.mubr.f32.gmra.mxu0 %v130
    %v245 = vpop.f32.mrf.mxu0
    %v246 = vadd.f32 %v124, %v245
    %v247 = vpop.f32.mrf.mxu0
    %248 = vmatprep.mubr.f32.mxu0 0.0
    %249 = vmatmul.mubr.f32.gmra.mxu0 %v133
    %v250 = vpop.f32.mrf.mxu0
    %v251 = vadd.f32 %v124, %v250
    %v252 = vpop.f32.mrf.mxu0
    %253 = vmatprep.mubr.f32.mxu0 0.0
    %254 = vmatmul.mubr.f32.gmra.mxu0 %v136
    %v255 = vpop.f32.mrf.mxu0
    %v256 = vadd.f32 %v124, %v255
    %v257 = vpop.f32.mrf.mxu0
    %258 = vmatprep.mubr.f32.mxu0 0.0
    %259 = vmatmul.mubr.f32.gmra.mxu0 %v139
    %v260 = vpop.f32.mrf.mxu0
    %v261 = vadd.f32 %v124, %v260
    %v262 = vpop.f32.mrf.mxu0
    %263 = vmatprep.mubr.f32.mxu0 0.0
    %264 = vmatmul.mubr.f32.gmra.mxu0 %v142
    %v265 = vpop.f32.mrf.mxu0
    %v266 = vadd.f32 %v124, %v265
    %v267 = vpop.f32.mrf.mxu0
    %268 = vmatprep.mubr.f32.mxu0 0.0
    %269 = vmatmul.mubr.f32.gmra.mxu0 %v145
    %v270 = vpop.f32.mrf.mxu0
    %v271 = vadd.f32 %v124, %v270
    %v272 = vpop.f32.mrf.mxu0
    %273 = vmatprep.mubr.f32.mxu0 0.0
    %274 = vmatmul.mubr.f32.gmra.mxu0 %v148
    %v275 = vpop.f32.mrf.mxu0
    %v276 = vadd.f32 %v124, %v275
    %v277 = vpop.f32.mrf.mxu0
    %278 = vmatprep.mubr.f32.mxu0 0.0
    %279 = vmatmul.mubr.f32.gmra.mxu0 %v151
    %v280 = vpop.f32.mrf.mxu0
    %v281 = vadd.f32 %v124, %v280
    %v282 = vpop.f32.mrf.mxu0
    %283 = vmatprep.mubr.f32.mxu0 0.0
    %284 = vmatmul.mubr.f32.gmra.mxu0 %v154
    %v285 = vpop.f32.mrf.mxu0
    %v286 = vadd.f32 %v124, %v285
    %v287 = vpop.f32.mrf.mxu0
    %288 = vmatprep.mubr.f32.mxu0 0.0
    %289 = vmatmul.mubr.f32.gmra.mxu0 %v157
    %v290 = vpop.f32.mrf.mxu0
    %v291 = vadd.f32 %v124, %v290
    %v292 = vpop.f32.mrf.mxu0
    %293 = vmatprep.mubr.f32.mxu0 0.0
    %294 = vmatmul.mubr.f32.gmra.mxu0 %v160
    %v295 = vpop.f32.mrf.mxu0
    %v296 = vadd.f32 %v124, %v295
    %v297 = vpop.f32.mrf.mxu0
    %298 = vmatprep.mubr.f32.mxu0 0.0
    %299 = vmatmul.mubr.f32.gmra.mxu0 %v163
    %v300 = vpop.f32.mrf.mxu0
    %v301 = vadd.f32 %v124, %v300
    %v302 = vpop.f32.mrf.mxu0
    %303 = vmatprep.mubr.f32.mxu0 0.0
    %304 = vmatmul.mubr.f32.gmra.mxu0 %v166
    %v305 = vpop.f32.mrf.mxu0
    %v306 = vadd.f32 %v124, %v305
    %v307 = vpop.f32.mrf.mxu0
    %308 = vmatprep.mubr.f32.mxu0 0.0
    %309 = vmatmul.mubr.f32.gmra.mxu0 %v169
    %v310 = vpop.f32.mrf.mxu0
    %v311 = vadd.f32 %v124, %v310
    %v312 = vpop.f32.mrf.mxu0
    %313 = vmatprep.mubr.f32.mxu0 0.0
    %314 = vmatmul.mubr.f32.gmra.mxu0 %v172
    %v315 = vpop.f32.mrf.mxu0
    %v316 = vadd.f32 %v124, %v315
    %v317 = vpop.f32.mrf.mxu0
    %318 = vdwg.mxu0
    %320 = vrot.lane.b32.xlu0 %v93, 32
    %v321 = vpop.permute.xlu0 %320
    %v323 = vmul.f32 %v241, %v321
    %v324 = vmul.f32 %v246, %v321
    %v325 = vmul.f32 %v251, %v321
    %v326 = vmul.f32 %v256, %v321
    %v327 = vmul.f32 %v261, %v321
    %v328 = vmul.f32 %v266, %v321
    %v329 = vmul.f32 %v271, %v321
    %v330 = vmul.f32 %v276, %v321
    %v331 = vmul.f32 %v281, %v321
    %v332 = vmul.f32 %v286, %v321
    %v333 = vmul.f32 %v291, %v321
    %v334 = vmul.f32 %v296, %v321
    %v335 = vmul.f32 %v301, %v321
    %v336 = vmul.f32 %v306, %v321
    %v337 = vmul.f32 %v311, %v321
    %v338 = vmul.f32 %v316, %v321
    %340 = vrot.lane.b32.xlu0 %v98, 32
    %v341 = vpop.permute.xlu0 %340
    %v343 = vmul.f32 %v241, %v341
    %v344 = vmul.f32 %v246, %v341
    %v345 = vmul.f32 %v251, %v341
    %v346 = vmul.f32 %v256, %v341
    %v347 = vmul.f32 %v261, %v341
    %v348 = vmul.f32 %v266, %v341
    %v349 = vmul.f32 %v271, %v341
    %v350 = vmul.f32 %v276, %v341
    %v351 = vmul.f32 %v281, %v341
    %v352 = vmul.f32 %v286, %v341
    %v353 = vmul.f32 %v291, %v341
    %v354 = vmul.f32 %v296, %v341
    %v355 = vmul.f32 %v301, %v341
    %v356 = vmul.f32 %v306, %v341
    %v357 = vmul.f32 %v311, %v341
    %v358 = vmul.f32 %v316, %v341
    %360 = vrot.lane.b32.xlu0 %v103, 32
    %v361 = vpop.permute.xlu0 %360
    %v363 = vmul.f32 %v241, %v361
    %v364 = vmul.f32 %v246, %v361
    %v365 = vmul.f32 %v251, %v361
    %v366 = vmul.f32 %v256, %v361
    %v367 = vmul.f32 %v261, %v361
    %v368 = vmul.f32 %v266, %v361
    %v369 = vmul.f32 %v271, %v361
    %v370 = vmul.f32 %v276, %v361
    %v371 = vmul.f32 %v281, %v361
    %v372 = vmul.f32 %v286, %v361
    %v373 = vmul.f32 %v291, %v361
    %v374 = vmul.f32 %v296, %v361
    %v375 = vmul.f32 %v301, %v361
    %v376 = vmul.f32 %v306, %v361
    %v377 = vmul.f32 %v311, %v361
    %v378 = vmul.f32 %v316, %v361
    %380 = vrot.lane.b32.xlu0 %v108, 32
    %v381 = vpop.permute.xlu0 %380
    %v383 = vmul.f32 %v241, %v381
    %v384 = vmul.f32 %v246, %v381
    %v385 = vmul.f32 %v251, %v381
    %v386 = vmul.f32 %v256, %v381
    %v387 = vmul.f32 %v261, %v381
    %v388 = vmul.f32 %v266, %v381
    %v389 = vmul.f32 %v271, %v381
    %v390 = vmul.f32 %v276, %v381
    %v391 = vmul.f32 %v281, %v381
    %v392 = vmul.f32 %v286, %v381
    %v393 = vmul.f32 %v291, %v381
    %v394 = vmul.f32 %v296, %v381
    %v395 = vmul.f32 %v301, %v381
    %v396 = vmul.f32 %v306, %v381
    %v397 = vmul.f32 %v311, %v381
    %v398 = vmul.f32 %v316, %v381
    %399 = vrot.lane.b32.xlu0 %v93, 64
    %v400 = vpop.permute.xlu0 %399
    %v402 = vmul.f32 %v241, %v400
    %v403 = vmul.f32 %v246, %v400
    %v404 = vmul.f32 %v251, %v400
    %v405 = vmul.f32 %v256, %v400
    %v406 = vmul.f32 %v261, %v400
    %v407 = vmul.f32 %v266, %v400
    %v408 = vmul.f32 %v271, %v400
    %v409 = vmul.f32 %v276, %v400
    %v410 = vmul.f32 %v281, %v400
    %v411 = vmul.f32 %v286, %v400
    %v412 = vmul.f32 %v291, %v400
    %v413 = vmul.f32 %v296, %v400
    %v414 = vmul.f32 %v301, %v400
    %v415 = vmul.f32 %v306, %v400
    %v416 = vmul.f32 %v311, %v400
    %v417 = vmul.f32 %v316, %v400
    %418 = vrot.lane.b32.xlu0 %v98, 64
    %v419 = vpop.permute.xlu0 %418
    %v421 = vmul.f32 %v241, %v419
    %v422 = vmul.f32 %v246, %v419
    %v423 = vmul.f32 %v251, %v419
    %v424 = vmul.f32 %v256, %v419
    %v425 = vmul.f32 %v261, %v419
    %v426 = vmul.f32 %v266, %v419
    %v427 = vmul.f32 %v271, %v419
    %v428 = vmul.f32 %v276, %v419
    %v429 = vmul.f32 %v281, %v419
    %v430 = vmul.f32 %v286, %v419
    %v431 = vmul.f32 %v291, %v419
    %v432 = vmul.f32 %v296, %v419
    %v433 = vmul.f32 %v301, %v419
    %v434 = vmul.f32 %v306, %v419
    %v435 = vmul.f32 %v311, %v419
    %v436 = vmul.f32 %v316, %v419
    %437 = vrot.lane.b32.xlu0 %v103, 64
    %v438 = vpop.permute.xlu0 %437
    %v440 = vmul.f32 %v241, %v438
    %v441 = vmul.f32 %v246, %v438
    %v442 = vmul.f32 %v251, %v438
    %v443 = vmul.f32 %v256, %v438
    %v444 = vmul.f32 %v261, %v438
    %v445 = vmul.f32 %v266, %v438
    %v446 = vmul.f32 %v271, %v438
    %v447 = vmul.f32 %v276, %v438
    %v448 = vmul.f32 %v281, %v438
    %v449 = vmul.f32 %v286, %v438
    %v450 = vmul.f32 %v291, %v438
    %v451 = vmul.f32 %v296, %v438
    %v452 = vmul.f32 %v301, %v438
    %v453 = vmul.f32 %v306, %v438
    %v454 = vmul.f32 %v311, %v438
    %v455 = vmul.f32 %v316, %v438
    %456 = vrot.lane.b32.xlu0 %v108, 64
    %v457 = vpop.permute.xlu0 %456
    %v459 = vmul.f32 %v241, %v457
    %v460 = vmul.f32 %v246, %v457
    %v461 = vmul.f32 %v251, %v457
    %v462 = vmul.f32 %v256, %v457
    %v463 = vmul.f32 %v261, %v457
    %v464 = vmul.f32 %v266, %v457
    %v465 = vmul.f32 %v271, %v457
    %v466 = vmul.f32 %v276, %v457
    %v467 = vmul.f32 %v281, %v457
    %v468 = vmul.f32 %v286, %v457
    %v469 = vmul.f32 %v291, %v457
    %v470 = vmul.f32 %v296, %v457
    %v471 = vmul.f32 %v301, %v457
    %v472 = vmul.f32 %v306, %v457
    %v473 = vmul.f32 %v311, %v457
    %v474 = vmul.f32 %v316, %v457
    %507 = vrot.lane.b32.xlu0 %v323, 96
    %v508 = vpop.permute.xlu0 %507
    %509 = vrot.lane.b32.xlu0 %v324, 96
    %v510 = vpop.permute.xlu0 %509
    %511 = vrot.lane.b32.xlu0 %v325, 96
    %v512 = vpop.permute.xlu0 %511
    %513 = vrot.lane.b32.xlu0 %v326, 96
    %v514 = vpop.permute.xlu0 %513
    %515 = vrot.lane.b32.xlu0 %v327, 96
    %v516 = vpop.permute.xlu0 %515
    %517 = vrot.lane.b32.xlu0 %v328, 96
    %v518 = vpop.permute.xlu0 %517
    %519 = vrot.lane.b32.xlu0 %v329, 96
    %v520 = vpop.permute.xlu0 %519
    %521 = vrot.lane.b32.xlu0 %v330, 96
    %v522 = vpop.permute.xlu0 %521
    %523 = vrot.lane.b32.xlu0 %v343, 96
    %v524 = vpop.permute.xlu0 %523
    %525 = vrot.lane.b32.xlu0 %v344, 96
    %v526 = vpop.permute.xlu0 %525
    %527 = vrot.lane.b32.xlu0 %v345, 96
    %v528 = vpop.permute.xlu0 %527
    %529 = vrot.lane.b32.xlu0 %v346, 96
    %v530 = vpop.permute.xlu0 %529
    %531 = vrot.lane.b32.xlu0 %v347, 96
    %v532 = vpop.permute.xlu0 %531
    %533 = vrot.lane.b32.xlu0 %v348, 96
    %v534 = vpop.permute.xlu0 %533
    %535 = vrot.lane.b32.xlu0 %v349, 96
    %v536 = vpop.permute.xlu0 %535
    %537 = vrot.lane.b32.xlu0 %v350, 96
    %v538 = vpop.permute.xlu0 %537
    %539 = vrot.lane.b32.xlu0 %v363, 96
    %v540 = vpop.permute.xlu0 %539
    %541 = vrot.lane.b32.xlu0 %v364, 96
    %v542 = vpop.permute.xlu0 %541
    %543 = vrot.lane.b32.xlu0 %v365, 96
    %v544 = vpop.permute.xlu0 %543
    %545 = vrot.lane.b32.xlu0 %v366, 96
    %v546 = vpop.permute.xlu0 %545
    %547 = vrot.lane.b32.xlu0 %v367, 96
    %v548 = vpop.permute.xlu0 %547
    %549 = vrot.lane.b32.xlu0 %v368, 96
    %v550 = vpop.permute.xlu0 %549
    %551 = vrot.lane.b32.xlu0 %v369, 96
    %v552 = vpop.permute.xlu0 %551
    %553 = vrot.lane.b32.xlu0 %v370, 96
    %v554 = vpop.permute.xlu0 %553
    %555 = vrot.lane.b32.xlu0 %v383, 96
    %v556 = vpop.permute.xlu0 %555
    %557 = vrot.lane.b32.xlu0 %v384, 96
    %v558 = vpop.permute.xlu0 %557
    %559 = vrot.lane.b32.xlu0 %v385, 96
    %v560 = vpop.permute.xlu0 %559
    %561 = vrot.lane.b32.xlu0 %v386, 96
    %v562 = vpop.permute.xlu0 %561
    %563 = vrot.lane.b32.xlu0 %v387, 96
    %v564 = vpop.permute.xlu0 %563
    %565 = vrot.lane.b32.xlu0 %v388, 96
    %v566 = vpop.permute.xlu0 %565
    %567 = vrot.lane.b32.xlu0 %v389, 96
    %v568 = vpop.permute.xlu0 %567
    %569 = vrot.lane.b32.xlu0 %v390, 96
    %v570 = vpop.permute.xlu0 %569
    %v572 = vsel %vm125, %v241, 0
    %v575 = vsel %vm125, %v246, 0
    %v578 = vsel %vm125, %v251, 0
    %v581 = vsel %vm125, %v256, 0
    %v584 = vsel %vm125, %v261, 0
    %v587 = vsel %vm125, %v266, 0
    %v590 = vsel %vm125, %v271, 0
    %v593 = vsel %vm125, %v276, 0
    %v595 = vsel %vm125, %v508, 0
    %v597 = vsel %vm125, %v510, 0
    %v599 = vsel %vm125, %v512, 0
    %v601 = vsel %vm125, %v514, 0
    %v603 = vsel %vm125, %v516, 0
    %v605 = vsel %vm125, %v518, 0
    %v607 = vsel %vm125, %v520, 0
    %v609 = vsel %vm125, %v522, 0
    %v611 = vsel %vm125, %v524, 0
    %v613 = vsel %vm125, %v526, 0
    %v615 = vsel %vm125, %v528, 0
    %v617 = vsel %vm125, %v530, 0
    %v619 = vsel %vm125, %v532, 0
    %v621 = vsel %vm125, %v534, 0
    %v623 = vsel %vm125, %v536, 0
    %v625 = vsel %vm125, %v538, 0
    %v627 = vsel %vm125, %v540, 0
    %v629 = vsel %vm125, %v542, 0
    %v631 = vsel %vm125, %v544, 0
    %v633 = vsel %vm125, %v546, 0
    %v635 = vsel %vm125, %v548, 0
    %v637 = vsel %vm125, %v550, 0
    %v639 = vsel %vm125, %v552, 0
    %v641 = vsel %vm125, %v554, 0
    %v643 = vsel %vm125, %v556, 0
    %v645 = vsel %vm125, %v558, 0
    %v647 = vsel %vm125, %v560, 0
    %v649 = vsel %vm125, %v562, 0
    %v651 = vsel %vm125, %v564, 0
    %v653 = vsel %vm125, %v566, 0
    %v655 = vsel %vm125, %v568, 0
    %v657 = vsel %vm125, %v570, 0
    %659 = vmatprep.subr.mxu0 0.0
    %660 = vmatpush1.xpose.msra.mxu0 %v625
    %661 = vmatprep.subr.mxu0 0.0
    %662 = vmatpush1.xpose.msra.mxu0 %v623
    %663 = vmatprep.subr.mxu0 0.0
    %664 = vmatpush1.xpose.msra.mxu0 %v621
    %665 = vmatprep.subr.mxu0 0.0
    %666 = vmatpush1.xpose.msra.mxu0 %v619
    %667 = vmatprep.subr.mxu0 0.0
    %668 = vmatpush1.xpose.msra.mxu0 %v617
    %669 = vmatprep.subr.mxu0 0.0
    %670 = vmatpush1.xpose.msra.mxu0 %v615
    %671 = vmatprep.subr.mxu0 0.0
    %672 = vmatpush1.xpose.msra.mxu0 %v613
    %673 = vmatprep.subr.mxu0 0.0
    %674 = vmatpush1.xpose.msra.mxu0 %v611
    %675 = vmatprep.subr.mxu0 0.0
    %676 = vmatpush1.xpose.msra.mxu0 %v609
    %677 = vmatprep.subr.mxu0 0.0
    %678 = vmatpush1.xpose.msra.mxu0 %v607
    %679 = vmatprep.subr.mxu0 0.0
    %680 = vmatpush1.xpose.msra.mxu0 %v605
    %681 = vmatprep.subr.mxu0 0.0
    %682 = vmatpush1.xpose.msra.mxu0 %v603
    %683 = vmatprep.subr.mxu0 0.0
    %684 = vmatpush1.xpose.msra.mxu0 %v601
    %685 = vmatprep.subr.mxu0 0.0
    %686 = vmatpush1.xpose.msra.mxu0 %v599
    %687 = vmatprep.subr.mxu0 0.0
    %688 = vmatpush1.xpose.msra.mxu0 %v597
    %689 = vmatprep.subr.mxu0 0.0
    %690 = vmatpush1.xpose.msra.mxu0 %v595
    %691 = vmatprep.subr.mxu0 0.0
    %692 = vmatpush2.xpose.msra.mxu0 %v657
    %693 = vmatprep.subr.mxu0 0.0
    %694 = vmatpush2.xpose.msra.mxu0 %v655
    %695 = vmatprep.subr.mxu0 0.0
    %696 = vmatpush2.xpose.msra.mxu0 %v653
    %697 = vmatprep.subr.mxu0 0.0
    %698 = vmatpush2.xpose.msra.mxu0 %v651
    %699 = vmatprep.subr.mxu0 0.0
    %700 = vmatpush2.xpose.msra.mxu0 %v649
    %701 = vmatprep.subr.mxu0 0.0
    %702 = vmatpush2.xpose.msra.mxu0 %v647
    %703 = vmatprep.subr.mxu0 0.0
    %704 = vmatpush2.xpose.msra.mxu0 %v645
    %705 = vmatprep.subr.mxu0 0.0
    %706 = vmatpush2.xpose.msra.mxu0 %v643
    %707 = vmatprep.subr.mxu0 0.0
    %708 = vmatpush2.xpose.msra.mxu0 %v641
    %709 = vmatprep.subr.mxu0 0.0
    %710 = vmatpush2.xpose.msra.mxu0 %v639
    %711 = vmatprep.subr.mxu0 0.0
    %712 = vmatpush2.xpose.msra.mxu0 %v637
    %713 = vmatprep.subr.mxu0 0.0
    %714 = vmatpush2.xpose.msra.mxu0 %v635
    %715 = vmatprep.subr.mxu0 0.0
    %716 = vmatpush2.xpose.msra.mxu0 %v633
    %717 = vmatprep.subr.mxu0 0.0
    %718 = vmatpush2.xpose.msra.mxu0 %v631
    %719 = vmatprep.subr.mxu0 0.0
    %720 = vmatpush2.xpose.msra.mxu0 %v629
    %721 = vmatprep.subr.mxu0 0.0
    %722 = vmatpush2.xpose.msra.mxu0 %v627
    %723 = vmatprep.mubr.f32.mxu0 0.0
    %724 = vmatmul.mubr.f32.gmra.mxu0 %v572
    %v725 = vpop.f32.mrf.mxu0
    %v726 = vadd.f32 0.0, %v725
    %v727 = vpop.f32.mrf.mxu0
    %v728 = vadd.f32 0.0, %v727
    %729 = vmatprep.mubr.f32.mxu0 0.0
    %730 = vmatmul.mubr.f32.gmra.mxu0 %v575
    %v731 = vpop.f32.mrf.mxu0
    %v732 = vadd.f32 0.0, %v731
    %v733 = vpop.f32.mrf.mxu0
    %v734 = vadd.f32 0.0, %v733
    %735 = vmatprep.mubr.f32.mxu0 0.0
    %736 = vmatmul.mubr.f32.gmra.mxu0 %v578
    %v737 = vpop.f32.mrf.mxu0
    %v738 = vadd.f32 0.0, %v737
    %v739 = vpop.f32.mrf.mxu0
    %v740 = vadd.f32 0.0, %v739
    %741 = vmatprep.mubr.f32.mxu0 0.0
    %742 = vmatmul.mubr.f32.gmra.mxu0 %v581
    %v743 = vpop.f32.mrf.mxu0
    %v744 = vadd.f32 0.0, %v743
    %v745 = vpop.f32.mrf.mxu0
    %v746 = vadd.f32 0.0, %v745
    %747 = vmatprep.mubr.f32.mxu0 0.0
    %748 = vmatmul.mubr.f32.gmra.mxu0 %v584
    %v749 = vpop.f32.mrf.mxu0
    %v750 = vadd.f32 0.0, %v749
    %v751 = vpop.f32.mrf.mxu0
    %v752 = vadd.f32 0.0, %v751
    %753 = vmatprep.mubr.f32.mxu0 0.0
    %754 = vmatmul.mubr.f32.gmra.mxu0 %v587
    %v755 = vpop.f32.mrf.mxu0
    %v756 = vadd.f32 0.0, %v755
    %v757 = vpop.f32.mrf.mxu0
    %v758 = vadd.f32 0.0, %v757
    %759 = vmatprep.mubr.f32.mxu0 0.0
    %760 = vmatmul.mubr.f32.gmra.mxu0 %v590
    %v761 = vpop.f32.mrf.mxu0
    %v762 = vadd.f32 0.0, %v761
    %v763 = vpop.f32.mrf.mxu0
    %v764 = vadd.f32 0.0, %v763
    %765 = vmatprep.mubr.f32.mxu0 0.0
    %766 = vmatmul.mubr.f32.gmra.mxu0 %v593
    %v767 = vpop.f32.mrf.mxu0
    %v768 = vadd.f32 0.0, %v767
    %v769 = vpop.f32.mrf.mxu0
    %v770 = vadd.f32 0.0, %v769
    %771 = vdwg.mxu0
    %vm772 = vcmask 523264
    %v773 = vsel %vm772, %v726, -inf
    %774 = vmax.xlane.f32.xlu0 %v773
    %v775 = vpop.xlane.xlu0 %774
    %v776 = vsel %vm772, %v732, -inf
    %777 = vmax.xlane.f32.xlu0 %v776
    %v778 = vpop.xlane.xlu0 %777
    %v779 = vsel %vm772, %v738, -inf
    %780 = vmax.xlane.f32.xlu0 %v779
    %v781 = vpop.xlane.xlu0 %780
    %v782 = vsel %vm772, %v744, -inf
    %783 = vmax.xlane.f32.xlu0 %v782
    %v784 = vpop.xlane.xlu0 %783
    %v785 = vsel %vm772, %v750, -inf
    %786 = vmax.xlane.f32.xlu0 %v785
    %v787 = vpop.xlane.xlu0 %786
    %v788 = vsel %vm772, %v756, -inf
    %789 = vmax.xlane.f32.xlu0 %v788
    %v790 = vpop.xlane.xlu0 %789
    %v791 = vsel %vm772, %v762, -inf
    %792 = vmax.xlane.f32.xlu0 %v791
    %v793 = vpop.xlane.xlu0 %792
    %v794 = vsel %vm772, %v768, -inf
    %795 = vmax.xlane.f32.xlu0 %v794
    %v796 = vpop.xlane.xlu0 %795
    %v797 = vsub.f32 %v726, %v775
    %v798 = vsub.f32 %v732, %v778
    %v799 = vsub.f32 %v738, %v781
    %v800 = vsub.f32 %v744, %v784
    %v801 = vsub.f32 %v750, %v787
    %v802 = vsub.f32 %v756, %v790
    %v803 = vsub.f32 %v762, %v793
    %v804 = vsub.f32 %v768, %v796
    %v805 = vmul.f32 %v797, 1.442695
    %v806 = vpow.pop %v805
    %v807 = vmul.f32 %v798, 1.442695
    %v808 = vpow.pop %v807
    %v809 = vmul.f32 %v799, 1.442695
    %v810 = vpow.pop %v809
    %v811 = vmul.f32 %v800, 1.442695
    %v812 = vpow.pop %v811
    %v813 = vmul.f32 %v801, 1.442695
    %v814 = vpow.pop %v813
    %v815 = vmul.f32 %v802, 1.442695
    %v816 = vpow.pop %v815
    %v817 = vmul.f32 %v803, 1.442695
    %v818 = vpow.pop %v817
    %v819 = vmul.f32 %v804, 1.442695
    %v820 = vpow.pop %v819
    %v821 = vsel %vm772, %v806, 0.0
    %822 = vadd.xlane.f32.xlu0 %v821
    %v823 = vpop.xlane.xlu0 %822
    %v824 = vsel %vm772, %v808, 0.0
    %825 = vadd.xlane.f32.xlu0 %v824
    %v826 = vpop.xlane.xlu0 %825
    %v827 = vsel %vm772, %v810, 0.0
    %828 = vadd.xlane.f32.xlu0 %v827
    %v829 = vpop.xlane.xlu0 %828
    %v830 = vsel %vm772, %v812, 0.0
    %831 = vadd.xlane.f32.xlu0 %v830
    %v832 = vpop.xlane.xlu0 %831
    %v833 = vsel %vm772, %v814, 0.0
    %834 = vadd.xlane.f32.xlu0 %v833
    %v835 = vpop.xlane.xlu0 %834
    %v836 = vsel %vm772, %v816, 0.0
    %837 = vadd.xlane.f32.xlu0 %v836
    %v838 = vpop.xlane.xlu0 %837
    %v839 = vsel %vm772, %v818, 0.0
    %840 = vadd.xlane.f32.xlu0 %v839
    %v841 = vpop.xlane.xlu0 %840
    %v842 = vsel %vm772, %v820, 0.0
    %843 = vadd.xlane.f32.xlu0 %v842
    %v844 = vpop.xlane.xlu0 %843
    %v845 = vrcp.pop %v823
    %v846 = vrcp.pop %v826
    %v847 = vrcp.pop %v829
    %v848 = vrcp.pop %v832
    %v849 = vrcp.pop %v835
    %v850 = vrcp.pop %v838
    %v851 = vrcp.pop %v841
    %v852 = vrcp.pop %v844
    %v853 = vmul.f32 %v806, %v845
    %v854 = vmul.f32 %v808, %v846
    %v855 = vmul.f32 %v810, %v847
    %v856 = vmul.f32 %v812, %v848
    %v857 = vmul.f32 %v814, %v849
    %v858 = vmul.f32 %v816, %v850
    %v859 = vmul.f32 %v818, %v851
    %v860 = vmul.f32 %v820, %v852
    %vm861 = vcmask 1048064
    %v862 = vsel %vm861, %v726, -inf
    %863 = vmax.xlane.f32.xlu0 %v862
    %v864 = vpop.xlane.xlu0 %863
    %v865 = vsel %vm861, %v732, -inf
    %866 = vmax.xlane.f32.xlu0 %v865
    %v867 = vpop.xlane.xlu0 %866
    %v868 = vsel %vm861, %v738, -inf
    %869 = vmax.xlane.f32.xlu0 %v868
    %v870 = vpop.xlane.xlu0 %869
    %v871 = vsel %vm861, %v744, -inf
    %872 = vmax.xlane.f32.xlu0 %v871
    %v873 = vpop.xlane.xlu0 %872
    %v874 = vsel %vm861, %v750, -inf
    %875 = vmax.xlane.f32.xlu0 %v874
    %v876 = vpop.xlane.xlu0 %875
    %v877 = vsel %vm861, %v756, -inf
    %878 = vmax.xlane.f32.xlu0 %v877
    %v879 = vpop.xlane.xlu0 %878
    %v880 = vsel %vm861, %v762, -inf
    %881 = vmax.xlane.f32.xlu0 %v880
    %v882 = vpop.xlane.xlu0 %881
    %v883 = vsel %vm861, %v768, -inf
    %884 = vmax.xlane.f32.xlu0 %v883
    %v885 = vpop.xlane.xlu0 %884
    %v886 = vsub.f32 %v726, %v864
    %v887 = vsub.f32 %v732, %v867
    %v888 = vsub.f32 %v738, %v870
    %v889 = vsub.f32 %v744, %v873
    %v890 = vsub.f32 %v750, %v876
    %v891 = vsub.f32 %v756, %v879
    %v892 = vsub.f32 %v762, %v882
    %v893 = vsub.f32 %v768, %v885
    %v894 = vmul.f32 %v886, 1.442695
    %v895 = vpow.pop %v894
    %v896 = vmul.f32 %v887, 1.442695
    %v897 = vpow.pop %v896
    %v898 = vmul.f32 %v888, 1.442695
    %v899 = vpow.pop %v898
    %v900 = vmul.f32 %v889, 1.442695
    %v901 = vpow.pop %v900
    %v902 = vmul.f32 %v890, 1.442695
    %v903 = vpow.pop %v902
    %v904 = vmul.f32 %v891, 1.442695
    %v905 = vpow.pop %v904
    %v906 = vmul.f32 %v892, 1.442695
    %v907 = vpow.pop %v906
    %v908 = vmul.f32 %v893, 1.442695
    %v909 = vpow.pop %v908
    %918 = vrot.lane.b32.xlu0 %v895, 64
    %v919 = vpop.permute.xlu0 %918
    %920 = vrot.lane.b32.xlu0 %v897, 64
    %v921 = vpop.permute.xlu0 %920
    %922 = vrot.lane.b32.xlu0 %v899, 64
    %v923 = vpop.permute.xlu0 %922
    %924 = vrot.lane.b32.xlu0 %v901, 64
    %v925 = vpop.permute.xlu0 %924
    %926 = vrot.lane.b32.xlu0 %v903, 64
    %v927 = vpop.permute.xlu0 %926
    %928 = vrot.lane.b32.xlu0 %v905, 64
    %v929 = vpop.permute.xlu0 %928
    %930 = vrot.lane.b32.xlu0 %v907, 64
    %v931 = vpop.permute.xlu0 %930
    %932 = vrot.lane.b32.xlu0 %v909, 64
    %v933 = vpop.permute.xlu0 %932
    %v942 = vsel %vm772, %v919, 0.0
    %943 = vadd.xlane.f32.xlu0 %v942
    %v944 = vpop.xlane.xlu0 %943
    %v945 = vsel %vm772, %v921, 0.0
    %946 = vadd.xlane.f32.xlu0 %v945
    %v947 = vpop.xlane.xlu0 %946
    %v948 = vsel %vm772, %v923, 0.0
    %949 = vadd.xlane.f32.xlu0 %v948
    %v950 = vpop.xlane.xlu0 %949
    %v951 = vsel %vm772, %v925, 0.0
    %952 = vadd.xlane.f32.xlu0 %v951
    %v953 = vpop.xlane.xlu0 %952
    %v954 = vsel %vm772, %v927, 0.0
    %955 = vadd.xlane.f32.xlu0 %v954
    %v956 = vpop.xlane.xlu0 %955
    %v957 = vsel %vm772, %v929, 0.0
    %958 = vadd.xlane.f32.xlu0 %v957
    %v959 = vpop.xlane.xlu0 %958
    %v960 = vsel %vm772, %v931, 0.0
    %961 = vadd.xlane.f32.xlu0 %v960
    %v962 = vpop.xlane.xlu0 %961
    %v963 = vsel %vm772, %v933, 0.0
    %964 = vadd.xlane.f32.xlu0 %v963
    %v965 = vpop.xlane.xlu0 %964
    %v966 = vrcp.pop %v944
    %v967 = vrcp.pop %v947
    %v968 = vrcp.pop %v950
    %v969 = vrcp.pop %v953
    %v970 = vrcp.pop %v956
    %v971 = vrcp.pop %v959
    %v972 = vrcp.pop %v962
    %v973 = vrcp.pop %v965
    %v974 = vmul.f32 %v895, %v966
    %v975 = vmul.f32 %v897, %v967
    %v976 = vmul.f32 %v899, %v968
    %v977 = vmul.f32 %v901, %v969
    %v978 = vmul.f32 %v903, %v970
    %v979 = vmul.f32 %v905, %v971
    %v980 = vmul.f32 %v907, %v972
    %v981 = vmul.f32 %v909, %v973
    %v982 = vsel %vm772, %v728, -inf
    %983 = vmax.xlane.f32.xlu0 %v982
    %v984 = vpop.xlane.xlu0 %983
    %v985 = vsel %vm772, %v734, -inf
    %986 = vmax.xlane.f32.xlu0 %v985
    %v987 = vpop.xlane.xlu0 %986
    %v988 = vsel %vm772, %v740, -inf
    %989 = vmax.xlane.f32.xlu0 %v988
    %v990 = vpop.xlane.xlu0 %989
    %v991 = vsel %vm772, %v746, -inf
    %992 = vmax.xlane.f32.xlu0 %v991
    %v993 = vpop.xlane.xlu0 %992
    %v994 = vsel %vm772, %v752, -inf
    %995 = vmax.xlane.f32.xlu0 %v994
    %v996 = vpop.xlane.xlu0 %995
    %v997 = vsel %vm772, %v758, -inf
    %998 = vmax.xlane.f32.xlu0 %v997
    %v999 = vpop.xlane.xlu0 %998
    %v1000 = vsel %vm772, %v764, -inf
    %1001 = vmax.xlane.f32.xlu0 %v1000
    %v1002 = vpop.xlane.xlu0 %1001
    %v1003 = vsel %vm772, %v770, -inf
    %1004 = vmax.xlane.f32.xlu0 %v1003
    %v1005 = vpop.xlane.xlu0 %1004
    %v1006 = vsub.f32 %v728, %v984
    %v1007 = vsub.f32 %v734, %v987
    %v1008 = vsub.f32 %v740, %v990
    %v1009 = vsub.f32 %v746, %v993
    %v1010 = vsub.f32 %v752, %v996
    %v1011 = vsub.f32 %v758, %v999
    %v1012 = vsub.f32 %v764, %v1002
    %v1013 = vsub.f32 %v770, %v1005
    %v1014 = vmul.f32 %v1006, 1.442695
    %v1015 = vpow.pop %v1014
    %v1016 = vmul.f32 %v1007, 1.442695
    %v1017 = vpow.pop %v1016
    %v1018 = vmul.f32 %v1008, 1.442695
    %v1019 = vpow.pop %v1018
    %v1020 = vmul.f32 %v1009, 1.442695
    %v1021 = vpow.pop %v1020
    %v1022 = vmul.f32 %v1010, 1.442695
    %v1023 = vpow.pop %v1022
    %v1024 = vmul.f32 %v1011, 1.442695
    %v1025 = vpow.pop %v1024
    %v1026 = vmul.f32 %v1012, 1.442695
    %v1027 = vpow.pop %v1026
    %v1028 = vmul.f32 %v1013, 1.442695
    %v1029 = vpow.pop %v1028
    %v1030 = vsel %vm772, %v1015, 0.0
    %1031 = vadd.xlane.f32.xlu0 %v1030
    %v1032 = vpop.xlane.xlu0 %1031
    %v1033 = vsel %vm772, %v1017, 0.0
    %1034 = vadd.xlane.f32.xlu0 %v1033
    %v1035 = vpop.xlane.xlu0 %1034
    %v1036 = vsel %vm772, %v1019, 0.0
    %1037 = vadd.xlane.f32.xlu0 %v1036
    %v1038 = vpop.xlane.xlu0 %1037
    %v1039 = vsel %vm772, %v1021, 0.0
    %1040 = vadd.xlane.f32.xlu0 %v1039
    %v1041 = vpop.xlane.xlu0 %1040
    %v1042 = vsel %vm772, %v1023, 0.0
    %1043 = vadd.xlane.f32.xlu0 %v1042
    %v1044 = vpop.xlane.xlu0 %1043
    %v1045 = vsel %vm772, %v1025, 0.0
    %1046 = vadd.xlane.f32.xlu0 %v1045
    %v1047 = vpop.xlane.xlu0 %1046
    %v1048 = vsel %vm772, %v1027, 0.0
    %1049 = vadd.xlane.f32.xlu0 %v1048
    %v1050 = vpop.xlane.xlu0 %1049
    %v1051 = vsel %vm772, %v1029, 0.0
    %1052 = vadd.xlane.f32.xlu0 %v1051
    %v1053 = vpop.xlane.xlu0 %1052
    %v1054 = vrcp.pop %v1032
    %v1055 = vrcp.pop %v1035
    %v1056 = vrcp.pop %v1038
    %v1057 = vrcp.pop %v1041
    %v1058 = vrcp.pop %v1044
    %v1059 = vrcp.pop %v1047
    %v1060 = vrcp.pop %v1050
    %v1061 = vrcp.pop %v1053
    %v1062 = vmul.f32 %v1015, %v1054
    %v1063 = vmul.f32 %v1017, %v1055
    %v1064 = vmul.f32 %v1019, %v1056
    %v1065 = vmul.f32 %v1021, %v1057
    %v1066 = vmul.f32 %v1023, %v1058
    %v1067 = vmul.f32 %v1025, %v1059
    %v1068 = vmul.f32 %v1027, %v1060
    %v1069 = vmul.f32 %v1029, %v1061
    %v1070 = vsel %vm861, %v728, -inf
    %1071 = vmax.xlane.f32.xlu0 %v1070
    %v1072 = vpop.xlane.xlu0 %1071
    %v1073 = vsel %vm861, %v734, -inf
    %1074 = vmax.xlane.f32.xlu0 %v1073
    %v1075 = vpop.xlane.xlu0 %1074
    %v1076 = vsel %vm861, %v740, -inf
    %1077 = vmax.xlane.f32.xlu0 %v1076
    %v1078 = vpop.xlane.xlu0 %1077
    %v1079 = vsel %vm861, %v746, -inf
    %1080 = vmax.xlane.f32.xlu0 %v1079
    %v1081 = vpop.xlane.xlu0 %1080
    %v1082 = vsel %vm861, %v752, -inf
    %1083 = vmax.xlane.f32.xlu0 %v1082
    %v1084 = vpop.xlane.xlu0 %1083
    %v1085 = vsel %vm861, %v758, -inf
    %1086 = vmax.xlane.f32.xlu0 %v1085
    %v1087 = vpop.xlane.xlu0 %1086
    %v1088 = vsel %vm861, %v764, -inf
    %1089 = vmax.xlane.f32.xlu0 %v1088
    %v1090 = vpop.xlane.xlu0 %1089
    %v1091 = vsel %vm861, %v770, -inf
    %1092 = vmax.xlane.f32.xlu0 %v1091
    %v1093 = vpop.xlane.xlu0 %1092
    %v1094 = vsub.f32 %v728, %v1072
    %v1095 = vsub.f32 %v734, %v1075
    %v1096 = vsub.f32 %v740, %v1078
    %v1097 = vsub.f32 %v746, %v1081
    %v1098 = vsub.f32 %v752, %v1084
    %v1099 = vsub.f32 %v758, %v1087
    %v1100 = vsub.f32 %v764, %v1090
    %v1101 = vsub.f32 %v770, %v1093
    %v1102 = vmul.f32 %v1094, 1.442695
    %v1103 = vpow.pop %v1102
    %v1104 = vmul.f32 %v1095, 1.442695
    %v1105 = vpow.pop %v1104
    %v1106 = vmul.f32 %v1096, 1.442695
    %v1107 = vpow.pop %v1106
    %v1108 = vmul.f32 %v1097, 1.442695
    %v1109 = vpow.pop %v1108
    %v1110 = vmul.f32 %v1098, 1.442695
    %v1111 = vpow.pop %v1110
    %v1112 = vmul.f32 %v1099, 1.442695
    %v1113 = vpow.pop %v1112
    %v1114 = vmul.f32 %v1100, 1.442695
    %v1115 = vpow.pop %v1114
    %v1116 = vmul.f32 %v1101, 1.442695
    %v1117 = vpow.pop %v1116
    %1126 = vrot.lane.b32.xlu0 %v1103, 64
    %v1127 = vpop.permute.xlu0 %1126
    %1128 = vrot.lane.b32.xlu0 %v1105, 64
    %v1129 = vpop.permute.xlu0 %1128
    %1130 = vrot.lane.b32.xlu0 %v1107, 64
    %v1131 = vpop.permute.xlu0 %1130
    %1132 = vrot.lane.b32.xlu0 %v1109, 64
    %v1133 = vpop.permute.xlu0 %1132
    %1134 = vrot.lane.b32.xlu0 %v1111, 64
    %v1135 = vpop.permute.xlu0 %1134
    %1136 = vrot.lane.b32.xlu0 %v1113, 64
    %v1137 = vpop.permute.xlu0 %1136
    %1138 = vrot.lane.b32.xlu0 %v1115, 64
    %v1139 = vpop.permute.xlu0 %1138
    %1140 = vrot.lane.b32.xlu0 %v1117, 64
    %v1141 = vpop.permute.xlu0 %1140
    %v1150 = vsel %vm772, %v1127, 0.0
    %1151 = vadd.xlane.f32.xlu0 %v1150
    %v1152 = vpop.xlane.xlu0 %1151
    %v1153 = vsel %vm772, %v1129, 0.0
    %1154 = vadd.xlane.f32.xlu0 %v1153
    %v1155 = vpop.xlane.xlu0 %1154
    %v1156 = vsel %vm772, %v1131, 0.0
    %1157 = vadd.xlane.f32.xlu0 %v1156
    %v1158 = vpop.xlane.xlu0 %1157
    %v1159 = vsel %vm772, %v1133, 0.0
    %1160 = vadd.xlane.f32.xlu0 %v1159
    %v1161 = vpop.xlane.xlu0 %1160
    %v1162 = vsel %vm772, %v1135, 0.0
    %1163 = vadd.xlane.f32.xlu0 %v1162
    %v1164 = vpop.xlane.xlu0 %1163
    %v1165 = vsel %vm772, %v1137, 0.0
    %1166 = vadd.xlane.f32.xlu0 %v1165
    %v1167 = vpop.xlane.xlu0 %1166
    %v1168 = vsel %vm772, %v1139, 0.0
    %1169 = vadd.xlane.f32.xlu0 %v1168
    %v1170 = vpop.xlane.xlu0 %1169
    %v1171 = vsel %vm772, %v1141, 0.0
    %1172 = vadd.xlane.f32.xlu0 %v1171
    %v1173 = vpop.xlane.xlu0 %1172
    %v1174 = vrcp.pop %v1152
    %v1175 = vrcp.pop %v1155
    %v1176 = vrcp.pop %v1158
    %v1177 = vrcp.pop %v1161
    %v1178 = vrcp.pop %v1164
    %v1179 = vrcp.pop %v1167
    %v1180 = vrcp.pop %v1170
    %v1181 = vrcp.pop %v1173
    %v1182 = vmul.f32 %v1103, %v1174
    %v1183 = vmul.f32 %v1105, %v1175
    %v1184 = vmul.f32 %v1107, %v1176
    %v1185 = vmul.f32 %v1109, %v1177
    %v1186 = vmul.f32 %v1111, %v1178
    %v1187 = vmul.f32 %v1113, %v1179
    %v1188 = vmul.f32 %v1115, %v1180
    %v1189 = vmul.f32 %v1117, %v1181
    %v1190 = vsel %vm772, %v853, %v974
    %v1191 = vsel %vm772, %v854, %v975
    %v1192 = vsel %vm772, %v855, %v976
    %v1193 = vsel %vm772, %v856, %v977
    %v1194 = vsel %vm772, %v857, %v978
    %v1195 = vsel %vm772, %v858, %v979
    %v1196 = vsel %vm772, %v859, %v980
    %v1197 = vsel %vm772, %v860, %v981
    %v1198 = vsel %vm772, %v1062, %v1182
    %v1199 = vsel %vm772, %v1063, %v1183
    %v1200 = vsel %vm772, %v1064, %v1184
    %v1201 = vsel %vm772, %v1065, %v1185
    %v1202 = vsel %vm772, %v1066, %v1186
    %v1203 = vsel %vm772, %v1067, %v1187
    %v1204 = vsel %vm772, %v1068, %v1188
    %v1205 = vsel %vm772, %v1069, %v1189
    %1238 = vrot.lane.b32.xlu0 %v402, 64
    %v1239 = vpop.permute.xlu0 %1238
    %1240 = vrot.lane.b32.xlu0 %v403, 64
    %v1241 = vpop.permute.xlu0 %1240
    %1242 = vrot.lane.b32.xlu0 %v404, 64
    %v1243 = vpop.permute.xlu0 %1242
    %1244 = vrot.lane.b32.xlu0 %v405, 64
    %v1245 = vpop.permute.xlu0 %1244
    %1246 = vrot.lane.b32.xlu0 %v406, 64
    %v1247 = vpop.permute.xlu0 %1246
    %1248 = vrot.lane.b32.xlu0 %v407, 64
    %v1249 = vpop.permute.xlu0 %1248
    %1250 = vrot.lane.b32.xlu0 %v408, 64
    %v1251 = vpop.permute.xlu0 %1250
    %1252 = vrot.lane.b32.xlu0 %v409, 64
    %v1253 = vpop.permute.xlu0 %1252
    %1254 = vrot.lane.b32.xlu0 %v421, 64
    %v1255 = vpop.permute.xlu0 %1254
    %1256 = vrot.lane.b32.xlu0 %v422, 64
    %v1257 = vpop.permute.xlu0 %1256
    %1258 = vrot.lane.b32.xlu0 %v423, 64
    %v1259 = vpop.permute.xlu0 %1258
    %1260 = vrot.lane.b32.xlu0 %v424, 64
    %v1261 = vpop.permute.xlu0 %1260
    %1262 = vrot.lane.b32.xlu0 %v425, 64
    %v1263 = vpop.permute.xlu0 %1262
    %1264 = vrot.lane.b32.xlu0 %v426, 64
    %v1265 = vpop.permute.xlu0 %1264
    %1266 = vrot.lane.b32.xlu0 %v427, 64
    %v1267 = vpop.permute.xlu0 %1266
    %1268 = vrot.lane.b32.xlu0 %v428, 64
    %v1269 = vpop.permute.xlu0 %1268
    %1270 = vrot.lane.b32.xlu0 %v440, 64
    %v1271 = vpop.permute.xlu0 %1270
    %1272 = vrot.lane.b32.xlu0 %v441, 64
    %v1273 = vpop.permute.xlu0 %1272
    %1274 = vrot.lane.b32.xlu0 %v442, 64
    %v1275 = vpop.permute.xlu0 %1274
    %1276 = vrot.lane.b32.xlu0 %v443, 64
    %v1277 = vpop.permute.xlu0 %1276
    %1278 = vrot.lane.b32.xlu0 %v444, 64
    %v1279 = vpop.permute.xlu0 %1278
    %1280 = vrot.lane.b32.xlu0 %v445, 64
    %v1281 = vpop.permute.xlu0 %1280
    %1282 = vrot.lane.b32.xlu0 %v446, 64
    %v1283 = vpop.permute.xlu0 %1282
    %1284 = vrot.lane.b32.xlu0 %v447, 64
    %v1285 = vpop.permute.xlu0 %1284
    %1286 = vrot.lane.b32.xlu0 %v459, 64
    %v1287 = vpop.permute.xlu0 %1286
    %1288 = vrot.lane.b32.xlu0 %v460, 64
    %v1289 = vpop.permute.xlu0 %1288
    %1290 = vrot.lane.b32.xlu0 %v461, 64
    %v1291 = vpop.permute.xlu0 %1290
    %1292 = vrot.lane.b32.xlu0 %v462, 64
    %v1293 = vpop.permute.xlu0 %1292
    %1294 = vrot.lane.b32.xlu0 %v463, 64
    %v1295 = vpop.permute.xlu0 %1294
    %1296 = vrot.lane.b32.xlu0 %v464, 64
    %v1297 = vpop.permute.xlu0 %1296
    %1298 = vrot.lane.b32.xlu0 %v465, 64
    %v1299 = vpop.permute.xlu0 %1298
    %1300 = vrot.lane.b32.xlu0 %v466, 64
    %v1301 = vpop.permute.xlu0 %1300
    %1334 = vmatprep.subr.mxu0 0.0
    %1335 = vmatpush1.msra.mxu0 %v1269
    %1336 = vmatprep.subr.mxu0 0.0
    %1337 = vmatpush1.msra.mxu0 %v1267
    %1338 = vmatprep.subr.mxu0 0.0
    %1339 = vmatpush1.msra.mxu0 %v1265
    %1340 = vmatprep.subr.mxu0 0.0
    %1341 = vmatpush1.msra.mxu0 %v1263
    %1342 = vmatprep.subr.mxu0 0.0
    %1343 = vmatpush1.msra.mxu0 %v1261
    %1344 = vmatprep.subr.mxu0 0.0
    %1345 = vmatpush1.msra.mxu0 %v1259
    %1346 = vmatprep.subr.mxu0 0.0
    %1347 = vmatpush1.msra.mxu0 %v1257
    %1348 = vmatprep.subr.mxu0 0.0
    %1349 = vmatpush1.msra.mxu0 %v1255
    %1350 = vmatprep.subr.mxu0 0.0
    %1351 = vmatpush1.msra.mxu0 %v1253
    %1352 = vmatprep.subr.mxu0 0.0
    %1353 = vmatpush1.msra.mxu0 %v1251
    %1354 = vmatprep.subr.mxu0 0.0
    %1355 = vmatpush1.msra.mxu0 %v1249
    %1356 = vmatprep.subr.mxu0 0.0
    %1357 = vmatpush1.msra.mxu0 %v1247
    %1358 = vmatprep.subr.mxu0 0.0
    %1359 = vmatpush1.msra.mxu0 %v1245
    %1360 = vmatprep.subr.mxu0 0.0
    %1361 = vmatpush1.msra.mxu0 %v1243
    %1362 = vmatprep.subr.mxu0 0.0
    %1363 = vmatpush1.msra.mxu0 %v1241
    %1364 = vmatprep.subr.mxu0 0.0
    %1365 = vmatpush1.msra.mxu0 %v1239
    %1366 = vmatprep.subr.mxu0 0.0
    %1367 = vmatpush2.msra.mxu0 %v1301
    %1368 = vmatprep.subr.mxu0 0.0
    %1369 = vmatpush2.msra.mxu0 %v1299
    %1370 = vmatprep.subr.mxu0 0.0
    %1371 = vmatpush2.msra.mxu0 %v1297
    %1372 = vmatprep.subr.mxu0 0.0
    %1373 = vmatpush2.msra.mxu0 %v1295
    %1374 = vmatprep.subr.mxu0 0.0
    %1375 = vmatpush2.msra.mxu0 %v1293
    %1376 = vmatprep.subr.mxu0 0.0
    %1377 = vmatpush2.msra.mxu0 %v1291
    %1378 = vmatprep.subr.mxu0 0.0
    %1379 = vmatpush2.msra.mxu0 %v1289
    %1380 = vmatprep.subr.mxu0 0.0
    %1381 = vmatpush2.msra.mxu0 %v1287
    %1382 = vmatprep.subr.mxu0 0.0
    %1383 = vmatpush2.msra.mxu0 %v1285
    %1384 = vmatprep.subr.mxu0 0.0
    %1385 = vmatpush2.msra.mxu0 %v1283
    %1386 = vmatprep.subr.mxu0 0.0
    %1387 = vmatpush2.msra.mxu0 %v1281
    %1388 = vmatprep.subr.mxu0 0.0
    %1389 = vmatpush2.msra.mxu0 %v1279
    %1390 = vmatprep.subr.mxu0 0.0
    %1391 = vmatpush2.msra.mxu0 %v1277
    %1392 = vmatprep.subr.mxu0 0.0
    %1393 = vmatpush2.msra.mxu0 %v1275
    %1394 = vmatprep.subr.mxu0 0.0
    %1395 = vmatpush2.msra.mxu0 %v1273
    %1396 = vmatprep.subr.mxu0 0.0
    %1397 = vmatpush2.msra.mxu0 %v1271
    %1398 = vmatprep.mubr.f32.mxu0 %v1198
    %1399 = vmatmul.mubr.f32.gmra.mxu0 %v1190
    %v1400 = vpop.f32.mrf.mxu0
    %v1401 = vadd.f32 0.0, %v1400
    %v1402 = vpop.f32.mrf.mxu0
    %1403 = vmatprep.mubr.f32.mxu0 %v1199
    %1404 = vmatmul.mubr.f32.gmra.mxu0 %v1191
    %v1405 = vpop.f32.mrf.mxu0
    %v1406 = vadd.f32 0.0, %v1405
    %v1407 = vpop.f32.mrf.mxu0
    %1408 = vmatprep.mubr.f32.mxu0 %v1200
    %1409 = vmatmul.mubr.f32.gmra.mxu0 %v1192
    %v1410 = vpop.f32.mrf.mxu0
    %v1411 = vadd.f32 0.0, %v1410
    %v1412 = vpop.f32.mrf.mxu0
    %1413 = vmatprep.mubr.f32.mxu0 %v1201
    %1414 = vmatmul.mubr.f32.gmra.mxu0 %v1193
    %v1415 = vpop.f32.mrf.mxu0
    %v1416 = vadd.f32 0.0, %v1415
    %v1417 = vpop.f32.mrf.mxu0
    %1418 = vmatprep.mubr.f32.mxu0 %v1202
    %1419 = vmatmul.mubr.f32.gmra.mxu0 %v1194
    %v1420 = vpop.f32.mrf.mxu0
    %v1421 = vadd.f32 0.0, %v1420
    %v1422 = vpop.f32.mrf.mxu0
    %1423 = vmatprep.mubr.f32.mxu0 %v1203
    %1424 = vmatmul.mubr.f32.gmra.mxu0 %v1195
    %v1425 = vpop.f32.mrf.mxu0
    %v1426 = vadd.f32 0.0, %v1425
    %v1427 = vpop.f32.mrf.mxu0
    %1428 = vmatprep.mubr.f32.mxu0 %v1204
    %1429 = vmatmul.mubr.f32.gmra.mxu0 %v1196
    %v1430 = vpop.f32.mrf.mxu0
    %v1431 = vadd.f32 0.0, %v1430
    %v1432 = vpop.f32.mrf.mxu0
    %1433 = vmatprep.mubr.f32.mxu0 %v1205
    %1434 = vmatmul.mubr.f32.gmra.mxu0 %v1197
    %v1435 = vpop.f32.mrf.mxu0
    %v1436 = vadd.f32 0.0, %v1435
    %v1437 = vpop.f32.mrf.mxu0
    %1438 = vdwg.mxu0
    %1439 = vst.msk [vmem:[#allocation2] sm:$0xff] %vm125, %v1401
    %1440 = vst.msk [vmem:[#allocation2 + $0x8] sm:$0xff] %vm125, %v1406
    %1441 = vst.msk [vmem:[#allocation2 + $0x10] sm:$0xff] %vm125, %v1411
    %1442 = vst.msk [vmem:[#allocation2 + $0x18] sm:$0xff] %vm125, %v1416
    %1443 = vst.msk [vmem:[#allocation2 + $0x20] sm:$0xff] %vm125, %v1421
    %1444 = vst.msk [vmem:[#allocation2 + $0x28] sm:$0xff] %vm125, %v1426
    %1445 = vst.msk [vmem:[#allocation2 + $0x30] sm:$0xff] %vm125, %v1431
    %1446 = vst.msk [vmem:[#allocation2 + $0x38] sm:$0xff] %vm125, %v1436
    %1479 = vrot.lane.b32.xlu0 %v331, 96
    %v1480 = vpop.permute.xlu0 %1479
    %1481 = vrot.lane.b32.xlu0 %v332, 96
    %v1482 = vpop.permute.xlu0 %1481
    %1483 = vrot.lane.b32.xlu0 %v333, 96
    %v1484 = vpop.permute.xlu0 %1483
    %1485 = vrot.lane.b32.xlu0 %v334, 96
    %v1486 = vpop.permute.xlu0 %1485
    %1487 = vrot.lane.b32.xlu0 %v335, 96
    %v1488 = vpop.permute.xlu0 %1487
    %1489 = vrot.lane.b32.xlu0 %v336, 96
    %v1490 = vpop.permute.xlu0 %1489
    %1491 = vrot.lane.b32.xlu0 %v337, 96
    %v1492 = vpop.permute.xlu0 %1491
    %1493 = vrot.lane.b32.xlu0 %v338, 96
    %v1494 = vpop.permute.xlu0 %1493
    %1495 = vrot.lane.b32.xlu0 %v351, 96
    %v1496 = vpop.permute.xlu0 %1495
    %1497 = vrot.lane.b32.xlu0 %v352, 96
    %v1498 = vpop.permute.xlu0 %1497
    %1499 = vrot.lane.b32.xlu0 %v353, 96
    %v1500 = vpop.permute.xlu0 %1499
    %1501 = vrot.lane.b32.xlu0 %v354, 96
    %v1502 = vpop.permute.xlu0 %1501
    %1503 = vrot.lane.b32.xlu0 %v355, 96
    %v1504 = vpop.permute.xlu0 %1503
    %1505 = vrot.lane.b32.xlu0 %v356, 96
    %v1506 = vpop.permute.xlu0 %1505
    %1507 = vrot.lane.b32.xlu0 %v357, 96
    %v1508 = vpop.permute.xlu0 %1507
    %1509 = vrot.lane.b32.xlu0 %v358, 96
    %v1510 = vpop.permute.xlu0 %1509
    %1511 = vrot.lane.b32.xlu0 %v371, 96
    %v1512 = vpop.permute.xlu0 %1511
    %1513 = vrot.lane.b32.xlu0 %v372, 96
    %v1514 = vpop.permute.xlu0 %1513
    %1515 = vrot.lane.b32.xlu0 %v373, 96
    %v1516 = vpop.permute.xlu0 %1515
    %1517 = vrot.lane.b32.xlu0 %v374, 96
    %v1518 = vpop.permute.xlu0 %1517
    %1519 = vrot.lane.b32.xlu0 %v375, 96
    %v1520 = vpop.permute.xlu0 %1519
    %1521 = vrot.lane.b32.xlu0 %v376, 96
    %v1522 = vpop.permute.xlu0 %1521
    %1523 = vrot.lane.b32.xlu0 %v377, 96
    %v1524 = vpop.permute.xlu0 %1523
    %1525 = vrot.lane.b32.xlu0 %v378, 96
    %v1526 = vpop.permute.xlu0 %1525
    %1527 = vrot.lane.b32.xlu0 %v391, 96
    %v1528 = vpop.permute.xlu0 %1527
    %1529 = vrot.lane.b32.xlu0 %v392, 96
    %v1530 = vpop.permute.xlu0 %1529
    %1531 = vrot.lane.b32.xlu0 %v393, 96
    %v1532 = vpop.permute.xlu0 %1531
    %1533 = vrot.lane.b32.xlu0 %v394, 96
    %v1534 = vpop.permute.xlu0 %1533
    %1535 = vrot.lane.b32.xlu0 %v395, 96
    %v1536 = vpop.permute.xlu0 %1535
    %1537 = vrot.lane.b32.xlu0 %v396, 96
    %v1538 = vpop.permute.xlu0 %1537
    %1539 = vrot.lane.b32.xlu0 %v397, 96
    %v1540 = vpop.permute.xlu0 %1539
    %1541 = vrot.lane.b32.xlu0 %v398, 96
    %v1542 = vpop.permute.xlu0 %1541
    %v1544 = vsel %vm125, %v281, 0
    %v1547 = vsel %vm125, %v286, 0
    %v1550 = vsel %vm125, %v291, 0
    %v1553 = vsel %vm125, %v296, 0
    %v1556 = vsel %vm125, %v301, 0
    %v1559 = vsel %vm125, %v306, 0
    %v1562 = vsel %vm125, %v311, 0
    %v1565 = vsel %vm125, %v316, 0
    %v1567 = vsel %vm125, %v1480, 0
    %v1569 = vsel %vm125, %v1482, 0
    %v1571 = vsel %vm125, %v1484, 0
    %v1573 = vsel %vm125, %v1486, 0
    %v1575 = vsel %vm125, %v1488, 0
    %v1577 = vsel %vm125, %v1490, 0
    %v1579 = vsel %vm125, %v1492, 0
    %v1581 = vsel %vm125, %v1494, 0
    %v1583 = vsel %vm125, %v1496, 0
    %v1585 = vsel %vm125, %v1498, 0
    %v1587 = vsel %vm125, %v1500, 0
    %v1589 = vsel %vm125, %v1502, 0
    %v1591 = vsel %vm125, %v1504, 0
    %v1593 = vsel %vm125, %v1506, 0
    %v1595 = vsel %vm125, %v1508, 0
    %v1597 = vsel %vm125, %v1510, 0
    %v1599 = vsel %vm125, %v1512, 0
    %v1601 = vsel %vm125, %v1514, 0
    %v1603 = vsel %vm125, %v1516, 0
    %v1605 = vsel %vm125, %v1518, 0
    %v1607 = vsel %vm125, %v1520, 0
    %v1609 = vsel %vm125, %v1522, 0
    %v1611 = vsel %vm125, %v1524, 0
    %v1613 = vsel %vm125, %v1526, 0
    %v1615 = vsel %vm125, %v1528, 0
    %v1617 = vsel %vm125, %v1530, 0
    %v1619 = vsel %vm125, %v1532, 0
    %v1621 = vsel %vm125, %v1534, 0
    %v1623 = vsel %vm125, %v1536, 0
    %v1625 = vsel %vm125, %v1538, 0
    %v1627 = vsel %vm125, %v1540, 0
    %v1629 = vsel %vm125, %v1542, 0
    %1631 = vmatprep.subr.mxu0 0.0
    %1632 = vmatpush1.xpose.msra.mxu0 %v1597
    %1633 = vmatprep.subr.mxu0 0.0
    %1634 = vmatpush1.xpose.msra.mxu0 %v1595
    %1635 = vmatprep.subr.mxu0 0.0
    %1636 = vmatpush1.xpose.msra.mxu0 %v1593
    %1637 = vmatprep.subr.mxu0 0.0
    %1638 = vmatpush1.xpose.msra.mxu0 %v1591
    %1639 = vmatprep.subr.mxu0 0.0
    %1640 = vmatpush1.xpose.msra.mxu0 %v1589
    %1641 = vmatprep.subr.mxu0 0.0
    %1642 = vmatpush1.xpose.msra.mxu0 %v1587
    %1643 = vmatprep.subr.mxu0 0.0
    %1644 = vmatpush1.xpose.msra.mxu0 %v1585
    %1645 = vmatprep.subr.mxu0 0.0
    %1646 = vmatpush1.xpose.msra.mxu0 %v1583
    %1647 = vmatprep.subr.mxu0 0.0
    %1648 = vmatpush1.xpose.msra.mxu0 %v1581
    %1649 = vmatprep.subr.mxu0 0.0
    %1650 = vmatpush1.xpose.msra.mxu0 %v1579
    %1651 = vmatprep.subr.mxu0 0.0
    %1652 = vmatpush1.xpose.msra.mxu0 %v1577
    %1653 = vmatprep.subr.mxu0 0.0
    %1654 = vmatpush1.xpose.msra.mxu0 %v1575
    %1655 = vmatprep.subr.mxu0 0.0
    %1656 = vmatpush1.xpose.msra.mxu0 %v1573
    %1657 = vmatprep.subr.mxu0 0.0
    %1658 = vmatpush1.xpose.msra.mxu0 %v1571
    %1659 = vmatprep.subr.mxu0 0.0
    %1660 = vmatpush1.xpose.msra.mxu0 %v1569
    %1661 = vmatprep.subr.mxu0 0.0
    %1662 = vmatpush1.xpose.msra.mxu0 %v1567
    %1663 = vmatprep.subr.mxu0 0.0
    %1664 = vmatpush2.xpose.msra.mxu0 %v1629
    %1665 = vmatprep.subr.mxu0 0.0
    %1666 = vmatpush2.xpose.msra.mxu0 %v1627
    %1667 = vmatprep.subr.mxu0 0.0
    %1668 = vmatpush2.xpose.msra.mxu0 %v1625
    %1669 = vmatprep.subr.mxu0 0.0
    %1670 = vmatpush2.xpose.msra.mxu0 %v1623
    %1671 = vmatprep.subr.mxu0 0.0
    %1672 = vmatpush2.xpose.msra.mxu0 %v1621
    %1673 = vmatprep.subr.mxu0 0.0
    %1674 = vmatpush2.xpose.msra.mxu0 %v1619
    %1675 = vmatprep.subr.mxu0 0.0
    %1676 = vmatpush2.xpose.msra.mxu0 %v1617
    %1677 = vmatprep.subr.mxu0 0.0
    %1678 = vmatpush2.xpose.msra.mxu0 %v1615
    %1679 = vmatprep.subr.mxu0 0.0
    %1680 = vmatpush2.xpose.msra.mxu0 %v1613
    %1681 = vmatprep.subr.mxu0 0.0
    %1682 = vmatpush2.xpose.msra.mxu0 %v1611
    %1683 = vmatprep.subr.mxu0 0.0
    %1684 = vmatpush2.xpose.msra.mxu0 %v1609
    %1685 = vmatprep.subr.mxu0 0.0
    %1686 = vmatpush2.xpose.msra.mxu0 %v1607
    %1687 = vmatprep.subr.mxu0 0.0
    %1688 = vmatpush2.xpose.msra.mxu0 %v1605
    %1689 = vmatprep.subr.mxu0 0.0
    %1690 = vmatpush2.xpose.msra.mxu0 %v1603
    %1691 = vmatprep.subr.mxu0 0.0
    %1692 = vmatpush2.xpose.msra.mxu0 %v1601
    %1693 = vmatprep.subr.mxu0 0.0
    %1694 = vmatpush2.xpose.msra.mxu0 %v1599
    %1695 = vmatprep.mubr.f32.mxu0 0.0
    %1696 = vmatmul.mubr.f32.gmra.mxu0 %v1544
    %v1697 = vpop.f32.mrf.mxu0
    %v1698 = vadd.f32 0.0, %v1697
    %v1699 = vpop.f32.mrf.mxu0
    %v1700 = vadd.f32 0.0, %v1699
    %1701 = vmatprep.mubr.f32.mxu0 0.0
    %1702 = vmatmul.mubr.f32.gmra.mxu0 %v1547
    %v1703 = vpop.f32.mrf.mxu0
    %v1704 = vadd.f32 0.0, %v1703
    %v1705 = vpop.f32.mrf.mxu0
    %v1706 = vadd.f32 0.0, %v1705
    %1707 = vmatprep.mubr.f32.mxu0 0.0
    %1708 = vmatmul.mubr.f32.gmra.mxu0 %v1550
    %v1709 = vpop.f32.mrf.mxu0
    %v1710 = vadd.f32 0.0, %v1709
    %v1711 = vpop.f32.mrf.mxu0
    %v1712 = vadd.f32 0.0, %v1711
    %1713 = vmatprep.mubr.f32.mxu0 0.0
    %1714 = vmatmul.mubr.f32.gmra.mxu0 %v1553
    %v1715 = vpop.f32.mrf.mxu0
    %v1716 = vadd.f32 0.0, %v1715
    %v1717 = vpop.f32.mrf.mxu0
    %v1718 = vadd.f32 0.0, %v1717
    %1719 = vmatprep.mubr.f32.mxu0 0.0
    %1720 = vmatmul.mubr.f32.gmra.mxu0 %v1556
    %v1721 = vpop.f32.mrf.mxu0
    %v1722 = vadd.f32 0.0, %v1721
    %v1723 = vpop.f32.mrf.mxu0
    %v1724 = vadd.f32 0.0, %v1723
    %1725 = vmatprep.mubr.f32.mxu0 0.0
    %1726 = vmatmul.mubr.f32.gmra.mxu0 %v1559
    %v1727 = vpop.f32.mrf.mxu0
    %v1728 = vadd.f32 0.0, %v1727
    %v1729 = vpop.f32.mrf.mxu0
    %v1730 = vadd.f32 0.0, %v1729
    %1731 = vmatprep.mubr.f32.mxu0 0.0
    %1732 = vmatmul.mubr.f32.gmra.mxu0 %v1562
    %v1733 = vpop.f32.mrf.mxu0
    %v1734 = vadd.f32 0.0, %v1733
    %v1735 = vpop.f32.mrf.mxu0
    %v1736 = vadd.f32 0.0, %v1735
    %1737 = vmatprep.mubr.f32.mxu0 0.0
    %1738 = vmatmul.mubr.f32.gmra.mxu0 %v1565
    %v1739 = vpop.f32.mrf.mxu0
    %v1740 = vadd.f32 0.0, %v1739
    %v1741 = vpop.f32.mrf.mxu0
    %v1742 = vadd.f32 0.0, %v1741
    %1743 = vdwg.mxu0
    %v1744 = vsel %vm772, %v1698, -inf
    %1745 = vmax.xlane.f32.xlu0 %v1744
    %v1746 = vpop.xlane.xlu0 %1745
    %v1747 = vsel %vm772, %v1704, -inf
    %1748 = vmax.xlane.f32.xlu0 %v1747
    %v1749 = vpop.xlane.xlu0 %1748
    %v1750 = vsel %vm772, %v1710, -inf
    %1751 = vmax.xlane.f32.xlu0 %v1750
    %v1752 = vpop.xlane.xlu0 %1751
    %v1753 = vsel %vm772, %v1716, -inf
    %1754 = vmax.xlane.f32.xlu0 %v1753
    %v1755 = vpop.xlane.xlu0 %1754
    %v1756 = vsel %vm772, %v1722, -inf
    %1757 = vmax.xlane.f32.xlu0 %v1756
    %v1758 = vpop.xlane.xlu0 %1757
    %v1759 = vsel %vm772, %v1728, -inf
    %1760 = vmax.xlane.f32.xlu0 %v1759
    %v1761 = vpop.xlane.xlu0 %1760
    %v1762 = vsel %vm772, %v1734, -inf
    %1763 = vmax.xlane.f32.xlu0 %v1762
    %v1764 = vpop.xlane.xlu0 %1763
    %v1765 = vsel %vm772, %v1740, -inf
    %1766 = vmax.xlane.f32.xlu0 %v1765
    %v1767 = vpop.xlane.xlu0 %1766
    %v1768 = vsub.f32 %v1698, %v1746
    %v1769 = vsub.f32 %v1704, %v1749
    %v1770 = vsub.f32 %v1710, %v1752
    %v1771 = vsub.f32 %v1716, %v1755
    %v1772 = vsub.f32 %v1722, %v1758
    %v1773 = vsub.f32 %v1728, %v1761
    %v1774 = vsub.f32 %v1734, %v1764
    %v1775 = vsub.f32 %v1740, %v1767
    %v1776 = vmul.f32 %v1768, 1.442695
    %v1777 = vpow.pop %v1776
    %v1778 = vmul.f32 %v1769, 1.442695
    %v1779 = vpow.pop %v1778
    %v1780 = vmul.f32 %v1770, 1.442695
    %v1781 = vpow.pop %v1780
    %v1782 = vmul.f32 %v1771, 1.442695
    %v1783 = vpow.pop %v1782
    %v1784 = vmul.f32 %v1772, 1.442695
    %v1785 = vpow.pop %v1784
    %v1786 = vmul.f32 %v1773, 1.442695
    %v1787 = vpow.pop %v1786
    %v1788 = vmul.f32 %v1774, 1.442695
    %v1789 = vpow.pop %v1788
    %v1790 = vmul.f32 %v1775, 1.442695
    %v1791 = vpow.pop %v1790
    %v1792 = vsel %vm772, %v1777, 0.0
    %1793 = vadd.xlane.f32.xlu0 %v1792
    %v1794 = vpop.xlane.xlu0 %1793
    %v1795 = vsel %vm772, %v1779, 0.0
    %1796 = vadd.xlane.f32.xlu0 %v1795
    %v1797 = vpop.xlane.xlu0 %1796
    %v1798 = vsel %vm772, %v1781, 0.0
    %1799 = vadd.xlane.f32.xlu0 %v1798
    %v1800 = vpop.xlane.xlu0 %1799
    %v1801 = vsel %vm772, %v1783, 0.0
    %1802 = vadd.xlane.f32.xlu0 %v1801
    %v1803 = vpop.xlane.xlu0 %1802
    %v1804 = vsel %vm772, %v1785, 0.0
    %1805 = vadd.xlane.f32.xlu0 %v1804
    %v1806 = vpop.xlane.xlu0 %1805
    %v1807 = vsel %vm772, %v1787, 0.0
    %1808 = vadd.xlane.f32.xlu0 %v1807
    %v1809 = vpop.xlane.xlu0 %1808
    %v1810 = vsel %vm772, %v1789, 0.0
    %1811 = vadd.xlane.f32.xlu0 %v1810
    %v1812 = vpop.xlane.xlu0 %1811
    %v1813 = vsel %vm772, %v1791, 0.0
    %1814 = vadd.xlane.f32.xlu0 %v1813
    %v1815 = vpop.xlane.xlu0 %1814
    %v1816 = vrcp.pop %v1794
    %v1817 = vrcp.pop %v1797
    %v1818 = vrcp.pop %v1800
    %v1819 = vrcp.pop %v1803
    %v1820 = vrcp.pop %v1806
    %v1821 = vrcp.pop %v1809
    %v1822 = vrcp.pop %v1812
    %v1823 = vrcp.pop %v1815
    %v1824 = vmul.f32 %v1777, %v1816
    %v1825 = vmul.f32 %v1779, %v1817
    %v1826 = vmul.f32 %v1781, %v1818
    %v1827 = vmul.f32 %v1783, %v1819
    %v1828 = vmul.f32 %v1785, %v1820
    %v1829 = vmul.f32 %v1787, %v1821
    %v1830 = vmul.f32 %v1789, %v1822
    %v1831 = vmul.f32 %v1791, %v1823
    %v1832 = vsel %vm861, %v1698, -inf
    %1833 = vmax.xlane.f32.xlu0 %v1832
    %v1834 = vpop.xlane.xlu0 %1833
    %v1835 = vsel %vm861, %v1704, -inf
    %1836 = vmax.xlane.f32.xlu0 %v1835
    %v1837 = vpop.xlane.xlu0 %1836
    %v1838 = vsel %vm861, %v1710, -inf
    %1839 = vmax.xlane.f32.xlu0 %v1838
    %v1840 = vpop.xlane.xlu0 %1839
    %v1841 = vsel %vm861, %v1716, -inf
    %1842 = vmax.xlane.f32.xlu0 %v1841
    %v1843 = vpop.xlane.xlu0 %1842
    %v1844 = vsel %vm861, %v1722, -inf
    %1845 = vmax.xlane.f32.xlu0 %v1844
    %v1846 = vpop.xlane.xlu0 %1845
    %v1847 = vsel %vm861, %v1728, -inf
    %1848 = vmax.xlane.f32.xlu0 %v1847
    %v1849 = vpop.xlane.xlu0 %1848
    %v1850 = vsel %vm861, %v1734, -inf
    %1851 = vmax.xlane.f32.xlu0 %v1850
    %v1852 = vpop.xlane.xlu0 %1851
    %v1853 = vsel %vm861, %v1740, -inf
    %1854 = vmax.xlane.f32.xlu0 %v1853
    %v1855 = vpop.xlane.xlu0 %1854
    %v1856 = vsub.f32 %v1698, %v1834
    %v1857 = vsub.f32 %v1704, %v1837
    %v1858 = vsub.f32 %v1710, %v1840
    %v1859 = vsub.f32 %v1716, %v1843
    %v1860 = vsub.f32 %v1722, %v1846
    %v1861 = vsub.f32 %v1728, %v1849
    %v1862 = vsub.f32 %v1734, %v1852
    %v1863 = vsub.f32 %v1740, %v1855
    %v1864 = vmul.f32 %v1856, 1.442695
    %v1865 = vpow.pop %v1864
    %v1866 = vmul.f32 %v1857, 1.442695
    %v1867 = vpow.pop %v1866
    %v1868 = vmul.f32 %v1858, 1.442695
    %v1869 = vpow.pop %v1868
    %v1870 = vmul.f32 %v1859, 1.442695
    %v1871 = vpow.pop %v1870
    %v1872 = vmul.f32 %v1860, 1.442695
    %v1873 = vpow.pop %v1872
    %v1874 = vmul.f32 %v1861, 1.442695
    %v1875 = vpow.pop %v1874
    %v1876 = vmul.f32 %v1862, 1.442695
    %v1877 = vpow.pop %v1876
    %v1878 = vmul.f32 %v1863, 1.442695
    %v1879 = vpow.pop %v1878
    %1888 = vrot.lane.b32.xlu0 %v1865, 64
    %v1889 = vpop.permute.xlu0 %1888
    %1890 = vrot.lane.b32.xlu0 %v1867, 64
    %v1891 = vpop.permute.xlu0 %1890
    %1892 = vrot.lane.b32.xlu0 %v1869, 64
    %v1893 = vpop.permute.xlu0 %1892
    %1894 = vrot.lane.b32.xlu0 %v1871, 64
    %v1895 = vpop.permute.xlu0 %1894
    %1896 = vrot.lane.b32.xlu0 %v1873, 64
    %v1897 = vpop.permute.xlu0 %1896
    %1898 = vrot.lane.b32.xlu0 %v1875, 64
    %v1899 = vpop.permute.xlu0 %1898
    %1900 = vrot.lane.b32.xlu0 %v1877, 64
    %v1901 = vpop.permute.xlu0 %1900
    %1902 = vrot.lane.b32.xlu0 %v1879, 64
    %v1903 = vpop.permute.xlu0 %1902
    %v1912 = vsel %vm772, %v1889, 0.0
    %1913 = vadd.xlane.f32.xlu0 %v1912
    %v1914 = vpop.xlane.xlu0 %1913
    %v1915 = vsel %vm772, %v1891, 0.0
    %1916 = vadd.xlane.f32.xlu0 %v1915
    %v1917 = vpop.xlane.xlu0 %1916
    %v1918 = vsel %vm772, %v1893, 0.0
    %1919 = vadd.xlane.f32.xlu0 %v1918
    %v1920 = vpop.xlane.xlu0 %1919
    %v1921 = vsel %vm772, %v1895, 0.0
    %1922 = vadd.xlane.f32.xlu0 %v1921
    %v1923 = vpop.xlane.xlu0 %1922
    %v1924 = vsel %vm772, %v1897, 0.0
    %1925 = vadd.xlane.f32.xlu0 %v1924
    %v1926 = vpop.xlane.xlu0 %1925
    %v1927 = vsel %vm772, %v1899, 0.0
    %1928 = vadd.xlane.f32.xlu0 %v1927
    %v1929 = vpop.xlane.xlu0 %1928
    %v1930 = vsel %vm772, %v1901, 0.0
    %1931 = vadd.xlane.f32.xlu0 %v1930
    %v1932 = vpop.xlane.xlu0 %1931
    %v1933 = vsel %vm772, %v1903, 0.0
    %1934 = vadd.xlane.f32.xlu0 %v1933
    %v1935 = vpop.xlane.xlu0 %1934
    %v1936 = vrcp.pop %v1914
    %v1937 = vrcp.pop %v1917
    %v1938 = vrcp.pop %v1920
    %v1939 = vrcp.pop %v1923
    %v1940 = vrcp.pop %v1926
    %v1941 = vrcp.pop %v1929
    %v1942 = vrcp.pop %v1932
    %v1943 = vrcp.pop %v1935
    %v1944 = vmul.f32 %v1865, %v1936
    %v1945 = vmul.f32 %v1867, %v1937
    %v1946 = vmul.f32 %v1869, %v1938
    %v1947 = vmul.f32 %v1871, %v1939
    %v1948 = vmul.f32 %v1873, %v1940
    %v1949 = vmul.f32 %v1875, %v1941
    %v1950 = vmul.f32 %v1877, %v1942
    %v1951 = vmul.f32 %v1879, %v1943
    %v1952 = vsel %vm772, %v1700, -inf
    %1953 = vmax.xlane.f32.xlu0 %v1952
    %v1954 = vpop.xlane.xlu0 %1953
    %v1955 = vsel %vm772, %v1706, -inf
    %1956 = vmax.xlane.f32.xlu0 %v1955
    %v1957 = vpop.xlane.xlu0 %1956
    %v1958 = vsel %vm772, %v1712, -inf
    %1959 = vmax.xlane.f32.xlu0 %v1958
    %v1960 = vpop.xlane.xlu0 %1959
    %v1961 = vsel %vm772, %v1718, -inf
    %1962 = vmax.xlane.f32.xlu0 %v1961
    %v1963 = vpop.xlane.xlu0 %1962
    %v1964 = vsel %vm772, %v1724, -inf
    %1965 = vmax.xlane.f32.xlu0 %v1964
    %v1966 = vpop.xlane.xlu0 %1965
    %v1967 = vsel %vm772, %v1730, -inf
    %1968 = vmax.xlane.f32.xlu0 %v1967
    %v1969 = vpop.xlane.xlu0 %1968
    %v1970 = vsel %vm772, %v1736, -inf
    %1971 = vmax.xlane.f32.xlu0 %v1970
    %v1972 = vpop.xlane.xlu0 %1971
    %v1973 = vsel %vm772, %v1742, -inf
    %1974 = vmax.xlane.f32.xlu0 %v1973
    %v1975 = vpop.xlane.xlu0 %1974
    %v1976 = vsub.f32 %v1700, %v1954
    %v1977 = vsub.f32 %v1706, %v1957
    %v1978 = vsub.f32 %v1712, %v1960
    %v1979 = vsub.f32 %v1718, %v1963
    %v1980 = vsub.f32 %v1724, %v1966
    %v1981 = vsub.f32 %v1730, %v1969
    %v1982 = vsub.f32 %v1736, %v1972
    %v1983 = vsub.f32 %v1742, %v1975
    %v1984 = vmul.f32 %v1976, 1.442695
    %v1985 = vpow.pop %v1984
    %v1986 = vmul.f32 %v1977, 1.442695
    %v1987 = vpow.pop %v1986
    %v1988 = vmul.f32 %v1978, 1.442695
    %v1989 = vpow.pop %v1988
    %v1990 = vmul.f32 %v1979, 1.442695
    %v1991 = vpow.pop %v1990
    %v1992 = vmul.f32 %v1980, 1.442695
    %v1993 = vpow.pop %v1992
    %v1994 = vmul.f32 %v1981, 1.442695
    %v1995 = vpow.pop %v1994
    %v1996 = vmul.f32 %v1982, 1.442695
    %v1997 = vpow.pop %v1996
    %v1998 = vmul.f32 %v1983, 1.442695
    %v1999 = vpow.pop %v1998
    %v2000 = vsel %vm772, %v1985, 0.0
    %2001 = vadd.xlane.f32.xlu0 %v2000
    %v2002 = vpop.xlane.xlu0 %2001
    %v2003 = vsel %vm772, %v1987, 0.0
    %2004 = vadd.xlane.f32.xlu0 %v2003
    %v2005 = vpop.xlane.xlu0 %2004
    %v2006 = vsel %vm772, %v1989, 0.0
    %2007 = vadd.xlane.f32.xlu0 %v2006
    %v2008 = vpop.xlane.xlu0 %2007
    %v2009 = vsel %vm772, %v1991, 0.0
    %2010 = vadd.xlane.f32.xlu0 %v2009
    %v2011 = vpop.xlane.xlu0 %2010
    %v2012 = vsel %vm772, %v1993, 0.0
    %2013 = vadd.xlane.f32.xlu0 %v2012
    %v2014 = vpop.xlane.xlu0 %2013
    %v2015 = vsel %vm772, %v1995, 0.0
    %2016 = vadd.xlane.f32.xlu0 %v2015
    %v2017 = vpop.xlane.xlu0 %2016
    %v2018 = vsel %vm772, %v1997, 0.0
    %2019 = vadd.xlane.f32.xlu0 %v2018
    %v2020 = vpop.xlane.xlu0 %2019
    %v2021 = vsel %vm772, %v1999, 0.0
    %2022 = vadd.xlane.f32.xlu0 %v2021
    %v2023 = vpop.xlane.xlu0 %2022
    %v2024 = vrcp.pop %v2002
    %v2025 = vrcp.pop %v2005
    %v2026 = vrcp.pop %v2008
    %v2027 = vrcp.pop %v2011
    %v2028 = vrcp.pop %v2014
    %v2029 = vrcp.pop %v2017
    %v2030 = vrcp.pop %v2020
    %v2031 = vrcp.pop %v2023
    %v2032 = vmul.f32 %v1985, %v2024
    %v2033 = vmul.f32 %v1987, %v2025
    %v2034 = vmul.f32 %v1989, %v2026
    %v2035 = vmul.f32 %v1991, %v2027
    %v2036 = vmul.f32 %v1993, %v2028
    %v2037 = vmul.f32 %v1995, %v2029
    %v2038 = vmul.f32 %v1997, %v2030
    %v2039 = vmul.f32 %v1999, %v2031
    %v2040 = vsel %vm861, %v1700, -inf
    %2041 = vmax.xlane.f32.xlu0 %v2040
    %v2042 = vpop.xlane.xlu0 %2041
    %v2043 = vsel %vm861, %v1706, -inf
    %2044 = vmax.xlane.f32.xlu0 %v2043
    %v2045 = vpop.xlane.xlu0 %2044
    %v2046 = vsel %vm861, %v1712, -inf
    %2047 = vmax.xlane.f32.xlu0 %v2046
    %v2048 = vpop.xlane.xlu0 %2047
    %v2049 = vsel %vm861, %v1718, -inf
    %2050 = vmax.xlane.f32.xlu0 %v2049
    %v2051 = vpop.xlane.xlu0 %2050
    %v2052 = vsel %vm861, %v1724, -inf
    %2053 = vmax.xlane.f32.xlu0 %v2052
    %v2054 = vpop.xlane.xlu0 %2053
    %v2055 = vsel %vm861, %v1730, -inf
    %2056 = vmax.xlane.f32.xlu0 %v2055
    %v2057 = vpop.xlane.xlu0 %2056
    %v2058 = vsel %vm861, %v1736, -inf
    %2059 = vmax.xlane.f32.xlu0 %v2058
    %v2060 = vpop.xlane.xlu0 %2059
    %v2061 = vsel %vm861, %v1742, -inf
    %2062 = vmax.xlane.f32.xlu0 %v2061
    %v2063 = vpop.xlane.xlu0 %2062
    %v2064 = vsub.f32 %v1700, %v2042
    %v2065 = vsub.f32 %v1706, %v2045
    %v2066 = vsub.f32 %v1712, %v2048
    %v2067 = vsub.f32 %v1718, %v2051
    %v2068 = vsub.f32 %v1724, %v2054
    %v2069 = vsub.f32 %v1730, %v2057
    %v2070 = vsub.f32 %v1736, %v2060
    %v2071 = vsub.f32 %v1742, %v2063
    %v2072 = vmul.f32 %v2064, 1.442695
    %v2073 = vpow.pop %v2072
    %v2074 = vmul.f32 %v2065, 1.442695
    %v2075 = vpow.pop %v2074
    %v2076 = vmul.f32 %v2066, 1.442695
    %v2077 = vpow.pop %v2076
    %v2078 = vmul.f32 %v2067, 1.442695
    %v2079 = vpow.pop %v2078
    %v2080 = vmul.f32 %v2068, 1.442695
    %v2081 = vpow.pop %v2080
    %v2082 = vmul.f32 %v2069, 1.442695
    %v2083 = vpow.pop %v2082
    %v2084 = vmul.f32 %v2070, 1.442695
    %v2085 = vpow.pop %v2084
    %v2086 = vmul.f32 %v2071, 1.442695
    %v2087 = vpow.pop %v2086
    %2096 = vrot.lane.b32.xlu0 %v2073, 64
    %v2097 = vpop.permute.xlu0 %2096
    %2098 = vrot.lane.b32.xlu0 %v2075, 64
    %v2099 = vpop.permute.xlu0 %2098
    %2100 = vrot.lane.b32.xlu0 %v2077, 64
    %v2101 = vpop.permute.xlu0 %2100
    %2102 = vrot.lane.b32.xlu0 %v2079, 64
    %v2103 = vpop.permute.xlu0 %2102
    %2104 = vrot.lane.b32.xlu0 %v2081, 64
    %v2105 = vpop.permute.xlu0 %2104
    %2106 = vrot.lane.b32.xlu0 %v2083, 64
    %v2107 = vpop.permute.xlu0 %2106
    %2108 = vrot.lane.b32.xlu0 %v2085, 64
    %v2109 = vpop.permute.xlu0 %2108
    %2110 = vrot.lane.b32.xlu0 %v2087, 64
    %v2111 = vpop.permute.xlu0 %2110
    %v2120 = vsel %vm772, %v2097, 0.0
    %2121 = vadd.xlane.f32.xlu0 %v2120
    %v2122 = vpop.xlane.xlu0 %2121
    %v2123 = vsel %vm772, %v2099, 0.0
    %2124 = vadd.xlane.f32.xlu0 %v2123
    %v2125 = vpop.xlane.xlu0 %2124
    %v2126 = vsel %vm772, %v2101, 0.0
    %2127 = vadd.xlane.f32.xlu0 %v2126
    %v2128 = vpop.xlane.xlu0 %2127
    %v2129 = vsel %vm772, %v2103, 0.0
    %2130 = vadd.xlane.f32.xlu0 %v2129
    %v2131 = vpop.xlane.xlu0 %2130
    %v2132 = vsel %vm772, %v2105, 0.0
    %2133 = vadd.xlane.f32.xlu0 %v2132
    %v2134 = vpop.xlane.xlu0 %2133
    %v2135 = vsel %vm772, %v2107, 0.0
    %2136 = vadd.xlane.f32.xlu0 %v2135
    %v2137 = vpop.xlane.xlu0 %2136
    %v2138 = vsel %vm772, %v2109, 0.0
    %2139 = vadd.xlane.f32.xlu0 %v2138
    %v2140 = vpop.xlane.xlu0 %2139
    %v2141 = vsel %vm772, %v2111, 0.0
    %2142 = vadd.xlane.f32.xlu0 %v2141
    %v2143 = vpop.xlane.xlu0 %2142
    %v2144 = vrcp.pop %v2122
    %v2145 = vrcp.pop %v2125
    %v2146 = vrcp.pop %v2128
    %v2147 = vrcp.pop %v2131
    %v2148 = vrcp.pop %v2134
    %v2149 = vrcp.pop %v2137
    %v2150 = vrcp.pop %v2140
    %v2151 = vrcp.pop %v2143
    %v2152 = vmul.f32 %v2073, %v2144
    %v2153 = vmul.f32 %v2075, %v2145
    %v2154 = vmul.f32 %v2077, %v2146
    %v2155 = vmul.f32 %v2079, %v2147
    %v2156 = vmul.f32 %v2081, %v2148
    %v2157 = vmul.f32 %v2083, %v2149
    %v2158 = vmul.f32 %v2085, %v2150
    %v2159 = vmul.f32 %v2087, %v2151
    %v2160 = vsel %vm772, %v1824, %v1944
    %v2161 = vsel %vm772, %v1825, %v1945
    %v2162 = vsel %vm772, %v1826, %v1946
    %v2163 = vsel %vm772, %v1827, %v1947
    %v2164 = vsel %vm772, %v1828, %v1948
    %v2165 = vsel %vm772, %v1829, %v1949
    %v2166 = vsel %vm772, %v1830, %v1950
    %v2167 = vsel %vm772, %v1831, %v1951
    %v2168 = vsel %vm772, %v2032, %v2152
    %v2169 = vsel %vm772, %v2033, %v2153
    %v2170 = vsel %vm772, %v2034, %v2154
    %v2171 = vsel %vm772, %v2035, %v2155
    %v2172 = vsel %vm772, %v2036, %v2156
    %v2173 = vsel %vm772, %v2037, %v2157
    %v2174 = vsel %vm772, %v2038, %v2158
    %v2175 = vsel %vm772, %v2039, %v2159
    %2208 = vrot.lane.b32.xlu0 %v410, 64
    %v2209 = vpop.permute.xlu0 %2208
    %2210 = vrot.lane.b32.xlu0 %v411, 64
    %v2211 = vpop.permute.xlu0 %2210
    %2212 = vrot.lane.b32.xlu0 %v412, 64
    %v2213 = vpop.permute.xlu0 %2212
    %2214 = vrot.lane.b32.xlu0 %v413, 64
    %v2215 = vpop.permute.xlu0 %2214
    %2216 = vrot.lane.b32.xlu0 %v414, 64
    %v2217 = vpop.permute.xlu0 %2216
    %2218 = vrot.lane.b32.xlu0 %v415, 64
    %v2219 = vpop.permute.xlu0 %2218
    %2220 = vrot.lane.b32.xlu0 %v416, 64
    %v2221 = vpop.permute.xlu0 %2220
    %2222 = vrot.lane.b32.xlu0 %v417, 64
    %v2223 = vpop.permute.xlu0 %2222
    %2224 = vrot.lane.b32.xlu0 %v429, 64
    %v2225 = vpop.permute.xlu0 %2224
    %2226 = vrot.lane.b32.xlu0 %v430, 64
    %v2227 = vpop.permute.xlu0 %2226
    %2228 = vrot.lane.b32.xlu0 %v431, 64
    %v2229 = vpop.permute.xlu0 %2228
    %2230 = vrot.lane.b32.xlu0 %v432, 64
    %v2231 = vpop.permute.xlu0 %2230
    %2232 = vrot.lane.b32.xlu0 %v433, 64
    %v2233 = vpop.permute.xlu0 %2232
    %2234 = vrot.lane.b32.xlu0 %v434, 64
    %v2235 = vpop.permute.xlu0 %2234
    %2236 = vrot.lane.b32.xlu0 %v435, 64
    %v2237 = vpop.permute.xlu0 %2236
    %2238 = vrot.lane.b32.xlu0 %v436, 64
    %v2239 = vpop.permute.xlu0 %2238
    %2240 = vrot.lane.b32.xlu0 %v448, 64
    %v2241 = vpop.permute.xlu0 %2240
    %2242 = vrot.lane.b32.xlu0 %v449, 64
    %v2243 = vpop.permute.xlu0 %2242
    %2244 = vrot.lane.b32.xlu0 %v450, 64
    %v2245 = vpop.permute.xlu0 %2244
    %2246 = vrot.lane.b32.xlu0 %v451, 64
    %v2247 = vpop.permute.xlu0 %2246
    %2248 = vrot.lane.b32.xlu0 %v452, 64
    %v2249 = vpop.permute.xlu0 %2248
    %2250 = vrot.lane.b32.xlu0 %v453, 64
    %v2251 = vpop.permute.xlu0 %2250
    %2252 = vrot.lane.b32.xlu0 %v454, 64
    %v2253 = vpop.permute.xlu0 %2252
    %2254 = vrot.lane.b32.xlu0 %v455, 64
    %v2255 = vpop.permute.xlu0 %2254
    %2256 = vrot.lane.b32.xlu0 %v467, 64
    %v2257 = vpop.permute.xlu0 %2256
    %2258 = vrot.lane.b32.xlu0 %v468, 64
    %v2259 = vpop.permute.xlu0 %2258
    %2260 = vrot.lane.b32.xlu0 %v469, 64
    %v2261 = vpop.permute.xlu0 %2260
    %2262 = vrot.lane.b32.xlu0 %v470, 64
    %v2263 = vpop.permute.xlu0 %2262
    %2264 = vrot.lane.b32.xlu0 %v471, 64
    %v2265 = vpop.permute.xlu0 %2264
    %2266 = vrot.lane.b32.xlu0 %v472, 64
    %v2267 = vpop.permute.xlu0 %2266
    %2268 = vrot.lane.b32.xlu0 %v473, 64
    %v2269 = vpop.permute.xlu0 %2268
    %2270 = vrot.lane.b32.xlu0 %v474, 64
    %v2271 = vpop.permute.xlu0 %2270
    %2304 = vmatprep.subr.mxu0 0.0
    %2305 = vmatpush1.msra.mxu0 %v2239
    %2306 = vmatprep.subr.mxu0 0.0
    %2307 = vmatpush1.msra.mxu0 %v2237
    %2308 = vmatprep.subr.mxu0 0.0
    %2309 = vmatpush1.msra.mxu0 %v2235
    %2310 = vmatprep.subr.mxu0 0.0
    %2311 = vmatpush1.msra.mxu0 %v2233
    %2312 = vmatprep.subr.mxu0 0.0
    %2313 = vmatpush1.msra.mxu0 %v2231
    %2314 = vmatprep.subr.mxu0 0.0
    %2315 = vmatpush1.msra.mxu0 %v2229
    %2316 = vmatprep.subr.mxu0 0.0
    %2317 = vmatpush1.msra.mxu0 %v2227
    %2318 = vmatprep.subr.mxu0 0.0
    %2319 = vmatpush1.msra.mxu0 %v2225
    %2320 = vmatprep.subr.mxu0 0.0
    %2321 = vmatpush1.msra.mxu0 %v2223
    %2322 = vmatprep.subr.mxu0 0.0
    %2323 = vmatpush1.msra.mxu0 %v2221
    %2324 = vmatprep.subr.mxu0 0.0
    %2325 = vmatpush1.msra.mxu0 %v2219
    %2326 = vmatprep.subr.mxu0 0.0
    %2327 = vmatpush1.msra.mxu0 %v2217
    %2328 = vmatprep.subr.mxu0 0.0
    %2329 = vmatpush1.msra.mxu0 %v2215
    %2330 = vmatprep.subr.mxu0 0.0
    %2331 = vmatpush1.msra.mxu0 %v2213
    %2332 = vmatprep.subr.mxu0 0.0
    %2333 = vmatpush1.msra.mxu0 %v2211
    %2334 = vmatprep.subr.mxu0 0.0
    %2335 = vmatpush1.msra.mxu0 %v2209
    %2336 = vmatprep.subr.mxu0 0.0
    %2337 = vmatpush2.msra.mxu0 %v2271
    %2338 = vmatprep.subr.mxu0 0.0
    %2339 = vmatpush2.msra.mxu0 %v2269
    %2340 = vmatprep.subr.mxu0 0.0
    %2341 = vmatpush2.msra.mxu0 %v2267
    %2342 = vmatprep.subr.mxu0 0.0
    %2343 = vmatpush2.msra.mxu0 %v2265
    %2344 = vmatprep.subr.mxu0 0.0
    %2345 = vmatpush2.msra.mxu0 %v2263
    %2346 = vmatprep.subr.mxu0 0.0
    %2347 = vmatpush2.msra.mxu0 %v2261
    %2348 = vmatprep.subr.mxu0 0.0
    %2349 = vmatpush2.msra.mxu0 %v2259
    %2350 = vmatprep.subr.mxu0 0.0
    %2351 = vmatpush2.msra.mxu0 %v2257
    %2352 = vmatprep.subr.mxu0 0.0
    %2353 = vmatpush2.msra.mxu0 %v2255
    %2354 = vmatprep.subr.mxu0 0.0
    %2355 = vmatpush2.msra.mxu0 %v2253
    %2356 = vmatprep.subr.mxu0 0.0
    %2357 = vmatpush2.msra.mxu0 %v2251
    %2358 = vmatprep.subr.mxu0 0.0
    %2359 = vmatpush2.msra.mxu0 %v2249
    %2360 = vmatprep.subr.mxu0 0.0
    %2361 = vmatpush2.msra.mxu0 %v2247
    %2362 = vmatprep.subr.mxu0 0.0
    %2363 = vmatpush2.msra.mxu0 %v2245
    %2364 = vmatprep.subr.mxu0 0.0
    %2365 = vmatpush2.msra.mxu0 %v2243
    %2366 = vmatprep.subr.mxu0 0.0
    %2367 = vmatpush2.msra.mxu0 %v2241
    %2368 = vmatprep.mubr.f32.mxu0 %v2168
    %2369 = vmatmul.mubr.f32.gmra.mxu0 %v2160
    %v2370 = vpop.f32.mrf.mxu0
    %v2371 = vadd.f32 0.0, %v2370
    %v2372 = vpop.f32.mrf.mxu0
    %2373 = vmatprep.mubr.f32.mxu0 %v2169
    %2374 = vmatmul.mubr.f32.gmra.mxu0 %v2161
    %v2375 = vpop.f32.mrf.mxu0
    %v2376 = vadd.f32 0.0, %v2375
    %v2377 = vpop.f32.mrf.mxu0
    %2378 = vmatprep.mubr.f32.mxu0 %v2170
    %2379 = vmatmul.mubr.f32.gmra.mxu0 %v2162
    %v2380 = vpop.f32.mrf.mxu0
    %v2381 = vadd.f32 0.0, %v2380
    %v2382 = vpop.f32.mrf.mxu0
    %2383 = vmatprep.mubr.f32.mxu0 %v2171
    %2384 = vmatmul.mubr.f32.gmra.mxu0 %v2163
    %v2385 = vpop.f32.mrf.mxu0
    %v2386 = vadd.f32 0.0, %v2385
    %v2387 = vpop.f32.mrf.mxu0
    %2388 = vmatprep.mubr.f32.mxu0 %v2172
    %2389 = vmatmul.mubr.f32.gmra.mxu0 %v2164
    %v2390 = vpop.f32.mrf.mxu0
    %v2391 = vadd.f32 0.0, %v2390
    %v2392 = vpop.f32.mrf.mxu0
    %2393 = vmatprep.mubr.f32.mxu0 %v2173
    %2394 = vmatmul.mubr.f32.gmra.mxu0 %v2165
    %v2395 = vpop.f32.mrf.mxu0
    %v2396 = vadd.f32 0.0, %v2395
    %v2397 = vpop.f32.mrf.mxu0
    %2398 = vmatprep.mubr.f32.mxu0 %v2174
    %2399 = vmatmul.mubr.f32.gmra.mxu0 %v2166
    %v2400 = vpop.f32.mrf.mxu0
    %v2401 = vadd.f32 0.0, %v2400
    %v2402 = vpop.f32.mrf.mxu0
    %2403 = vmatprep.mubr.f32.mxu0 %v2175
    %2404 = vmatmul.mubr.f32.gmra.mxu0 %v2167
    %v2405 = vpop.f32.mrf.mxu0
    %v2406 = vadd.f32 0.0, %v2405
    %v2407 = vpop.f32.mrf.mxu0
    %2408 = vdwg.mxu0
    %2409 = vst.msk [vmem:[#allocation2 + $0x40] sm:$0xff] %vm125, %v2371
    %2410 = vst.msk [vmem:[#allocation2 + $0x48] sm:$0xff] %vm125, %v2376
    %2411 = vst.msk [vmem:[#allocation2 + $0x50] sm:$0xff] %vm125, %v2381
    %2412 = vst.msk [vmem:[#allocation2 + $0x58] sm:$0xff] %vm125, %v2386
    %2413 = vst.msk [vmem:[#allocation2 + $0x60] sm:$0xff] %vm125, %v2391
    %2414 = vst.msk [vmem:[#allocation2 + $0x68] sm:$0xff] %vm125, %v2396
    %2415 = vst.msk [vmem:[#allocation2 + $0x70] sm:$0xff] %vm125, %v2401
    %2416 = vst.msk [vmem:[#allocation2 + $0x78] sm:$0xff] %vm125, %v2406
    %v2417 = vld [vmem:[#allocation2] sm:$0xff]
    %v2418 = vld [vmem:[#allocation2 + $0x8] sm:$0xff]
    %v2419 = vld [vmem:[#allocation2 + $0x10] sm:$0xff]
    %v2420 = vld [vmem:[#allocation2 + $0x18] sm:$0xff]
    %v2421 = vld [vmem:[#allocation2 + $0x20] sm:$0xff]
    %v2422 = vld [vmem:[#allocation2 + $0x28] sm:$0xff]
    %v2423 = vld [vmem:[#allocation2 + $0x30] sm:$0xff]
    %v2424 = vld [vmem:[#allocation2 + $0x38] sm:$0xff]
    %v2425 = vld [vmem:[#allocation2 + $0x40] sm:$0xff]
    %v2426 = vld [vmem:[#allocation2 + $0x48] sm:$0xff]
    %v2427 = vld [vmem:[#allocation2 + $0x50] sm:$0xff]
    %v2428 = vld [vmem:[#allocation2 + $0x58] sm:$0xff]
    %v2429 = vld [vmem:[#allocation2 + $0x60] sm:$0xff]
    %v2430 = vld [vmem:[#allocation2 + $0x68] sm:$0xff]
    %v2431 = vld [vmem:[#allocation2 + $0x70] sm:$0xff]
    %v2432 = vld [vmem:[#allocation2 + $0x78] sm:$0xff]
    %v2433 = vld [vmem:[%s5] sm:$0xff]
    %v2434 = vld [vmem:[%s5 + $0x8] sm:$0xff]
    %v2435 = vld [vmem:[%s5 + $0x10] sm:$0xff]
    %v2436 = vld [vmem:[%s5 + $0x18] sm:$0xff]
    %v2437 = vlaneseq
    %v2438 = vshrl.u32 %v2437, 7
    %v2439 = vsub.s32 0, %v2438
    %v2440 = vrot.slane %v110, %v2439
    %v2442 = vsel %vm125, %v2417, 0
    %v2445 = vsel %vm125, %v2418, 0
    %v2448 = vsel %vm125, %v2419, 0
    %v2451 = vsel %vm125, %v2420, 0
    %v2454 = vsel %vm125, %v2421, 0
    %v2457 = vsel %vm125, %v2422, 0
    %v2460 = vsel %vm125, %v2423, 0
    %v2463 = vsel %vm125, %v2424, 0
    %v2466 = vsel %vm125, %v2425, 0
    %v2469 = vsel %vm125, %v2426, 0
    %v2472 = vsel %vm125, %v2427, 0
    %v2475 = vsel %vm125, %v2428, 0
    %v2478 = vsel %vm125, %v2429, 0
    %v2481 = vsel %vm125, %v2430, 0
    %v2484 = vsel %vm125, %v2431, 0
    %v2487 = vsel %vm125, %v2432, 0
    %2489 = vmatprep.subr.mxu0 0.0
    %2490 = vmatpush1.msra.mxu0 0.0
    %2491 = vmatprep.subr.mxu0 0.0
    %2492 = vmatpush1.msra.mxu0 0.0
    %2493 = vmatprep.subr.mxu0 0.0
    %2494 = vmatpush1.msra.mxu0 0.0
    %2495 = vmatprep.subr.mxu0 0.0
    %2496 = vmatpush1.msra.mxu0 0.0
    %2497 = vmatprep.subr.mxu0 0.0
    %2498 = vmatpush1.msra.mxu0 0.0
    %2499 = vmatprep.subr.mxu0 0.0
    %2500 = vmatpush1.msra.mxu0 0.0
    %2501 = vmatprep.subr.mxu0 0.0
    %2502 = vmatpush1.msra.mxu0 0.0
    %2503 = vmatprep.subr.mxu0 0.0
    %2504 = vmatpush1.msra.mxu0 0.0
    %2505 = vmatprep.subr.mxu0 0.0
    %2506 = vmatpush1.msra.mxu0 0.0
    %2507 = vmatprep.subr.mxu0 0.0
    %2508 = vmatpush1.msra.mxu0 0.0
    %2509 = vmatprep.subr.mxu0 0.0
    %2510 = vmatpush1.msra.mxu0 0.0
    %2511 = vmatprep.subr.mxu0 0.0
    %2512 = vmatpush1.msra.mxu0 0.0
    %2513 = vmatprep.subr.mxu0 0.0
    %2514 = vmatpush1.msra.mxu0 %v2436
    %2515 = vmatprep.subr.mxu0 0.0
    %2516 = vmatpush1.msra.mxu0 %v2435
    %2517 = vmatprep.subr.mxu0 0.0
    %2518 = vmatpush1.msra.mxu0 %v2434
    %2519 = vmatprep.subr.mxu0 0.0
    %2520 = vmatpush1.msra.mxu0 %v2433
    %2521 = vmatprep.subr.mxu0 0.0
    %2522 = vmatpush2.msra.mxu0 0.0
    %2523 = vmatprep.subr.mxu0 0.0
    %2524 = vmatpush2.msra.mxu0 0.0
    %2525 = vmatprep.subr.mxu0 0.0
    %2526 = vmatpush2.msra.mxu0 0.0
    %2527 = vmatprep.subr.mxu0 0.0
    %2528 = vmatpush2.msra.mxu0 0.0
    %2529 = vmatprep.subr.mxu0 0.0
    %2530 = vmatpush2.msra.mxu0 0.0
    %2531 = vmatprep.subr.mxu0 0.0
    %2532 = vmatpush2.msra.mxu0 0.0
    %2533 = vmatprep.subr.mxu0 0.0
    %2534 = vmatpush2.msra.mxu0 0.0
    %2535 = vmatprep.subr.mxu0 0.0
    %2536 = vmatpush2.msra.mxu0 0.0
    %2537 = vmatprep.subr.mxu0 0.0
    %2538 = vmatpush2.msra.mxu0 0.0
    %2539 = vmatprep.subr.mxu0 0.0
    %2540 = vmatpush2.msra.mxu0 0.0
    %2541 = vmatprep.subr.mxu0 0.0
    %2542 = vmatpush2.msra.mxu0 0.0
    %2543 = vmatprep.subr.mxu0 0.0
    %2544 = vmatpush2.msra.mxu0 0.0
    %2545 = vmatprep.subr.mxu0 0.0
    %2546 = vmatpush2.msra.mxu0 0.0
    %2547 = vmatprep.subr.mxu0 0.0
    %2548 = vmatpush2.msra.mxu0 0.0
    %2549 = vmatprep.subr.mxu0 0.0
    %2550 = vmatpush2.msra.mxu0 0.0
    %2551 = vmatprep.subr.mxu0 0.0
    %2552 = vmatpush2.msra.mxu0 0.0
    %2553 = vmatprep.mubr.f32.mxu0 0.0
    %2554 = vmatmul.mubr.f32.gmra.mxu0 %v2442
    %v2555 = vpop.f32.mrf.mxu0
    %v2556 = vadd.f32 %v2440, %v2555
    %v2557 = vpop.f32.mrf.mxu0
    %2558 = vmatprep.mubr.f32.mxu0 0.0
    %2559 = vmatmul.mubr.f32.gmra.mxu0 %v2445
    %v2560 = vpop.f32.mrf.mxu0
    %v2561 = vadd.f32 %v2440, %v2560
    %v2562 = vpop.f32.mrf.mxu0
    %2563 = vmatprep.mubr.f32.mxu0 0.0
    %2564 = vmatmul.mubr.f32.gmra.mxu0 %v2448
    %v2565 = vpop.f32.mrf.mxu0
    %v2566 = vadd.f32 %v2440, %v2565
    %v2567 = vpop.f32.mrf.mxu0
    %2568 = vmatprep.mubr.f32.mxu0 0.0
    %2569 = vmatmul.mubr.f32.gmra.mxu0 %v2451
    %v2570 = vpop.f32.mrf.mxu0
    %v2571 = vadd.f32 %v2440, %v2570
    %v2572 = vpop.f32.mrf.mxu0
    %2573 = vmatprep.mubr.f32.mxu0 0.0
    %2574 = vmatmul.mubr.f32.gmra.mxu0 %v2454
    %v2575 = vpop.f32.mrf.mxu0
    %v2576 = vadd.f32 %v2440, %v2575
    %v2577 = vpop.f32.mrf.mxu0
    %2578 = vmatprep.mubr.f32.mxu0 0.0
    %2579 = vmatmul.mubr.f32.gmra.mxu0 %v2457
    %v2580 = vpop.f32.mrf.mxu0
    %v2581 = vadd.f32 %v2440, %v2580
    %v2582 = vpop.f32.mrf.mxu0
    %2583 = vmatprep.mubr.f32.mxu0 0.0
    %2584 = vmatmul.mubr.f32.gmra.mxu0 %v2460
    %v2585 = vpop.f32.mrf.mxu0
    %v2586 = vadd.f32 %v2440, %v2585
    %v2587 = vpop.f32.mrf.mxu0
    %2588 = vmatprep.mubr.f32.mxu0 0.0
    %2589 = vmatmul.mubr.f32.gmra.mxu0 %v2463
    %v2590 = vpop.f32.mrf.mxu0
    %v2591 = vadd.f32 %v2440, %v2590
    %v2592 = vpop.f32.mrf.mxu0
    %2593 = vmatprep.mubr.f32.mxu0 0.0
    %2594 = vmatmul.mubr.f32.gmra.mxu0 %v2466
    %v2595 = vpop.f32.mrf.mxu0
    %v2596 = vadd.f32 %v2440, %v2595
    %v2597 = vpop.f32.mrf.mxu0
    %2598 = vmatprep.mubr.f32.mxu0 0.0
    %2599 = vmatmul.mubr.f32.gmra.mxu0 %v2469
    %v2600 = vpop.f32.mrf.mxu0
    %v2601 = vadd.f32 %v2440, %v2600
    %v2602 = vpop.f32.mrf.mxu0
    %2603 = vmatprep.mubr.f32.mxu0 0.0
    %2604 = vmatmul.mubr.f32.gmra.mxu0 %v2472
    %v2605 = vpop.f32.mrf.mxu0
    %v2606 = vadd.f32 %v2440, %v2605
    %v2607 = vpop.f32.mrf.mxu0
    %2608 = vmatprep.mubr.f32.mxu0 0.0
    %2609 = vmatmul.mubr.f32.gmra.mxu0 %v2475
    %v2610 = vpop.f32.mrf.mxu0
    %v2611 = vadd.f32 %v2440, %v2610
    %v2612 = vpop.f32.mrf.mxu0
    %2613 = vmatprep.mubr.f32.mxu0 0.0
    %2614 = vmatmul.mubr.f32.gmra.mxu0 %v2478
    %v2615 = vpop.f32.mrf.mxu0
    %v2616 = vadd.f32 %v2440, %v2615
    %v2617 = vpop.f32.mrf.mxu0
    %2618 = vmatprep.mubr.f32.mxu0 0.0
    %2619 = vmatmul.mubr.f32.gmra.mxu0 %v2481
    %v2620 = vpop.f32.mrf.mxu0
    %v2621 = vadd.f32 %v2440, %v2620
    %v2622 = vpop.f32.mrf.mxu0
    %2623 = vmatprep.mubr.f32.mxu0 0.0
    %2624 = vmatmul.mubr.f32.gmra.mxu0 %v2484
    %v2625 = vpop.f32.mrf.mxu0
    %v2626 = vadd.f32 %v2440, %v2625
    %v2627 = vpop.f32.mrf.mxu0
    %2628 = vmatprep.mubr.f32.mxu0 0.0
    %2629 = vmatmul.mubr.f32.gmra.mxu0 %v2487
    %v2630 = vpop.f32.mrf.mxu0
    %v2631 = vadd.f32 %v2440, %v2630
    %v2632 = vpop.f32.mrf.mxu0
    %2633 = vdwg.mxu0
    %v2634 = vadd.f32 %v2556, %v53
    %v2635 = vadd.f32 %v2561, %v54
    %v2636 = vadd.f32 %v2566, %v55
    %v2637 = vadd.f32 %v2571, %v56
    %v2638 = vadd.f32 %v2576, %v65
    %v2639 = vadd.f32 %v2581, %v66
    %v2640 = vadd.f32 %v2586, %v67
    %v2641 = vadd.f32 %v2591, %v68
    %v2642 = vadd.f32 %v2596, %v74
    %v2643 = vadd.f32 %v2601, %v75
    %v2644 = vadd.f32 %v2606, %v76
    %v2645 = vadd.f32 %v2611, %v77
    %v2646 = vadd.f32 %v2616, %v83
    %v2647 = vadd.f32 %v2621, %v84
    %v2648 = vadd.f32 %v2626, %v85
    %v2649 = vadd.f32 %v2631, %v86
    %v2650 = vsel %vm125, %v2634, 0.0
    %2651 = vadd.xlane.f32.xlu0 %v2650
    %v2652 = vpop.xlane.xlu0 %2651
    %v2653 = vsel %vm125, %v2635, 0.0
    %2654 = vadd.xlane.f32.xlu0 %v2653
    %v2655 = vpop.xlane.xlu0 %2654
    %v2656 = vsel %vm125, %v2636, 0.0
    %2657 = vadd.xlane.f32.xlu0 %v2656
    %v2658 = vpop.xlane.xlu0 %2657
    %v2659 = vsel %vm125, %v2637, 0.0
    %2660 = vadd.xlane.f32.xlu0 %v2659
    %v2661 = vpop.xlane.xlu0 %2660
    %v2662 = vsel %vm125, %v2638, 0.0
    %2663 = vadd.xlane.f32.xlu0 %v2662
    %v2664 = vpop.xlane.xlu0 %2663
    %v2665 = vsel %vm125, %v2639, 0.0
    %2666 = vadd.xlane.f32.xlu0 %v2665
    %v2667 = vpop.xlane.xlu0 %2666
    %v2668 = vsel %vm125, %v2640, 0.0
    %2669 = vadd.xlane.f32.xlu0 %v2668
    %v2670 = vpop.xlane.xlu0 %2669
    %v2671 = vsel %vm125, %v2641, 0.0
    %2672 = vadd.xlane.f32.xlu0 %v2671
    %v2673 = vpop.xlane.xlu0 %2672
    %v2674 = vsel %vm125, %v2642, 0.0
    %2675 = vadd.xlane.f32.xlu0 %v2674
    %v2676 = vpop.xlane.xlu0 %2675
    %v2677 = vsel %vm125, %v2643, 0.0
    %2678 = vadd.xlane.f32.xlu0 %v2677
    %v2679 = vpop.xlane.xlu0 %2678
    %v2680 = vsel %vm125, %v2644, 0.0
    %2681 = vadd.xlane.f32.xlu0 %v2680
    %v2682 = vpop.xlane.xlu0 %2681
    %v2683 = vsel %vm125, %v2645, 0.0
    %2684 = vadd.xlane.f32.xlu0 %v2683
    %v2685 = vpop.xlane.xlu0 %2684
    %v2686 = vsel %vm125, %v2646, 0.0
    %2687 = vadd.xlane.f32.xlu0 %v2686
    %v2688 = vpop.xlane.xlu0 %2687
    %v2689 = vsel %vm125, %v2647, 0.0
    %2690 = vadd.xlane.f32.xlu0 %v2689
    %v2691 = vpop.xlane.xlu0 %2690
    %v2692 = vsel %vm125, %v2648, 0.0
    %2693 = vadd.xlane.f32.xlu0 %v2692
    %v2694 = vpop.xlane.xlu0 %2693
    %v2695 = vsel %vm125, %v2649, 0.0
    %2696 = vadd.xlane.f32.xlu0 %v2695
    %v2697 = vpop.xlane.xlu0 %2696
    %v2698 = vrcp.pop 32.0
    %v2699 = vmul.f32 %v2652, %v2698
    %v2700 = vmul.f32 %v2655, %v2698
    %v2701 = vmul.f32 %v2658, %v2698
    %v2702 = vmul.f32 %v2661, %v2698
    %v2703 = vmul.f32 %v2664, %v2698
    %v2704 = vmul.f32 %v2667, %v2698
    %v2705 = vmul.f32 %v2670, %v2698
    %v2706 = vmul.f32 %v2673, %v2698
    %v2707 = vmul.f32 %v2676, %v2698
    %v2708 = vmul.f32 %v2679, %v2698
    %v2709 = vmul.f32 %v2682, %v2698
    %v2710 = vmul.f32 %v2685, %v2698
    %v2711 = vmul.f32 %v2688, %v2698
    %v2712 = vmul.f32 %v2691, %v2698
    %v2713 = vmul.f32 %v2694, %v2698
    %v2714 = vmul.f32 %v2697, %v2698
    %v2715 = vsub.f32 %v2634, %v2699
    %v2716 = vsub.f32 %v2635, %v2700
    %v2717 = vsub.f32 %v2636, %v2701
    %v2718 = vsub.f32 %v2637, %v2702
    %v2719 = vsub.f32 %v2638, %v2703
    %v2720 = vsub.f32 %v2639, %v2704
    %v2721 = vsub.f32 %v2640, %v2705
    %v2722 = vsub.f32 %v2641, %v2706
    %v2723 = vsub.f32 %v2642, %v2707
    %v2724 = vsub.f32 %v2643, %v2708
    %v2725 = vsub.f32 %v2644, %v2709
    %v2726 = vsub.f32 %v2645, %v2710
    %v2727 = vsub.f32 %v2646, %v2711
    %v2728 = vsub.f32 %v2647, %v2712
    %v2729 = vsub.f32 %v2648, %v2713
    %v2730 = vsub.f32 %v2649, %v2714
    %v2731 = vmul.f32 %v2715, %v2715
    %v2732 = vmul.f32 %v2716, %v2716
    %v2733 = vmul.f32 %v2717, %v2717
    %v2734 = vmul.f32 %v2718, %v2718
    %v2735 = vmul.f32 %v2719, %v2719
    %v2736 = vmul.f32 %v2720, %v2720
    %v2737 = vmul.f32 %v2721, %v2721
    %v2738 = vmul.f32 %v2722, %v2722
    %v2739 = vmul.f32 %v2723, %v2723
    %v2740 = vmul.f32 %v2724, %v2724
    %v2741 = vmul.f32 %v2725, %v2725
    %v2742 = vmul.f32 %v2726, %v2726
    %v2743 = vmul.f32 %v2727, %v2727
    %v2744 = vmul.f32 %v2728, %v2728
    %v2745 = vmul.f32 %v2729, %v2729
    %v2746 = vmul.f32 %v2730, %v2730
    %v2747 = vsel %vm125, %v2731, 0.0
    %2748 = vadd.xlane.f32.xlu0 %v2747
    %v2749 = vpop.xlane.xlu0 %2748
    %v2750 = vsel %vm125, %v2732, 0.0
    %2751 = vadd.xlane.f32.xlu0 %v2750
    %v2752 = vpop.xlane.xlu0 %2751
    %v2753 = vsel %vm125, %v2733, 0.0
    %2754 = vadd.xlane.f32.xlu0 %v2753
    %v2755 = vpop.xlane.xlu0 %2754
    %v2756 = vsel %vm125, %v2734, 0.0
    %2757 = vadd.xlane.f32.xlu0 %v2756
    %v2758 = vpop.xlane.xlu0 %2757
    %v2759 = vsel %vm125, %v2735, 0.0
    %2760 = vadd.xlane.f32.xlu0 %v2759
    %v2761 = vpop.xlane.xlu0 %2760
    %v2762 = vsel %vm125, %v2736, 0.0
    %2763 = vadd.xlane.f32.xlu0 %v2762
    %v2764 = vpop.xlane.xlu0 %2763
    %v2765 = vsel %vm125, %v2737, 0.0
    %2766 = vadd.xlane.f32.xlu0 %v2765
    %v2767 = vpop.xlane.xlu0 %2766
    %v2768 = vsel %vm125, %v2738, 0.0
    %2769 = vadd.xlane.f32.xlu0 %v2768
    %v2770 = vpop.xlane.xlu0 %2769
    %v2771 = vsel %vm125, %v2739, 0.0
    %2772 = vadd.xlane.f32.xlu0 %v2771
    %v2773 = vpop.xlane.xlu0 %2772
    %v2774 = vsel %vm125, %v2740, 0.0
    %2775 = vadd.xlane.f32.xlu0 %v2774
    %v2776 = vpop.xlane.xlu0 %2775
    %v2777 = vsel %vm125, %v2741, 0.0
    %2778 = vadd.xlane.f32.xlu0 %v2777
    %v2779 = vpop.xlane.xlu0 %2778
    %v2780 = vsel %vm125, %v2742, 0.0
    %2781 = vadd.xlane.f32.xlu0 %v2780
    %v2782 = vpop.xlane.xlu0 %2781
    %v2783 = vsel %vm125, %v2743, 0.0
    %2784 = vadd.xlane.f32.xlu0 %v2783
    %v2785 = vpop.xlane.xlu0 %2784
    %v2786 = vsel %vm125, %v2744, 0.0
    %2787 = vadd.xlane.f32.xlu0 %v2786
    %v2788 = vpop.xlane.xlu0 %2787
    %v2789 = vsel %vm125, %v2745, 0.0
    %2790 = vadd.xlane.f32.xlu0 %v2789
    %v2791 = vpop.xlane.xlu0 %2790
    %v2792 = vsel %vm125, %v2746, 0.0
    %2793 = vadd.xlane.f32.xlu0 %v2792
    %v2794 = vpop.xlane.xlu0 %2793
    %v2795 = vmul.f32 %v2749, %v2698
    %v2796 = vmul.f32 %v2752, %v2698
    %v2797 = vmul.f32 %v2755, %v2698
    %v2798 = vmul.f32 %v2758, %v2698
    %v2799 = vmul.f32 %v2761, %v2698
    %v2800 = vmul.f32 %v2764, %v2698
    %v2801 = vmul.f32 %v2767, %v2698
    %v2802 = vmul.f32 %v2770, %v2698
    %v2803 = vmul.f32 %v2773, %v2698
    %v2804 = vmul.f32 %v2776, %v2698
    %v2805 = vmul.f32 %v2779, %v2698
    %v2806 = vmul.f32 %v2782, %v2698
    %v2807 = vmul.f32 %v2785, %v2698
    %v2808 = vmul.f32 %v2788, %v2698
    %v2809 = vmul.f32 %v2791, %v2698
    %v2810 = vmul.f32 %v2794, %v2698
    %v2811 = vadd.f32 %v2795, 1e-12
    %v2812 = vadd.f32 %v2796, 1e-12
    %v2813 = vadd.f32 %v2797, 1e-12
    %v2814 = vadd.f32 %v2798, 1e-12
    %v2815 = vadd.f32 %v2799, 1e-12
    %v2816 = vadd.f32 %v2800, 1e-12
    %v2817 = vadd.f32 %v2801, 1e-12
    %v2818 = vadd.f32 %v2802, 1e-12
    %v2819 = vadd.f32 %v2803, 1e-12
    %v2820 = vadd.f32 %v2804, 1e-12
    %v2821 = vadd.f32 %v2805, 1e-12
    %v2822 = vadd.f32 %v2806, 1e-12
    %v2823 = vadd.f32 %v2807, 1e-12
    %v2824 = vadd.f32 %v2808, 1e-12
    %v2825 = vadd.f32 %v2809, 1e-12
    %v2826 = vadd.f32 %v2810, 1e-12
    %v2827 = vrsqrt.pop %v2811
    %v2828 = vrsqrt.pop %v2812
    %v2829 = vrsqrt.pop %v2813
    %v2830 = vrsqrt.pop %v2814
    %v2831 = vrsqrt.pop %v2815
    %v2832 = vrsqrt.pop %v2816
    %v2833 = vrsqrt.pop %v2817
    %v2834 = vrsqrt.pop %v2818
    %v2835 = vrsqrt.pop %v2819
    %v2836 = vrsqrt.pop %v2820
    %v2837 = vrsqrt.pop %v2821
    %v2838 = vrsqrt.pop %v2822
    %v2839 = vrsqrt.pop %v2823
    %v2840 = vrsqrt.pop %v2824
    %v2841 = vrsqrt.pop %v2825
    %v2842 = vrsqrt.pop %v2826
    %v2843 = vmul.f32 %v2715, %v2827
    %v2844 = vmul.f32 %v2716, %v2828
    %v2845 = vmul.f32 %v2717, %v2829
    %v2846 = vmul.f32 %v2718, %v2830
    %v2847 = vmul.f32 %v2719, %v2831
    %v2848 = vmul.f32 %v2720, %v2832
    %v2849 = vmul.f32 %v2721, %v2833
    %v2850 = vmul.f32 %v2722, %v2834
    %v2851 = vmul.f32 %v2723, %v2835
    %v2852 = vmul.f32 %v2724, %v2836
    %v2853 = vmul.f32 %v2725, %v2837
    %v2854 = vmul.f32 %v2726, %v2838
    %v2855 = vmul.f32 %v2727, %v2839
    %v2856 = vmul.f32 %v2728, %v2840
    %v2857 = vmul.f32 %v2729, %v2841
    %v2858 = vmul.f32 %v2730, %v2842
    %v2859 = vlaneseq
    %v2860 = vshrl.u32 %v2859, 7
    %v2861 = vsub.s32 0, %v2860
    %v2862 = vrot.slane %v111, %v2861
    %v2863 = vmul.f32 %v2862, %v2843
    %v2864 = vmul.f32 %v2862, %v2844
    %v2865 = vmul.f32 %v2862, %v2845
    %v2866 = vmul.f32 %v2862, %v2846
    %v2867 = vmul.f32 %v2862, %v2847
    %v2868 = vmul.f32 %v2862, %v2848
    %v2869 = vmul.f32 %v2862, %v2849
    %v2870 = vmul.f32 %v2862, %v2850
    %v2871 = vmul.f32 %v2862, %v2851
    %v2872 = vmul.f32 %v2862, %v2852
    %v2873 = vmul.f32 %v2862, %v2853
    %v2874 = vmul.f32 %v2862, %v2854
    %v2875 = vmul.f32 %v2862, %v2855
    %v2876 = vmul.f32 %v2862, %v2856
    %v2877 = vmul.f32 %v2862, %v2857
    %v2878 = vmul.f32 %v2862, %v2858
    %v2879 = vlaneseq
    %v2880 = vshrl.u32 %v2879, 7
    %v2881 = vsub.s32 0, %v2880
    %v2882 = vrot.slane %v112, %v2881
    %v2883 = vadd.f32 %v2863, %v2882
    %v2884 = vadd.f32 %v2864, %v2882
    %v2885 = vadd.f32 %v2865, %v2882
    %v2886 = vadd.f32 %v2866, %v2882
    %v2887 = vadd.f32 %v2867, %v2882
    %v2888 = vadd.f32 %v2868, %v2882
    %v2889 = vadd.f32 %v2869, %v2882
    %v2890 = vadd.f32 %v2870, %v2882
    %v2891 = vadd.f32 %v2871, %v2882
    %v2892 = vadd.f32 %v2872, %v2882
    %v2893 = vadd.f32 %v2873, %v2882
    %v2894 = vadd.f32 %v2874, %v2882
    %v2895 = vadd.f32 %v2875, %v2882
    %v2896 = vadd.f32 %v2876, %v2882
    %v2897 = vadd.f32 %v2877, %v2882
    %v2898 = vadd.f32 %v2878, %v2882
    %v2899 = vld [vmem:[%s6] sm:$0xff]
    %v2900 = vld [vmem:[%s6 + $0x8] sm:$0xff]
    %v2901 = vld [vmem:[%s6 + $0x10] sm:$0xff]
    %v2902 = vld [vmem:[%s6 + $0x18] sm:$0xff]
    %v2903 = vlaneseq
    %v2904 = vshrl.u32 %v2903, 7
    %v2905 = vsub.s32 0, %v2904
    %v2906 = vrot.slane %v113, %v2905
    %v2908 = vsel %vm125, %v2883, 0
    %v2911 = vsel %vm125, %v2884, 0
    %v2914 = vsel %vm125, %v2885, 0
    %v2917 = vsel %vm125, %v2886, 0
    %v2920 = vsel %vm125, %v2887, 0
    %v2923 = vsel %vm125, %v2888, 0
    %v2926 = vsel %vm125, %v2889, 0
    %v2929 = vsel %vm125, %v2890, 0
    %v2932 = vsel %vm125, %v2891, 0
    %v2935 = vsel %vm125, %v2892, 0
    %v2938 = vsel %vm125, %v2893, 0
    %v2941 = vsel %vm125, %v2894, 0
    %v2944 = vsel %vm125, %v2895, 0
    %v2947 = vsel %vm125, %v2896, 0
    %v2950 = vsel %vm125, %v2897, 0
    %v2953 = vsel %vm125, %v2898, 0
    %2955 = vmatprep.subr.mxu0 0.0
    %2956 = vmatpush1.msra.mxu0 0.0
    %2957 = vmatprep.subr.mxu0 0.0
    %2958 = vmatpush1.msra.mxu0 0.0
    %2959 = vmatprep.subr.mxu0 0.0
    %2960 = vmatpush1.msra.mxu0 0.0
    %2961 = vmatprep.subr.mxu0 0.0
    %2962 = vmatpush1.msra.mxu0 0.0
    %2963 = vmatprep.subr.mxu0 0.0
    %2964 = vmatpush1.msra.mxu0 0.0
    %2965 = vmatprep.subr.mxu0 0.0
    %2966 = vmatpush1.msra.mxu0 0.0
    %2967 = vmatprep.subr.mxu0 0.0
    %2968 = vmatpush1.msra.mxu0 0.0
    %2969 = vmatprep.subr.mxu0 0.0
    %2970 = vmatpush1.msra.mxu0 0.0
    %2971 = vmatprep.subr.mxu0 0.0
    %2972 = vmatpush1.msra.mxu0 0.0
    %2973 = vmatprep.subr.mxu0 0.0
    %2974 = vmatpush1.msra.mxu0 0.0
    %2975 = vmatprep.subr.mxu0 0.0
    %2976 = vmatpush1.msra.mxu0 0.0
    %2977 = vmatprep.subr.mxu0 0.0
    %2978 = vmatpush1.msra.mxu0 0.0
    %2979 = vmatprep.subr.mxu0 0.0
    %2980 = vmatpush1.msra.mxu0 %v2902
    %2981 = vmatprep.subr.mxu0 0.0
    %2982 = vmatpush1.msra.mxu0 %v2901
    %2983 = vmatprep.subr.mxu0 0.0
    %2984 = vmatpush1.msra.mxu0 %v2900
    %2985 = vmatprep.subr.mxu0 0.0
    %2986 = vmatpush1.msra.mxu0 %v2899
    %2987 = vmatprep.subr.mxu0 0.0
    %2988 = vmatpush2.msra.mxu0 0.0
    %2989 = vmatprep.subr.mxu0 0.0
    %2990 = vmatpush2.msra.mxu0 0.0
    %2991 = vmatprep.subr.mxu0 0.0
    %2992 = vmatpush2.msra.mxu0 0.0
    %2993 = vmatprep.subr.mxu0 0.0
    %2994 = vmatpush2.msra.mxu0 0.0
    %2995 = vmatprep.subr.mxu0 0.0
    %2996 = vmatpush2.msra.mxu0 0.0
    %2997 = vmatprep.subr.mxu0 0.0
    %2998 = vmatpush2.msra.mxu0 0.0
    %2999 = vmatprep.subr.mxu0 0.0
    %3000 = vmatpush2.msra.mxu0 0.0
    %3001 = vmatprep.subr.mxu0 0.0
    %3002 = vmatpush2.msra.mxu0 0.0
    %3003 = vmatprep.subr.mxu0 0.0
    %3004 = vmatpush2.msra.mxu0 0.0
    %3005 = vmatprep.subr.mxu0 0.0
    %3006 = vmatpush2.msra.mxu0 0.0
    %3007 = vmatprep.subr.mxu0 0.0
    %3008 = vmatpush2.msra.mxu0 0.0
    %3009 = vmatprep.subr.mxu0 0.0
    %3010 = vmatpush2.msra.mxu0 0.0
    %3011 = vmatprep.subr.mxu0 0.0
    %3012 = vmatpush2.msra.mxu0 0.0
    %3013 = vmatprep.subr.mxu0 0.0
    %3014 = vmatpush2.msra.mxu0 0.0
    %3015 = vmatprep.subr.mxu0 0.0
    %3016 = vmatpush2.msra.mxu0 0.0
    %3017 = vmatprep.subr.mxu0 0.0
    %3018 = vmatpush2.msra.mxu0 0.0
    %3019 = vmatprep.mubr.f32.mxu0 0.0
    %3020 = vmatmul.mubr.f32.gmra.mxu0 %v2908
    %v3021 = vpop.f32.mrf.mxu0
    %v3022 = vadd.f32 %v2906, %v3021
    %v3023 = vpop.f32.mrf.mxu0
    %3024 = vmatprep.mubr.f32.mxu0 0.0
    %3025 = vmatmul.mubr.f32.gmra.mxu0 %v2911
    %v3026 = vpop.f32.mrf.mxu0
    %v3027 = vadd.f32 %v2906, %v3026
    %v3028 = vpop.f32.mrf.mxu0
    %3029 = vmatprep.mubr.f32.mxu0 0.0
    %3030 = vmatmul.mubr.f32.gmra.mxu0 %v2914
    %v3031 = vpop.f32.mrf.mxu0
    %v3032 = vadd.f32 %v2906, %v3031
    %v3033 = vpop.f32.mrf.mxu0
    %3034 = vmatprep.mubr.f32.mxu0 0.0
    %3035 = vmatmul.mubr.f32.gmra.mxu0 %v2917
    %v3036 = vpop.f32.mrf.mxu0
    %v3037 = vadd.f32 %v2906, %v3036
    %v3038 = vpop.f32.mrf.mxu0
    %3039 = vmatprep.mubr.f32.mxu0 0.0
    %3040 = vmatmul.mubr.f32.gmra.mxu0 %v2920
    %v3041 = vpop.f32.mrf.mxu0
    %v3042 = vadd.f32 %v2906, %v3041
    %v3043 = vpop.f32.mrf.mxu0
    %3044 = vmatprep.mubr.f32.mxu0 0.0
    %3045 = vmatmul.mubr.f32.gmra.mxu0 %v2923
    %v3046 = vpop.f32.mrf.mxu0
    %v3047 = vadd.f32 %v2906, %v3046
    %v3048 = vpop.f32.mrf.mxu0
    %3049 = vmatprep.mubr.f32.mxu0 0.0
    %3050 = vmatmul.mubr.f32.gmra.mxu0 %v2926
    %v3051 = vpop.f32.mrf.mxu0
    %v3052 = vadd.f32 %v2906, %v3051
    %v3053 = vpop.f32.mrf.mxu0
    %3054 = vmatprep.mubr.f32.mxu0 0.0
    %3055 = vmatmul.mubr.f32.gmra.mxu0 %v2929
    %v3056 = vpop.f32.mrf.mxu0
    %v3057 = vadd.f32 %v2906, %v3056
    %v3058 = vpop.f32.mrf.mxu0
    %3059 = vmatprep.mubr.f32.mxu0 0.0
    %3060 = vmatmul.mubr.f32.gmra.mxu0 %v2932
    %v3061 = vpop.f32.mrf.mxu0
    %v3062 = vadd.f32 %v2906, %v3061
    %v3063 = vpop.f32.mrf.mxu0
    %3064 = vmatprep.mubr.f32.mxu0 0.0
    %3065 = vmatmul.mubr.f32.gmra.mxu0 %v2935
    %v3066 = vpop.f32.mrf.mxu0
    %v3067 = vadd.f32 %v2906, %v3066
    %v3068 = vpop.f32.mrf.mxu0
    %3069 = vmatprep.mubr.f32.mxu0 0.0
    %3070 = vmatmul.mubr.f32.gmra.mxu0 %v2938
    %v3071 = vpop.f32.mrf.mxu0
    %v3072 = vadd.f32 %v2906, %v3071
    %v3073 = vpop.f32.mrf.mxu0
    %3074 = vmatprep.mubr.f32.mxu0 0.0
    %3075 = vmatmul.mubr.f32.gmra.mxu0 %v2941
    %v3076 = vpop.f32.mrf.mxu0
    %v3077 = vadd.f32 %v2906, %v3076
    %v3078 = vpop.f32.mrf.mxu0
    %3079 = vmatprep.mubr.f32.mxu0 0.0
    %3080 = vmatmul.mubr.f32.gmra.mxu0 %v2944
    %v3081 = vpop.f32.mrf.mxu0
    %v3082 = vadd.f32 %v2906, %v3081
    %v3083 = vpop.f32.mrf.mxu0
    %3084 = vmatprep.mubr.f32.mxu0 0.0
    %3085 = vmatmul.mubr.f32.gmra.mxu0 %v2947
    %v3086 = vpop.f32.mrf.mxu0
    %v3087 = vadd.f32 %v2906, %v3086
    %v3088 = vpop.f32.mrf.mxu0
    %3089 = vmatprep.mubr.f32.mxu0 0.0
    %3090 = vmatmul.mubr.f32.gmra.mxu0 %v2950
    %v3091 = vpop.f32.mrf.mxu0
    %v3092 = vadd.f32 %v2906, %v3091
    %v3093 = vpop.f32.mrf.mxu0
    %3094 = vmatprep.mubr.f32.mxu0 0.0
    %3095 = vmatmul.mubr.f32.gmra.mxu0 %v2953
    %v3096 = vpop.f32.mrf.mxu0
    %v3097 = vadd.f32 %v2906, %v3096
    %v3098 = vpop.f32.mrf.mxu0
    %3099 = vdwg.mxu0
    %v3100 = vmax.f32 %v3022, 0.0
    %v3101 = vmax.f32 %v3027, 0.0
    %v3102 = vmax.f32 %v3032, 0.0
    %v3103 = vmax.f32 %v3037, 0.0
    %v3104 = vmax.f32 %v3042, 0.0
    %v3105 = vmax.f32 %v3047, 0.0
    %v3106 = vmax.f32 %v3052, 0.0
    %v3107 = vmax.f32 %v3057, 0.0
    %v3108 = vmax.f32 %v3062, 0.0
    %v3109 = vmax.f32 %v3067, 0.0
    %v3110 = vmax.f32 %v3072, 0.0
    %v3111 = vmax.f32 %v3077, 0.0
    %v3112 = vmax.f32 %v3082, 0.0
    %v3113 = vmax.f32 %v3087, 0.0
    %v3114 = vmax.f32 %v3092, 0.0
    %v3115 = vmax.f32 %v3097, 0.0
    %v3116 = vld [vmem:[%s7] sm:$0xff]
    %v3117 = vld [vmem:[%s7 + $0x8] sm:$0xff]
    %v3118 = vld [vmem:[%s7 + $0x10] sm:$0xff]
    %v3119 = vld [vmem:[%s7 + $0x18] sm:$0xff]
    %v3120 = vld [vmem:[%s7 + $0x20] sm:$0xff]
    %v3121 = vld [vmem:[%s7 + $0x28] sm:$0xff]
    %v3122 = vld [vmem:[%s7 + $0x30] sm:$0xff]
    %v3123 = vld [vmem:[%s7 + $0x38] sm:$0xff]
    %v3124 = vlaneseq
    %v3125 = vshrl.u32 %v3124, 7
    %v3126 = vsub.s32 0, %v3125
    %v3127 = vrot.slane %v114, %v3126
    %v3129 = vsel %vm772, %v3100, 0
    %v3132 = vsel %vm772, %v3101, 0
    %v3135 = vsel %vm772, %v3102, 0
    %v3138 = vsel %vm772, %v3103, 0
    %v3141 = vsel %vm772, %v3104, 0
    %v3144 = vsel %vm772, %v3105, 0
    %v3147 = vsel %vm772, %v3106, 0
    %v3150 = vsel %vm772, %v3107, 0
    %v3153 = vsel %vm772, %v3108, 0
    %v3156 = vsel %vm772, %v3109, 0
    %v3159 = vsel %vm772, %v3110, 0
    %v3162 = vsel %vm772, %v3111, 0
    %v3165 = vsel %vm772, %v3112, 0
    %v3168 = vsel %vm772, %v3113, 0
    %v3171 = vsel %vm772, %v3114, 0
    %v3174 = vsel %vm772, %v3115, 0
    %3176 = vmatprep.subr.mxu0 0.0
    %3177 = vmatpush1.msra.mxu0 0.0
    %3178 = vmatprep.subr.mxu0 0.0
    %3179 = vmatpush1.msra.mxu0 0.0
    %3180 = vmatprep.subr.mxu0 0.0
    %3181 = vmatpush1.msra.mxu0 0.0
    %3182 = vmatprep.subr.mxu0 0.0
    %3183 = vmatpush1.msra.mxu0 0.0
    %3184 = vmatprep.subr.mxu0 0.0
    %3185 = vmatpush1.msra.mxu0 0.0
    %3186 = vmatprep.subr.mxu0 0.0
    %3187 = vmatpush1.msra.mxu0 0.0
    %3188 = vmatprep.subr.mxu0 0.0
    %3189 = vmatpush1.msra.mxu0 0.0
    %3190 = vmatprep.subr.mxu0 0.0
    %3191 = vmatpush1.msra.mxu0 0.0
    %3192 = vmatprep.subr.mxu0 0.0
    %3193 = vmatpush1.msra.mxu0 %v3123
    %3194 = vmatprep.subr.mxu0 0.0
    %3195 = vmatpush1.msra.mxu0 %v3122
    %3196 = vmatprep.subr.mxu0 0.0
    %3197 = vmatpush1.msra.mxu0 %v3121
    %3198 = vmatprep.subr.mxu0 0.0
    %3199 = vmatpush1.msra.mxu0 %v3120
    %3200 = vmatprep.subr.mxu0 0.0
    %3201 = vmatpush1.msra.mxu0 %v3119
    %3202 = vmatprep.subr.mxu0 0.0
    %3203 = vmatpush1.msra.mxu0 %v3118
    %3204 = vmatprep.subr.mxu0 0.0
    %3205 = vmatpush1.msra.mxu0 %v3117
    %3206 = vmatprep.subr.mxu0 0.0
    %3207 = vmatpush1.msra.mxu0 %v3116
    %3208 = vmatprep.subr.mxu0 0.0
    %3209 = vmatpush2.msra.mxu0 0.0
    %3210 = vmatprep.subr.mxu0 0.0
    %3211 = vmatpush2.msra.mxu0 0.0
    %3212 = vmatprep.subr.mxu0 0.0
    %3213 = vmatpush2.msra.mxu0 0.0
    %3214 = vmatprep.subr.mxu0 0.0
    %3215 = vmatpush2.msra.mxu0 0.0
    %3216 = vmatprep.subr.mxu0 0.0
    %3217 = vmatpush2.msra.mxu0 0.0
    %3218 = vmatprep.subr.mxu0 0.0
    %3219 = vmatpush2.msra.mxu0 0.0
    %3220 = vmatprep.subr.mxu0 0.0
    %3221 = vmatpush2.msra.mxu0 0.0
    %3222 = vmatprep.subr.mxu0 0.0
    %3223 = vmatpush2.msra.mxu0 0.0
    %3224 = vmatprep.subr.mxu0 0.0
    %3225 = vmatpush2.msra.mxu0 0.0
    %3226 = vmatprep.subr.mxu0 0.0
    %3227 = vmatpush2.msra.mxu0 0.0
    %3228 = vmatprep.subr.mxu0 0.0
    %3229 = vmatpush2.msra.mxu0 0.0
    %3230 = vmatprep.subr.mxu0 0.0
    %3231 = vmatpush2.msra.mxu0 0.0
    %3232 = vmatprep.subr.mxu0 0.0
    %3233 = vmatpush2.msra.mxu0 0.0
    %3234 = vmatprep.subr.mxu0 0.0
    %3235 = vmatpush2.msra.mxu0 0.0
    %3236 = vmatprep.subr.mxu0 0.0
    %3237 = vmatpush2.msra.mxu0 0.0
    %3238 = vmatprep.subr.mxu0 0.0
    %3239 = vmatpush2.msra.mxu0 0.0
    %3240 = vmatprep.mubr.f32.mxu0 0.0
    %3241 = vmatmul.mubr.f32.gmra.mxu0 %v3129
    %v3242 = vpop.f32.mrf.mxu0
    %v3243 = vadd.f32 %v3127, %v3242
    %v3244 = vpop.f32.mrf.mxu0
    %3245 = vmatprep.mubr.f32.mxu0 0.0
    %3246 = vmatmul.mubr.f32.gmra.mxu0 %v3132
    %v3247 = vpop.f32.mrf.mxu0
    %v3248 = vadd.f32 %v3127, %v3247
    %v3249 = vpop.f32.mrf.mxu0
    %3250 = vmatprep.mubr.f32.mxu0 0.0
    %3251 = vmatmul.mubr.f32.gmra.mxu0 %v3135
    %v3252 = vpop.f32.mrf.mxu0
    %v3253 = vadd.f32 %v3127, %v3252
    %v3254 = vpop.f32.mrf.mxu0
    %3255 = vmatprep.mubr.f32.mxu0 0.0
    %3256 = vmatmul.mubr.f32.gmra.mxu0 %v3138
    %v3257 = vpop.f32.mrf.mxu0
    %v3258 = vadd.f32 %v3127, %v3257
    %v3259 = vpop.f32.mrf.mxu0
    %3260 = vmatprep.mubr.f32.mxu0 0.0
    %3261 = vmatmul.mubr.f32.gmra.mxu0 %v3141
    %v3262 = vpop.f32.mrf.mxu0
    %v3263 = vadd.f32 %v3127, %v3262
    %v3264 = vpop.f32.mrf.mxu0
    %3265 = vmatprep.mubr.f32.mxu0 0.0
    %3266 = vmatmul.mubr.f32.gmra.mxu0 %v3144
    %v3267 = vpop.f32.mrf.mxu0
    %v3268 = vadd.f32 %v3127, %v3267
    %v3269 = vpop.f32.mrf.mxu0
    %3270 = vmatprep.mubr.f32.mxu0 0.0
    %3271 = vmatmul.mubr.f32.gmra.mxu0 %v3147
    %v3272 = vpop.f32.mrf.mxu0
    %v3273 = vadd.f32 %v3127, %v3272
    %v3274 = vpop.f32.mrf.mxu0
    %3275 = vmatprep.mubr.f32.mxu0 0.0
    %3276 = vmatmul.mubr.f32.gmra.mxu0 %v3150
    %v3277 = vpop.f32.mrf.mxu0
    %v3278 = vadd.f32 %v3127, %v3277
    %v3279 = vpop.f32.mrf.mxu0
    %3280 = vmatprep.mubr.f32.mxu0 0.0
    %3281 = vmatmul.mubr.f32.gmra.mxu0 %v3153
    %v3282 = vpop.f32.mrf.mxu0
    %v3283 = vadd.f32 %v3127, %v3282
    %v3284 = vpop.f32.mrf.mxu0
    %3285 = vmatprep.mubr.f32.mxu0 0.0
    %3286 = vmatmul.mubr.f32.gmra.mxu0 %v3156
    %v3287 = vpop.f32.mrf.mxu0
    %v3288 = vadd.f32 %v3127, %v3287
    %v3289 = vpop.f32.mrf.mxu0
    %3290 = vmatprep.mubr.f32.mxu0 0.0
    %3291 = vmatmul.mubr.f32.gmra.mxu0 %v3159
    %v3292 = vpop.f32.mrf.mxu0
    %v3293 = vadd.f32 %v3127, %v3292
    %v3294 = vpop.f32.mrf.mxu0
    %3295 = vmatprep.mubr.f32.mxu0 0.0
    %3296 = vmatmul.mubr.f32.gmra.mxu0 %v3162
    %v3297 = vpop.f32.mrf.mxu0
    %v3298 = vadd.f32 %v3127, %v3297
    %v3299 = vpop.f32.mrf.mxu0
    %3300 = vmatprep.mubr.f32.mxu0 0.0
    %3301 = vmatmul.mubr.f32.gmra.mxu0 %v3165
    %v3302 = vpop.f32.mrf.mxu0
    %v3303 = vadd.f32 %v3127, %v3302
    %v3304 = vpop.f32.mrf.mxu0
    %3305 = vmatprep.mubr.f32.mxu0 0.0
    %3306 = vmatmul.mubr.f32.gmra.mxu0 %v3168
    %v3307 = vpop.f32.mrf.mxu0
    %v3308 = vadd.f32 %v3127, %v3307
    %v3309 = vpop.f32.mrf.mxu0
    %3310 = vmatprep.mubr.f32.mxu0 0.0
    %3311 = vmatmul.mubr.f32.gmra.mxu0 %v3171
    %v3312 = vpop.f32.mrf.mxu0
    %v3313 = vadd.f32 %v3127, %v3312
    %v3314 = vpop.f32.mrf.mxu0
    %3315 = vmatprep.mubr.f32.mxu0 0.0
    %3316 = vmatmul.mubr.f32.gmra.mxu0 %v3174
    %v3317 = vpop.f32.mrf.mxu0
    %v3318 = vadd.f32 %v3127, %v3317
    %v3319 = vpop.f32.mrf.mxu0
    %3320 = vdwg.mxu0
    %v3321 = vadd.f32 %v3243, %v2883
    %v3322 = vadd.f32 %v3248, %v2884
    %v3323 = vadd.f32 %v3253, %v2885
    %v3324 = vadd.f32 %v3258, %v2886
    %v3325 = vadd.f32 %v3263, %v2887
    %v3326 = vadd.f32 %v3268, %v2888
    %v3327 = vadd.f32 %v3273, %v2889
    %v3328 = vadd.f32 %v3278, %v2890
    %v3329 = vadd.f32 %v3283, %v2891
    %v3330 = vadd.f32 %v3288, %v2892
    %v3331 = vadd.f32 %v3293, %v2893
    %v3332 = vadd.f32 %v3298, %v2894
    %v3333 = vadd.f32 %v3303, %v2895
    %v3334 = vadd.f32 %v3308, %v2896
    %v3335 = vadd.f32 %v3313, %v2897
    %v3336 = vadd.f32 %v3318, %v2898
    %v3337 = vsel %vm125, %v3321, 0.0
    %3338 = vadd.xlane.f32.xlu0 %v3337
    %v3339 = vpop.xlane.xlu0 %3338
    %v3340 = vsel %vm125, %v3322, 0.0
    %3341 = vadd.xlane.f32.xlu0 %v3340
    %v3342 = vpop.xlane.xlu0 %3341
    %v3343 = vsel %vm125, %v3323, 0.0
    %3344 = vadd.xlane.f32.xlu0 %v3343
    %v3345 = vpop.xlane.xlu0 %3344
    %v3346 = vsel %vm125, %v3324, 0.0
    %3347 = vadd.xlane.f32.xlu0 %v3346
    %v3348 = vpop.xlane.xlu0 %3347
    %v3349 = vsel %vm125, %v3325, 0.0
    %3350 = vadd.xlane.f32.xlu0 %v3349
    %v3351 = vpop.xlane.xlu0 %3350
    %v3352 = vsel %vm125, %v3326, 0.0
    %3353 = vadd.xlane.f32.xlu0 %v3352
    %v3354 = vpop.xlane.xlu0 %3353
    %v3355 = vsel %vm125, %v3327, 0.0
    %3356 = vadd.xlane.f32.xlu0 %v3355
    %v3357 = vpop.xlane.xlu0 %3356
    %v3358 = vsel %vm125, %v3328, 0.0
    %3359 = vadd.xlane.f32.xlu0 %v3358
    %v3360 = vpop.xlane.xlu0 %3359
    %v3361 = vsel %vm125, %v3329, 0.0
    %3362 = vadd.xlane.f32.xlu0 %v3361
    %v3363 = vpop.xlane.xlu0 %3362
    %v3364 = vsel %vm125, %v3330, 0.0
    %3365 = vadd.xlane.f32.xlu0 %v3364
    %v3366 = vpop.xlane.xlu0 %3365
    %v3367 = vsel %vm125, %v3331, 0.0
    %3368 = vadd.xlane.f32.xlu0 %v3367
    %v3369 = vpop.xlane.xlu0 %3368
    %v3370 = vsel %vm125, %v3332, 0.0
    %3371 = vadd.xlane.f32.xlu0 %v3370
    %v3372 = vpop.xlane.xlu0 %3371
    %v3373 = vsel %vm125, %v3333, 0.0
    %3374 = vadd.xlane.f32.xlu0 %v3373
    %v3375 = vpop.xlane.xlu0 %3374
    %v3376 = vsel %vm125, %v3334, 0.0
    %3377 = vadd.xlane.f32.xlu0 %v3376
    %v3378 = vpop.xlane.xlu0 %3377
    %v3379 = vsel %vm125, %v3335, 0.0
    %3380 = vadd.xlane.f32.xlu0 %v3379
    %v3381 = vpop.xlane.xlu0 %3380
    %v3382 = vsel %vm125, %v3336, 0.0
    %3383 = vadd.xlane.f32.xlu0 %v3382
    %v3384 = vpop.xlane.xlu0 %3383
    %v3385 = vmul.f32 %v3339, %v2698
    %v3386 = vmul.f32 %v3342, %v2698
    %v3387 = vmul.f32 %v3345, %v2698
    %v3388 = vmul.f32 %v3348, %v2698
    %v3389 = vmul.f32 %v3351, %v2698
    %v3390 = vmul.f32 %v3354, %v2698
    %v3391 = vmul.f32 %v3357, %v2698
    %v3392 = vmul.f32 %v3360, %v2698
    %v3393 = vmul.f32 %v3363, %v2698
    %v3394 = vmul.f32 %v3366, %v2698
    %v3395 = vmul.f32 %v3369, %v2698
    %v3396 = vmul.f32 %v3372, %v2698
    %v3397 = vmul.f32 %v3375, %v2698
    %v3398 = vmul.f32 %v3378, %v2698
    %v3399 = vmul.f32 %v3381, %v2698
    %v3400 = vmul.f32 %v3384, %v2698
    %v3401 = vsub.f32 %v3321, %v3385
    %v3402 = vsub.f32 %v3322, %v3386
    %v3403 = vsub.f32 %v3323, %v3387
    %v3404 = vsub.f32 %v3324, %v3388
    %v3405 = vsub.f32 %v3325, %v3389
    %v3406 = vsub.f32 %v3326, %v3390
    %v3407 = vsub.f32 %v3327, %v3391
    %v3408 = vsub.f32 %v3328, %v3392
    %v3409 = vsub.f32 %v3329, %v3393
    %v3410 = vsub.f32 %v3330, %v3394
    %v3411 = vsub.f32 %v3331, %v3395
    %v3412 = vsub.f32 %v3332, %v3396
    %v3413 = vsub.f32 %v3333, %v3397
    %v3414 = vsub.f32 %v3334, %v3398
    %v3415 = vsub.f32 %v3335, %v3399
    %v3416 = vsub.f32 %v3336, %v3400
    %v3417 = vmul.f32 %v3401, %v3401
    %v3418 = vmul.f32 %v3402, %v3402
    %v3419 = vmul.f32 %v3403, %v3403
    %v3420 = vmul.f32 %v3404, %v3404
    %v3421 = vmul.f32 %v3405, %v3405
    %v3422 = vmul.f32 %v3406, %v3406
    %v3423 = vmul.f32 %v3407, %v3407
    %v3424 = vmul.f32 %v3408, %v3408
    %v3425 = vmul.f32 %v3409, %v3409
    %v3426 = vmul.f32 %v3410, %v3410
    %v3427 = vmul.f32 %v3411, %v3411
    %v3428 = vmul.f32 %v3412, %v3412
    %v3429 = vmul.f32 %v3413, %v3413
    %v3430 = vmul.f32 %v3414, %v3414
    %v3431 = vmul.f32 %v3415, %v3415
    %v3432 = vmul.f32 %v3416, %v3416
    %v3433 = vsel %vm125, %v3417, 0.0
    %3434 = vadd.xlane.f32.xlu0 %v3433
    %v3435 = vpop.xlane.xlu0 %3434
    %v3436 = vsel %vm125, %v3418, 0.0
    %3437 = vadd.xlane.f32.xlu0 %v3436
    %v3438 = vpop.xlane.xlu0 %3437
    %v3439 = vsel %vm125, %v3419, 0.0
    %3440 = vadd.xlane.f32.xlu0 %v3439
    %v3441 = vpop.xlane.xlu0 %3440
    %v3442 = vsel %vm125, %v3420, 0.0
    %3443 = vadd.xlane.f32.xlu0 %v3442
    %v3444 = vpop.xlane.xlu0 %3443
    %v3445 = vsel %vm125, %v3421, 0.0
    %3446 = vadd.xlane.f32.xlu0 %v3445
    %v3447 = vpop.xlane.xlu0 %3446
    %v3448 = vsel %vm125, %v3422, 0.0
    %3449 = vadd.xlane.f32.xlu0 %v3448
    %v3450 = vpop.xlane.xlu0 %3449
    %v3451 = vsel %vm125, %v3423, 0.0
    %3452 = vadd.xlane.f32.xlu0 %v3451
    %v3453 = vpop.xlane.xlu0 %3452
    %v3454 = vsel %vm125, %v3424, 0.0
    %3455 = vadd.xlane.f32.xlu0 %v3454
    %v3456 = vpop.xlane.xlu0 %3455
    %v3457 = vsel %vm125, %v3425, 0.0
    %3458 = vadd.xlane.f32.xlu0 %v3457
    %v3459 = vpop.xlane.xlu0 %3458
    %v3460 = vsel %vm125, %v3426, 0.0
    %3461 = vadd.xlane.f32.xlu0 %v3460
    %v3462 = vpop.xlane.xlu0 %3461
    %v3463 = vsel %vm125, %v3427, 0.0
    %3464 = vadd.xlane.f32.xlu0 %v3463
    %v3465 = vpop.xlane.xlu0 %3464
    %v3466 = vsel %vm125, %v3428, 0.0
    %3467 = vadd.xlane.f32.xlu0 %v3466
    %v3468 = vpop.xlane.xlu0 %3467
    %v3469 = vsel %vm125, %v3429, 0.0
    %3470 = vadd.xlane.f32.xlu0 %v3469
    %v3471 = vpop.xlane.xlu0 %3470
    %v3472 = vsel %vm125, %v3430, 0.0
    %3473 = vadd.xlane.f32.xlu0 %v3472
    %v3474 = vpop.xlane.xlu0 %3473
    %v3475 = vsel %vm125, %v3431, 0.0
    %3476 = vadd.xlane.f32.xlu0 %v3475
    %v3477 = vpop.xlane.xlu0 %3476
    %v3478 = vsel %vm125, %v3432, 0.0
    %3479 = vadd.xlane.f32.xlu0 %v3478
    %v3480 = vpop.xlane.xlu0 %3479
    %v3481 = vmul.f32 %v3435, %v2698
    %v3482 = vmul.f32 %v3438, %v2698
    %v3483 = vmul.f32 %v3441, %v2698
    %v3484 = vmul.f32 %v3444, %v2698
    %v3485 = vmul.f32 %v3447, %v2698
    %v3486 = vmul.f32 %v3450, %v2698
    %v3487 = vmul.f32 %v3453, %v2698
    %v3488 = vmul.f32 %v3456, %v2698
    %v3489 = vmul.f32 %v3459, %v2698
    %v3490 = vmul.f32 %v3462, %v2698
    %v3491 = vmul.f32 %v3465, %v2698
    %v3492 = vmul.f32 %v3468, %v2698
    %v3493 = vmul.f32 %v3471, %v2698
    %v3494 = vmul.f32 %v3474, %v2698
    %v3495 = vmul.f32 %v3477, %v2698
    %v3496 = vmul.f32 %v3480, %v2698
    %v3497 = vadd.f32 %v3481, 1e-12
    %v3498 = vadd.f32 %v3482, 1e-12
    %v3499 = vadd.f32 %v3483, 1e-12
    %v3500 = vadd.f32 %v3484, 1e-12
    %v3501 = vadd.f32 %v3485, 1e-12
    %v3502 = vadd.f32 %v3486, 1e-12
    %v3503 = vadd.f32 %v3487, 1e-12
    %v3504 = vadd.f32 %v3488, 1e-12
    %v3505 = vadd.f32 %v3489, 1e-12
    %v3506 = vadd.f32 %v3490, 1e-12
    %v3507 = vadd.f32 %v3491, 1e-12
    %v3508 = vadd.f32 %v3492, 1e-12
    %v3509 = vadd.f32 %v3493, 1e-12
    %v3510 = vadd.f32 %v3494, 1e-12
    %v3511 = vadd.f32 %v3495, 1e-12
    %v3512 = vadd.f32 %v3496, 1e-12
    %v3513 = vrsqrt.pop %v3497
    %v3514 = vrsqrt.pop %v3498
    %v3515 = vrsqrt.pop %v3499
    %v3516 = vrsqrt.pop %v3500
    %v3517 = vrsqrt.pop %v3501
    %v3518 = vrsqrt.pop %v3502
    %v3519 = vrsqrt.pop %v3503
    %v3520 = vrsqrt.pop %v3504
    %v3521 = vrsqrt.pop %v3505
    %v3522 = vrsqrt.pop %v3506
    %v3523 = vrsqrt.pop %v3507
    %v3524 = vrsqrt.pop %v3508
    %v3525 = vrsqrt.pop %v3509
    %v3526 = vrsqrt.pop %v3510
    %v3527 = vrsqrt.pop %v3511
    %v3528 = vrsqrt.pop %v3512
    %v3529 = vmul.f32 %v3401, %v3513
    %v3530 = vmul.f32 %v3402, %v3514
    %v3531 = vmul.f32 %v3403, %v3515
    %v3532 = vmul.f32 %v3404, %v3516
    %v3533 = vmul.f32 %v3405, %v3517
    %v3534 = vmul.f32 %v3406, %v3518
    %v3535 = vmul.f32 %v3407, %v3519
    %v3536 = vmul.f32 %v3408, %v3520
    %v3537 = vmul.f32 %v3409, %v3521
    %v3538 = vmul.f32 %v3410, %v3522
    %v3539 = vmul.f32 %v3411, %v3523
    %v3540 = vmul.f32 %v3412, %v3524
    %v3541 = vmul.f32 %v3413, %v3525
    %v3542 = vmul.f32 %v3414, %v3526
    %v3543 = vmul.f32 %v3415, %v3527
    %v3544 = vmul.f32 %v3416, %v3528
    %v3545 = vlaneseq
    %v3546 = vshrl.u32 %v3545, 7
    %v3547 = vsub.s32 0, %v3546
    %v3548 = vrot.slane %v115, %v3547
    %v3549 = vmul.f32 %v3548, %v3529
    %v3550 = vmul.f32 %v3548, %v3530
    %v3551 = vmul.f32 %v3548, %v3531
    %v3552 = vmul.f32 %v3548, %v3532
    %v3553 = vmul.f32 %v3548, %v3533
    %v3554 = vmul.f32 %v3548, %v3534
    %v3555 = vmul.f32 %v3548, %v3535
    %v3556 = vmul.f32 %v3548, %v3536
    %v3557 = vmul.f32 %v3548, %v3537
    %v3558 = vmul.f32 %v3548, %v3538
    %v3559 = vmul.f32 %v3548, %v3539
    %v3560 = vmul.f32 %v3548, %v3540
    %v3561 = vmul.f32 %v3548, %v3541
    %v3562 = vmul.f32 %v3548, %v3542
    %v3563 = vmul.f32 %v3548, %v3543
    %v3564 = vmul.f32 %v3548, %v3544
    %v3565 = vlaneseq
    %v3566 = vshrl.u32 %v3565, 7
    %v3567 = vsub.s32 0, %v3566
    %v3568 = vrot.slane %v116, %v3567
    %v3569 = vadd.f32 %v3549, %v3568
    %v3570 = vadd.f32 %v3550, %v3568
    %v3571 = vadd.f32 %v3551, %v3568
    %v3572 = vadd.f32 %v3552, %v3568
    %v3573 = vadd.f32 %v3553, %v3568
    %v3574 = vadd.f32 %v3554, %v3568
    %v3575 = vadd.f32 %v3555, %v3568
    %v3576 = vadd.f32 %v3556, %v3568
    %v3577 = vadd.f32 %v3557, %v3568
    %v3578 = vadd.f32 %v3558, %v3568
    %v3579 = vadd.f32 %v3559, %v3568
    %v3580 = vadd.f32 %v3560, %v3568
    %v3581 = vadd.f32 %v3561, %v3568
    %v3582 = vadd.f32 %v3562, %v3568
    %v3583 = vadd.f32 %v3563, %v3568
    %v3584 = vadd.f32 %v3564, %v3568
    %s3585 = scalar_lea.vmem %s4, 8
    %v3586 = vld [vmem:[%s3585] sm:$0x1]
    %v3587 = vld [vmem:[%s3585 + $0x1] sm:$0x1]
    %v3588 = vld [vmem:[%s3585 + $0x2] sm:$0x1]
    %v3589 = vld [vmem:[%s3585 + $0x3] sm:$0x1]
    %v3590 = vld [vmem:[%s3585 + $0x4] sm:$0x1]
    %v3591 = vld [vmem:[%s3585 + $0x5] sm:$0x1]
    %v3592 = vld [vmem:[%s3585 + $0x6] sm:$0x1]
    %v3593 = vld [vmem:[%s3585 + $0x7] sm:$0x1]
    %s3594 = scalar_lea.vmem %s3, 32
    %v3595 = vld [vmem:[%s3594] sm:$0xff]
    %v3596 = vld [vmem:[%s3594 + $0x8] sm:$0xff]
    %v3597 = vld [vmem:[%s3594 + $0x10] sm:$0xff]
    %v3598 = vld [vmem:[%s3594 + $0x18] sm:$0xff]
    %v3599 = vlaneseq
    %v3600 = vshrl.u32 %v3599, 7
    %v3601 = vsub.s32 0, %v3600
    %v3602 = vrot.slane %v3586, %v3601
    %v3604 = vsel %vm125, %v3569, 0
    %v3607 = vsel %vm125, %v3570, 0
    %v3610 = vsel %vm125, %v3571, 0
    %v3613 = vsel %vm125, %v3572, 0
    %v3616 = vsel %vm125, %v3573, 0
    %v3619 = vsel %vm125, %v3574, 0
    %v3622 = vsel %vm125, %v3575, 0
    %v3625 = vsel %vm125, %v3576, 0
    %v3628 = vsel %vm125, %v3577, 0
    %v3631 = vsel %vm125, %v3578, 0
    %v3634 = vsel %vm125, %v3579, 0
    %v3637 = vsel %vm125, %v3580, 0
    %v3640 = vsel %vm125, %v3581, 0
    %v3643 = vsel %vm125, %v3582, 0
    %v3646 = vsel %vm125, %v3583, 0
    %v3649 = vsel %vm125, %v3584, 0
    %3651 = vmatprep.subr.mxu0 0.0
    %3652 = vmatpush1.msra.mxu0 0.0
    %3653 = vmatprep.subr.mxu0 0.0
    %3654 = vmatpush1.msra.mxu0 0.0
    %3655 = vmatprep.subr.mxu0 0.0
    %3656 = vmatpush1.msra.mxu0 0.0
    %3657 = vmatprep.subr.mxu0 0.0
    %3658 = vmatpush1.msra.mxu0 0.0
    %3659 = vmatprep.subr.mxu0 0.0
    %3660 = vmatpush1.msra.mxu0 0.0
    %3661 = vmatprep.subr.mxu0 0.0
    %3662 = vmatpush1.msra.mxu0 0.0
    %3663 = vmatprep.subr.mxu0 0.0
    %3664 = vmatpush1.msra.mxu0 0.0
    %3665 = vmatprep.subr.mxu0 0.0
    %3666 = vmatpush1.msra.mxu0 0.0
    %3667 = vmatprep.subr.mxu0 0.0
    %3668 = vmatpush1.msra.mxu0 0.0
    %3669 = vmatprep.subr.mxu0 0.0
    %3670 = vmatpush1.msra.mxu0 0.0
    %3671 = vmatprep.subr.mxu0 0.0
    %3672 = vmatpush1.msra.mxu0 0.0
    %3673 = vmatprep.subr.mxu0 0.0
    %3674 = vmatpush1.msra.mxu0 0.0
    %3675 = vmatprep.subr.mxu0 0.0
    %3676 = vmatpush1.msra.mxu0 %v3598
    %3677 = vmatprep.subr.mxu0 0.0
    %3678 = vmatpush1.msra.mxu0 %v3597
    %3679 = vmatprep.subr.mxu0 0.0
    %3680 = vmatpush1.msra.mxu0 %v3596
    %3681 = vmatprep.subr.mxu0 0.0
    %3682 = vmatpush1.msra.mxu0 %v3595
    %3683 = vmatprep.subr.mxu0 0.0
    %3684 = vmatpush2.msra.mxu0 0.0
    %3685 = vmatprep.subr.mxu0 0.0
    %3686 = vmatpush2.msra.mxu0 0.0
    %3687 = vmatprep.subr.mxu0 0.0
    %3688 = vmatpush2.msra.mxu0 0.0
    %3689 = vmatprep.subr.mxu0 0.0
    %3690 = vmatpush2.msra.mxu0 0.0
    %3691 = vmatprep.subr.mxu0 0.0
    %3692 = vmatpush2.msra.mxu0 0.0
    %3693 = vmatprep.subr.mxu0 0.0
    %3694 = vmatpush2.msra.mxu0 0.0
    %3695 = vmatprep.subr.mxu0 0.0
    %3696 = vmatpush2.msra.mxu0 0.0
    %3697 = vmatprep.subr.mxu0 0.0
    %3698 = vmatpush2.msra.mxu0 0.0
    %3699 = vmatprep.subr.mxu0 0.0
    %3700 = vmatpush2.msra.mxu0 0.0
    %3701 = vmatprep.subr.mxu0 0.0
    %3702 = vmatpush2.msra.mxu0 0.0
    %3703 = vmatprep.subr.mxu0 0.0
    %3704 = vmatpush2.msra.mxu0 0.0
    %3705 = vmatprep.subr.mxu0 0.0
    %3706 = vmatpush2.msra.mxu0 0.0
    %3707 = vmatprep.subr.mxu0 0.0
    %3708 = vmatpush2.msra.mxu0 0.0
    %3709 = vmatprep.subr.mxu0 0.0
    %3710 = vmatpush2.msra.mxu0 0.0
    %3711 = vmatprep.subr.mxu0 0.0
    %3712 = vmatpush2.msra.mxu0 0.0
    %3713 = vmatprep.subr.mxu0 0.0
    %3714 = vmatpush2.msra.mxu0 0.0
    %3715 = vmatprep.mubr.f32.mxu0 0.0
    %3716 = vmatmul.mubr.f32.gmra.mxu0 %v3604
    %v3717 = vpop.f32.mrf.mxu0
    %v3718 = vadd.f32 %v3602, %v3717
    %v3719 = vpop.f32.mrf.mxu0
    %3720 = vmatprep.mubr.f32.mxu0 0.0
    %3721 = vmatmul.mubr.f32.gmra.mxu0 %v3607
    %v3722 = vpop.f32.mrf.mxu0
    %v3723 = vadd.f32 %v3602, %v3722
    %v3724 = vpop.f32.mrf.mxu0
    %3725 = vmatprep.mubr.f32.mxu0 0.0
    %3726 = vmatmul.mubr.f32.gmra.mxu0 %v3610
    %v3727 = vpop.f32.mrf.mxu0
    %v3728 = vadd.f32 %v3602, %v3727
    %v3729 = vpop.f32.mrf.mxu0
    %3730 = vmatprep.mubr.f32.mxu0 0.0
    %3731 = vmatmul.mubr.f32.gmra.mxu0 %v3613
    %v3732 = vpop.f32.mrf.mxu0
    %v3733 = vadd.f32 %v3602, %v3732
    %v3734 = vpop.f32.mrf.mxu0
    %3735 = vmatprep.mubr.f32.mxu0 0.0
    %3736 = vmatmul.mubr.f32.gmra.mxu0 %v3616
    %v3737 = vpop.f32.mrf.mxu0
    %v3738 = vadd.f32 %v3602, %v3737
    %v3739 = vpop.f32.mrf.mxu0
    %3740 = vmatprep.mubr.f32.mxu0 0.0
    %3741 = vmatmul.mubr.f32.gmra.mxu0 %v3619
    %v3742 = vpop.f32.mrf.mxu0
    %v3743 = vadd.f32 %v3602, %v3742
    %v3744 = vpop.f32.mrf.mxu0
    %3745 = vmatprep.mubr.f32.mxu0 0.0
    %3746 = vmatmul.mubr.f32.gmra.mxu0 %v3622
    %v3747 = vpop.f32.mrf.mxu0
    %v3748 = vadd.f32 %v3602, %v3747
    %v3749 = vpop.f32.mrf.mxu0
    %3750 = vmatprep.mubr.f32.mxu0 0.0
    %3751 = vmatmul.mubr.f32.gmra.mxu0 %v3625
    %v3752 = vpop.f32.mrf.mxu0
    %v3753 = vadd.f32 %v3602, %v3752
    %v3754 = vpop.f32.mrf.mxu0
    %3755 = vmatprep.mubr.f32.mxu0 0.0
    %3756 = vmatmul.mubr.f32.gmra.mxu0 %v3628
    %v3757 = vpop.f32.mrf.mxu0
    %v3758 = vadd.f32 %v3602, %v3757
    %v3759 = vpop.f32.mrf.mxu0
    %3760 = vmatprep.mubr.f32.mxu0 0.0
    %3761 = vmatmul.mubr.f32.gmra.mxu0 %v3631
    %v3762 = vpop.f32.mrf.mxu0
    %v3763 = vadd.f32 %v3602, %v3762
    %v3764 = vpop.f32.mrf.mxu0
    %3765 = vmatprep.mubr.f32.mxu0 0.0
    %3766 = vmatmul.mubr.f32.gmra.mxu0 %v3634
    %v3767 = vpop.f32.mrf.mxu0
    %v3768 = vadd.f32 %v3602, %v3767
    %v3769 = vpop.f32.mrf.mxu0
    %3770 = vmatprep.mubr.f32.mxu0 0.0
    %3771 = vmatmul.mubr.f32.gmra.mxu0 %v3637
    %v3772 = vpop.f32.mrf.mxu0
    %v3773 = vadd.f32 %v3602, %v3772
    %v3774 = vpop.f32.mrf.mxu0
    %3775 = vmatprep.mubr.f32.mxu0 0.0
    %3776 = vmatmul.mubr.f32.gmra.mxu0 %v3640
    %v3777 = vpop.f32.mrf.mxu0
    %v3778 = vadd.f32 %v3602, %v3777
    %v3779 = vpop.f32.mrf.mxu0
    %3780 = vmatprep.mubr.f32.mxu0 0.0
    %3781 = vmatmul.mubr.f32.gmra.mxu0 %v3643
    %v3782 = vpop.f32.mrf.mxu0
    %v3783 = vadd.f32 %v3602, %v3782
    %v3784 = vpop.f32.mrf.mxu0
    %3785 = vmatprep.mubr.f32.mxu0 0.0
    %3786 = vmatmul.mubr.f32.gmra.mxu0 %v3646
    %v3787 = vpop.f32.mrf.mxu0
    %v3788 = vadd.f32 %v3602, %v3787
    %v3789 = vpop.f32.mrf.mxu0
    %3790 = vmatprep.mubr.f32.mxu0 0.0
    %3791 = vmatmul.mubr.f32.gmra.mxu0 %v3649
    %v3792 = vpop.f32.mrf.mxu0
    %v3793 = vadd.f32 %v3602, %v3792
    %v3794 = vpop.f32.mrf.mxu0
    %3795 = vdwg.mxu0
    %v3796 = vmul.f32 %v3718, %v321
    %v3797 = vmul.f32 %v3723, %v321
    %v3798 = vmul.f32 %v3728, %v321
    %v3799 = vmul.f32 %v3733, %v321
    %v3800 = vmul.f32 %v3738, %v321
    %v3801 = vmul.f32 %v3743, %v321
    %v3802 = vmul.f32 %v3748, %v321
    %v3803 = vmul.f32 %v3753, %v321
    %v3804 = vmul.f32 %v3758, %v321
    %v3805 = vmul.f32 %v3763, %v321
    %v3806 = vmul.f32 %v3768, %v321
    %v3807 = vmul.f32 %v3773, %v321
    %v3808 = vmul.f32 %v3778, %v321
    %v3809 = vmul.f32 %v3783, %v321
    %v3810 = vmul.f32 %v3788, %v321
    %v3811 = vmul.f32 %v3793, %v321
    %v3812 = vmul.f32 %v3718, %v341
    %v3813 = vmul.f32 %v3723, %v341
    %v3814 = vmul.f32 %v3728, %v341
    %v3815 = vmul.f32 %v3733, %v341
    %v3816 = vmul.f32 %v3738, %v341
    %v3817 = vmul.f32 %v3743, %v341
    %v3818 = vmul.f32 %v3748, %v341
    %v3819 = vmul.f32 %v3753, %v341
    %v3820 = vmul.f32 %v3758, %v341
    %v3821 = vmul.f32 %v3763, %v341
    %v3822 = vmul.f32 %v3768, %v341
    %v3823 = vmul.f32 %v3773, %v341
    %v3824 = vmul.f32 %v3778, %v341
    %v3825 = vmul.f32 %v3783, %v341
    %v3826 = vmul.f32 %v3788, %v341
    %v3827 = vmul.f32 %v3793, %v341
    %v3828 = vmul.f32 %v3718, %v361
    %v3829 = vmul.f32 %v3723, %v361
    %v3830 = vmul.f32 %v3728, %v361
    %v3831 = vmul.f32 %v3733, %v361
    %v3832 = vmul.f32 %v3738, %v361
    %v3833 = vmul.f32 %v3743, %v361
    %v3834 = vmul.f32 %v3748, %v361
    %v3835 = vmul.f32 %v3753, %v361
    %v3836 = vmul.f32 %v3758, %v361
    %v3837 = vmul.f32 %v3763, %v361
    %v3838 = vmul.f32 %v3768, %v361
    %v3839 = vmul.f32 %v3773, %v361
    %v3840 = vmul.f32 %v3778, %v361
    %v3841 = vmul.f32 %v3783, %v361
    %v3842 = vmul.f32 %v3788, %v361
    %v3843 = vmul.f32 %v3793, %v361
    %v3844 = vmul.f32 %v3718, %v381
    %v3845 = vmul.f32 %v3723, %v381
    %v3846 = vmul.f32 %v3728, %v381
    %v3847 = vmul.f32 %v3733, %v381
    %v3848 = vmul.f32 %v3738, %v381
    %v3849 = vmul.f32 %v3743, %v381
    %v3850 = vmul.f32 %v3748, %v381
    %v3851 = vmul.f32 %v3753, %v381
    %v3852 = vmul.f32 %v3758, %v381
    %v3853 = vmul.f32 %v3763, %v381
    %v3854 = vmul.f32 %v3768, %v381
    %v3855 = vmul.f32 %v3773, %v381
    %v3856 = vmul.f32 %v3778, %v381
    %v3857 = vmul.f32 %v3783, %v381
    %v3858 = vmul.f32 %v3788, %v381
    %v3859 = vmul.f32 %v3793, %v381
    %v3860 = vmul.f32 %v3718, %v400
    %v3861 = vmul.f32 %v3723, %v400
    %v3862 = vmul.f32 %v3728, %v400
    %v3863 = vmul.f32 %v3733, %v400
    %v3864 = vmul.f32 %v3738, %v400
    %v3865 = vmul.f32 %v3743, %v400
    %v3866 = vmul.f32 %v3748, %v400
    %v3867 = vmul.f32 %v3753, %v400
    %v3868 = vmul.f32 %v3758, %v400
    %v3869 = vmul.f32 %v3763, %v400
    %v3870 = vmul.f32 %v3768, %v400
    %v3871 = vmul.f32 %v3773, %v400
    %v3872 = vmul.f32 %v3778, %v400
    %v3873 = vmul.f32 %v3783, %v400
    %v3874 = vmul.f32 %v3788, %v400
    %v3875 = vmul.f32 %v3793, %v400
    %v3876 = vmul.f32 %v3718, %v419
    %v3877 = vmul.f32 %v3723, %v419
    %v3878 = vmul.f32 %v3728, %v419
    %v3879 = vmul.f32 %v3733, %v419
    %v3880 = vmul.f32 %v3738, %v419
    %v3881 = vmul.f32 %v3743, %v419
    %v3882 = vmul.f32 %v3748, %v419
    %v3883 = vmul.f32 %v3753, %v419
    %v3884 = vmul.f32 %v3758, %v419
    %v3885 = vmul.f32 %v3763, %v419
    %v3886 = vmul.f32 %v3768, %v419
    %v3887 = vmul.f32 %v3773, %v419
    %v3888 = vmul.f32 %v3778, %v419
    %v3889 = vmul.f32 %v3783, %v419
    %v3890 = vmul.f32 %v3788, %v419
    %v3891 = vmul.f32 %v3793, %v419
    %v3892 = vmul.f32 %v3718, %v438
    %v3893 = vmul.f32 %v3723, %v438
    %v3894 = vmul.f32 %v3728, %v438
    %v3895 = vmul.f32 %v3733, %v438
    %v3896 = vmul.f32 %v3738, %v438
    %v3897 = vmul.f32 %v3743, %v438
    %v3898 = vmul.f32 %v3748, %v438
    %v3899 = vmul.f32 %v3753, %v438
    %v3900 = vmul.f32 %v3758, %v438
    %v3901 = vmul.f32 %v3763, %v438
    %v3902 = vmul.f32 %v3768, %v438
    %v3903 = vmul.f32 %v3773, %v438
    %v3904 = vmul.f32 %v3778, %v438
    %v3905 = vmul.f32 %v3783, %v438
    %v3906 = vmul.f32 %v3788, %v438
    %v3907 = vmul.f32 %v3793, %v438
    %v3908 = vmul.f32 %v3718, %v457
    %v3909 = vmul.f32 %v3723, %v457
    %v3910 = vmul.f32 %v3728, %v457
    %v3911 = vmul.f32 %v3733, %v457
    %v3912 = vmul.f32 %v3738, %v457
    %v3913 = vmul.f32 %v3743, %v457
    %v3914 = vmul.f32 %v3748, %v457
    %v3915 = vmul.f32 %v3753, %v457
    %v3916 = vmul.f32 %v3758, %v457
    %v3917 = vmul.f32 %v3763, %v457
    %v3918 = vmul.f32 %v3768, %v457
    %v3919 = vmul.f32 %v3773, %v457
    %v3920 = vmul.f32 %v3778, %v457
    %v3921 = vmul.f32 %v3783, %v457
    %v3922 = vmul.f32 %v3788, %v457
    %v3923 = vmul.f32 %v3793, %v457
    %3956 = vrot.lane.b32.xlu0 %v3796, 96
    %v3957 = vpop.permute.xlu0 %3956
    %3958 = vrot.lane.b32.xlu0 %v3797, 96
    %v3959 = vpop.permute.xlu0 %3958
    %3960 = vrot.lane.b32.xlu0 %v3798, 96
    %v3961 = vpop.permute.xlu0 %3960
    %3962 = vrot.lane.b32.xlu0 %v3799, 96
    %v3963 = vpop.permute.xlu0 %3962
    %3964 = vrot.lane.b32.xlu0 %v3800, 96
    %v3965 = vpop.permute.xlu0 %3964
    %3966 = vrot.lane.b32.xlu0 %v3801, 96
    %v3967 = vpop.permute.xlu0 %3966
    %3968 = vrot.lane.b32.xlu0 %v3802, 96
    %v3969 = vpop.permute.xlu0 %3968
    %3970 = vrot.lane.b32.xlu0 %v3803, 96
    %v3971 = vpop.permute.xlu0 %3970
    %3972 = vrot.lane.b32.xlu0 %v3812, 96
    %v3973 = vpop.permute.xlu0 %3972
    %3974 = vrot.lane.b32.xlu0 %v3813, 96
    %v3975 = vpop.permute.xlu0 %3974
    %3976 = vrot.lane.b32.xlu0 %v3814, 96
    %v3977 = vpop.permute.xlu0 %3976
    %3978 = vrot.lane.b32.xlu0 %v3815, 96
    %v3979 = vpop.permute.xlu0 %3978
    %3980 = vrot.lane.b32.xlu0 %v3816, 96
    %v3981 = vpop.permute.xlu0 %3980
    %3982 = vrot.lane.b32.xlu0 %v3817, 96
    %v3983 = vpop.permute.xlu0 %3982
    %3984 = vrot.lane.b32.xlu0 %v3818, 96
    %v3985 = vpop.permute.xlu0 %3984
    %3986 = vrot.lane.b32.xlu0 %v3819, 96
    %v3987 = vpop.permute.xlu0 %3986
    %3988 = vrot.lane.b32.xlu0 %v3828, 96
    %v3989 = vpop.permute.xlu0 %3988
    %3990 = vrot.lane.b32.xlu0 %v3829, 96
    %v3991 = vpop.permute.xlu0 %3990
    %3992 = vrot.lane.b32.xlu0 %v3830, 96
    %v3993 = vpop.permute.xlu0 %3992
    %3994 = vrot.lane.b32.xlu0 %v3831, 96
    %v3995 = vpop.permute.xlu0 %3994
    %3996 = vrot.lane.b32.xlu0 %v3832, 96
    %v3997 = vpop.permute.xlu0 %3996
    %3998 = vrot.lane.b32.xlu0 %v3833, 96
    %v3999 = vpop.permute.xlu0 %3998
    %4000 = vrot.lane.b32.xlu0 %v3834, 96
    %v4001 = vpop.permute.xlu0 %4000
    %4002 = vrot.lane.b32.xlu0 %v3835, 96
    %v4003 = vpop.permute.xlu0 %4002
    %4004 = vrot.lane.b32.xlu0 %v3844, 96
    %v4005 = vpop.permute.xlu0 %4004
    %4006 = vrot.lane.b32.xlu0 %v3845, 96
    %v4007 = vpop.permute.xlu0 %4006
    %4008 = vrot.lane.b32.xlu0 %v3846, 96
    %v4009 = vpop.permute.xlu0 %4008
    %4010 = vrot.lane.b32.xlu0 %v3847, 96
    %v4011 = vpop.permute.xlu0 %4010
    %4012 = vrot.lane.b32.xlu0 %v3848, 96
    %v4013 = vpop.permute.xlu0 %4012
    %4014 = vrot.lane.b32.xlu0 %v3849, 96
    %v4015 = vpop.permute.xlu0 %4014
    %4016 = vrot.lane.b32.xlu0 %v3850, 96
    %v4017 = vpop.permute.xlu0 %4016
    %4018 = vrot.lane.b32.xlu0 %v3851, 96
    %v4019 = vpop.permute.xlu0 %4018
    %v4021 = vsel %vm125, %v3718, 0
    %v4024 = vsel %vm125, %v3723, 0
    %v4027 = vsel %vm125, %v3728, 0
    %v4030 = vsel %vm125, %v3733, 0
    %v4033 = vsel %vm125, %v3738, 0
    %v4036 = vsel %vm125, %v3743, 0
    %v4039 = vsel %vm125, %v3748, 0
    %v4042 = vsel %vm125, %v3753, 0
    %v4044 = vsel %vm125, %v3957, 0
    %v4046 = vsel %vm125, %v3959, 0
    %v4048 = vsel %vm125, %v3961, 0
    %v4050 = vsel %vm125, %v3963, 0
    %v4052 = vsel %vm125, %v3965, 0
    %v4054 = vsel %vm125, %v3967, 0
    %v4056 = vsel %vm125, %v3969, 0
    %v4058 = vsel %vm125, %v3971, 0
    %v4060 = vsel %vm125, %v3973, 0
    %v4062 = vsel %vm125, %v3975, 0
    %v4064 = vsel %vm125, %v3977, 0
    %v4066 = vsel %vm125, %v3979, 0
    %v4068 = vsel %vm125, %v3981, 0
    %v4070 = vsel %vm125, %v3983, 0
    %v4072 = vsel %vm125, %v3985, 0
    %v4074 = vsel %vm125, %v3987, 0
    %v4076 = vsel %vm125, %v3989, 0
    %v4078 = vsel %vm125, %v3991, 0
    %v4080 = vsel %vm125, %v3993, 0
    %v4082 = vsel %vm125, %v3995, 0
    %v4084 = vsel %vm125, %v3997, 0
    %v4086 = vsel %vm125, %v3999, 0
    %v4088 = vsel %vm125, %v4001, 0
    %v4090 = vsel %vm125, %v4003, 0
    %v4092 = vsel %vm125, %v4005, 0
    %v4094 = vsel %vm125, %v4007, 0
    %v4096 = vsel %vm125, %v4009, 0
    %v4098 = vsel %vm125, %v4011, 0
    %v4100 = vsel %vm125, %v4013, 0
    %v4102 = vsel %vm125, %v4015, 0
    %v4104 = vsel %vm125, %v4017, 0
    %v4106 = vsel %vm125, %v4019, 0
    %4108 = vmatprep.subr.mxu0 0.0
    %4109 = vmatpush1.xpose.msra.mxu0 %v4074
    %4110 = vmatprep.subr.mxu0 0.0
    %4111 = vmatpush1.xpose.msra.mxu0 %v4072
    %4112 = vmatprep.subr.mxu0 0.0
    %4113 = vmatpush1.xpose.msra.mxu0 %v4070
    %4114 = vmatprep.subr.mxu0 0.0
    %4115 = vmatpush1.xpose.msra.mxu0 %v4068
    %4116 = vmatprep.subr.mxu0 0.0
    %4117 = vmatpush1.xpose.msra.mxu0 %v4066
    %4118 = vmatprep.subr.mxu0 0.0
    %4119 = vmatpush1.xpose.msra.mxu0 %v4064
    %4120 = vmatprep.subr.mxu0 0.0
    %4121 = vmatpush1.xpose.msra.mxu0 %v4062
    %4122 = vmatprep.subr.mxu0 0.0
    %4123 = vmatpush1.xpose.msra.mxu0 %v4060
    %4124 = vmatprep.subr.mxu0 0.0
    %4125 = vmatpush1.xpose.msra.mxu0 %v4058
    %4126 = vmatprep.subr.mxu0 0.0
    %4127 = vmatpush1.xpose.msra.mxu0 %v4056
    %4128 = vmatprep.subr.mxu0 0.0
    %4129 = vmatpush1.xpose.msra.mxu0 %v4054
    %4130 = vmatprep.subr.mxu0 0.0
    %4131 = vmatpush1.xpose.msra.mxu0 %v4052
    %4132 = vmatprep.subr.mxu0 0.0
    %4133 = vmatpush1.xpose.msra.mxu0 %v4050
    %4134 = vmatprep.subr.mxu0 0.0
    %4135 = vmatpush1.xpose.msra.mxu0 %v4048
    %4136 = vmatprep.subr.mxu0 0.0
    %4137 = vmatpush1.xpose.msra.mxu0 %v4046
    %4138 = vmatprep.subr.mxu0 0.0
    %4139 = vmatpush1.xpose.msra.mxu0 %v4044
    %4140 = vmatprep.subr.mxu0 0.0
    %4141 = vmatpush2.xpose.msra.mxu0 %v4106
    %4142 = vmatprep.subr.mxu0 0.0
    %4143 = vmatpush2.xpose.msra.mxu0 %v4104
    %4144 = vmatprep.subr.mxu0 0.0
    %4145 = vmatpush2.xpose.msra.mxu0 %v4102
    %4146 = vmatprep.subr.mxu0 0.0
    %4147 = vmatpush2.xpose.msra.mxu0 %v4100
    %4148 = vmatprep.subr.mxu0 0.0
    %4149 = vmatpush2.xpose.msra.mxu0 %v4098
    %4150 = vmatprep.subr.mxu0 0.0
    %4151 = vmatpush2.xpose.msra.mxu0 %v4096
    %4152 = vmatprep.subr.mxu0 0.0
    %4153 = vmatpush2.xpose.msra.mxu0 %v4094
    %4154 = vmatprep.subr.mxu0 0.0
    %4155 = vmatpush2.xpose.msra.mxu0 %v4092
    %4156 = vmatprep.subr.mxu0 0.0
    %4157 = vmatpush2.xpose.msra.mxu0 %v4090
    %4158 = vmatprep.subr.mxu0 0.0
    %4159 = vmatpush2.xpose.msra.mxu0 %v4088
    %4160 = vmatprep.subr.mxu0 0.0
    %4161 = vmatpush2.xpose.msra.mxu0 %v4086
    %4162 = vmatprep.subr.mxu0 0.0
    %4163 = vmatpush2.xpose.msra.mxu0 %v4084
    %4164 = vmatprep.subr.mxu0 0.0
    %4165 = vmatpush2.xpose.msra.mxu0 %v4082
    %4166 = vmatprep.subr.mxu0 0.0
    %4167 = vmatpush2.xpose.msra.mxu0 %v4080
    %4168 = vmatprep.subr.mxu0 0.0
    %4169 = vmatpush2.xpose.msra.mxu0 %v4078
    %4170 = vmatprep.subr.mxu0 0.0
    %4171 = vmatpush2.xpose.msra.mxu0 %v4076
    %4172 = vmatprep.mubr.f32.mxu0 0.0
    %4173 = vmatmul.mubr.f32.gmra.mxu0 %v4021
    %v4174 = vpop.f32.mrf.mxu0
    %v4175 = vadd.f32 0.0, %v4174
    %v4176 = vpop.f32.mrf.mxu0
    %v4177 = vadd.f32 0.0, %v4176
    %4178 = vmatprep.mubr.f32.mxu0 0.0
    %4179 = vmatmul.mubr.f32.gmra.mxu0 %v4024
    %v4180 = vpop.f32.mrf.mxu0
    %v4181 = vadd.f32 0.0, %v4180
    %v4182 = vpop.f32.mrf.mxu0
    %v4183 = vadd.f32 0.0, %v4182
    %4184 = vmatprep.mubr.f32.mxu0 0.0
    %4185 = vmatmul.mubr.f32.gmra.mxu0 %v4027
    %v4186 = vpop.f32.mrf.mxu0
    %v4187 = vadd.f32 0.0, %v4186
    %v4188 = vpop.f32.mrf.mxu0
    %v4189 = vadd.f32 0.0, %v4188
    %4190 = vmatprep.mubr.f32.mxu0 0.0
    %4191 = vmatmul.mubr.f32.gmra.mxu0 %v4030
    %v4192 = vpop.f32.mrf.mxu0
    %v4193 = vadd.f32 0.0, %v4192
    %v4194 = vpop.f32.mrf.mxu0
    %v4195 = vadd.f32 0.0, %v4194
    %4196 = vmatprep.mubr.f32.mxu0 0.0
    %4197 = vmatmul.mubr.f32.gmra.mxu0 %v4033
    %v4198 = vpop.f32.mrf.mxu0
    %v4199 = vadd.f32 0.0, %v4198
    %v4200 = vpop.f32.mrf.mxu0
    %v4201 = vadd.f32 0.0, %v4200
    %4202 = vmatprep.mubr.f32.mxu0 0.0
    %4203 = vmatmul.mubr.f32.gmra.mxu0 %v4036
    %v4204 = vpop.f32.mrf.mxu0
    %v4205 = vadd.f32 0.0, %v4204
    %v4206 = vpop.f32.mrf.mxu0
    %v4207 = vadd.f32 0.0, %v4206
    %4208 = vmatprep.mubr.f32.mxu0 0.0
    %4209 = vmatmul.mubr.f32.gmra.mxu0 %v4039
    %v4210 = vpop.f32.mrf.mxu0
    %v4211 = vadd.f32 0.0, %v4210
    %v4212 = vpop.f32.mrf.mxu0
    %v4213 = vadd.f32 0.0, %v4212
    %4214 = vmatprep.mubr.f32.mxu0 0.0
    %4215 = vmatmul.mubr.f32.gmra.mxu0 %v4042
    %v4216 = vpop.f32.mrf.mxu0
    %v4217 = vadd.f32 0.0, %v4216
    %v4218 = vpop.f32.mrf.mxu0
    %v4219 = vadd.f32 0.0, %v4218
    %4220 = vdwg.mxu0
    %v4221 = vsel %vm772, %v4175, -inf
    %4222 = vmax.xlane.f32.xlu0 %v4221
    %v4223 = vpop.xlane.xlu0 %4222
    %v4224 = vsel %vm772, %v4181, -inf
    %4225 = vmax.xlane.f32.xlu0 %v4224
    %v4226 = vpop.xlane.xlu0 %4225
    %v4227 = vsel %vm772, %v4187, -inf
    %4228 = vmax.xlane.f32.xlu0 %v4227
    %v4229 = vpop.xlane.xlu0 %4228
    %v4230 = vsel %vm772, %v4193, -inf
    %4231 = vmax.xlane.f32.xlu0 %v4230
    %v4232 = vpop.xlane.xlu0 %4231
    %v4233 = vsel %vm772, %v4199, -inf
    %4234 = vmax.xlane.f32.xlu0 %v4233
    %v4235 = vpop.xlane.xlu0 %4234
    %v4236 = vsel %vm772, %v4205, -inf
    %4237 = vmax.xlane.f32.xlu0 %v4236
    %v4238 = vpop.xlane.xlu0 %4237
    %v4239 = vsel %vm772, %v4211, -inf
    %4240 = vmax.xlane.f32.xlu0 %v4239
    %v4241 = vpop.xlane.xlu0 %4240
    %v4242 = vsel %vm772, %v4217, -inf
    %4243 = vmax.xlane.f32.xlu0 %v4242
    %v4244 = vpop.xlane.xlu0 %4243
    %v4245 = vsub.f32 %v4175, %v4223
    %v4246 = vsub.f32 %v4181, %v4226
    %v4247 = vsub.f32 %v4187, %v4229
    %v4248 = vsub.f32 %v4193, %v4232
    %v4249 = vsub.f32 %v4199, %v4235
    %v4250 = vsub.f32 %v4205, %v4238
    %v4251 = vsub.f32 %v4211, %v4241
    %v4252 = vsub.f32 %v4217, %v4244
    %v4253 = vmul.f32 %v4245, 1.442695
    %v4254 = vpow.pop %v4253
    %v4255 = vmul.f32 %v4246, 1.442695
    %v4256 = vpow.pop %v4255
    %v4257 = vmul.f32 %v4247, 1.442695
    %v4258 = vpow.pop %v4257
    %v4259 = vmul.f32 %v4248, 1.442695
    %v4260 = vpow.pop %v4259
    %v4261 = vmul.f32 %v4249, 1.442695
    %v4262 = vpow.pop %v4261
    %v4263 = vmul.f32 %v4250, 1.442695
    %v4264 = vpow.pop %v4263
    %v4265 = vmul.f32 %v4251, 1.442695
    %v4266 = vpow.pop %v4265
    %v4267 = vmul.f32 %v4252, 1.442695
    %v4268 = vpow.pop %v4267
    %v4269 = vsel %vm772, %v4254, 0.0
    %4270 = vadd.xlane.f32.xlu0 %v4269
    %v4271 = vpop.xlane.xlu0 %4270
    %v4272 = vsel %vm772, %v4256, 0.0
    %4273 = vadd.xlane.f32.xlu0 %v4272
    %v4274 = vpop.xlane.xlu0 %4273
    %v4275 = vsel %vm772, %v4258, 0.0
    %4276 = vadd.xlane.f32.xlu0 %v4275
    %v4277 = vpop.xlane.xlu0 %4276
    %v4278 = vsel %vm772, %v4260, 0.0
    %4279 = vadd.xlane.f32.xlu0 %v4278
    %v4280 = vpop.xlane.xlu0 %4279
    %v4281 = vsel %vm772, %v4262, 0.0
    %4282 = vadd.xlane.f32.xlu0 %v4281
    %v4283 = vpop.xlane.xlu0 %4282
    %v4284 = vsel %vm772, %v4264, 0.0
    %4285 = vadd.xlane.f32.xlu0 %v4284
    %v4286 = vpop.xlane.xlu0 %4285
    %v4287 = vsel %vm772, %v4266, 0.0
    %4288 = vadd.xlane.f32.xlu0 %v4287
    %v4289 = vpop.xlane.xlu0 %4288
    %v4290 = vsel %vm772, %v4268, 0.0
    %4291 = vadd.xlane.f32.xlu0 %v4290
    %v4292 = vpop.xlane.xlu0 %4291
    %v4293 = vrcp.pop %v4271
    %v4294 = vrcp.pop %v4274
    %v4295 = vrcp.pop %v4277
    %v4296 = vrcp.pop %v4280
    %v4297 = vrcp.pop %v4283
    %v4298 = vrcp.pop %v4286
    %v4299 = vrcp.pop %v4289
    %v4300 = vrcp.pop %v4292
    %v4301 = vmul.f32 %v4254, %v4293
    %v4302 = vmul.f32 %v4256, %v4294
    %v4303 = vmul.f32 %v4258, %v4295
    %v4304 = vmul.f32 %v4260, %v4296
    %v4305 = vmul.f32 %v4262, %v4297
    %v4306 = vmul.f32 %v4264, %v4298
    %v4307 = vmul.f32 %v4266, %v4299
    %v4308 = vmul.f32 %v4268, %v4300
    %v4309 = vsel %vm861, %v4175, -inf
    %4310 = vmax.xlane.f32.xlu0 %v4309
    %v4311 = vpop.xlane.xlu0 %4310
    %v4312 = vsel %vm861, %v4181, -inf
    %4313 = vmax.xlane.f32.xlu0 %v4312
    %v4314 = vpop.xlane.xlu0 %4313
    %v4315 = vsel %vm861, %v4187, -inf
    %4316 = vmax.xlane.f32.xlu0 %v4315
    %v4317 = vpop.xlane.xlu0 %4316
    %v4318 = vsel %vm861, %v4193, -inf
    %4319 = vmax.xlane.f32.xlu0 %v4318
    %v4320 = vpop.xlane.xlu0 %4319
    %v4321 = vsel %vm861, %v4199, -inf
    %4322 = vmax.xlane.f32.xlu0 %v4321
    %v4323 = vpop.xlane.xlu0 %4322
    %v4324 = vsel %vm861, %v4205, -inf
    %4325 = vmax.xlane.f32.xlu0 %v4324
    %v4326 = vpop.xlane.xlu0 %4325
    %v4327 = vsel %vm861, %v4211, -inf
    %4328 = vmax.xlane.f32.xlu0 %v4327
    %v4329 = vpop.xlane.xlu0 %4328
    %v4330 = vsel %vm861, %v4217, -inf
    %4331 = vmax.xlane.f32.xlu0 %v4330
    %v4332 = vpop.xlane.xlu0 %4331
    %v4333 = vsub.f32 %v4175, %v4311
    %v4334 = vsub.f32 %v4181, %v4314
    %v4335 = vsub.f32 %v4187, %v4317
    %v4336 = vsub.f32 %v4193, %v4320
    %v4337 = vsub.f32 %v4199, %v4323
    %v4338 = vsub.f32 %v4205, %v4326
    %v4339 = vsub.f32 %v4211, %v4329
    %v4340 = vsub.f32 %v4217, %v4332
    %v4341 = vmul.f32 %v4333, 1.442695
    %v4342 = vpow.pop %v4341
    %v4343 = vmul.f32 %v4334, 1.442695
    %v4344 = vpow.pop %v4343
    %v4345 = vmul.f32 %v4335, 1.442695
    %v4346 = vpow.pop %v4345
    %v4347 = vmul.f32 %v4336, 1.442695
    %v4348 = vpow.pop %v4347
    %v4349 = vmul.f32 %v4337, 1.442695
    %v4350 = vpow.pop %v4349
    %v4351 = vmul.f32 %v4338, 1.442695
    %v4352 = vpow.pop %v4351
    %v4353 = vmul.f32 %v4339, 1.442695
    %v4354 = vpow.pop %v4353
    %v4355 = vmul.f32 %v4340, 1.442695
    %v4356 = vpow.pop %v4355
    %4365 = vrot.lane.b32.xlu0 %v4342, 64
    %v4366 = vpop.permute.xlu0 %4365
    %4367 = vrot.lane.b32.xlu0 %v4344, 64
    %v4368 = vpop.permute.xlu0 %4367
    %4369 = vrot.lane.b32.xlu0 %v4346, 64
    %v4370 = vpop.permute.xlu0 %4369
    %4371 = vrot.lane.b32.xlu0 %v4348, 64
    %v4372 = vpop.permute.xlu0 %4371
    %4373 = vrot.lane.b32.xlu0 %v4350, 64
    %v4374 = vpop.permute.xlu0 %4373
    %4375 = vrot.lane.b32.xlu0 %v4352, 64
    %v4376 = vpop.permute.xlu0 %4375
    %4377 = vrot.lane.b32.xlu0 %v4354, 64
    %v4378 = vpop.permute.xlu0 %4377
    %4379 = vrot.lane.b32.xlu0 %v4356, 64
    %v4380 = vpop.permute.xlu0 %4379
    %v4389 = vsel %vm772, %v4366, 0.0
    %4390 = vadd.xlane.f32.xlu0 %v4389
    %v4391 = vpop.xlane.xlu0 %4390
    %v4392 = vsel %vm772, %v4368, 0.0
    %4393 = vadd.xlane.f32.xlu0 %v4392
    %v4394 = vpop.xlane.xlu0 %4393
    %v4395 = vsel %vm772, %v4370, 0.0
    %4396 = vadd.xlane.f32.xlu0 %v4395
    %v4397 = vpop.xlane.xlu0 %4396
    %v4398 = vsel %vm772, %v4372, 0.0
    %4399 = vadd.xlane.f32.xlu0 %v4398
    %v4400 = vpop.xlane.xlu0 %4399
    %v4401 = vsel %vm772, %v4374, 0.0
    %4402 = vadd.xlane.f32.xlu0 %v4401
    %v4403 = vpop.xlane.xlu0 %4402
    %v4404 = vsel %vm772, %v4376, 0.0
    %4405 = vadd.xlane.f32.xlu0 %v4404
    %v4406 = vpop.xlane.xlu0 %4405
    %v4407 = vsel %vm772, %v4378, 0.0
    %4408 = vadd.xlane.f32.xlu0 %v4407
    %v4409 = vpop.xlane.xlu0 %4408
    %v4410 = vsel %vm772, %v4380, 0.0
    %4411 = vadd.xlane.f32.xlu0 %v4410
    %v4412 = vpop.xlane.xlu0 %4411
    %v4413 = vrcp.pop %v4391
    %v4414 = vrcp.pop %v4394
    %v4415 = vrcp.pop %v4397
    %v4416 = vrcp.pop %v4400
    %v4417 = vrcp.pop %v4403
    %v4418 = vrcp.pop %v4406
    %v4419 = vrcp.pop %v4409
    %v4420 = vrcp.pop %v4412
    %v4421 = vmul.f32 %v4342, %v4413
    %v4422 = vmul.f32 %v4344, %v4414
    %v4423 = vmul.f32 %v4346, %v4415
    %v4424 = vmul.f32 %v4348, %v4416
    %v4425 = vmul.f32 %v4350, %v4417
    %v4426 = vmul.f32 %v4352, %v4418
    %v4427 = vmul.f32 %v4354, %v4419
    %v4428 = vmul.f32 %v4356, %v4420
    %v4429 = vsel %vm772, %v4177, -inf
    %4430 = vmax.xlane.f32.xlu0 %v4429
    %v4431 = vpop.xlane.xlu0 %4430
    %v4432 = vsel %vm772, %v4183, -inf
    %4433 = vmax.xlane.f32.xlu0 %v4432
    %v4434 = vpop.xlane.xlu0 %4433
    %v4435 = vsel %vm772, %v4189, -inf
    %4436 = vmax.xlane.f32.xlu0 %v4435
    %v4437 = vpop.xlane.xlu0 %4436
    %v4438 = vsel %vm772, %v4195, -inf
    %4439 = vmax.xlane.f32.xlu0 %v4438
    %v4440 = vpop.xlane.xlu0 %4439
    %v4441 = vsel %vm772, %v4201, -inf
    %4442 = vmax.xlane.f32.xlu0 %v4441
    %v4443 = vpop.xlane.xlu0 %4442
    %v4444 = vsel %vm772, %v4207, -inf
    %4445 = vmax.xlane.f32.xlu0 %v4444
    %v4446 = vpop.xlane.xlu0 %4445
    %v4447 = vsel %vm772, %v4213, -inf
    %4448 = vmax.xlane.f32.xlu0 %v4447
    %v4449 = vpop.xlane.xlu0 %4448
    %v4450 = vsel %vm772, %v4219, -inf
    %4451 = vmax.xlane.f32.xlu0 %v4450
    %v4452 = vpop.xlane.xlu0 %4451
    %v4453 = vsub.f32 %v4177, %v4431
    %v4454 = vsub.f32 %v4183, %v4434
    %v4455 = vsub.f32 %v4189, %v4437
    %v4456 = vsub.f32 %v4195, %v4440
    %v4457 = vsub.f32 %v4201, %v4443
    %v4458 = vsub.f32 %v4207, %v4446
    %v4459 = vsub.f32 %v4213, %v4449
    %v4460 = vsub.f32 %v4219, %v4452
    %v4461 = vmul.f32 %v4453, 1.442695
    %v4462 = vpow.pop %v4461
    %v4463 = vmul.f32 %v4454, 1.442695
    %v4464 = vpow.pop %v4463
    %v4465 = vmul.f32 %v4455, 1.442695
    %v4466 = vpow.pop %v4465
    %v4467 = vmul.f32 %v4456, 1.442695
    %v4468 = vpow.pop %v4467
    %v4469 = vmul.f32 %v4457, 1.442695
    %v4470 = vpow.pop %v4469
    %v4471 = vmul.f32 %v4458, 1.442695
    %v4472 = vpow.pop %v4471
    %v4473 = vmul.f32 %v4459, 1.442695
    %v4474 = vpow.pop %v4473
    %v4475 = vmul.f32 %v4460, 1.442695
    %v4476 = vpow.pop %v4475
    %v4477 = vsel %vm772, %v4462, 0.0
    %4478 = vadd.xlane.f32.xlu0 %v4477
    %v4479 = vpop.xlane.xlu0 %4478
    %v4480 = vsel %vm772, %v4464, 0.0
    %4481 = vadd.xlane.f32.xlu0 %v4480
    %v4482 = vpop.xlane.xlu0 %4481
    %v4483 = vsel %vm772, %v4466, 0.0
    %4484 = vadd.xlane.f32.xlu0 %v4483
    %v4485 = vpop.xlane.xlu0 %4484
    %v4486 = vsel %vm772, %v4468, 0.0
    %4487 = vadd.xlane.f32.xlu0 %v4486
    %v4488 = vpop.xlane.xlu0 %4487
    %v4489 = vsel %vm772, %v4470, 0.0
    %4490 = vadd.xlane.f32.xlu0 %v4489
    %v4491 = vpop.xlane.xlu0 %4490
    %v4492 = vsel %vm772, %v4472, 0.0
    %4493 = vadd.xlane.f32.xlu0 %v4492
    %v4494 = vpop.xlane.xlu0 %4493
    %v4495 = vsel %vm772, %v4474, 0.0
    %4496 = vadd.xlane.f32.xlu0 %v4495
    %v4497 = vpop.xlane.xlu0 %4496
    %v4498 = vsel %vm772, %v4476, 0.0
    %4499 = vadd.xlane.f32.xlu0 %v4498
    %v4500 = vpop.xlane.xlu0 %4499
    %v4501 = vrcp.pop %v4479
    %v4502 = vrcp.pop %v4482
    %v4503 = vrcp.pop %v4485
    %v4504 = vrcp.pop %v4488
    %v4505 = vrcp.pop %v4491
    %v4506 = vrcp.pop %v4494
    %v4507 = vrcp.pop %v4497
    %v4508 = vrcp.pop %v4500
    %v4509 = vmul.f32 %v4462, %v4501
    %v4510 = vmul.f32 %v4464, %v4502
    %v4511 = vmul.f32 %v4466, %v4503
    %v4512 = vmul.f32 %v4468, %v4504
    %v4513 = vmul.f32 %v4470, %v4505
    %v4514 = vmul.f32 %v4472, %v4506
    %v4515 = vmul.f32 %v4474, %v4507
    %v4516 = vmul.f32 %v4476, %v4508
    %v4517 = vsel %vm861, %v4177, -inf
    %4518 = vmax.xlane.f32.xlu0 %v4517
    %v4519 = vpop.xlane.xlu0 %4518
    %v4520 = vsel %vm861, %v4183, -inf
    %4521 = vmax.xlane.f32.xlu0 %v4520
    %v4522 = vpop.xlane.xlu0 %4521
    %v4523 = vsel %vm861, %v4189, -inf
    %4524 = vmax.xlane.f32.xlu0 %v4523
    %v4525 = vpop.xlane.xlu0 %4524
    %v4526 = vsel %vm861, %v4195, -inf
    %4527 = vmax.xlane.f32.xlu0 %v4526
    %v4528 = vpop.xlane.xlu0 %4527
    %v4529 = vsel %vm861, %v4201, -inf
    %4530 = vmax.xlane.f32.xlu0 %v4529
    %v4531 = vpop.xlane.xlu0 %4530
    %v4532 = vsel %vm861, %v4207, -inf
    %4533 = vmax.xlane.f32.xlu0 %v4532
    %v4534 = vpop.xlane.xlu0 %4533
    %v4535 = vsel %vm861, %v4213, -inf
    %4536 = vmax.xlane.f32.xlu0 %v4535
    %v4537 = vpop.xlane.xlu0 %4536
    %v4538 = vsel %vm861, %v4219, -inf
    %4539 = vmax.xlane.f32.xlu0 %v4538
    %v4540 = vpop.xlane.xlu0 %4539
    %v4541 = vsub.f32 %v4177, %v4519
    %v4542 = vsub.f32 %v4183, %v4522
    %v4543 = vsub.f32 %v4189, %v4525
    %v4544 = vsub.f32 %v4195, %v4528
    %v4545 = vsub.f32 %v4201, %v4531
    %v4546 = vsub.f32 %v4207, %v4534
    %v4547 = vsub.f32 %v4213, %v4537
    %v4548 = vsub.f32 %v4219, %v4540
    %v4549 = vmul.f32 %v4541, 1.442695
    %v4550 = vpow.pop %v4549
    %v4551 = vmul.f32 %v4542, 1.442695
    %v4552 = vpow.pop %v4551
    %v4553 = vmul.f32 %v4543, 1.442695
    %v4554 = vpow.pop %v4553
    %v4555 = vmul.f32 %v4544, 1.442695
    %v4556 = vpow.pop %v4555
    %v4557 = vmul.f32 %v4545, 1.442695
    %v4558 = vpow.pop %v4557
    %v4559 = vmul.f32 %v4546, 1.442695
    %v4560 = vpow.pop %v4559
    %v4561 = vmul.f32 %v4547, 1.442695
    %v4562 = vpow.pop %v4561
    %v4563 = vmul.f32 %v4548, 1.442695
    %v4564 = vpow.pop %v4563
    %4573 = vrot.lane.b32.xlu0 %v4550, 64
    %v4574 = vpop.permute.xlu0 %4573
    %4575 = vrot.lane.b32.xlu0 %v4552, 64
    %v4576 = vpop.permute.xlu0 %4575
    %4577 = vrot.lane.b32.xlu0 %v4554, 64
    %v4578 = vpop.permute.xlu0 %4577
    %4579 = vrot.lane.b32.xlu0 %v4556, 64
    %v4580 = vpop.permute.xlu0 %4579
    %4581 = vrot.lane.b32.xlu0 %v4558, 64
    %v4582 = vpop.permute.xlu0 %4581
    %4583 = vrot.lane.b32.xlu0 %v4560, 64
    %v4584 = vpop.permute.xlu0 %4583
    %4585 = vrot.lane.b32.xlu0 %v4562, 64
    %v4586 = vpop.permute.xlu0 %4585
    %4587 = vrot.lane.b32.xlu0 %v4564, 64
    %v4588 = vpop.permute.xlu0 %4587
    %v4597 = vsel %vm772, %v4574, 0.0
    %4598 = vadd.xlane.f32.xlu0 %v4597
    %v4599 = vpop.xlane.xlu0 %4598
    %v4600 = vsel %vm772, %v4576, 0.0
    %4601 = vadd.xlane.f32.xlu0 %v4600
    %v4602 = vpop.xlane.xlu0 %4601
    %v4603 = vsel %vm772, %v4578, 0.0
    %4604 = vadd.xlane.f32.xlu0 %v4603
    %v4605 = vpop.xlane.xlu0 %4604
    %v4606 = vsel %vm772, %v4580, 0.0
    %4607 = vadd.xlane.f32.xlu0 %v4606
    %v4608 = vpop.xlane.xlu0 %4607
    %v4609 = vsel %vm772, %v4582, 0.0
    %4610 = vadd.xlane.f32.xlu0 %v4609
    %v4611 = vpop.xlane.xlu0 %4610
    %v4612 = vsel %vm772, %v4584, 0.0
    %4613 = vadd.xlane.f32.xlu0 %v4612
    %v4614 = vpop.xlane.xlu0 %4613
    %v4615 = vsel %vm772, %v4586, 0.0
    %4616 = vadd.xlane.f32.xlu0 %v4615
    %v4617 = vpop.xlane.xlu0 %4616
    %v4618 = vsel %vm772, %v4588, 0.0
    %4619 = vadd.xlane.f32.xlu0 %v4618
    %v4620 = vpop.xlane.xlu0 %4619
    %v4621 = vrcp.pop %v4599
    %v4622 = vrcp.pop %v4602
    %v4623 = vrcp.pop %v4605
    %v4624 = vrcp.pop %v4608
    %v4625 = vrcp.pop %v4611
    %v4626 = vrcp.pop %v4614
    %v4627 = vrcp.pop %v4617
    %v4628 = vrcp.pop %v4620
    %v4629 = vmul.f32 %v4550, %v4621
    %v4630 = vmul.f32 %v4552, %v4622
    %v4631 = vmul.f32 %v4554, %v4623
    %v4632 = vmul.f32 %v4556, %v4624
    %v4633 = vmul.f32 %v4558, %v4625
    %v4634 = vmul.f32 %v4560, %v4626
    %v4635 = vmul.f32 %v4562, %v4627
    %v4636 = vmul.f32 %v4564, %v4628
    %v4637 = vsel %vm772, %v4301, %v4421
    %v4638 = vsel %vm772, %v4302, %v4422
    %v4639 = vsel %vm772, %v4303, %v4423
    %v4640 = vsel %vm772, %v4304, %v4424
    %v4641 = vsel %vm772, %v4305, %v4425
    %v4642 = vsel %vm772, %v4306, %v4426
    %v4643 = vsel %vm772, %v4307, %v4427
    %v4644 = vsel %vm772, %v4308, %v4428
    %v4645 = vsel %vm772, %v4509, %v4629
    %v4646 = vsel %vm772, %v4510, %v4630
    %v4647 = vsel %vm772, %v4511, %v4631
    %v4648 = vsel %vm772, %v4512, %v4632
    %v4649 = vsel %vm772, %v4513, %v4633
    %v4650 = vsel %vm772, %v4514, %v4634
    %v4651 = vsel %vm772, %v4515, %v4635
    %v4652 = vsel %vm772, %v4516, %v4636
    %4685 = vrot.lane.b32.xlu0 %v3860, 64
    %v4686 = vpop.permute.xlu0 %4685
    %4687 = vrot.lane.b32.xlu0 %v3861, 64
    %v4688 = vpop.permute.xlu0 %4687
    %4689 = vrot.lane.b32.xlu0 %v3862, 64
    %v4690 = vpop.permute.xlu0 %4689
    %4691 = vrot.lane.b32.xlu0 %v3863, 64
    %v4692 = vpop.permute.xlu0 %4691
    %4693 = vrot.lane.b32.xlu0 %v3864, 64
    %v4694 = vpop.permute.xlu0 %4693
    %4695 = vrot.lane.b32.xlu0 %v3865, 64
    %v4696 = vpop.permute.xlu0 %4695
    %4697 = vrot.lane.b32.xlu0 %v3866, 64
    %v4698 = vpop.permute.xlu0 %4697
    %4699 = vrot.lane.b32.xlu0 %v3867, 64
    %v4700 = vpop.permute.xlu0 %4699
    %4701 = vrot.lane.b32.xlu0 %v3876, 64
    %v4702 = vpop.permute.xlu0 %4701
    %4703 = vrot.lane.b32.xlu0 %v3877, 64
    %v4704 = vpop.permute.xlu0 %4703
    %4705 = vrot.lane.b32.xlu0 %v3878, 64
    %v4706 = vpop.permute.xlu0 %4705
    %4707 = vrot.lane.b32.xlu0 %v3879, 64
    %v4708 = vpop.permute.xlu0 %4707
    %4709 = vrot.lane.b32.xlu0 %v3880, 64
    %v4710 = vpop.permute.xlu0 %4709
    %4711 = vrot.lane.b32.xlu0 %v3881, 64
    %v4712 = vpop.permute.xlu0 %4711
    %4713 = vrot.lane.b32.xlu0 %v3882, 64
    %v4714 = vpop.permute.xlu0 %4713
    %4715 = vrot.lane.b32.xlu0 %v3883, 64
    %v4716 = vpop.permute.xlu0 %4715
    %4717 = vrot.lane.b32.xlu0 %v3892, 64
    %v4718 = vpop.permute.xlu0 %4717
    %4719 = vrot.lane.b32.xlu0 %v3893, 64
    %v4720 = vpop.permute.xlu0 %4719
    %4721 = vrot.lane.b32.xlu0 %v3894, 64
    %v4722 = vpop.permute.xlu0 %4721
    %4723 = vrot.lane.b32.xlu0 %v3895, 64
    %v4724 = vpop.permute.xlu0 %4723
    %4725 = vrot.lane.b32.xlu0 %v3896, 64
    %v4726 = vpop.permute.xlu0 %4725
    %4727 = vrot.lane.b32.xlu0 %v3897, 64
    %v4728 = vpop.permute.xlu0 %4727
    %4729 = vrot.lane.b32.xlu0 %v3898, 64
    %v4730 = vpop.permute.xlu0 %4729
    %4731 = vrot.lane.b32.xlu0 %v3899, 64
    %v4732 = vpop.permute.xlu0 %4731
    %4733 = vrot.lane.b32.xlu0 %v3908, 64
    %v4734 = vpop.permute.xlu0 %4733
    %4735 = vrot.lane.b32.xlu0 %v3909, 64
    %v4736 = vpop.permute.xlu0 %4735
    %4737 = vrot.lane.b32.xlu0 %v3910, 64
    %v4738 = vpop.permute.xlu0 %4737
    %4739 = vrot.lane.b32.xlu0 %v3911, 64
    %v4740 = vpop.permute.xlu0 %4739
    %4741 = vrot.lane.b32.xlu0 %v3912, 64
    %v4742 = vpop.permute.xlu0 %4741
    %4743 = vrot.lane.b32.xlu0 %v3913, 64
    %v4744 = vpop.permute.xlu0 %4743
    %4745 = vrot.lane.b32.xlu0 %v3914, 64
    %v4746 = vpop.permute.xlu0 %4745
    %4747 = vrot.lane.b32.xlu0 %v3915, 64
    %v4748 = vpop.permute.xlu0 %4747
    %4781 = vmatprep.subr.mxu0 0.0
    %4782 = vmatpush1.msra.mxu0 %v4716
    %4783 = vmatprep.subr.mxu0 0.0
    %4784 = vmatpush1.msra.mxu0 %v4714
    %4785 = vmatprep.subr.mxu0 0.0
    %4786 = vmatpush1.msra.mxu0 %v4712
    %4787 = vmatprep.subr.mxu0 0.0
    %4788 = vmatpush1.msra.mxu0 %v4710
    %4789 = vmatprep.subr.mxu0 0.0
    %4790 = vmatpush1.msra.mxu0 %v4708
    %4791 = vmatprep.subr.mxu0 0.0
    %4792 = vmatpush1.msra.mxu0 %v4706
    %4793 = vmatprep.subr.mxu0 0.0
    %4794 = vmatpush1.msra.mxu0 %v4704
    %4795 = vmatprep.subr.mxu0 0.0
    %4796 = vmatpush1.msra.mxu0 %v4702
    %4797 = vmatprep.subr.mxu0 0.0
    %4798 = vmatpush1.msra.mxu0 %v4700
    %4799 = vmatprep.subr.mxu0 0.0
    %4800 = vmatpush1.msra.mxu0 %v4698
    %4801 = vmatprep.subr.mxu0 0.0
    %4802 = vmatpush1.msra.mxu0 %v4696
    %4803 = vmatprep.subr.mxu0 0.0
    %4804 = vmatpush1.msra.mxu0 %v4694
    %4805 = vmatprep.subr.mxu0 0.0
    %4806 = vmatpush1.msra.mxu0 %v4692
    %4807 = vmatprep.subr.mxu0 0.0
    %4808 = vmatpush1.msra.mxu0 %v4690
    %4809 = vmatprep.subr.mxu0 0.0
    %4810 = vmatpush1.msra.mxu0 %v4688
    %4811 = vmatprep.subr.mxu0 0.0
    %4812 = vmatpush1.msra.mxu0 %v4686
    %4813 = vmatprep.subr.mxu0 0.0
    %4814 = vmatpush2.msra.mxu0 %v4748
    %4815 = vmatprep.subr.mxu0 0.0
    %4816 = vmatpush2.msra.mxu0 %v4746
    %4817 = vmatprep.subr.mxu0 0.0
    %4818 = vmatpush2.msra.mxu0 %v4744
    %4819 = vmatprep.subr.mxu0 0.0
    %4820 = vmatpush2.msra.mxu0 %v4742
    %4821 = vmatprep.subr.mxu0 0.0
    %4822 = vmatpush2.msra.mxu0 %v4740
    %4823 = vmatprep.subr.mxu0 0.0
    %4824 = vmatpush2.msra.mxu0 %v4738
    %4825 = vmatprep.subr.mxu0 0.0
    %4826 = vmatpush2.msra.mxu0 %v4736
    %4827 = vmatprep.subr.mxu0 0.0
    %4828 = vmatpush2.msra.mxu0 %v4734
    %4829 = vmatprep.subr.mxu0 0.0
    %4830 = vmatpush2.msra.mxu0 %v4732
    %4831 = vmatprep.subr.mxu0 0.0
    %4832 = vmatpush2.msra.mxu0 %v4730
    %4833 = vmatprep.subr.mxu0 0.0
    %4834 = vmatpush2.msra.mxu0 %v4728
    %4835 = vmatprep.subr.mxu0 0.0
    %4836 = vmatpush2.msra.mxu0 %v4726
    %4837 = vmatprep.subr.mxu0 0.0
    %4838 = vmatpush2.msra.mxu0 %v4724
    %4839 = vmatprep.subr.mxu0 0.0
    %4840 = vmatpush2.msra.mxu0 %v4722
    %4841 = vmatprep.subr.mxu0 0.0
    %4842 = vmatpush2.msra.mxu0 %v4720
    %4843 = vmatprep.subr.mxu0 0.0
    %4844 = vmatpush2.msra.mxu0 %v4718
    %4845 = vmatprep.mubr.f32.mxu0 %v4645
    %4846 = vmatmul.mubr.f32.gmra.mxu0 %v4637
    %v4847 = vpop.f32.mrf.mxu0
    %v4848 = vadd.f32 0.0, %v4847
    %v4849 = vpop.f32.mrf.mxu0
    %4850 = vmatprep.mubr.f32.mxu0 %v4646
    %4851 = vmatmul.mubr.f32.gmra.mxu0 %v4638
    %v4852 = vpop.f32.mrf.mxu0
    %v4853 = vadd.f32 0.0, %v4852
    %v4854 = vpop.f32.mrf.mxu0
    %4855 = vmatprep.mubr.f32.mxu0 %v4647
    %4856 = vmatmul.mubr.f32.gmra.mxu0 %v4639
    %v4857 = vpop.f32.mrf.mxu0
    %v4858 = vadd.f32 0.0, %v4857
    %v4859 = vpop.f32.mrf.mxu0
    %4860 = vmatprep.mubr.f32.mxu0 %v4648
    %4861 = vmatmul.mubr.f32.gmra.mxu0 %v4640
    %v4862 = vpop.f32.mrf.mxu0
    %v4863 = vadd.f32 0.0, %v4862
    %v4864 = vpop.f32.mrf.mxu0
    %4865 = vmatprep.mubr.f32.mxu0 %v4649
    %4866 = vmatmul.mubr.f32.gmra.mxu0 %v4641
    %v4867 = vpop.f32.mrf.mxu0
    %v4868 = vadd.f32 0.0, %v4867
    %v4869 = vpop.f32.mrf.mxu0
    %4870 = vmatprep.mubr.f32.mxu0 %v4650
    %4871 = vmatmul.mubr.f32.gmra.mxu0 %v4642
    %v4872 = vpop.f32.mrf.mxu0
    %v4873 = vadd.f32 0.0, %v4872
    %v4874 = vpop.f32.mrf.mxu0
    %4875 = vmatprep.mubr.f32.mxu0 %v4651
    %4876 = vmatmul.mubr.f32.gmra.mxu0 %v4643
    %v4877 = vpop.f32.mrf.mxu0
    %v4878 = vadd.f32 0.0, %v4877
    %v4879 = vpop.f32.mrf.mxu0
    %4880 = vmatprep.mubr.f32.mxu0 %v4652
    %4881 = vmatmul.mubr.f32.gmra.mxu0 %v4644
    %v4882 = vpop.f32.mrf.mxu0
    %v4883 = vadd.f32 0.0, %v4882
    %v4884 = vpop.f32.mrf.mxu0
    %4885 = vdwg.mxu0
    %4886 = vst.msk [vmem:[#allocation2] sm:$0xff] %vm125, %v4848
    %4887 = vst.msk [vmem:[#allocation2 + $0x8] sm:$0xff] %vm125, %v4853
    %4888 = vst.msk [vmem:[#allocation2 + $0x10] sm:$0xff] %vm125, %v4858
    %4889 = vst.msk [vmem:[#allocation2 + $0x18] sm:$0xff] %vm125, %v4863
    %4890 = vst.msk [vmem:[#allocation2 + $0x20] sm:$0xff] %vm125, %v4868
    %4891 = vst.msk [vmem:[#allocation2 + $0x28] sm:$0xff] %vm125, %v4873
    %4892 = vst.msk [vmem:[#allocation2 + $0x30] sm:$0xff] %vm125, %v4878
    %4893 = vst.msk [vmem:[#allocation2 + $0x38] sm:$0xff] %vm125, %v4883
    %4926 = vrot.lane.b32.xlu0 %v3804, 96
    %v4927 = vpop.permute.xlu0 %4926
    %4928 = vrot.lane.b32.xlu0 %v3805, 96
    %v4929 = vpop.permute.xlu0 %4928
    %4930 = vrot.lane.b32.xlu0 %v3806, 96
    %v4931 = vpop.permute.xlu0 %4930
    %4932 = vrot.lane.b32.xlu0 %v3807, 96
    %v4933 = vpop.permute.xlu0 %4932
    %4934 = vrot.lane.b32.xlu0 %v3808, 96
    %v4935 = vpop.permute.xlu0 %4934
    %4936 = vrot.lane.b32.xlu0 %v3809, 96
    %v4937 = vpop.permute.xlu0 %4936
    %4938 = vrot.lane.b32.xlu0 %v3810, 96
    %v4939 = vpop.permute.xlu0 %4938
    %4940 = vrot.lane.b32.xlu0 %v3811, 96
    %v4941 = vpop.permute.xlu0 %4940
    %4942 = vrot.lane.b32.xlu0 %v3820, 96
    %v4943 = vpop.permute.xlu0 %4942
    %4944 = vrot.lane.b32.xlu0 %v3821, 96
    %v4945 = vpop.permute.xlu0 %4944
    %4946 = vrot.lane.b32.xlu0 %v3822, 96
    %v4947 = vpop.permute.xlu0 %4946
    %4948 = vrot.lane.b32.xlu0 %v3823, 96
    %v4949 = vpop.permute.xlu0 %4948
    %4950 = vrot.lane.b32.xlu0 %v3824, 96
    %v4951 = vpop.permute.xlu0 %4950
    %4952 = vrot.lane.b32.xlu0 %v3825, 96
    %v4953 = vpop.permute.xlu0 %4952
    %4954 = vrot.lane.b32.xlu0 %v3826, 96
    %v4955 = vpop.permute.xlu0 %4954
    %4956 = vrot.lane.b32.xlu0 %v3827, 96
    %v4957 = vpop.permute.xlu0 %4956
    %4958 = vrot.lane.b32.xlu0 %v3836, 96
    %v4959 = vpop.permute.xlu0 %4958
    %4960 = vrot.lane.b32.xlu0 %v3837, 96
    %v4961 = vpop.permute.xlu0 %4960
    %4962 = vrot.lane.b32.xlu0 %v3838, 96
    %v4963 = vpop.permute.xlu0 %4962
    %4964 = vrot.lane.b32.xlu0 %v3839, 96
    %v4965 = vpop.permute.xlu0 %4964
    %4966 = vrot.lane.b32.xlu0 %v3840, 96
    %v4967 = vpop.permute.xlu0 %4966
    %4968 = vrot.lane.b32.xlu0 %v3841, 96
    %v4969 = vpop.permute.xlu0 %4968
    %4970 = vrot.lane.b32.xlu0 %v3842, 96
    %v4971 = vpop.permute.xlu0 %4970
    %4972 = vrot.lane.b32.xlu0 %v3843, 96
    %v4973 = vpop.permute.xlu0 %4972
    %4974 = vrot.lane.b32.xlu0 %v3852, 96
    %v4975 = vpop.permute.xlu0 %4974
    %4976 = vrot.lane.b32.xlu0 %v3853, 96
    %v4977 = vpop.permute.xlu0 %4976
    %4978 = vrot.lane.b32.xlu0 %v3854, 96
    %v4979 = vpop.permute.xlu0 %4978
    %4980 = vrot.lane.b32.xlu0 %v3855, 96
    %v4981 = vpop.permute.xlu0 %4980
    %4982 = vrot.lane.b32.xlu0 %v3856, 96
    %v4983 = vpop.permute.xlu0 %4982
    %4984 = vrot.lane.b32.xlu0 %v3857, 96
    %v4985 = vpop.permute.xlu0 %4984
    %4986 = vrot.lane.b32.xlu0 %v3858, 96
    %v4987 = vpop.permute.xlu0 %4986
    %4988 = vrot.lane.b32.xlu0 %v3859, 96
    %v4989 = vpop.permute.xlu0 %4988
    %v4991 = vsel %vm125, %v3758, 0
    %v4994 = vsel %vm125, %v3763, 0
    %v4997 = vsel %vm125, %v3768, 0
    %v5000 = vsel %vm125, %v3773, 0
    %v5003 = vsel %vm125, %v3778, 0
    %v5006 = vsel %vm125, %v3783, 0
    %v5009 = vsel %vm125, %v3788, 0
    %v5012 = vsel %vm125, %v3793, 0
    %v5014 = vsel %vm125, %v4927, 0
    %v5016 = vsel %vm125, %v4929, 0
    %v5018 = vsel %vm125, %v4931, 0
    %v5020 = vsel %vm125, %v4933, 0
    %v5022 = vsel %vm125, %v4935, 0
    %v5024 = vsel %vm125, %v4937, 0
    %v5026 = vsel %vm125, %v4939, 0
    %v5028 = vsel %vm125, %v4941, 0
    %v5030 = vsel %vm125, %v4943, 0
    %v5032 = vsel %vm125, %v4945, 0
    %v5034 = vsel %vm125, %v4947, 0
    %v5036 = vsel %vm125, %v4949, 0
    %v5038 = vsel %vm125, %v4951, 0
    %v5040 = vsel %vm125, %v4953, 0
    %v5042 = vsel %vm125, %v4955, 0
    %v5044 = vsel %vm125, %v4957, 0
    %v5046 = vsel %vm125, %v4959, 0
    %v5048 = vsel %vm125, %v4961, 0
    %v5050 = vsel %vm125, %v4963, 0
    %v5052 = vsel %vm125, %v4965, 0
    %v5054 = vsel %vm125, %v4967, 0
    %v5056 = vsel %vm125, %v4969, 0
    %v5058 = vsel %vm125, %v4971, 0
    %v5060 = vsel %vm125, %v4973, 0
    %v5062 = vsel %vm125, %v4975, 0
    %v5064 = vsel %vm125, %v4977, 0
    %v5066 = vsel %vm125, %v4979, 0
    %v5068 = vsel %vm125, %v4981, 0
    %v5070 = vsel %vm125, %v4983, 0
    %v5072 = vsel %vm125, %v4985, 0
    %v5074 = vsel %vm125, %v4987, 0
    %v5076 = vsel %vm125, %v4989, 0
    %5078 = vmatprep.subr.mxu0 0.0
    %5079 = vmatpush1.xpose.msra.mxu0 %v5044
    %5080 = vmatprep.subr.mxu0 0.0
    %5081 = vmatpush1.xpose.msra.mxu0 %v5042
    %5082 = vmatprep.subr.mxu0 0.0
    %5083 = vmatpush1.xpose.msra.mxu0 %v5040
    %5084 = vmatprep.subr.mxu0 0.0
    %5085 = vmatpush1.xpose.msra.mxu0 %v5038
    %5086 = vmatprep.subr.mxu0 0.0
    %5087 = vmatpush1.xpose.msra.mxu0 %v5036
    %5088 = vmatprep.subr.mxu0 0.0
    %5089 = vmatpush1.xpose.msra.mxu0 %v5034
    %5090 = vmatprep.subr.mxu0 0.0
    %5091 = vmatpush1.xpose.msra.mxu0 %v5032
    %5092 = vmatprep.subr.mxu0 0.0
    %5093 = vmatpush1.xpose.msra.mxu0 %v5030
    %5094 = vmatprep.subr.mxu0 0.0
    %5095 = vmatpush1.xpose.msra.mxu0 %v5028
    %5096 = vmatprep.subr.mxu0 0.0
    %5097 = vmatpush1.xpose.msra.mxu0 %v5026
    %5098 = vmatprep.subr.mxu0 0.0
    %5099 = vmatpush1.xpose.msra.mxu0 %v5024
    %5100 = vmatprep.subr.mxu0 0.0
    %5101 = vmatpush1.xpose.msra.mxu0 %v5022
    %5102 = vmatprep.subr.mxu0 0.0
    %5103 = vmatpush1.xpose.msra.mxu0 %v5020
    %5104 = vmatprep.subr.mxu0 0.0
    %5105 = vmatpush1.xpose.msra.mxu0 %v5018
    %5106 = vmatprep.subr.mxu0 0.0
    %5107 = vmatpush1.xpose.msra.mxu0 %v5016
    %5108 = vmatprep.subr.mxu0 0.0
    %5109 = vmatpush1.xpose.msra.mxu0 %v5014
    %5110 = vmatprep.subr.mxu0 0.0
    %5111 = vmatpush2.xpose.msra.mxu0 %v5076
    %5112 = vmatprep.subr.mxu0 0.0
    %5113 = vmatpush2.xpose.msra.mxu0 %v5074
    %5114 = vmatprep.subr.mxu0 0.0
    %5115 = vmatpush2.xpose.msra.mxu0 %v5072
    %5116 = vmatprep.subr.mxu0 0.0
    %5117 = vmatpush2.xpose.msra.mxu0 %v5070
    %5118 = vmatprep.subr.mxu0 0.0
    %5119 = vmatpush2.xpose.msra.mxu0 %v5068
    %5120 = vmatprep.subr.mxu0 0.0
    %5121 = vmatpush2.xpose.msra.mxu0 %v5066
    %5122 = vmatprep.subr.mxu0 0.0
    %5123 = vmatpush2.xpose.msra.mxu0 %v5064
    %5124 = vmatprep.subr.mxu0 0.0
    %5125 = vmatpush2.xpose.msra.mxu0 %v5062
    %5126 = vmatprep.subr.mxu0 0.0
    %5127 = vmatpush2.xpose.msra.mxu0 %v5060
    %5128 = vmatprep.subr.mxu0 0.0
    %5129 = vmatpush2.xpose.msra.mxu0 %v5058
    %5130 = vmatprep.subr.mxu0 0.0
    %5131 = vmatpush2.xpose.msra.mxu0 %v5056
    %5132 = vmatprep.subr.mxu0 0.0
    %5133 = vmatpush2.xpose.msra.mxu0 %v5054
    %5134 = vmatprep.subr.mxu0 0.0
    %5135 = vmatpush2.xpose.msra.mxu0 %v5052
    %5136 = vmatprep.subr.mxu0 0.0
    %5137 = vmatpush2.xpose.msra.mxu0 %v5050
    %5138 = vmatprep.subr.mxu0 0.0
    %5139 = vmatpush2.xpose.msra.mxu0 %v5048
    %5140 = vmatprep.subr.mxu0 0.0
    %5141 = vmatpush2.xpose.msra.mxu0 %v5046
    %5142 = vmatprep.mubr.f32.mxu0 0.0
    %5143 = vmatmul.mubr.f32.gmra.mxu0 %v4991
    %v5144 = vpop.f32.mrf.mxu0
    %v5145 = vadd.f32 0.0, %v5144
    %v5146 = vpop.f32.mrf.mxu0
    %v5147 = vadd.f32 0.0, %v5146
    %5148 = vmatprep.mubr.f32.mxu0 0.0
    %5149 = vmatmul.mubr.f32.gmra.mxu0 %v4994
    %v5150 = vpop.f32.mrf.mxu0
    %v5151 = vadd.f32 0.0, %v5150
    %v5152 = vpop.f32.mrf.mxu0
    %v5153 = vadd.f32 0.0, %v5152
    %5154 = vmatprep.mubr.f32.mxu0 0.0
    %5155 = vmatmul.mubr.f32.gmra.mxu0 %v4997
    %v5156 = vpop.f32.mrf.mxu0
    %v5157 = vadd.f32 0.0, %v5156
    %v5158 = vpop.f32.mrf.mxu0
    %v5159 = vadd.f32 0.0, %v5158
    %5160 = vmatprep.mubr.f32.mxu0 0.0
    %5161 = vmatmul.mubr.f32.gmra.mxu0 %v5000
    %v5162 = vpop.f32.mrf.mxu0
    %v5163 = vadd.f32 0.0, %v5162
    %v5164 = vpop.f32.mrf.mxu0
    %v5165 = vadd.f32 0.0, %v5164
    %5166 = vmatprep.mubr.f32.mxu0 0.0
    %5167 = vmatmul.mubr.f32.gmra.mxu0 %v5003
    %v5168 = vpop.f32.mrf.mxu0
    %v5169 = vadd.f32 0.0, %v5168
    %v5170 = vpop.f32.mrf.mxu0
    %v5171 = vadd.f32 0.0, %v5170
    %5172 = vmatprep.mubr.f32.mxu0 0.0
    %5173 = vmatmul.mubr.f32.gmra.mxu0 %v5006
    %v5174 = vpop.f32.mrf.mxu0
    %v5175 = vadd.f32 0.0, %v5174
    %v5176 = vpop.f32.mrf.mxu0
    %v5177 = vadd.f32 0.0, %v5176
    %5178 = vmatprep.mubr.f32.mxu0 0.0
    %5179 = vmatmul.mubr.f32.gmra.mxu0 %v5009
    %v5180 = vpop.f32.mrf.mxu0
    %v5181 = vadd.f32 0.0, %v5180
    %v5182 = vpop.f32.mrf.mxu0
    %v5183 = vadd.f32 0.0, %v5182
    %5184 = vmatprep.mubr.f32.mxu0 0.0
    %5185 = vmatmul.mubr.f32.gmra.mxu0 %v5012
    %v5186 = vpop.f32.mrf.mxu0
    %v5187 = vadd.f32 0.0, %v5186
    %v5188 = vpop.f32.mrf.mxu0
    %v5189 = vadd.f32 0.0, %v5188
    %5190 = vdwg.mxu0
    %v5191 = vsel %vm772, %v5145, -inf
    %5192 = vmax.xlane.f32.xlu0 %v5191
    %v5193 = vpop.xlane.xlu0 %5192
    %v5194 = vsel %vm772, %v5151, -inf
    %5195 = vmax.xlane.f32.xlu0 %v5194
    %v5196 = vpop.xlane.xlu0 %5195
    %v5197 = vsel %vm772, %v5157, -inf
    %5198 = vmax.xlane.f32.xlu0 %v5197
    %v5199 = vpop.xlane.xlu0 %5198
    %v5200 = vsel %vm772, %v5163, -inf
    %5201 = vmax.xlane.f32.xlu0 %v5200
    %v5202 = vpop.xlane.xlu0 %5201
    %v5203 = vsel %vm772, %v5169, -inf
    %5204 = vmax.xlane.f32.xlu0 %v5203
    %v5205 = vpop.xlane.xlu0 %5204
    %v5206 = vsel %vm772, %v5175, -inf
    %5207 = vmax.xlane.f32.xlu0 %v5206
    %v5208 = vpop.xlane.xlu0 %5207
    %v5209 = vsel %vm772, %v5181, -inf
    %5210 = vmax.xlane.f32.xlu0 %v5209
    %v5211 = vpop.xlane.xlu0 %5210
    %v5212 = vsel %vm772, %v5187, -inf
    %5213 = vmax.xlane.f32.xlu0 %v5212
    %v5214 = vpop.xlane.xlu0 %5213
    %v5215 = vsub.f32 %v5145, %v5193
    %v5216 = vsub.f32 %v5151, %v5196
    %v5217 = vsub.f32 %v5157, %v5199
    %v5218 = vsub.f32 %v5163, %v5202
    %v5219 = vsub.f32 %v5169, %v5205
    %v5220 = vsub.f32 %v5175, %v5208
    %v5221 = vsub.f32 %v5181, %v5211
    %v5222 = vsub.f32 %v5187, %v5214
    %v5223 = vmul.f32 %v5215, 1.442695
    %v5224 = vpow.pop %v5223
    %v5225 = vmul.f32 %v5216, 1.442695
    %v5226 = vpow.pop %v5225
    %v5227 = vmul.f32 %v5217, 1.442695
    %v5228 = vpow.pop %v5227
    %v5229 = vmul.f32 %v5218, 1.442695
    %v5230 = vpow.pop %v5229
    %v5231 = vmul.f32 %v5219, 1.442695
    %v5232 = vpow.pop %v5231
    %v5233 = vmul.f32 %v5220, 1.442695
    %v5234 = vpow.pop %v5233
    %v5235 = vmul.f32 %v5221, 1.442695
    %v5236 = vpow.pop %v5235
    %v5237 = vmul.f32 %v5222, 1.442695
    %v5238 = vpow.pop %v5237
    %v5239 = vsel %vm772, %v5224, 0.0
    %5240 = vadd.xlane.f32.xlu0 %v5239
    %v5241 = vpop.xlane.xlu0 %5240
    %v5242 = vsel %vm772, %v5226, 0.0
    %5243 = vadd.xlane.f32.xlu0 %v5242
    %v5244 = vpop.xlane.xlu0 %5243
    %v5245 = vsel %vm772, %v5228, 0.0
    %5246 = vadd.xlane.f32.xlu0 %v5245
    %v5247 = vpop.xlane.xlu0 %5246
    %v5248 = vsel %vm772, %v5230, 0.0
    %5249 = vadd.xlane.f32.xlu0 %v5248
    %v5250 = vpop.xlane.xlu0 %5249
    %v5251 = vsel %vm772, %v5232, 0.0
    %5252 = vadd.xlane.f32.xlu0 %v5251
    %v5253 = vpop.xlane.xlu0 %5252
    %v5254 = vsel %vm772, %v5234, 0.0
    %5255 = vadd.xlane.f32.xlu0 %v5254
    %v5256 = vpop.xlane.xlu0 %5255
    %v5257 = vsel %vm772, %v5236, 0.0
    %5258 = vadd.xlane.f32.xlu0 %v5257
    %v5259 = vpop.xlane.xlu0 %5258
    %v5260 = vsel %vm772, %v5238, 0.0
    %5261 = vadd.xlane.f32.xlu0 %v5260
    %v5262 = vpop.xlane.xlu0 %5261
    %v5263 = vrcp.pop %v5241
    %v5264 = vrcp.pop %v5244
    %v5265 = vrcp.pop %v5247
    %v5266 = vrcp.pop %v5250
    %v5267 = vrcp.pop %v5253
    %v5268 = vrcp.pop %v5256
    %v5269 = vrcp.pop %v5259
    %v5270 = vrcp.pop %v5262
    %v5271 = vmul.f32 %v5224, %v5263
    %v5272 = vmul.f32 %v5226, %v5264
    %v5273 = vmul.f32 %v5228, %v5265
    %v5274 = vmul.f32 %v5230, %v5266
    %v5275 = vmul.f32 %v5232, %v5267
    %v5276 = vmul.f32 %v5234, %v5268
    %v5277 = vmul.f32 %v5236, %v5269
    %v5278 = vmul.f32 %v5238, %v5270
    %v5279 = vsel %vm861, %v5145, -inf
    %5280 = vmax.xlane.f32.xlu0 %v5279
    %v5281 = vpop.xlane.xlu0 %5280
    %v5282 = vsel %vm861, %v5151, -inf
    %5283 = vmax.xlane.f32.xlu0 %v5282
    %v5284 = vpop.xlane.xlu0 %5283
    %v5285 = vsel %vm861, %v5157, -inf
    %5286 = vmax.xlane.f32.xlu0 %v5285
    %v5287 = vpop.xlane.xlu0 %5286
    %v5288 = vsel %vm861, %v5163, -inf
    %5289 = vmax.xlane.f32.xlu0 %v5288
    %v5290 = vpop.xlane.xlu0 %5289
    %v5291 = vsel %vm861, %v5169, -inf
    %5292 = vmax.xlane.f32.xlu0 %v5291
    %v5293 = vpop.xlane.xlu0 %5292
    %v5294 = vsel %vm861, %v5175, -inf
    %5295 = vmax.xlane.f32.xlu0 %v5294
    %v5296 = vpop.xlane.xlu0 %5295
    %v5297 = vsel %vm861, %v5181, -inf
    %5298 = vmax.xlane.f32.xlu0 %v5297
    %v5299 = vpop.xlane.xlu0 %5298
    %v5300 = vsel %vm861, %v5187, -inf
    %5301 = vmax.xlane.f32.xlu0 %v5300
    %v5302 = vpop.xlane.xlu0 %5301
    %v5303 = vsub.f32 %v5145, %v5281
    %v5304 = vsub.f32 %v5151, %v5284
    %v5305 = vsub.f32 %v5157, %v5287
    %v5306 = vsub.f32 %v5163, %v5290
    %v5307 = vsub.f32 %v5169, %v5293
    %v5308 = vsub.f32 %v5175, %v5296
    %v5309 = vsub.f32 %v5181, %v5299
    %v5310 = vsub.f32 %v5187, %v5302
    %v5311 = vmul.f32 %v5303, 1.442695
    %v5312 = vpow.pop %v5311
    %v5313 = vmul.f32 %v5304, 1.442695
    %v5314 = vpow.pop %v5313
    %v5315 = vmul.f32 %v5305, 1.442695
    %v5316 = vpow.pop %v5315
    %v5317 = vmul.f32 %v5306, 1.442695
    %v5318 = vpow.pop %v5317
    %v5319 = vmul.f32 %v5307, 1.442695
    %v5320 = vpow.pop %v5319
    %v5321 = vmul.f32 %v5308, 1.442695
    %v5322 = vpow.pop %v5321
    %v5323 = vmul.f32 %v5309, 1.442695
    %v5324 = vpow.pop %v5323
    %v5325 = vmul.f32 %v5310, 1.442695
    %v5326 = vpow.pop %v5325
    %5335 = vrot.lane.b32.xlu0 %v5312, 64
    %v5336 = vpop.permute.xlu0 %5335
    %5337 = vrot.lane.b32.xlu0 %v5314, 64
    %v5338 = vpop.permute.xlu0 %5337
    %5339 = vrot.lane.b32.xlu0 %v5316, 64
    %v5340 = vpop.permute.xlu0 %5339
    %5341 = vrot.lane.b32.xlu0 %v5318, 64
    %v5342 = vpop.permute.xlu0 %5341
    %5343 = vrot.lane.b32.xlu0 %v5320, 64
    %v5344 = vpop.permute.xlu0 %5343
    %5345 = vrot.lane.b32.xlu0 %v5322, 64
    %v5346 = vpop.permute.xlu0 %5345
    %5347 = vrot.lane.b32.xlu0 %v5324, 64
    %v5348 = vpop.permute.xlu0 %5347
    %5349 = vrot.lane.b32.xlu0 %v5326, 64
    %v5350 = vpop.permute.xlu0 %5349
    %v5359 = vsel %vm772, %v5336, 0.0
    %5360 = vadd.xlane.f32.xlu0 %v5359
    %v5361 = vpop.xlane.xlu0 %5360
    %v5362 = vsel %vm772, %v5338, 0.0
    %5363 = vadd.xlane.f32.xlu0 %v5362
    %v5364 = vpop.xlane.xlu0 %5363
    %v5365 = vsel %vm772, %v5340, 0.0
    %5366 = vadd.xlane.f32.xlu0 %v5365
    %v5367 = vpop.xlane.xlu0 %5366
    %v5368 = vsel %vm772, %v5342, 0.0
    %5369 = vadd.xlane.f32.xlu0 %v5368
    %v5370 = vpop.xlane.xlu0 %5369
    %v5371 = vsel %vm772, %v5344, 0.0
    %5372 = vadd.xlane.f32.xlu0 %v5371
    %v5373 = vpop.xlane.xlu0 %5372
    %v5374 = vsel %vm772, %v5346, 0.0
    %5375 = vadd.xlane.f32.xlu0 %v5374
    %v5376 = vpop.xlane.xlu0 %5375
    %v5377 = vsel %vm772, %v5348, 0.0
    %5378 = vadd.xlane.f32.xlu0 %v5377
    %v5379 = vpop.xlane.xlu0 %5378
    %v5380 = vsel %vm772, %v5350, 0.0
    %5381 = vadd.xlane.f32.xlu0 %v5380
    %v5382 = vpop.xlane.xlu0 %5381
    %v5383 = vrcp.pop %v5361
    %v5384 = vrcp.pop %v5364
    %v5385 = vrcp.pop %v5367
    %v5386 = vrcp.pop %v5370
    %v5387 = vrcp.pop %v5373
    %v5388 = vrcp.pop %v5376
    %v5389 = vrcp.pop %v5379
    %v5390 = vrcp.pop %v5382
    %v5391 = vmul.f32 %v5312, %v5383
    %v5392 = vmul.f32 %v5314, %v5384
    %v5393 = vmul.f32 %v5316, %v5385
    %v5394 = vmul.f32 %v5318, %v5386
    %v5395 = vmul.f32 %v5320, %v5387
    %v5396 = vmul.f32 %v5322, %v5388
    %v5397 = vmul.f32 %v5324, %v5389
    %v5398 = vmul.f32 %v5326, %v5390
    %v5399 = vsel %vm772, %v5147, -inf
    %5400 = vmax.xlane.f32.xlu0 %v5399
    %v5401 = vpop.xlane.xlu0 %5400
    %v5402 = vsel %vm772, %v5153, -inf
    %5403 = vmax.xlane.f32.xlu0 %v5402
    %v5404 = vpop.xlane.xlu0 %5403
    %v5405 = vsel %vm772, %v5159, -inf
    %5406 = vmax.xlane.f32.xlu0 %v5405
    %v5407 = vpop.xlane.xlu0 %5406
    %v5408 = vsel %vm772, %v5165, -inf
    %5409 = vmax.xlane.f32.xlu0 %v5408
    %v5410 = vpop.xlane.xlu0 %5409
    %v5411 = vsel %vm772, %v5171, -inf
    %5412 = vmax.xlane.f32.xlu0 %v5411
    %v5413 = vpop.xlane.xlu0 %5412
    %v5414 = vsel %vm772, %v5177, -inf
    %5415 = vmax.xlane.f32.xlu0 %v5414
    %v5416 = vpop.xlane.xlu0 %5415
    %v5417 = vsel %vm772, %v5183, -inf
    %5418 = vmax.xlane.f32.xlu0 %v5417
    %v5419 = vpop.xlane.xlu0 %5418
    %v5420 = vsel %vm772, %v5189, -inf
    %5421 = vmax.xlane.f32.xlu0 %v5420
    %v5422 = vpop.xlane.xlu0 %5421
    %v5423 = vsub.f32 %v5147, %v5401
    %v5424 = vsub.f32 %v5153, %v5404
    %v5425 = vsub.f32 %v5159, %v5407
    %v5426 = vsub.f32 %v5165, %v5410
    %v5427 = vsub.f32 %v5171, %v5413
    %v5428 = vsub.f32 %v5177, %v5416
    %v5429 = vsub.f32 %v5183, %v5419
    %v5430 = vsub.f32 %v5189, %v5422
    %v5431 = vmul.f32 %v5423, 1.442695
    %v5432 = vpow.pop %v5431
    %v5433 = vmul.f32 %v5424, 1.442695
    %v5434 = vpow.pop %v5433
    %v5435 = vmul.f32 %v5425, 1.442695
    %v5436 = vpow.pop %v5435
    %v5437 = vmul.f32 %v5426, 1.442695
    %v5438 = vpow.pop %v5437
    %v5439 = vmul.f32 %v5427, 1.442695
    %v5440 = vpow.pop %v5439
    %v5441 = vmul.f32 %v5428, 1.442695
    %v5442 = vpow.pop %v5441
    %v5443 = vmul.f32 %v5429, 1.442695
    %v5444 = vpow.pop %v5443
    %v5445 = vmul.f32 %v5430, 1.442695
    %v5446 = vpow.pop %v5445
    %v5447 = vsel %vm772, %v5432, 0.0
    %5448 = vadd.xlane.f32.xlu0 %v5447
    %v5449 = vpop.xlane.xlu0 %5448
    %v5450 = vsel %vm772, %v5434, 0.0
    %5451 = vadd.xlane.f32.xlu0 %v5450
    %v5452 = vpop.xlane.xlu0 %5451
    %v5453 = vsel %vm772, %v5436, 0.0
    %5454 = vadd.xlane.f32.xlu0 %v5453
    %v5455 = vpop.xlane.xlu0 %5454
    %v5456 = vsel %vm772, %v5438, 0.0
    %5457 = vadd.xlane.f32.xlu0 %v5456
    %v5458 = vpop.xlane.xlu0 %5457
    %v5459 = vsel %vm772, %v5440, 0.0
    %5460 = vadd.xlane.f32.xlu0 %v5459
    %v5461 = vpop.xlane.xlu0 %5460
    %v5462 = vsel %vm772, %v5442, 0.0
    %5463 = vadd.xlane.f32.xlu0 %v5462
    %v5464 = vpop.xlane.xlu0 %5463
    %v5465 = vsel %vm772, %v5444, 0.0
    %5466 = vadd.xlane.f32.xlu0 %v5465
    %v5467 = vpop.xlane.xlu0 %5466
    %v5468 = vsel %vm772, %v5446, 0.0
    %5469 = vadd.xlane.f32.xlu0 %v5468
    %v5470 = vpop.xlane.xlu0 %5469
    %v5471 = vrcp.pop %v5449
    %v5472 = vrcp.pop %v5452
    %v5473 = vrcp.pop %v5455
    %v5474 = vrcp.pop %v5458
    %v5475 = vrcp.pop %v5461
    %v5476 = vrcp.pop %v5464
    %v5477 = vrcp.pop %v5467
    %v5478 = vrcp.pop %v5470
    %v5479 = vmul.f32 %v5432, %v5471
    %v5480 = vmul.f32 %v5434, %v5472
    %v5481 = vmul.f32 %v5436, %v5473
    %v5482 = vmul.f32 %v5438, %v5474
    %v5483 = vmul.f32 %v5440, %v5475
    %v5484 = vmul.f32 %v5442, %v5476
    %v5485 = vmul.f32 %v5444, %v5477
    %v5486 = vmul.f32 %v5446, %v5478
    %v5487 = vsel %vm861, %v5147, -inf
    %5488 = vmax.xlane.f32.xlu0 %v5487
    %v5489 = vpop.xlane.xlu0 %5488
    %v5490 = vsel %vm861, %v5153, -inf
    %5491 = vmax.xlane.f32.xlu0 %v5490
    %v5492 = vpop.xlane.xlu0 %5491
    %v5493 = vsel %vm861, %v5159, -inf
    %5494 = vmax.xlane.f32.xlu0 %v5493
    %v5495 = vpop.xlane.xlu0 %5494
    %v5496 = vsel %vm861, %v5165, -inf
    %5497 = vmax.xlane.f32.xlu0 %v5496
    %v5498 = vpop.xlane.xlu0 %5497
    %v5499 = vsel %vm861, %v5171, -inf
    %5500 = vmax.xlane.f32.xlu0 %v5499
    %v5501 = vpop.xlane.xlu0 %5500
    %v5502 = vsel %vm861, %v5177, -inf
    %5503 = vmax.xlane.f32.xlu0 %v5502
    %v5504 = vpop.xlane.xlu0 %5503
    %v5505 = vsel %vm861, %v5183, -inf
    %5506 = vmax.xlane.f32.xlu0 %v5505
    %v5507 = vpop.xlane.xlu0 %5506
    %v5508 = vsel %vm861, %v5189, -inf
    %5509 = vmax.xlane.f32.xlu0 %v5508
    %v5510 = vpop.xlane.xlu0 %5509
    %v5511 = vsub.f32 %v5147, %v5489
    %v5512 = vsub.f32 %v5153, %v5492
    %v5513 = vsub.f32 %v5159, %v5495
    %v5514 = vsub.f32 %v5165, %v5498
    %v5515 = vsub.f32 %v5171, %v5501
    %v5516 = vsub.f32 %v5177, %v5504
    %v5517 = vsub.f32 %v5183, %v5507
    %v5518 = vsub.f32 %v5189, %v5510
    %v5519 = vmul.f32 %v5511, 1.442695
    %v5520 = vpow.pop %v5519
    %v5521 = vmul.f32 %v5512, 1.442695
    %v5522 = vpow.pop %v5521
    %v5523 = vmul.f32 %v5513, 1.442695
    %v5524 = vpow.pop %v5523
    %v5525 = vmul.f32 %v5514, 1.442695
    %v5526 = vpow.pop %v5525
    %v5527 = vmul.f32 %v5515, 1.442695
    %v5528 = vpow.pop %v5527
    %v5529 = vmul.f32 %v5516, 1.442695
    %v5530 = vpow.pop %v5529
    %v5531 = vmul.f32 %v5517, 1.442695
    %v5532 = vpow.pop %v5531
    %v5533 = vmul.f32 %v5518, 1.442695
    %v5534 = vpow.pop %v5533
    %5543 = vrot.lane.b32.xlu0 %v5520, 64
    %v5544 = vpop.permute.xlu0 %5543
    %5545 = vrot.lane.b32.xlu0 %v5522, 64
    %v5546 = vpop.permute.xlu0 %5545
    %5547 = vrot.lane.b32.xlu0 %v5524, 64
    %v5548 = vpop.permute.xlu0 %5547
    %5549 = vrot.lane.b32.xlu0 %v5526, 64
    %v5550 = vpop.permute.xlu0 %5549
    %5551 = vrot.lane.b32.xlu0 %v5528, 64
    %v5552 = vpop.permute.xlu0 %5551
    %5553 = vrot.lane.b32.xlu0 %v5530, 64
    %v5554 = vpop.permute.xlu0 %5553
    %5555 = vrot.lane.b32.xlu0 %v5532, 64
    %v5556 = vpop.permute.xlu0 %5555
    %5557 = vrot.lane.b32.xlu0 %v5534, 64
    %v5558 = vpop.permute.xlu0 %5557
    %v5567 = vsel %vm772, %v5544, 0.0
    %5568 = vadd.xlane.f32.xlu0 %v5567
    %v5569 = vpop.xlane.xlu0 %5568
    %v5570 = vsel %vm772, %v5546, 0.0
    %5571 = vadd.xlane.f32.xlu0 %v5570
    %v5572 = vpop.xlane.xlu0 %5571
    %v5573 = vsel %vm772, %v5548, 0.0
    %5574 = vadd.xlane.f32.xlu0 %v5573
    %v5575 = vpop.xlane.xlu0 %5574
    %v5576 = vsel %vm772, %v5550, 0.0
    %5577 = vadd.xlane.f32.xlu0 %v5576
    %v5578 = vpop.xlane.xlu0 %5577
    %v5579 = vsel %vm772, %v5552, 0.0
    %5580 = vadd.xlane.f32.xlu0 %v5579
    %v5581 = vpop.xlane.xlu0 %5580
    %v5582 = vsel %vm772, %v5554, 0.0
    %5583 = vadd.xlane.f32.xlu0 %v5582
    %v5584 = vpop.xlane.xlu0 %5583
    %v5585 = vsel %vm772, %v5556, 0.0
    %5586 = vadd.xlane.f32.xlu0 %v5585
    %v5587 = vpop.xlane.xlu0 %5586
    %v5588 = vsel %vm772, %v5558, 0.0
    %5589 = vadd.xlane.f32.xlu0 %v5588
    %v5590 = vpop.xlane.xlu0 %5589
    %v5591 = vrcp.pop %v5569
    %v5592 = vrcp.pop %v5572
    %v5593 = vrcp.pop %v5575
    %v5594 = vrcp.pop %v5578
    %v5595 = vrcp.pop %v5581
    %v5596 = vrcp.pop %v5584
    %v5597 = vrcp.pop %v5587
    %v5598 = vrcp.pop %v5590
    %v5599 = vmul.f32 %v5520, %v5591
    %v5600 = vmul.f32 %v5522, %v5592
    %v5601 = vmul.f32 %v5524, %v5593
    %v5602 = vmul.f32 %v5526, %v5594
    %v5603 = vmul.f32 %v5528, %v5595
    %v5604 = vmul.f32 %v5530, %v5596
    %v5605 = vmul.f32 %v5532, %v5597
    %v5606 = vmul.f32 %v5534, %v5598
    %v5607 = vsel %vm772, %v5271, %v5391
    %v5608 = vsel %vm772, %v5272, %v5392
    %v5609 = vsel %vm772, %v5273, %v5393
    %v5610 = vsel %vm772, %v5274, %v5394
    %v5611 = vsel %vm772, %v5275, %v5395
    %v5612 = vsel %vm772, %v5276, %v5396
    %v5613 = vsel %vm772, %v5277, %v5397
    %v5614 = vsel %vm772, %v5278, %v5398
    %v5615 = vsel %vm772, %v5479, %v5599
    %v5616 = vsel %vm772, %v5480, %v5600
    %v5617 = vsel %vm772, %v5481, %v5601
    %v5618 = vsel %vm772, %v5482, %v5602
    %v5619 = vsel %vm772, %v5483, %v5603
    %v5620 = vsel %vm772, %v5484, %v5604
    %v5621 = vsel %vm772, %v5485, %v5605
    %v5622 = vsel %vm772, %v5486, %v5606
    %5655 = vrot.lane.b32.xlu0 %v3868, 64
    %v5656 = vpop.permute.xlu0 %5655
    %5657 = vrot.lane.b32.xlu0 %v3869, 64
    %v5658 = vpop.permute.xlu0 %5657
    %5659 = vrot.lane.b32.xlu0 %v3870, 64
    %v5660 = vpop.permute.xlu0 %5659
    %5661 = vrot.lane.b32.xlu0 %v3871, 64
    %v5662 = vpop.permute.xlu0 %5661
    %5663 = vrot.lane.b32.xlu0 %v3872, 64
    %v5664 = vpop.permute.xlu0 %5663
    %5665 = vrot.lane.b32.xlu0 %v3873, 64
    %v5666 = vpop.permute.xlu0 %5665
    %5667 = vrot.lane.b32.xlu0 %v3874, 64
    %v5668 = vpop.permute.xlu0 %5667
    %5669 = vrot.lane.b32.xlu0 %v3875, 64
    %v5670 = vpop.permute.xlu0 %5669
    %5671 = vrot.lane.b32.xlu0 %v3884, 64
    %v5672 = vpop.permute.xlu0 %5671
    %5673 = vrot.lane.b32.xlu0 %v3885, 64
    %v5674 = vpop.permute.xlu0 %5673
    %5675 = vrot.lane.b32.xlu0 %v3886, 64
    %v5676 = vpop.permute.xlu0 %5675
    %5677 = vrot.lane.b32.xlu0 %v3887, 64
    %v5678 = vpop.permute.xlu0 %5677
    %5679 = vrot.lane.b32.xlu0 %v3888, 64
    %v5680 = vpop.permute.xlu0 %5679
    %5681 = vrot.lane.b32.xlu0 %v3889, 64
    %v5682 = vpop.permute.xlu0 %5681
    %5683 = vrot.lane.b32.xlu0 %v3890, 64
    %v5684 = vpop.permute.xlu0 %5683
    %5685 = vrot.lane.b32.xlu0 %v3891, 64
    %v5686 = vpop.permute.xlu0 %5685
    %5687 = vrot.lane.b32.xlu0 %v3900, 64
    %v5688 = vpop.permute.xlu0 %5687
    %5689 = vrot.lane.b32.xlu0 %v3901, 64
    %v5690 = vpop.permute.xlu0 %5689
    %5691 = vrot.lane.b32.xlu0 %v3902, 64
    %v5692 = vpop.permute.xlu0 %5691
    %5693 = vrot.lane.b32.xlu0 %v3903, 64
    %v5694 = vpop.permute.xlu0 %5693
    %5695 = vrot.lane.b32.xlu0 %v3904, 64
    %v5696 = vpop.permute.xlu0 %5695
    %5697 = vrot.lane.b32.xlu0 %v3905, 64
    %v5698 = vpop.permute.xlu0 %5697
    %5699 = vrot.lane.b32.xlu0 %v3906, 64
    %v5700 = vpop.permute.xlu0 %5699
    %5701 = vrot.lane.b32.xlu0 %v3907, 64
    %v5702 = vpop.permute.xlu0 %5701
    %5703 = vrot.lane.b32.xlu0 %v3916, 64
    %v5704 = vpop.permute.xlu0 %5703
    %5705 = vrot.lane.b32.xlu0 %v3917, 64
    %v5706 = vpop.permute.xlu0 %5705
    %5707 = vrot.lane.b32.xlu0 %v3918, 64
    %v5708 = vpop.permute.xlu0 %5707
    %5709 = vrot.lane.b32.xlu0 %v3919, 64
    %v5710 = vpop.permute.xlu0 %5709
    %5711 = vrot.lane.b32.xlu0 %v3920, 64
    %v5712 = vpop.permute.xlu0 %5711
    %5713 = vrot.lane.b32.xlu0 %v3921, 64
    %v5714 = vpop.permute.xlu0 %5713
    %5715 = vrot.lane.b32.xlu0 %v3922, 64
    %v5716 = vpop.permute.xlu0 %5715
    %5717 = vrot.lane.b32.xlu0 %v3923, 64
    %v5718 = vpop.permute.xlu0 %5717
    %5751 = vmatprep.subr.mxu0 0.0
    %5752 = vmatpush1.msra.mxu0 %v5686
    %5753 = vmatprep.subr.mxu0 0.0
    %5754 = vmatpush1.msra.mxu0 %v5684
    %5755 = vmatprep.subr.mxu0 0.0
    %5756 = vmatpush1.msra.mxu0 %v5682
    %5757 = vmatprep.subr.mxu0 0.0
    %5758 = vmatpush1.msra.mxu0 %v5680
    %5759 = vmatprep.subr.mxu0 0.0
    %5760 = vmatpush1.msra.mxu0 %v5678
    %5761 = vmatprep.subr.mxu0 0.0
    %5762 = vmatpush1.msra.mxu0 %v5676
    %5763 = vmatprep.subr.mxu0 0.0
    %5764 = vmatpush1.msra.mxu0 %v5674
    %5765 = vmatprep.subr.mxu0 0.0
    %5766 = vmatpush1.msra.mxu0 %v5672
    %5767 = vmatprep.subr.mxu0 0.0
    %5768 = vmatpush1.msra.mxu0 %v5670
    %5769 = vmatprep.subr.mxu0 0.0
    %5770 = vmatpush1.msra.mxu0 %v5668
    %5771 = vmatprep.subr.mxu0 0.0
    %5772 = vmatpush1.msra.mxu0 %v5666
    %5773 = vmatprep.subr.mxu0 0.0
    %5774 = vmatpush1.msra.mxu0 %v5664
    %5775 = vmatprep.subr.mxu0 0.0
    %5776 = vmatpush1.msra.mxu0 %v5662
    %5777 = vmatprep.subr.mxu0 0.0
    %5778 = vmatpush1.msra.mxu0 %v5660
    %5779 = vmatprep.subr.mxu0 0.0
    %5780 = vmatpush1.msra.mxu0 %v5658
    %5781 = vmatprep.subr.mxu0 0.0
    %5782 = vmatpush1.msra.mxu0 %v5656
    %5783 = vmatprep.subr.mxu0 0.0
    %5784 = vmatpush2.msra.mxu0 %v5718
    %5785 = vmatprep.subr.mxu0 0.0
    %5786 = vmatpush2.msra.mxu0 %v5716
    %5787 = vmatprep.subr.mxu0 0.0
    %5788 = vmatpush2.msra.mxu0 %v5714
    %5789 = vmatprep.subr.mxu0 0.0
    %5790 = vmatpush2.msra.mxu0 %v5712
    %5791 = vmatprep.subr.mxu0 0.0
    %5792 = vmatpush2.msra.mxu0 %v5710
    %5793 = vmatprep.subr.mxu0 0.0
    %5794 = vmatpush2.msra.mxu0 %v5708
    %5795 = vmatprep.subr.mxu0 0.0
    %5796 = vmatpush2.msra.mxu0 %v5706
    %5797 = vmatprep.subr.mxu0 0.0
    %5798 = vmatpush2.msra.mxu0 %v5704
    %5799 = vmatprep.subr.mxu0 0.0
    %5800 = vmatpush2.msra.mxu0 %v5702
    %5801 = vmatprep.subr.mxu0 0.0
    %5802 = vmatpush2.msra.mxu0 %v5700
    %5803 = vmatprep.subr.mxu0 0.0
    %5804 = vmatpush2.msra.mxu0 %v5698
    %5805 = vmatprep.subr.mxu0 0.0
    %5806 = vmatpush2.msra.mxu0 %v5696
    %5807 = vmatprep.subr.mxu0 0.0
    %5808 = vmatpush2.msra.mxu0 %v5694
    %5809 = vmatprep.subr.mxu0 0.0
    %5810 = vmatpush2.msra.mxu0 %v5692
    %5811 = vmatprep.subr.mxu0 0.0
    %5812 = vmatpush2.msra.mxu0 %v5690
    %5813 = vmatprep.subr.mxu0 0.0
    %5814 = vmatpush2.msra.mxu0 %v5688
    %5815 = vmatprep.mubr.f32.mxu0 %v5615
    %5816 = vmatmul.mubr.f32.gmra.mxu0 %v5607
    %v5817 = vpop.f32.mrf.mxu0
    %v5818 = vadd.f32 0.0, %v5817
    %v5819 = vpop.f32.mrf.mxu0
    %5820 = vmatprep.mubr.f32.mxu0 %v5616
    %5821 = vmatmul.mubr.f32.gmra.mxu0 %v5608
    %v5822 = vpop.f32.mrf.mxu0
    %v5823 = vadd.f32 0.0, %v5822
    %v5824 = vpop.f32.mrf.mxu0
    %5825 = vmatprep.mubr.f32.mxu0 %v5617
    %5826 = vmatmul.mubr.f32.gmra.mxu0 %v5609
    %v5827 = vpop.f32.mrf.mxu0
    %v5828 = vadd.f32 0.0, %v5827
    %v5829 = vpop.f32.mrf.mxu0
    %5830 = vmatprep.mubr.f32.mxu0 %v5618
    %5831 = vmatmul.mubr.f32.gmra.mxu0 %v5610
    %v5832 = vpop.f32.mrf.mxu0
    %v5833 = vadd.f32 0.0, %v5832
    %v5834 = vpop.f32.mrf.mxu0
    %5835 = vmatprep.mubr.f32.mxu0 %v5619
    %5836 = vmatmul.mubr.f32.gmra.mxu0 %v5611
    %v5837 = vpop.f32.mrf.mxu0
    %v5838 = vadd.f32 0.0, %v5837
    %v5839 = vpop.f32.mrf.mxu0
    %5840 = vmatprep.mubr.f32.mxu0 %v5620
    %5841 = vmatmul.mubr.f32.gmra.mxu0 %v5612
    %v5842 = vpop.f32.mrf.mxu0
    %v5843 = vadd.f32 0.0, %v5842
    %v5844 = vpop.f32.mrf.mxu0
    %5845 = vmatprep.mubr.f32.mxu0 %v5621
    %5846 = vmatmul.mubr.f32.gmra.mxu0 %v5613
    %v5847 = vpop.f32.mrf.mxu0
    %v5848 = vadd.f32 0.0, %v5847
    %v5849 = vpop.f32.mrf.mxu0
    %5850 = vmatprep.mubr.f32.mxu0 %v5622
    %5851 = vmatmul.mubr.f32.gmra.mxu0 %v5614
    %v5852 = vpop.f32.mrf.mxu0
    %v5853 = vadd.f32 0.0, %v5852
    %v5854 = vpop.f32.mrf.mxu0
    %5855 = vdwg.mxu0
    %5856 = vst.msk [vmem:[#allocation2 + $0x40] sm:$0xff] %vm125, %v5818
    %5857 = vst.msk [vmem:[#allocation2 + $0x48] sm:$0xff] %vm125, %v5823
    %5858 = vst.msk [vmem:[#allocation2 + $0x50] sm:$0xff] %vm125, %v5828
    %5859 = vst.msk [vmem:[#allocation2 + $0x58] sm:$0xff] %vm125, %v5833
    %5860 = vst.msk [vmem:[#allocation2 + $0x60] sm:$0xff] %vm125, %v5838
    %5861 = vst.msk [vmem:[#allocation2 + $0x68] sm:$0xff] %vm125, %v5843
    %5862 = vst.msk [vmem:[#allocation2 + $0x70] sm:$0xff] %vm125, %v5848
    %5863 = vst.msk [vmem:[#allocation2 + $0x78] sm:$0xff] %vm125, %v5853
    %v5864 = vld [vmem:[#allocation2] sm:$0xff]
    %v5865 = vld [vmem:[#allocation2 + $0x8] sm:$0xff]
    %v5866 = vld [vmem:[#allocation2 + $0x10] sm:$0xff]
    %v5867 = vld [vmem:[#allocation2 + $0x18] sm:$0xff]
    %v5868 = vld [vmem:[#allocation2 + $0x20] sm:$0xff]
    %v5869 = vld [vmem:[#allocation2 + $0x28] sm:$0xff]
    %v5870 = vld [vmem:[#allocation2 + $0x30] sm:$0xff]
    %v5871 = vld [vmem:[#allocation2 + $0x38] sm:$0xff]
    %v5872 = vld [vmem:[#allocation2 + $0x40] sm:$0xff]
    %v5873 = vld [vmem:[#allocation2 + $0x48] sm:$0xff]
    %v5874 = vld [vmem:[#allocation2 + $0x50] sm:$0xff]
    %v5875 = vld [vmem:[#allocation2 + $0x58] sm:$0xff]
    %v5876 = vld [vmem:[#allocation2 + $0x60] sm:$0xff]
    %v5877 = vld [vmem:[#allocation2 + $0x68] sm:$0xff]
    %v5878 = vld [vmem:[#allocation2 + $0x70] sm:$0xff]
    %v5879 = vld [vmem:[#allocation2 + $0x78] sm:$0xff]
    %s5880 = scalar_lea.vmem %s5, 32
    %v5881 = vld [vmem:[%s5880] sm:$0xff]
    %v5882 = vld [vmem:[%s5880 + $0x8] sm:$0xff]
    %v5883 = vld [vmem:[%s5880 + $0x10] sm:$0xff]
    %v5884 = vld [vmem:[%s5880 + $0x18] sm:$0xff]
    %v5885 = vlaneseq
    %v5886 = vshrl.u32 %v5885, 7
    %v5887 = vsub.s32 0, %v5886
    %v5888 = vrot.slane %v3587, %v5887
    %v5890 = vsel %vm125, %v5864, 0
    %v5893 = vsel %vm125, %v5865, 0
    %v5896 = vsel %vm125, %v5866, 0
    %v5899 = vsel %vm125, %v5867, 0
    %v5902 = vsel %vm125, %v5868, 0
    %v5905 = vsel %vm125, %v5869, 0
    %v5908 = vsel %vm125, %v5870, 0
    %v5911 = vsel %vm125, %v5871, 0
    %v5914 = vsel %vm125, %v5872, 0
    %v5917 = vsel %vm125, %v5873, 0
    %v5920 = vsel %vm125, %v5874, 0
    %v5923 = vsel %vm125, %v5875, 0
    %v5926 = vsel %vm125, %v5876, 0
    %v5929 = vsel %vm125, %v5877, 0
    %v5932 = vsel %vm125, %v5878, 0
    %v5935 = vsel %vm125, %v5879, 0
    %5937 = vmatprep.subr.mxu0 0.0
    %5938 = vmatpush1.msra.mxu0 0.0
    %5939 = vmatprep.subr.mxu0 0.0
    %5940 = vmatpush1.msra.mxu0 0.0
    %5941 = vmatprep.subr.mxu0 0.0
    %5942 = vmatpush1.msra.mxu0 0.0
    %5943 = vmatprep.subr.mxu0 0.0
    %5944 = vmatpush1.msra.mxu0 0.0
    %5945 = vmatprep.subr.mxu0 0.0
    %5946 = vmatpush1.msra.mxu0 0.0
    %5947 = vmatprep.subr.mxu0 0.0
    %5948 = vmatpush1.msra.mxu0 0.0
    %5949 = vmatprep.subr.mxu0 0.0
    %5950 = vmatpush1.msra.mxu0 0.0
    %5951 = vmatprep.subr.mxu0 0.0
    %5952 = vmatpush1.msra.mxu0 0.0
    %5953 = vmatprep.subr.mxu0 0.0
    %5954 = vmatpush1.msra.mxu0 0.0
    %5955 = vmatprep.subr.mxu0 0.0
    %5956 = vmatpush1.msra.mxu0 0.0
    %5957 = vmatprep.subr.mxu0 0.0
    %5958 = vmatpush1.msra.mxu0 0.0
    %5959 = vmatprep.subr.mxu0 0.0
    %5960 = vmatpush1.msra.mxu0 0.0
    %5961 = vmatprep.subr.mxu0 0.0
    %5962 = vmatpush1.msra.mxu0 %v5884
    %5963 = vmatprep.subr.mxu0 0.0
    %5964 = vmatpush1.msra.mxu0 %v5883
    %5965 = vmatprep.subr.mxu0 0.0
    %5966 = vmatpush1.msra.mxu0 %v5882
    %5967 = vmatprep.subr.mxu0 0.0
    %5968 = vmatpush1.msra.mxu0 %v5881
    %5969 = vmatprep.subr.mxu0 0.0
    %5970 = vmatpush2.msra.mxu0 0.0
    %5971 = vmatprep.subr.mxu0 0.0
    %5972 = vmatpush2.msra.mxu0 0.0
    %5973 = vmatprep.subr.mxu0 0.0
    %5974 = vmatpush2.msra.mxu0 0.0
    %5975 = vmatprep.subr.mxu0 0.0
    %5976 = vmatpush2.msra.mxu0 0.0
    %5977 = vmatprep.subr.mxu0 0.0
    %5978 = vmatpush2.msra.mxu0 0.0
    %5979 = vmatprep.subr.mxu0 0.0
    %5980 = vmatpush2.msra.mxu0 0.0
    %5981 = vmatprep.subr.mxu0 0.0
    %5982 = vmatpush2.msra.mxu0 0.0
    %5983 = vmatprep.subr.mxu0 0.0
    %5984 = vmatpush2.msra.mxu0 0.0
    %5985 = vmatprep.subr.mxu0 0.0
    %5986 = vmatpush2.msra.mxu0 0.0
    %5987 = vmatprep.subr.mxu0 0.0
    %5988 = vmatpush2.msra.mxu0 0.0
    %5989 = vmatprep.subr.mxu0 0.0
    %5990 = vmatpush2.msra.mxu0 0.0
    %5991 = vmatprep.subr.mxu0 0.0
    %5992 = vmatpush2.msra.mxu0 0.0
    %5993 = vmatprep.subr.mxu0 0.0
    %5994 = vmatpush2.msra.mxu0 0.0
    %5995 = vmatprep.subr.mxu0 0.0
    %5996 = vmatpush2.msra.mxu0 0.0
    %5997 = vmatprep.subr.mxu0 0.0
    %5998 = vmatpush2.msra.mxu0 0.0
    %5999 = vmatprep.subr.mxu0 0.0
    %6000 = vmatpush2.msra.mxu0 0.0
    %6001 = vmatprep.mubr.f32.mxu0 0.0
    %6002 = vmatmul.mubr.f32.gmra.mxu0 %v5890
    %v6003 = vpop.f32.mrf.mxu0
    %v6004 = vadd.f32 %v5888, %v6003
    %v6005 = vpop.f32.mrf.mxu0
    %6006 = vmatprep.mubr.f32.mxu0 0.0
    %6007 = vmatmul.mubr.f32.gmra.mxu0 %v5893
    %v6008 = vpop.f32.mrf.mxu0
    %v6009 = vadd.f32 %v5888, %v6008
    %v6010 = vpop.f32.mrf.mxu0
    %6011 = vmatprep.mubr.f32.mxu0 0.0
    %6012 = vmatmul.mubr.f32.gmra.mxu0 %v5896
    %v6013 = vpop.f32.mrf.mxu0
    %v6014 = vadd.f32 %v5888, %v6013
    %v6015 = vpop.f32.mrf.mxu0
    %6016 = vmatprep.mubr.f32.mxu0 0.0
    %6017 = vmatmul.mubr.f32.gmra.mxu0 %v5899
    %v6018 = vpop.f32.mrf.mxu0
    %v6019 = vadd.f32 %v5888, %v6018
    %v6020 = vpop.f32.mrf.mxu0
    %6021 = vmatprep.mubr.f32.mxu0 0.0
    %6022 = vmatmul.mubr.f32.gmra.mxu0 %v5902
    %v6023 = vpop.f32.mrf.mxu0
    %v6024 = vadd.f32 %v5888, %v6023
    %v6025 = vpop.f32.mrf.mxu0
    %6026 = vmatprep.mubr.f32.mxu0 0.0
    %6027 = vmatmul.mubr.f32.gmra.mxu0 %v5905
    %v6028 = vpop.f32.mrf.mxu0
    %v6029 = vadd.f32 %v5888, %v6028
    %v6030 = vpop.f32.mrf.mxu0
    %6031 = vmatprep.mubr.f32.mxu0 0.0
    %6032 = vmatmul.mubr.f32.gmra.mxu0 %v5908
    %v6033 = vpop.f32.mrf.mxu0
    %v6034 = vadd.f32 %v5888, %v6033
    %v6035 = vpop.f32.mrf.mxu0
    %6036 = vmatprep.mubr.f32.mxu0 0.0
    %6037 = vmatmul.mubr.f32.gmra.mxu0 %v5911
    %v6038 = vpop.f32.mrf.mxu0
    %v6039 = vadd.f32 %v5888, %v6038
    %v6040 = vpop.f32.mrf.mxu0
    %6041 = vmatprep.mubr.f32.mxu0 0.0
    %6042 = vmatmul.mubr.f32.gmra.mxu0 %v5914
    %v6043 = vpop.f32.mrf.mxu0
    %v6044 = vadd.f32 %v5888, %v6043
    %v6045 = vpop.f32.mrf.mxu0
    %6046 = vmatprep.mubr.f32.mxu0 0.0
    %6047 = vmatmul.mubr.f32.gmra.mxu0 %v5917
    %v6048 = vpop.f32.mrf.mxu0
    %v6049 = vadd.f32 %v5888, %v6048
    %v6050 = vpop.f32.mrf.mxu0
    %6051 = vmatprep.mubr.f32.mxu0 0.0
    %6052 = vmatmul.mubr.f32.gmra.mxu0 %v5920
    %v6053 = vpop.f32.mrf.mxu0
    %v6054 = vadd.f32 %v5888, %v6053
    %v6055 = vpop.f32.mrf.mxu0
    %6056 = vmatprep.mubr.f32.mxu0 0.0
    %6057 = vmatmul.mubr.f32.gmra.mxu0 %v5923
    %v6058 = vpop.f32.mrf.mxu0
    %v6059 = vadd.f32 %v5888, %v6058
    %v6060 = vpop.f32.mrf.mxu0
    %6061 = vmatprep.mubr.f32.mxu0 0.0
    %6062 = vmatmul.mubr.f32.gmra.mxu0 %v5926
    %v6063 = vpop.f32.mrf.mxu0
    %v6064 = vadd.f32 %v5888, %v6063
    %v6065 = vpop.f32.mrf.mxu0
    %6066 = vmatprep.mubr.f32.mxu0 0.0
    %6067 = vmatmul.mubr.f32.gmra.mxu0 %v5929
    %v6068 = vpop.f32.mrf.mxu0
    %v6069 = vadd.f32 %v5888, %v6068
    %v6070 = vpop.f32.mrf.mxu0
    %6071 = vmatprep.mubr.f32.mxu0 0.0
    %6072 = vmatmul.mubr.f32.gmra.mxu0 %v5932
    %v6073 = vpop.f32.mrf.mxu0
    %v6074 = vadd.f32 %v5888, %v6073
    %v6075 = vpop.f32.mrf.mxu0
    %6076 = vmatprep.mubr.f32.mxu0 0.0
    %6077 = vmatmul.mubr.f32.gmra.mxu0 %v5935
    %v6078 = vpop.f32.mrf.mxu0
    %v6079 = vadd.f32 %v5888, %v6078
    %v6080 = vpop.f32.mrf.mxu0
    %6081 = vdwg.mxu0
    %v6082 = vadd.f32 %v6004, %v3569
    %v6083 = vadd.f32 %v6009, %v3570
    %v6084 = vadd.f32 %v6014, %v3571
    %v6085 = vadd.f32 %v6019, %v3572
    %v6086 = vadd.f32 %v6024, %v3573
    %v6087 = vadd.f32 %v6029, %v3574
    %v6088 = vadd.f32 %v6034, %v3575
    %v6089 = vadd.f32 %v6039, %v3576
    %v6090 = vadd.f32 %v6044, %v3577
    %v6091 = vadd.f32 %v6049, %v3578
    %v6092 = vadd.f32 %v6054, %v3579
    %v6093 = vadd.f32 %v6059, %v3580
    %v6094 = vadd.f32 %v6064, %v3581
    %v6095 = vadd.f32 %v6069, %v3582
    %v6096 = vadd.f32 %v6074, %v3583
    %v6097 = vadd.f32 %v6079, %v3584
    %v6098 = vsel %vm125, %v6082, 0.0
    %6099 = vadd.xlane.f32.xlu0 %v6098
    %v6100 = vpop.xlane.xlu0 %6099
    %v6101 = vsel %vm125, %v6083, 0.0
    %6102 = vadd.xlane.f32.xlu0 %v6101
    %v6103 = vpop.xlane.xlu0 %6102
    %v6104 = vsel %vm125, %v6084, 0.0
    %6105 = vadd.xlane.f32.xlu0 %v6104
    %v6106 = vpop.xlane.xlu0 %6105
    %v6107 = vsel %vm125, %v6085, 0.0
    %6108 = vadd.xlane.f32.xlu0 %v6107
    %v6109 = vpop.xlane.xlu0 %6108
    %v6110 = vsel %vm125, %v6086, 0.0
    %6111 = vadd.xlane.f32.xlu0 %v6110
    %v6112 = vpop.xlane.xlu0 %6111
    %v6113 = vsel %vm125, %v6087, 0.0
    %6114 = vadd.xlane.f32.xlu0 %v6113
    %v6115 = vpop.xlane.xlu0 %6114
    %v6116 = vsel %vm125, %v6088, 0.0
    %6117 = vadd.xlane.f32.xlu0 %v6116
    %v6118 = vpop.xlane.xlu0 %6117
    %v6119 = vsel %vm125, %v6089, 0.0
    %6120 = vadd.xlane.f32.xlu0 %v6119
    %v6121 = vpop.xlane.xlu0 %6120
    %v6122 = vsel %vm125, %v6090, 0.0
    %6123 = vadd.xlane.f32.xlu0 %v6122
    %v6124 = vpop.xlane.xlu0 %6123
    %v6125 = vsel %vm125, %v6091, 0.0
    %6126 = vadd.xlane.f32.xlu0 %v6125
    %v6127 = vpop.xlane.xlu0 %6126
    %v6128 = vsel %vm125, %v6092, 0.0
    %6129 = vadd.xlane.f32.xlu0 %v6128
    %v6130 = vpop.xlane.xlu0 %6129
    %v6131 = vsel %vm125, %v6093, 0.0
    %6132 = vadd.xlane.f32.xlu0 %v6131
    %v6133 = vpop.xlane.xlu0 %6132
    %v6134 = vsel %vm125, %v6094, 0.0
    %6135 = vadd.xlane.f32.xlu0 %v6134
    %v6136 = vpop.xlane.xlu0 %6135
    %v6137 = vsel %vm125, %v6095, 0.0
    %6138 = vadd.xlane.f32.xlu0 %v6137
    %v6139 = vpop.xlane.xlu0 %6138
    %v6140 = vsel %vm125, %v6096, 0.0
    %6141 = vadd.xlane.f32.xlu0 %v6140
    %v6142 = vpop.xlane.xlu0 %6141
    %v6143 = vsel %vm125, %v6097, 0.0
    %6144 = vadd.xlane.f32.xlu0 %v6143
    %v6145 = vpop.xlane.xlu0 %6144
    %v6146 = vmul.f32 %v6100, %v2698
    %v6147 = vmul.f32 %v6103, %v2698
    %v6148 = vmul.f32 %v6106, %v2698
    %v6149 = vmul.f32 %v6109, %v2698
    %v6150 = vmul.f32 %v6112, %v2698
    %v6151 = vmul.f32 %v6115, %v2698
    %v6152 = vmul.f32 %v6118, %v2698
    %v6153 = vmul.f32 %v6121, %v2698
    %v6154 = vmul.f32 %v6124, %v2698
    %v6155 = vmul.f32 %v6127, %v2698
    %v6156 = vmul.f32 %v6130, %v2698
    %v6157 = vmul.f32 %v6133, %v2698
    %v6158 = vmul.f32 %v6136, %v2698
    %v6159 = vmul.f32 %v6139, %v2698
    %v6160 = vmul.f32 %v6142, %v2698
    %v6161 = vmul.f32 %v6145, %v2698
    %v6162 = vsub.f32 %v6082, %v6146
    %v6163 = vsub.f32 %v6083, %v6147
    %v6164 = vsub.f32 %v6084, %v6148
    %v6165 = vsub.f32 %v6085, %v6149
    %v6166 = vsub.f32 %v6086, %v6150
    %v6167 = vsub.f32 %v6087, %v6151
    %v6168 = vsub.f32 %v6088, %v6152
    %v6169 = vsub.f32 %v6089, %v6153
    %v6170 = vsub.f32 %v6090, %v6154
    %v6171 = vsub.f32 %v6091, %v6155
    %v6172 = vsub.f32 %v6092, %v6156
    %v6173 = vsub.f32 %v6093, %v6157
    %v6174 = vsub.f32 %v6094, %v6158
    %v6175 = vsub.f32 %v6095, %v6159
    %v6176 = vsub.f32 %v6096, %v6160
    %v6177 = vsub.f32 %v6097, %v6161
    %v6178 = vmul.f32 %v6162, %v6162
    %v6179 = vmul.f32 %v6163, %v6163
    %v6180 = vmul.f32 %v6164, %v6164
    %v6181 = vmul.f32 %v6165, %v6165
    %v6182 = vmul.f32 %v6166, %v6166
    %v6183 = vmul.f32 %v6167, %v6167
    %v6184 = vmul.f32 %v6168, %v6168
    %v6185 = vmul.f32 %v6169, %v6169
    %v6186 = vmul.f32 %v6170, %v6170
    %v6187 = vmul.f32 %v6171, %v6171
    %v6188 = vmul.f32 %v6172, %v6172
    %v6189 = vmul.f32 %v6173, %v6173
    %v6190 = vmul.f32 %v6174, %v6174
    %v6191 = vmul.f32 %v6175, %v6175
    %v6192 = vmul.f32 %v6176, %v6176
    %v6193 = vmul.f32 %v6177, %v6177
    %v6194 = vsel %vm125, %v6178, 0.0
    %6195 = vadd.xlane.f32.xlu0 %v6194
    %v6196 = vpop.xlane.xlu0 %6195
    %v6197 = vsel %vm125, %v6179, 0.0
    %6198 = vadd.xlane.f32.xlu0 %v6197
    %v6199 = vpop.xlane.xlu0 %6198
    %v6200 = vsel %vm125, %v6180, 0.0
    %6201 = vadd.xlane.f32.xlu0 %v6200
    %v6202 = vpop.xlane.xlu0 %6201
    %v6203 = vsel %vm125, %v6181, 0.0
    %6204 = vadd.xlane.f32.xlu0 %v6203
    %v6205 = vpop.xlane.xlu0 %6204
    %v6206 = vsel %vm125, %v6182, 0.0
    %6207 = vadd.xlane.f32.xlu0 %v6206
    %v6208 = vpop.xlane.xlu0 %6207
    %v6209 = vsel %vm125, %v6183, 0.0
    %6210 = vadd.xlane.f32.xlu0 %v6209
    %v6211 = vpop.xlane.xlu0 %6210
    %v6212 = vsel %vm125, %v6184, 0.0
    %6213 = vadd.xlane.f32.xlu0 %v6212
    %v6214 = vpop.xlane.xlu0 %6213
    %v6215 = vsel %vm125, %v6185, 0.0
    %6216 = vadd.xlane.f32.xlu0 %v6215
    %v6217 = vpop.xlane.xlu0 %6216
    %v6218 = vsel %vm125, %v6186, 0.0
    %6219 = vadd.xlane.f32.xlu0 %v6218
    %v6220 = vpop.xlane.xlu0 %6219
    %v6221 = vsel %vm125, %v6187, 0.0
    %6222 = vadd.xlane.f32.xlu0 %v6221
    %v6223 = vpop.xlane.xlu0 %6222
    %v6224 = vsel %vm125, %v6188, 0.0
    %6225 = vadd.xlane.f32.xlu0 %v6224
    %v6226 = vpop.xlane.xlu0 %6225
    %v6227 = vsel %vm125, %v6189, 0.0
    %6228 = vadd.xlane.f32.xlu0 %v6227
    %v6229 = vpop.xlane.xlu0 %6228
    %v6230 = vsel %vm125, %v6190, 0.0
    %6231 = vadd.xlane.f32.xlu0 %v6230
    %v6232 = vpop.xlane.xlu0 %6231
    %v6233 = vsel %vm125, %v6191, 0.0
    %6234 = vadd.xlane.f32.xlu0 %v6233
    %v6235 = vpop.xlane.xlu0 %6234
    %v6236 = vsel %vm125, %v6192, 0.0
    %6237 = vadd.xlane.f32.xlu0 %v6236
    %v6238 = vpop.xlane.xlu0 %6237
    %v6239 = vsel %vm125, %v6193, 0.0
    %6240 = vadd.xlane.f32.xlu0 %v6239
    %v6241 = vpop.xlane.xlu0 %6240
    %v6242 = vmul.f32 %v6196, %v2698
    %v6243 = vmul.f32 %v6199, %v2698
    %v6244 = vmul.f32 %v6202, %v2698
    %v6245 = vmul.f32 %v6205, %v2698
    %v6246 = vmul.f32 %v6208, %v2698
    %v6247 = vmul.f32 %v6211, %v2698
    %v6248 = vmul.f32 %v6214, %v2698
    %v6249 = vmul.f32 %v6217, %v2698
    %v6250 = vmul.f32 %v6220, %v2698
    %v6251 = vmul.f32 %v6223, %v2698
    %v6252 = vmul.f32 %v6226, %v2698
    %v6253 = vmul.f32 %v6229, %v2698
    %v6254 = vmul.f32 %v6232, %v2698
    %v6255 = vmul.f32 %v6235, %v2698
    %v6256 = vmul.f32 %v6238, %v2698
    %v6257 = vmul.f32 %v6241, %v2698
    %v6258 = vadd.f32 %v6242, 1e-12
    %v6259 = vadd.f32 %v6243, 1e-12
    %v6260 = vadd.f32 %v6244, 1e-12
    %v6261 = vadd.f32 %v6245, 1e-12
    %v6262 = vadd.f32 %v6246, 1e-12
    %v6263 = vadd.f32 %v6247, 1e-12
    %v6264 = vadd.f32 %v6248, 1e-12
    %v6265 = vadd.f32 %v6249, 1e-12
    %v6266 = vadd.f32 %v6250, 1e-12
    %v6267 = vadd.f32 %v6251, 1e-12
    %v6268 = vadd.f32 %v6252, 1e-12
    %v6269 = vadd.f32 %v6253, 1e-12
    %v6270 = vadd.f32 %v6254, 1e-12
    %v6271 = vadd.f32 %v6255, 1e-12
    %v6272 = vadd.f32 %v6256, 1e-12
    %v6273 = vadd.f32 %v6257, 1e-12
    %v6274 = vrsqrt.pop %v6258
    %v6275 = vrsqrt.pop %v6259
    %v6276 = vrsqrt.pop %v6260
    %v6277 = vrsqrt.pop %v6261
    %v6278 = vrsqrt.pop %v6262
    %v6279 = vrsqrt.pop %v6263
    %v6280 = vrsqrt.pop %v6264
    %v6281 = vrsqrt.pop %v6265
    %v6282 = vrsqrt.pop %v6266
    %v6283 = vrsqrt.pop %v6267
    %v6284 = vrsqrt.pop %v6268
    %v6285 = vrsqrt.pop %v6269
    %v6286 = vrsqrt.pop %v6270
    %v6287 = vrsqrt.pop %v6271
    %v6288 = vrsqrt.pop %v6272
    %v6289 = vrsqrt.pop %v6273
    %v6290 = vmul.f32 %v6162, %v6274
    %v6291 = vmul.f32 %v6163, %v6275
    %v6292 = vmul.f32 %v6164, %v6276
    %v6293 = vmul.f32 %v6165, %v6277
    %v6294 = vmul.f32 %v6166, %v6278
    %v6295 = vmul.f32 %v6167, %v6279
    %v6296 = vmul.f32 %v6168, %v6280
    %v6297 = vmul.f32 %v6169, %v6281
    %v6298 = vmul.f32 %v6170, %v6282
    %v6299 = vmul.f32 %v6171, %v6283
    %v6300 = vmul.f32 %v6172, %v6284
    %v6301 = vmul.f32 %v6173, %v6285
    %v6302 = vmul.f32 %v6174, %v6286
    %v6303 = vmul.f32 %v6175, %v6287
    %v6304 = vmul.f32 %v6176, %v6288
    %v6305 = vmul.f32 %v6177, %v6289
    %v6306 = vlaneseq
    %v6307 = vshrl.u32 %v6306, 7
    %v6308 = vsub.s32 0, %v6307
    %v6309 = vrot.slane %v3588, %v6308
    %v6310 = vmul.f32 %v6309, %v6290
    %v6311 = vmul.f32 %v6309, %v6291
    %v6312 = vmul.f32 %v6309, %v6292
    %v6313 = vmul.f32 %v6309, %v6293
    %v6314 = vmul.f32 %v6309, %v6294
    %v6315 = vmul.f32 %v6309, %v6295
    %v6316 = vmul.f32 %v6309, %v6296
    %v6317 = vmul.f32 %v6309, %v6297
    %v6318 = vmul.f32 %v6309, %v6298
    %v6319 = vmul.f32 %v6309, %v6299
    %v6320 = vmul.f32 %v6309, %v6300
    %v6321 = vmul.f32 %v6309, %v6301
    %v6322 = vmul.f32 %v6309, %v6302
    %v6323 = vmul.f32 %v6309, %v6303
    %v6324 = vmul.f32 %v6309, %v6304
    %v6325 = vmul.f32 %v6309, %v6305
    %v6326 = vlaneseq
    %v6327 = vshrl.u32 %v6326, 7
    %v6328 = vsub.s32 0, %v6327
    %v6329 = vrot.slane %v3589, %v6328
    %v6330 = vadd.f32 %v6310, %v6329
    %v6331 = vadd.f32 %v6311, %v6329
    %v6332 = vadd.f32 %v6312, %v6329
    %v6333 = vadd.f32 %v6313, %v6329
    %v6334 = vadd.f32 %v6314, %v6329
    %v6335 = vadd.f32 %v6315, %v6329
    %v6336 = vadd.f32 %v6316, %v6329
    %v6337 = vadd.f32 %v6317, %v6329
    %v6338 = vadd.f32 %v6318, %v6329
    %v6339 = vadd.f32 %v6319, %v6329
    %v6340 = vadd.f32 %v6320, %v6329
    %v6341 = vadd.f32 %v6321, %v6329
    %v6342 = vadd.f32 %v6322, %v6329
    %v6343 = vadd.f32 %v6323, %v6329
    %v6344 = vadd.f32 %v6324, %v6329
    %v6345 = vadd.f32 %v6325, %v6329
    %s6346 = scalar_lea.vmem %s6, 32
    %v6347 = vld [vmem:[%s6346] sm:$0xff]
    %v6348 = vld [vmem:[%s6346 + $0x8] sm:$0xff]
    %v6349 = vld [vmem:[%s6346 + $0x10] sm:$0xff]
    %v6350 = vld [vmem:[%s6346 + $0x18] sm:$0xff]
    %v6351 = vlaneseq
    %v6352 = vshrl.u32 %v6351, 7
    %v6353 = vsub.s32 0, %v6352
    %v6354 = vrot.slane %v3590, %v6353
    %v6356 = vsel %vm125, %v6330, 0
    %v6359 = vsel %vm125, %v6331, 0
    %v6362 = vsel %vm125, %v6332, 0
    %v6365 = vsel %vm125, %v6333, 0
    %v6368 = vsel %vm125, %v6334, 0
    %v6371 = vsel %vm125, %v6335, 0
    %v6374 = vsel %vm125, %v6336, 0
    %v6377 = vsel %vm125, %v6337, 0
    %v6380 = vsel %vm125, %v6338, 0
    %v6383 = vsel %vm125, %v6339, 0
    %v6386 = vsel %vm125, %v6340, 0
    %v6389 = vsel %vm125, %v6341, 0
    %v6392 = vsel %vm125, %v6342, 0
    %v6395 = vsel %vm125, %v6343, 0
    %v6398 = vsel %vm125, %v6344, 0
    %v6401 = vsel %vm125, %v6345, 0
    %6403 = vmatprep.subr.mxu0 0.0
    %6404 = vmatpush1.msra.mxu0 0.0
    %6405 = vmatprep.subr.mxu0 0.0
    %6406 = vmatpush1.msra.mxu0 0.0
    %6407 = vmatprep.subr.mxu0 0.0
    %6408 = vmatpush1.msra.mxu0 0.0
    %6409 = vmatprep.subr.mxu0 0.0
    %6410 = vmatpush1.msra.mxu0 0.0
    %6411 = vmatprep.subr.mxu0 0.0
    %6412 = vmatpush1.msra.mxu0 0.0
    %6413 = vmatprep.subr.mxu0 0.0
    %6414 = vmatpush1.msra.mxu0 0.0
    %6415 = vmatprep.subr.mxu0 0.0
    %6416 = vmatpush1.msra.mxu0 0.0
    %6417 = vmatprep.subr.mxu0 0.0
    %6418 = vmatpush1.msra.mxu0 0.0
    %6419 = vmatprep.subr.mxu0 0.0
    %6420 = vmatpush1.msra.mxu0 0.0
    %6421 = vmatprep.subr.mxu0 0.0
    %6422 = vmatpush1.msra.mxu0 0.0
    %6423 = vmatprep.subr.mxu0 0.0
    %6424 = vmatpush1.msra.mxu0 0.0
    %6425 = vmatprep.subr.mxu0 0.0
    %6426 = vmatpush1.msra.mxu0 0.0
    %6427 = vmatprep.subr.mxu0 0.0
    %6428 = vmatpush1.msra.mxu0 %v6350
    %6429 = vmatprep.subr.mxu0 0.0
    %6430 = vmatpush1.msra.mxu0 %v6349
    %6431 = vmatprep.subr.mxu0 0.0
    %6432 = vmatpush1.msra.mxu0 %v6348
    %6433 = vmatprep.subr.mxu0 0.0
    %6434 = vmatpush1.msra.mxu0 %v6347
    %6435 = vmatprep.subr.mxu0 0.0
    %6436 = vmatpush2.msra.mxu0 0.0
    %6437 = vmatprep.subr.mxu0 0.0
    %6438 = vmatpush2.msra.mxu0 0.0
    %6439 = vmatprep.subr.mxu0 0.0
    %6440 = vmatpush2.msra.mxu0 0.0
    %6441 = vmatprep.subr.mxu0 0.0
    %6442 = vmatpush2.msra.mxu0 0.0
    %6443 = vmatprep.subr.mxu0 0.0
    %6444 = vmatpush2.msra.mxu0 0.0
    %6445 = vmatprep.subr.mxu0 0.0
    %6446 = vmatpush2.msra.mxu0 0.0
    %6447 = vmatprep.subr.mxu0 0.0
    %6448 = vmatpush2.msra.mxu0 0.0
    %6449 = vmatprep.subr.mxu0 0.0
    %6450 = vmatpush2.msra.mxu0 0.0
    %6451 = vmatprep.subr.mxu0 0.0
    %6452 = vmatpush2.msra.mxu0 0.0
    %6453 = vmatprep.subr.mxu0 0.0
    %6454 = vmatpush2.msra.mxu0 0.0
    %6455 = vmatprep.subr.mxu0 0.0
    %6456 = vmatpush2.msra.mxu0 0.0
    %6457 = vmatprep.subr.mxu0 0.0
    %6458 = vmatpush2.msra.mxu0 0.0
    %6459 = vmatprep.subr.mxu0 0.0
    %6460 = vmatpush2.msra.mxu0 0.0
    %6461 = vmatprep.subr.mxu0 0.0
    %6462 = vmatpush2.msra.mxu0 0.0
    %6463 = vmatprep.subr.mxu0 0.0
    %6464 = vmatpush2.msra.mxu0 0.0
    %6465 = vmatprep.subr.mxu0 0.0
    %6466 = vmatpush2.msra.mxu0 0.0
    %6467 = vmatprep.mubr.f32.mxu0 0.0
    %6468 = vmatmul.mubr.f32.gmra.mxu0 %v6356
    %v6469 = vpop.f32.mrf.mxu0
    %v6470 = vadd.f32 %v6354, %v6469
    %v6471 = vpop.f32.mrf.mxu0
    %6472 = vmatprep.mubr.f32.mxu0 0.0
    %6473 = vmatmul.mubr.f32.gmra.mxu0 %v6359
    %v6474 = vpop.f32.mrf.mxu0
    %v6475 = vadd.f32 %v6354, %v6474
    %v6476 = vpop.f32.mrf.mxu0
    %6477 = vmatprep.mubr.f32.mxu0 0.0
    %6478 = vmatmul.mubr.f32.gmra.mxu0 %v6362
    %v6479 = vpop.f32.mrf.mxu0
    %v6480 = vadd.f32 %v6354, %v6479
    %v6481 = vpop.f32.mrf.mxu0
    %6482 = vmatprep.mubr.f32.mxu0 0.0
    %6483 = vmatmul.mubr.f32.gmra.mxu0 %v6365
    %v6484 = vpop.f32.mrf.mxu0
    %v6485 = vadd.f32 %v6354, %v6484
    %v6486 = vpop.f32.mrf.mxu0
    %6487 = vmatprep.mubr.f32.mxu0 0.0
    %6488 = vmatmul.mubr.f32.gmra.mxu0 %v6368
    %v6489 = vpop.f32.mrf.mxu0
    %v6490 = vadd.f32 %v6354, %v6489
    %v6491 = vpop.f32.mrf.mxu0
    %6492 = vmatprep.mubr.f32.mxu0 0.0
    %6493 = vmatmul.mubr.f32.gmra.mxu0 %v6371
    %v6494 = vpop.f32.mrf.mxu0
    %v6495 = vadd.f32 %v6354, %v6494
    %v6496 = vpop.f32.mrf.mxu0
    %6497 = vmatprep.mubr.f32.mxu0 0.0
    %6498 = vmatmul.mubr.f32.gmra.mxu0 %v6374
    %v6499 = vpop.f32.mrf.mxu0
    %v6500 = vadd.f32 %v6354, %v6499
    %v6501 = vpop.f32.mrf.mxu0
    %6502 = vmatprep.mubr.f32.mxu0 0.0
    %6503 = vmatmul.mubr.f32.gmra.mxu0 %v6377
    %v6504 = vpop.f32.mrf.mxu0
    %v6505 = vadd.f32 %v6354, %v6504
    %v6506 = vpop.f32.mrf.mxu0
    %6507 = vmatprep.mubr.f32.mxu0 0.0
    %6508 = vmatmul.mubr.f32.gmra.mxu0 %v6380
    %v6509 = vpop.f32.mrf.mxu0
    %v6510 = vadd.f32 %v6354, %v6509
    %v6511 = vpop.f32.mrf.mxu0
    %6512 = vmatprep.mubr.f32.mxu0 0.0
    %6513 = vmatmul.mubr.f32.gmra.mxu0 %v6383
    %v6514 = vpop.f32.mrf.mxu0
    %v6515 = vadd.f32 %v6354, %v6514
    %v6516 = vpop.f32.mrf.mxu0
    %6517 = vmatprep.mubr.f32.mxu0 0.0
    %6518 = vmatmul.mubr.f32.gmra.mxu0 %v6386
    %v6519 = vpop.f32.mrf.mxu0
    %v6520 = vadd.f32 %v6354, %v6519
    %v6521 = vpop.f32.mrf.mxu0
    %6522 = vmatprep.mubr.f32.mxu0 0.0
    %6523 = vmatmul.mubr.f32.gmra.mxu0 %v6389
    %v6524 = vpop.f32.mrf.mxu0
    %v6525 = vadd.f32 %v6354, %v6524
    %v6526 = vpop.f32.mrf.mxu0
    %6527 = vmatprep.mubr.f32.mxu0 0.0
    %6528 = vmatmul.mubr.f32.gmra.mxu0 %v6392
    %v6529 = vpop.f32.mrf.mxu0
    %v6530 = vadd.f32 %v6354, %v6529
    %v6531 = vpop.f32.mrf.mxu0
    %6532 = vmatprep.mubr.f32.mxu0 0.0
    %6533 = vmatmul.mubr.f32.gmra.mxu0 %v6395
    %v6534 = vpop.f32.mrf.mxu0
    %v6535 = vadd.f32 %v6354, %v6534
    %v6536 = vpop.f32.mrf.mxu0
    %6537 = vmatprep.mubr.f32.mxu0 0.0
    %6538 = vmatmul.mubr.f32.gmra.mxu0 %v6398
    %v6539 = vpop.f32.mrf.mxu0
    %v6540 = vadd.f32 %v6354, %v6539
    %v6541 = vpop.f32.mrf.mxu0
    %6542 = vmatprep.mubr.f32.mxu0 0.0
    %6543 = vmatmul.mubr.f32.gmra.mxu0 %v6401
    %v6544 = vpop.f32.mrf.mxu0
    %v6545 = vadd.f32 %v6354, %v6544
    %v6546 = vpop.f32.mrf.mxu0
    %6547 = vdwg.mxu0
    %v6548 = vmax.f32 %v6470, 0.0
    %v6549 = vmax.f32 %v6475, 0.0
    %v6550 = vmax.f32 %v6480, 0.0
    %v6551 = vmax.f32 %v6485, 0.0
    %v6552 = vmax.f32 %v6490, 0.0
    %v6553 = vmax.f32 %v6495, 0.0
    %v6554 = vmax.f32 %v6500, 0.0
    %v6555 = vmax.f32 %v6505, 0.0
    %v6556 = vmax.f32 %v6510, 0.0
    %v6557 = vmax.f32 %v6515, 0.0
    %v6558 = vmax.f32 %v6520, 0.0
    %v6559 = vmax.f32 %v6525, 0.0
    %v6560 = vmax.f32 %v6530, 0.0
    %v6561 = vmax.f32 %v6535, 0.0
    %v6562 = vmax.f32 %v6540, 0.0
    %v6563 = vmax.f32 %v6545, 0.0
    %s6564 = scalar_lea.vmem %s7, 64
    %v6565 = vld [vmem:[%s6564] sm:$0xff]
    %v6566 = vld [vmem:[%s6564 + $0x8] sm:$0xff]
    %v6567 = vld [vmem:[%s6564 + $0x10] sm:$0xff]
    %v6568 = vld [vmem:[%s6564 + $0x18] sm:$0xff]
    %v6569 = vld [vmem:[%s6564 + $0x20] sm:$0xff]
    %v6570 = vld [vmem:[%s6564 + $0x28] sm:$0xff]
    %v6571 = vld [vmem:[%s6564 + $0x30] sm:$0xff]
    %v6572 = vld [vmem:[%s6564 + $0x38] sm:$0xff]
    %v6573 = vlaneseq
    %v6574 = vshrl.u32 %v6573, 7
    %v6575 = vsub.s32 0, %v6574
    %v6576 = vrot.slane %v3591, %v6575
    %v6578 = vsel %vm772, %v6548, 0
    %v6581 = vsel %vm772, %v6549, 0
    %v6584 = vsel %vm772, %v6550, 0
    %v6587 = vsel %vm772, %v6551, 0
    %v6590 = vsel %vm772, %v6552, 0
    %v6593 = vsel %vm772, %v6553, 0
    %v6596 = vsel %vm772, %v6554, 0
    %v6599 = vsel %vm772, %v6555, 0
    %v6602 = vsel %vm772, %v6556, 0
    %v6605 = vsel %vm772, %v6557, 0
    %v6608 = vsel %vm772, %v6558, 0
    %v6611 = vsel %vm772, %v6559, 0
    %v6614 = vsel %vm772, %v6560, 0
    %v6617 = vsel %vm772, %v6561, 0
    %v6620 = vsel %vm772, %v6562, 0
    %v6623 = vsel %vm772, %v6563, 0
    %6625 = vmatprep.subr.mxu0 0.0
    %6626 = vmatpush1.msra.mxu0 0.0
    %6627 = vmatprep.subr.mxu0 0.0
    %6628 = vmatpush1.msra.mxu0 0.0
    %6629 = vmatprep.subr.mxu0 0.0
    %6630 = vmatpush1.msra.mxu0 0.0
    %6631 = vmatprep.subr.mxu0 0.0
    %6632 = vmatpush1.msra.mxu0 0.0
    %6633 = vmatprep.subr.mxu0 0.0
    %6634 = vmatpush1.msra.mxu0 0.0
    %6635 = vmatprep.subr.mxu0 0.0
    %6636 = vmatpush1.msra.mxu0 0.0
    %6637 = vmatprep.subr.mxu0 0.0
    %6638 = vmatpush1.msra.mxu0 0.0
    %6639 = vmatprep.subr.mxu0 0.0
    %6640 = vmatpush1.msra.mxu0 0.0
    %6641 = vmatprep.subr.mxu0 0.0
    %6642 = vmatpush1.msra.mxu0 %v6572
    %6643 = vmatprep.subr.mxu0 0.0
    %6644 = vmatpush1.msra.mxu0 %v6571
    %6645 = vmatprep.subr.mxu0 0.0
    %6646 = vmatpush1.msra.mxu0 %v6570
    %6647 = vmatprep.subr.mxu0 0.0
    %6648 = vmatpush1.msra.mxu0 %v6569
    %6649 = vmatprep.subr.mxu0 0.0
    %6650 = vmatpush1.msra.mxu0 %v6568
    %6651 = vmatprep.subr.mxu0 0.0
    %6652 = vmatpush1.msra.mxu0 %v6567
    %6653 = vmatprep.subr.mxu0 0.0
    %6654 = vmatpush1.msra.mxu0 %v6566
    %6655 = vmatprep.subr.mxu0 0.0
    %6656 = vmatpush1.msra.mxu0 %v6565
    %6657 = vmatprep.subr.mxu0 0.0
    %6658 = vmatpush2.msra.mxu0 0.0
    %6659 = vmatprep.subr.mxu0 0.0
    %6660 = vmatpush2.msra.mxu0 0.0
    %6661 = vmatprep.subr.mxu0 0.0
    %6662 = vmatpush2.msra.mxu0 0.0
    %6663 = vmatprep.subr.mxu0 0.0
    %6664 = vmatpush2.msra.mxu0 0.0
    %6665 = vmatprep.subr.mxu0 0.0
    %6666 = vmatpush2.msra.mxu0 0.0
    %6667 = vmatprep.subr.mxu0 0.0
    %6668 = vmatpush2.msra.mxu0 0.0
    %6669 = vmatprep.subr.mxu0 0.0
    %6670 = vmatpush2.msra.mxu0 0.0
    %6671 = vmatprep.subr.mxu0 0.0
    %6672 = vmatpush2.msra.mxu0 0.0
    %6673 = vmatprep.subr.mxu0 0.0
    %6674 = vmatpush2.msra.mxu0 0.0
    %6675 = vmatprep.subr.mxu0 0.0
    %6676 = vmatpush2.msra.mxu0 0.0
    %6677 = vmatprep.subr.mxu0 0.0
    %6678 = vmatpush2.msra.mxu0 0.0
    %6679 = vmatprep.subr.mxu0 0.0
    %6680 = vmatpush2.msra.mxu0 0.0
    %6681 = vmatprep.subr.mxu0 0.0
    %6682 = vmatpush2.msra.mxu0 0.0
    %6683 = vmatprep.subr.mxu0 0.0
    %6684 = vmatpush2.msra.mxu0 0.0
    %6685 = vmatprep.subr.mxu0 0.0
    %6686 = vmatpush2.msra.mxu0 0.0
    %6687 = vmatprep.subr.mxu0 0.0
    %6688 = vmatpush2.msra.mxu0 0.0
    %6689 = vmatprep.mubr.f32.mxu0 0.0
    %6690 = vmatmul.mubr.f32.gmra.mxu0 %v6578
    %v6691 = vpop.f32.mrf.mxu0
    %v6692 = vadd.f32 %v6576, %v6691
    %v6693 = vpop.f32.mrf.mxu0
    %6694 = vmatprep.mubr.f32.mxu0 0.0
    %6695 = vmatmul.mubr.f32.gmra.mxu0 %v6581
    %v6696 = vpop.f32.mrf.mxu0
    %v6697 = vadd.f32 %v6576, %v6696
    %v6698 = vpop.f32.mrf.mxu0
    %6699 = vmatprep.mubr.f32.mxu0 0.0
    %6700 = vmatmul.mubr.f32.gmra.mxu0 %v6584
    %v6701 = vpop.f32.mrf.mxu0
    %v6702 = vadd.f32 %v6576, %v6701
    %v6703 = vpop.f32.mrf.mxu0
    %6704 = vmatprep.mubr.f32.mxu0 0.0
    %6705 = vmatmul.mubr.f32.gmra.mxu0 %v6587
    %v6706 = vpop.f32.mrf.mxu0
    %v6707 = vadd.f32 %v6576, %v6706
    %v6708 = vpop.f32.mrf.mxu0
    %6709 = vmatprep.mubr.f32.mxu0 0.0
    %6710 = vmatmul.mubr.f32.gmra.mxu0 %v6590
    %v6711 = vpop.f32.mrf.mxu0
    %v6712 = vadd.f32 %v6576, %v6711
    %v6713 = vpop.f32.mrf.mxu0
    %6714 = vmatprep.mubr.f32.mxu0 0.0
    %6715 = vmatmul.mubr.f32.gmra.mxu0 %v6593
    %v6716 = vpop.f32.mrf.mxu0
    %v6717 = vadd.f32 %v6576, %v6716
    %v6718 = vpop.f32.mrf.mxu0
    %6719 = vmatprep.mubr.f32.mxu0 0.0
    %6720 = vmatmul.mubr.f32.gmra.mxu0 %v6596
    %v6721 = vpop.f32.mrf.mxu0
    %v6722 = vadd.f32 %v6576, %v6721
    %v6723 = vpop.f32.mrf.mxu0
    %6724 = vmatprep.mubr.f32.mxu0 0.0
    %6725 = vmatmul.mubr.f32.gmra.mxu0 %v6599
    %v6726 = vpop.f32.mrf.mxu0
    %v6727 = vadd.f32 %v6576, %v6726
    %v6728 = vpop.f32.mrf.mxu0
    %6729 = vmatprep.mubr.f32.mxu0 0.0
    %6730 = vmatmul.mubr.f32.gmra.mxu0 %v6602
    %v6731 = vpop.f32.mrf.mxu0
    %v6732 = vadd.f32 %v6576, %v6731
    %v6733 = vpop.f32.mrf.mxu0
    %6734 = vmatprep.mubr.f32.mxu0 0.0
    %6735 = vmatmul.mubr.f32.gmra.mxu0 %v6605
    %v6736 = vpop.f32.mrf.mxu0
    %v6737 = vadd.f32 %v6576, %v6736
    %v6738 = vpop.f32.mrf.mxu0
    %6739 = vmatprep.mubr.f32.mxu0 0.0
    %6740 = vmatmul.mubr.f32.gmra.mxu0 %v6608
    %v6741 = vpop.f32.mrf.mxu0
    %v6742 = vadd.f32 %v6576, %v6741
    %v6743 = vpop.f32.mrf.mxu0
    %6744 = vmatprep.mubr.f32.mxu0 0.0
    %6745 = vmatmul.mubr.f32.gmra.mxu0 %v6611
    %v6746 = vpop.f32.mrf.mxu0
    %v6747 = vadd.f32 %v6576, %v6746
    %v6748 = vpop.f32.mrf.mxu0
    %6749 = vmatprep.mubr.f32.mxu0 0.0
    %6750 = vmatmul.mubr.f32.gmra.mxu0 %v6614
    %v6751 = vpop.f32.mrf.mxu0
    %v6752 = vadd.f32 %v6576, %v6751
    %v6753 = vpop.f32.mrf.mxu0
    %6754 = vmatprep.mubr.f32.mxu0 0.0
    %6755 = vmatmul.mubr.f32.gmra.mxu0 %v6617
    %v6756 = vpop.f32.mrf.mxu0
    %v6757 = vadd.f32 %v6576, %v6756
    %v6758 = vpop.f32.mrf.mxu0
    %6759 = vmatprep.mubr.f32.mxu0 0.0
    %6760 = vmatmul.mubr.f32.gmra.mxu0 %v6620
    %v6761 = vpop.f32.mrf.mxu0
    %v6762 = vadd.f32 %v6576, %v6761
    %v6763 = vpop.f32.mrf.mxu0
    %6764 = vmatprep.mubr.f32.mxu0 0.0
    %6765 = vmatmul.mubr.f32.gmra.mxu0 %v6623
    %v6766 = vpop.f32.mrf.mxu0
    %v6767 = vadd.f32 %v6576, %v6766
    %v6768 = vpop.f32.mrf.mxu0
    %6769 = vdwg.mxu0
    %v6770 = vadd.f32 %v6692, %v6330
    %v6771 = vadd.f32 %v6697, %v6331
    %v6772 = vadd.f32 %v6702, %v6332
    %v6773 = vadd.f32 %v6707, %v6333
    %v6774 = vadd.f32 %v6712, %v6334
    %v6775 = vadd.f32 %v6717, %v6335
    %v6776 = vadd.f32 %v6722, %v6336
    %v6777 = vadd.f32 %v6727, %v6337
    %v6778 = vadd.f32 %v6732, %v6338
    %v6779 = vadd.f32 %v6737, %v6339
    %v6780 = vadd.f32 %v6742, %v6340
    %v6781 = vadd.f32 %v6747, %v6341
    %v6782 = vadd.f32 %v6752, %v6342
    %v6783 = vadd.f32 %v6757, %v6343
    %v6784 = vadd.f32 %v6762, %v6344
    %v6785 = vadd.f32 %v6767, %v6345
    %v6786 = vsel %vm125, %v6770, 0.0
    %6787 = vadd.xlane.f32.xlu0 %v6786
    %v6788 = vpop.xlane.xlu0 %6787
    %v6789 = vsel %vm125, %v6771, 0.0
    %6790 = vadd.xlane.f32.xlu0 %v6789
    %v6791 = vpop.xlane.xlu0 %6790
    %v6792 = vsel %vm125, %v6772, 0.0
    %6793 = vadd.xlane.f32.xlu0 %v6792
    %v6794 = vpop.xlane.xlu0 %6793
    %v6795 = vsel %vm125, %v6773, 0.0
    %6796 = vadd.xlane.f32.xlu0 %v6795
    %v6797 = vpop.xlane.xlu0 %6796
    %v6798 = vsel %vm125, %v6774, 0.0
    %6799 = vadd.xlane.f32.xlu0 %v6798
    %v6800 = vpop.xlane.xlu0 %6799
    %v6801 = vsel %vm125, %v6775, 0.0
    %6802 = vadd.xlane.f32.xlu0 %v6801
    %v6803 = vpop.xlane.xlu0 %6802
    %v6804 = vsel %vm125, %v6776, 0.0
    %6805 = vadd.xlane.f32.xlu0 %v6804
    %v6806 = vpop.xlane.xlu0 %6805
    %v6807 = vsel %vm125, %v6777, 0.0
    %6808 = vadd.xlane.f32.xlu0 %v6807
    %v6809 = vpop.xlane.xlu0 %6808
    %v6810 = vsel %vm125, %v6778, 0.0
    %6811 = vadd.xlane.f32.xlu0 %v6810
    %v6812 = vpop.xlane.xlu0 %6811
    %v6813 = vsel %vm125, %v6779, 0.0
    %6814 = vadd.xlane.f32.xlu0 %v6813
    %v6815 = vpop.xlane.xlu0 %6814
    %v6816 = vsel %vm125, %v6780, 0.0
    %6817 = vadd.xlane.f32.xlu0 %v6816
    %v6818 = vpop.xlane.xlu0 %6817
    %v6819 = vsel %vm125, %v6781, 0.0
    %6820 = vadd.xlane.f32.xlu0 %v6819
    %v6821 = vpop.xlane.xlu0 %6820
    %v6822 = vsel %vm125, %v6782, 0.0
    %6823 = vadd.xlane.f32.xlu0 %v6822
    %v6824 = vpop.xlane.xlu0 %6823
    %v6825 = vsel %vm125, %v6783, 0.0
    %6826 = vadd.xlane.f32.xlu0 %v6825
    %v6827 = vpop.xlane.xlu0 %6826
    %v6828 = vsel %vm125, %v6784, 0.0
    %6829 = vadd.xlane.f32.xlu0 %v6828
    %v6830 = vpop.xlane.xlu0 %6829
    %v6831 = vsel %vm125, %v6785, 0.0
    %6832 = vadd.xlane.f32.xlu0 %v6831
    %v6833 = vpop.xlane.xlu0 %6832
    %v6834 = vmul.f32 %v6788, %v2698
    %v6835 = vmul.f32 %v6791, %v2698
    %v6836 = vmul.f32 %v6794, %v2698
    %v6837 = vmul.f32 %v6797, %v2698
    %v6838 = vmul.f32 %v6800, %v2698
    %v6839 = vmul.f32 %v6803, %v2698
    %v6840 = vmul.f32 %v6806, %v2698
    %v6841 = vmul.f32 %v6809, %v2698
    %v6842 = vmul.f32 %v6812, %v2698
    %v6843 = vmul.f32 %v6815, %v2698
    %v6844 = vmul.f32 %v6818, %v2698
    %v6845 = vmul.f32 %v6821, %v2698
    %v6846 = vmul.f32 %v6824, %v2698
    %v6847 = vmul.f32 %v6827, %v2698
    %v6848 = vmul.f32 %v6830, %v2698
    %v6849 = vmul.f32 %v6833, %v2698
    %v6850 = vsub.f32 %v6770, %v6834
    %v6851 = vsub.f32 %v6771, %v6835
    %v6852 = vsub.f32 %v6772, %v6836
    %v6853 = vsub.f32 %v6773, %v6837
    %v6854 = vsub.f32 %v6774, %v6838
    %v6855 = vsub.f32 %v6775, %v6839
    %v6856 = vsub.f32 %v6776, %v6840
    %v6857 = vsub.f32 %v6777, %v6841
    %v6858 = vsub.f32 %v6778, %v6842
    %v6859 = vsub.f32 %v6779, %v6843
    %v6860 = vsub.f32 %v6780, %v6844
    %v6861 = vsub.f32 %v6781, %v6845
    %v6862 = vsub.f32 %v6782, %v6846
    %v6863 = vsub.f32 %v6783, %v6847
    %v6864 = vsub.f32 %v6784, %v6848
    %v6865 = vsub.f32 %v6785, %v6849
    %v6866 = vmul.f32 %v6850, %v6850
    %v6867 = vmul.f32 %v6851, %v6851
    %v6868 = vmul.f32 %v6852, %v6852
    %v6869 = vmul.f32 %v6853, %v6853
    %v6870 = vmul.f32 %v6854, %v6854
    %v6871 = vmul.f32 %v6855, %v6855
    %v6872 = vmul.f32 %v6856, %v6856
    %v6873 = vmul.f32 %v6857, %v6857
    %v6874 = vmul.f32 %v6858, %v6858
    %v6875 = vmul.f32 %v6859, %v6859
    %v6876 = vmul.f32 %v6860, %v6860
    %v6877 = vmul.f32 %v6861, %v6861
    %v6878 = vmul.f32 %v6862, %v6862
    %v6879 = vmul.f32 %v6863, %v6863
    %v6880 = vmul.f32 %v6864, %v6864
    %v6881 = vmul.f32 %v6865, %v6865
    %v6882 = vsel %vm125, %v6866, 0.0
    %6883 = vadd.xlane.f32.xlu0 %v6882
    %v6884 = vpop.xlane.xlu0 %6883
    %v6885 = vsel %vm125, %v6867, 0.0
    %6886 = vadd.xlane.f32.xlu0 %v6885
    %v6887 = vpop.xlane.xlu0 %6886
    %v6888 = vsel %vm125, %v6868, 0.0
    %6889 = vadd.xlane.f32.xlu0 %v6888
    %v6890 = vpop.xlane.xlu0 %6889
    %v6891 = vsel %vm125, %v6869, 0.0
    %6892 = vadd.xlane.f32.xlu0 %v6891
    %v6893 = vpop.xlane.xlu0 %6892
    %v6894 = vsel %vm125, %v6870, 0.0
    %6895 = vadd.xlane.f32.xlu0 %v6894
    %v6896 = vpop.xlane.xlu0 %6895
    %v6897 = vsel %vm125, %v6871, 0.0
    %6898 = vadd.xlane.f32.xlu0 %v6897
    %v6899 = vpop.xlane.xlu0 %6898
    %v6900 = vsel %vm125, %v6872, 0.0
    %6901 = vadd.xlane.f32.xlu0 %v6900
    %v6902 = vpop.xlane.xlu0 %6901
    %v6903 = vsel %vm125, %v6873, 0.0
    %6904 = vadd.xlane.f32.xlu0 %v6903
    %v6905 = vpop.xlane.xlu0 %6904
    %v6906 = vsel %vm125, %v6874, 0.0
    %6907 = vadd.xlane.f32.xlu0 %v6906
    %v6908 = vpop.xlane.xlu0 %6907
    %v6909 = vsel %vm125, %v6875, 0.0
    %6910 = vadd.xlane.f32.xlu0 %v6909
    %v6911 = vpop.xlane.xlu0 %6910
    %v6912 = vsel %vm125, %v6876, 0.0
    %6913 = vadd.xlane.f32.xlu0 %v6912
    %v6914 = vpop.xlane.xlu0 %6913
    %v6915 = vsel %vm125, %v6877, 0.0
    %6916 = vadd.xlane.f32.xlu0 %v6915
    %v6917 = vpop.xlane.xlu0 %6916
    %v6918 = vsel %vm125, %v6878, 0.0
    %6919 = vadd.xlane.f32.xlu0 %v6918
    %v6920 = vpop.xlane.xlu0 %6919
    %v6921 = vsel %vm125, %v6879, 0.0
    %6922 = vadd.xlane.f32.xlu0 %v6921
    %v6923 = vpop.xlane.xlu0 %6922
    %v6924 = vsel %vm125, %v6880, 0.0
    %6925 = vadd.xlane.f32.xlu0 %v6924
    %v6926 = vpop.xlane.xlu0 %6925
    %v6927 = vsel %vm125, %v6881, 0.0
    %6928 = vadd.xlane.f32.xlu0 %v6927
    %v6929 = vpop.xlane.xlu0 %6928
    %v6930 = vmul.f32 %v6884, %v2698
    %v6931 = vmul.f32 %v6887, %v2698
    %v6932 = vmul.f32 %v6890, %v2698
    %v6933 = vmul.f32 %v6893, %v2698
    %v6934 = vmul.f32 %v6896, %v2698
    %v6935 = vmul.f32 %v6899, %v2698
    %v6936 = vmul.f32 %v6902, %v2698
    %v6937 = vmul.f32 %v6905, %v2698
    %v6938 = vmul.f32 %v6908, %v2698
    %v6939 = vmul.f32 %v6911, %v2698
    %v6940 = vmul.f32 %v6914, %v2698
    %v6941 = vmul.f32 %v6917, %v2698
    %v6942 = vmul.f32 %v6920, %v2698
    %v6943 = vmul.f32 %v6923, %v2698
    %v6944 = vmul.f32 %v6926, %v2698
    %v6945 = vmul.f32 %v6929, %v2698
    %v6946 = vadd.f32 %v6930, 1e-12
    %v6947 = vadd.f32 %v6931, 1e-12
    %v6948 = vadd.f32 %v6932, 1e-12
    %v6949 = vadd.f32 %v6933, 1e-12
    %v6950 = vadd.f32 %v6934, 1e-12
    %v6951 = vadd.f32 %v6935, 1e-12
    %v6952 = vadd.f32 %v6936, 1e-12
    %v6953 = vadd.f32 %v6937, 1e-12
    %v6954 = vadd.f32 %v6938, 1e-12
    %v6955 = vadd.f32 %v6939, 1e-12
    %v6956 = vadd.f32 %v6940, 1e-12
    %v6957 = vadd.f32 %v6941, 1e-12
    %v6958 = vadd.f32 %v6942, 1e-12
    %v6959 = vadd.f32 %v6943, 1e-12
    %v6960 = vadd.f32 %v6944, 1e-12
    %v6961 = vadd.f32 %v6945, 1e-12
    %v6962 = vrsqrt.pop %v6946
    %v6963 = vrsqrt.pop %v6947
    %v6964 = vrsqrt.pop %v6948
    %v6965 = vrsqrt.pop %v6949
    %v6966 = vrsqrt.pop %v6950
    %v6967 = vrsqrt.pop %v6951
    %v6968 = vrsqrt.pop %v6952
    %v6969 = vrsqrt.pop %v6953
    %v6970 = vrsqrt.pop %v6954
    %v6971 = vrsqrt.pop %v6955
    %v6972 = vrsqrt.pop %v6956
    %v6973 = vrsqrt.pop %v6957
    %v6974 = vrsqrt.pop %v6958
    %v6975 = vrsqrt.pop %v6959
    %v6976 = vrsqrt.pop %v6960
    %v6977 = vrsqrt.pop %v6961
    %v6978 = vmul.f32 %v6850, %v6962
    %v6979 = vmul.f32 %v6851, %v6963
    %v6980 = vmul.f32 %v6852, %v6964
    %v6981 = vmul.f32 %v6853, %v6965
    %v6982 = vmul.f32 %v6854, %v6966
    %v6983 = vmul.f32 %v6855, %v6967
    %v6984 = vmul.f32 %v6856, %v6968
    %v6985 = vmul.f32 %v6857, %v6969
    %v6986 = vmul.f32 %v6858, %v6970
    %v6987 = vmul.f32 %v6859, %v6971
    %v6988 = vmul.f32 %v6860, %v6972
    %v6989 = vmul.f32 %v6861, %v6973
    %v6990 = vmul.f32 %v6862, %v6974
    %v6991 = vmul.f32 %v6863, %v6975
    %v6992 = vmul.f32 %v6864, %v6976
    %v6993 = vmul.f32 %v6865, %v6977
    %v6994 = vlaneseq
    %v6995 = vshrl.u32 %v6994, 7
    %v6996 = vsub.s32 0, %v6995
    %v6997 = vrot.slane %v3592, %v6996
    %v6998 = vmul.f32 %v6997, %v6978
    %v6999 = vmul.f32 %v6997, %v6979
    %v7000 = vmul.f32 %v6997, %v6980
    %v7001 = vmul.f32 %v6997, %v6981
    %v7002 = vmul.f32 %v6997, %v6982
    %v7003 = vmul.f32 %v6997, %v6983
    %v7004 = vmul.f32 %v6997, %v6984
    %v7005 = vmul.f32 %v6997, %v6985
    %v7006 = vmul.f32 %v6997, %v6986
    %v7007 = vmul.f32 %v6997, %v6987
    %v7008 = vmul.f32 %v6997, %v6988
    %v7009 = vmul.f32 %v6997, %v6989
    %v7010 = vmul.f32 %v6997, %v6990
    %v7011 = vmul.f32 %v6997, %v6991
    %v7012 = vmul.f32 %v6997, %v6992
    %v7013 = vmul.f32 %v6997, %v6993
    %v7014 = vlaneseq
    %v7015 = vshrl.u32 %v7014, 7
    %v7016 = vsub.s32 0, %v7015
    %v7017 = vrot.slane %v3593, %v7016
    %v7018 = vadd.f32 %v6998, %v7017
    %v7019 = vadd.f32 %v6999, %v7017
    %v7020 = vadd.f32 %v7000, %v7017
    %v7021 = vadd.f32 %v7001, %v7017
    %v7022 = vadd.f32 %v7002, %v7017
    %v7023 = vadd.f32 %v7003, %v7017
    %v7024 = vadd.f32 %v7004, %v7017
    %v7025 = vadd.f32 %v7005, %v7017
    %v7026 = vadd.f32 %v7006, %v7017
    %v7027 = vadd.f32 %v7007, %v7017
    %v7028 = vadd.f32 %v7008, %v7017
    %v7029 = vadd.f32 %v7009, %v7017
    %v7030 = vadd.f32 %v7010, %v7017
    %v7031 = vadd.f32 %v7011, %v7017
    %v7032 = vadd.f32 %v7012, %v7017
    %v7033 = vadd.f32 %v7013, %v7017
    %v7034 = vld [vmem:[%s9] sm:$0x1]
    %v7035 = vld [vmem:[%s9 + $0x1] sm:$0x1]
    %v7036 = vld [vmem:[%s9 + $0x2] sm:$0x1]
    %v7037 = vld [vmem:[%s9 + $0x3] sm:$0x1]
    %v7038 = vld [vmem:[%s8] sm:$0xff]
    %v7039 = vld [vmem:[%s8 + $0x8] sm:$0xff]
    %v7040 = vld [vmem:[%s8 + $0x10] sm:$0xff]
    %v7041 = vld [vmem:[%s8 + $0x18] sm:$0xff]
    %v7042 = vlaneseq
    %v7043 = vshrl.u32 %v7042, 7
    %v7044 = vsub.s32 0, %v7043
    %v7045 = vrot.slane %v7034, %v7044
    %v7047 = vsel %vm125, %v7018, 0
    %v7050 = vsel %vm125, %v7019, 0
    %v7053 = vsel %vm125, %v7020, 0
    %v7056 = vsel %vm125, %v7021, 0
    %v7059 = vsel %vm125, %v7022, 0
    %v7062 = vsel %vm125, %v7023, 0
    %v7065 = vsel %vm125, %v7024, 0
    %v7068 = vsel %vm125, %v7025, 0
    %v7071 = vsel %vm125, %v7026, 0
    %v7074 = vsel %vm125, %v7027, 0
    %v7077 = vsel %vm125, %v7028, 0
    %v7080 = vsel %vm125, %v7029, 0
    %v7083 = vsel %vm125, %v7030, 0
    %v7086 = vsel %vm125, %v7031, 0
    %v7089 = vsel %vm125, %v7032, 0
    %v7092 = vsel %vm125, %v7033, 0
    %7094 = vmatprep.subr.mxu0 0.0
    %7095 = vmatpush1.msra.mxu0 0.0
    %7096 = vmatprep.subr.mxu0 0.0
    %7097 = vmatpush1.msra.mxu0 0.0
    %7098 = vmatprep.subr.mxu0 0.0
    %7099 = vmatpush1.msra.mxu0 0.0
    %7100 = vmatprep.subr.mxu0 0.0
    %7101 = vmatpush1.msra.mxu0 0.0
    %7102 = vmatprep.subr.mxu0 0.0
    %7103 = vmatpush1.msra.mxu0 0.0
    %7104 = vmatprep.subr.mxu0 0.0
    %7105 = vmatpush1.msra.mxu0 0.0
    %7106 = vmatprep.subr.mxu0 0.0
    %7107 = vmatpush1.msra.mxu0 0.0
    %7108 = vmatprep.subr.mxu0 0.0
    %7109 = vmatpush1.msra.mxu0 0.0
    %7110 = vmatprep.subr.mxu0 0.0
    %7111 = vmatpush1.msra.mxu0 0.0
    %7112 = vmatprep.subr.mxu0 0.0
    %7113 = vmatpush1.msra.mxu0 0.0
    %7114 = vmatprep.subr.mxu0 0.0
    %7115 = vmatpush1.msra.mxu0 0.0
    %7116 = vmatprep.subr.mxu0 0.0
    %7117 = vmatpush1.msra.mxu0 0.0
    %7118 = vmatprep.subr.mxu0 0.0
    %7119 = vmatpush1.msra.mxu0 %v7041
    %7120 = vmatprep.subr.mxu0 0.0
    %7121 = vmatpush1.msra.mxu0 %v7040
    %7122 = vmatprep.subr.mxu0 0.0
    %7123 = vmatpush1.msra.mxu0 %v7039
    %7124 = vmatprep.subr.mxu0 0.0
    %7125 = vmatpush1.msra.mxu0 %v7038
    %7126 = vmatprep.subr.mxu0 0.0
    %7127 = vmatpush2.msra.mxu0 0.0
    %7128 = vmatprep.subr.mxu0 0.0
    %7129 = vmatpush2.msra.mxu0 0.0
    %7130 = vmatprep.subr.mxu0 0.0
    %7131 = vmatpush2.msra.mxu0 0.0
    %7132 = vmatprep.subr.mxu0 0.0
    %7133 = vmatpush2.msra.mxu0 0.0
    %7134 = vmatprep.subr.mxu0 0.0
    %7135 = vmatpush2.msra.mxu0 0.0
    %7136 = vmatprep.subr.mxu0 0.0
    %7137 = vmatpush2.msra.mxu0 0.0
    %7138 = vmatprep.subr.mxu0 0.0
    %7139 = vmatpush2.msra.mxu0 0.0
    %7140 = vmatprep.subr.mxu0 0.0
    %7141 = vmatpush2.msra.mxu0 0.0
    %7142 = vmatprep.subr.mxu0 0.0
    %7143 = vmatpush2.msra.mxu0 0.0
    %7144 = vmatprep.subr.mxu0 0.0
    %7145 = vmatpush2.msra.mxu0 0.0
    %7146 = vmatprep.subr.mxu0 0.0
    %7147 = vmatpush2.msra.mxu0 0.0
    %7148 = vmatprep.subr.mxu0 0.0
    %7149 = vmatpush2.msra.mxu0 0.0
    %7150 = vmatprep.subr.mxu0 0.0
    %7151 = vmatpush2.msra.mxu0 0.0
    %7152 = vmatprep.subr.mxu0 0.0
    %7153 = vmatpush2.msra.mxu0 0.0
    %7154 = vmatprep.subr.mxu0 0.0
    %7155 = vmatpush2.msra.mxu0 0.0
    %7156 = vmatprep.subr.mxu0 0.0
    %7157 = vmatpush2.msra.mxu0 0.0
    %7158 = vmatprep.mubr.f32.mxu0 0.0
    %7159 = vmatmul.mubr.f32.gmra.mxu0 %v7047
    %v7160 = vpop.f32.mrf.mxu0
    %v7161 = vadd.f32 %v7045, %v7160
    %v7162 = vpop.f32.mrf.mxu0
    %7163 = vmatprep.mubr.f32.mxu0 0.0
    %7164 = vmatmul.mubr.f32.gmra.mxu0 %v7050
    %v7165 = vpop.f32.mrf.mxu0
    %v7166 = vadd.f32 %v7045, %v7165
    %v7167 = vpop.f32.mrf.mxu0
    %7168 = vmatprep.mubr.f32.mxu0 0.0
    %7169 = vmatmul.mubr.f32.gmra.mxu0 %v7053
    %v7170 = vpop.f32.mrf.mxu0
    %v7171 = vadd.f32 %v7045, %v7170
    %v7172 = vpop.f32.mrf.mxu0
    %7173 = vmatprep.mubr.f32.mxu0 0.0
    %7174 = vmatmul.mubr.f32.gmra.mxu0 %v7056
    %v7175 = vpop.f32.mrf.mxu0
    %v7176 = vadd.f32 %v7045, %v7175
    %v7177 = vpop.f32.mrf.mxu0
    %7178 = vmatprep.mubr.f32.mxu0 0.0
    %7179 = vmatmul.mubr.f32.gmra.mxu0 %v7059
    %v7180 = vpop.f32.mrf.mxu0
    %v7181 = vadd.f32 %v7045, %v7180
    %v7182 = vpop.f32.mrf.mxu0
    %7183 = vmatprep.mubr.f32.mxu0 0.0
    %7184 = vmatmul.mubr.f32.gmra.mxu0 %v7062
    %v7185 = vpop.f32.mrf.mxu0
    %v7186 = vadd.f32 %v7045, %v7185
    %v7187 = vpop.f32.mrf.mxu0
    %7188 = vmatprep.mubr.f32.mxu0 0.0
    %7189 = vmatmul.mubr.f32.gmra.mxu0 %v7065
    %v7190 = vpop.f32.mrf.mxu0
    %v7191 = vadd.f32 %v7045, %v7190
    %v7192 = vpop.f32.mrf.mxu0
    %7193 = vmatprep.mubr.f32.mxu0 0.0
    %7194 = vmatmul.mubr.f32.gmra.mxu0 %v7068
    %v7195 = vpop.f32.mrf.mxu0
    %v7196 = vadd.f32 %v7045, %v7195
    %v7197 = vpop.f32.mrf.mxu0
    %7198 = vmatprep.mubr.f32.mxu0 0.0
    %7199 = vmatmul.mubr.f32.gmra.mxu0 %v7071
    %v7200 = vpop.f32.mrf.mxu0
    %v7201 = vadd.f32 %v7045, %v7200
    %v7202 = vpop.f32.mrf.mxu0
    %7203 = vmatprep.mubr.f32.mxu0 0.0
    %7204 = vmatmul.mubr.f32.gmra.mxu0 %v7074
    %v7205 = vpop.f32.mrf.mxu0
    %v7206 = vadd.f32 %v7045, %v7205
    %v7207 = vpop.f32.mrf.mxu0
    %7208 = vmatprep.mubr.f32.mxu0 0.0
    %7209 = vmatmul.mubr.f32.gmra.mxu0 %v7077
    %v7210 = vpop.f32.mrf.mxu0
    %v7211 = vadd.f32 %v7045, %v7210
    %v7212 = vpop.f32.mrf.mxu0
    %7213 = vmatprep.mubr.f32.mxu0 0.0
    %7214 = vmatmul.mubr.f32.gmra.mxu0 %v7080
    %v7215 = vpop.f32.mrf.mxu0
    %v7216 = vadd.f32 %v7045, %v7215
    %v7217 = vpop.f32.mrf.mxu0
    %7218 = vmatprep.mubr.f32.mxu0 0.0
    %7219 = vmatmul.mubr.f32.gmra.mxu0 %v7083
    %v7220 = vpop.f32.mrf.mxu0
    %v7221 = vadd.f32 %v7045, %v7220
    %v7222 = vpop.f32.mrf.mxu0
    %7223 = vmatprep.mubr.f32.mxu0 0.0
    %7224 = vmatmul.mubr.f32.gmra.mxu0 %v7086
    %v7225 = vpop.f32.mrf.mxu0
    %v7226 = vadd.f32 %v7045, %v7225
    %v7227 = vpop.f32.mrf.mxu0
    %7228 = vmatprep.mubr.f32.mxu0 0.0
    %7229 = vmatmul.mubr.f32.gmra.mxu0 %v7089
    %v7230 = vpop.f32.mrf.mxu0
    %v7231 = vadd.f32 %v7045, %v7230
    %v7232 = vpop.f32.mrf.mxu0
    %7233 = vmatprep.mubr.f32.mxu0 0.0
    %7234 = vmatmul.mubr.f32.gmra.mxu0 %v7092
    %v7235 = vpop.f32.mrf.mxu0
    %v7236 = vadd.f32 %v7045, %v7235
    %v7237 = vpop.f32.mrf.mxu0
    %7238 = vdwg.mxu0
    %v7239 = vtanh.pop %v7161
    %v7240 = vtanh.pop %v7166
    %v7241 = vtanh.pop %v7171
    %v7242 = vtanh.pop %v7176
    %v7243 = vtanh.pop %v7181
    %v7244 = vtanh.pop %v7186
    %v7245 = vtanh.pop %v7191
    %v7246 = vtanh.pop %v7196
    %v7247 = vtanh.pop %v7201
    %v7248 = vtanh.pop %v7206
    %v7249 = vtanh.pop %v7211
    %v7250 = vtanh.pop %v7216
    %v7251 = vtanh.pop %v7221
    %v7252 = vtanh.pop %v7226
    %v7253 = vtanh.pop %v7231
    %v7254 = vtanh.pop %v7236
    %v7256 = vrot.slane %v7239, 1
    %7257 = vrot.lane.b32.xlu0 %v7256, 32
    %v7258 = vpop.permute.xlu0 %7257
    %v7260 = vsel %vm125, %v7239, %v7258
    %v7262 = vrot.slane %v7240, 1
    %7263 = vrot.lane.b32.xlu0 %v7262, 32
    %v7264 = vpop.permute.xlu0 %7263
    %v7266 = vsel %vm125, %v7240, %v7264
    %v7268 = vrot.slane %v7241, 1
    %7269 = vrot.lane.b32.xlu0 %v7268, 32
    %v7270 = vpop.permute.xlu0 %7269
    %v7272 = vsel %vm125, %v7241, %v7270
    %v7274 = vrot.slane %v7242, 1
    %7275 = vrot.lane.b32.xlu0 %v7274, 32
    %v7276 = vpop.permute.xlu0 %7275
    %v7278 = vsel %vm125, %v7242, %v7276
    %v7280 = vrot.slane %v7243, 1
    %7281 = vrot.lane.b32.xlu0 %v7280, 32
    %v7282 = vpop.permute.xlu0 %7281
    %v7284 = vsel %vm125, %v7243, %v7282
    %v7286 = vrot.slane %v7244, 1
    %7287 = vrot.lane.b32.xlu0 %v7286, 32
    %v7288 = vpop.permute.xlu0 %7287
    %v7290 = vsel %vm125, %v7244, %v7288
    %v7292 = vrot.slane %v7245, 1
    %7293 = vrot.lane.b32.xlu0 %v7292, 32
    %v7294 = vpop.permute.xlu0 %7293
    %v7296 = vsel %vm125, %v7245, %v7294
    %v7298 = vrot.slane %v7246, 1
    %7299 = vrot.lane.b32.xlu0 %v7298, 32
    %v7300 = vpop.permute.xlu0 %7299
    %v7302 = vsel %vm125, %v7246, %v7300
    %v7304 = vrot.slane %v7260, 2
    %7305 = vrot.lane.b32.xlu0 %v7304, 64
    %v7306 = vpop.permute.xlu0 %7305
    %v7308 = vsel %vm772, %v7260, %v7306
    %v7310 = vrot.slane %v7266, 2
    %7311 = vrot.lane.b32.xlu0 %v7310, 64
    %v7312 = vpop.permute.xlu0 %7311
    %v7314 = vsel %vm772, %v7266, %v7312
    %v7316 = vrot.slane %v7272, 2
    %7317 = vrot.lane.b32.xlu0 %v7316, 64
    %v7318 = vpop.permute.xlu0 %7317
    %v7320 = vsel %vm772, %v7272, %v7318
    %v7322 = vrot.slane %v7278, 2
    %7323 = vrot.lane.b32.xlu0 %v7322, 64
    %v7324 = vpop.permute.xlu0 %7323
    %v7326 = vsel %vm772, %v7278, %v7324
    %v7328 = vrot.slane %v7284, 2
    %7329 = vrot.lane.b32.xlu0 %v7328, 64
    %v7330 = vpop.permute.xlu0 %7329
    %v7332 = vsel %vm772, %v7284, %v7330
    %v7334 = vrot.slane %v7290, 2
    %7335 = vrot.lane.b32.xlu0 %v7334, 64
    %v7336 = vpop.permute.xlu0 %7335
    %v7338 = vsel %vm772, %v7290, %v7336
    %v7340 = vrot.slane %v7296, 2
    %7341 = vrot.lane.b32.xlu0 %v7340, 64
    %v7342 = vpop.permute.xlu0 %7341
    %v7344 = vsel %vm772, %v7296, %v7342
    %v7346 = vrot.slane %v7302, 2
    %7347 = vrot.lane.b32.xlu0 %v7346, 64
    %v7348 = vpop.permute.xlu0 %7347
    %v7350 = vsel %vm772, %v7302, %v7348
    %v7352 = vrot.slane %v7308, 4
    %v7355 = vrot.slane %v7314, 4
    %v7358 = vrot.slane %v7320, 4
    %v7361 = vrot.slane %v7326, 4
    %v7364 = vrot.slane %v7332, 4
    %v7367 = vrot.slane %v7338, 4
    %v7370 = vrot.slane %v7344, 4
    %v7373 = vrot.slane %v7350, 4
    %v7376 = vrot.slane %v7247, 1
    %7377 = vrot.lane.b32.xlu0 %v7376, 32
    %v7378 = vpop.permute.xlu0 %7377
    %v7380 = vsel %vm125, %v7247, %v7378
    %v7382 = vrot.slane %v7248, 1
    %7383 = vrot.lane.b32.xlu0 %v7382, 32
    %v7384 = vpop.permute.xlu0 %7383
    %v7386 = vsel %vm125, %v7248, %v7384
    %v7388 = vrot.slane %v7249, 1
    %7389 = vrot.lane.b32.xlu0 %v7388, 32
    %v7390 = vpop.permute.xlu0 %7389
    %v7392 = vsel %vm125, %v7249, %v7390
    %v7394 = vrot.slane %v7250, 1
    %7395 = vrot.lane.b32.xlu0 %v7394, 32
    %v7396 = vpop.permute.xlu0 %7395
    %v7398 = vsel %vm125, %v7250, %v7396
    %v7400 = vrot.slane %v7251, 1
    %7401 = vrot.lane.b32.xlu0 %v7400, 32
    %v7402 = vpop.permute.xlu0 %7401
    %v7404 = vsel %vm125, %v7251, %v7402
    %v7406 = vrot.slane %v7252, 1
    %7407 = vrot.lane.b32.xlu0 %v7406, 32
    %v7408 = vpop.permute.xlu0 %7407
    %v7410 = vsel %vm125, %v7252, %v7408
    %v7412 = vrot.slane %v7253, 1
    %7413 = vrot.lane.b32.xlu0 %v7412, 32
    %v7414 = vpop.permute.xlu0 %7413
    %v7416 = vsel %vm125, %v7253, %v7414
    %v7418 = vrot.slane %v7254, 1
    %7419 = vrot.lane.b32.xlu0 %v7418, 32
    %v7420 = vpop.permute.xlu0 %7419
    %v7422 = vsel %vm125, %v7254, %v7420
    %v7424 = vrot.slane %v7380, 2
    %7425 = vrot.lane.b32.xlu0 %v7424, 64
    %v7426 = vpop.permute.xlu0 %7425
    %v7428 = vsel %vm772, %v7380, %v7426
    %v7430 = vrot.slane %v7386, 2
    %7431 = vrot.lane.b32.xlu0 %v7430, 64
    %v7432 = vpop.permute.xlu0 %7431
    %v7434 = vsel %vm772, %v7386, %v7432
    %v7436 = vrot.slane %v7392, 2
    %7437 = vrot.lane.b32.xlu0 %v7436, 64
    %v7438 = vpop.permute.xlu0 %7437
    %v7440 = vsel %vm772, %v7392, %v7438
    %v7442 = vrot.slane %v7398, 2
    %7443 = vrot.lane.b32.xlu0 %v7442, 64
    %v7444 = vpop.permute.xlu0 %7443
    %v7446 = vsel %vm772, %v7398, %v7444
    %v7448 = vrot.slane %v7404, 2
    %7449 = vrot.lane.b32.xlu0 %v7448, 64
    %v7450 = vpop.permute.xlu0 %7449
    %v7452 = vsel %vm772, %v7404, %v7450
    %v7454 = vrot.slane %v7410, 2
    %7455 = vrot.lane.b32.xlu0 %v7454, 64
    %v7456 = vpop.permute.xlu0 %7455
    %v7458 = vsel %vm772, %v7410, %v7456
    %v7460 = vrot.slane %v7416, 2
    %7461 = vrot.lane.b32.xlu0 %v7460, 64
    %v7462 = vpop.permute.xlu0 %7461
    %v7464 = vsel %vm772, %v7416, %v7462
    %v7466 = vrot.slane %v7422, 2
    %7467 = vrot.lane.b32.xlu0 %v7466, 64
    %v7468 = vpop.permute.xlu0 %7467
    %v7470 = vsel %vm772, %v7422, %v7468
    %v7472 = vrot.slane %v7428, 4
    %v7474 = vrot.slane %v7434, 4
    %v7476 = vrot.slane %v7440, 4
    %v7478 = vrot.slane %v7446, 4
    %v7480 = vrot.slane %v7452, 4
    %v7482 = vrot.slane %v7458, 4
    %v7484 = vrot.slane %v7464, 4
    %v7486 = vrot.slane %v7470, 4
    %v7487 = vrot.slane %v7428, 7
    %v7488 = vrot.slane %v7472, 7
    %v7489 = vrot.slane %v7434, 7
    %v7490 = vrot.slane %v7474, 7
    %v7491 = vrot.slane %v7440, 7
    %v7492 = vrot.slane %v7476, 7
    %v7493 = vrot.slane %v7446, 7
    %v7494 = vrot.slane %v7478, 7
    %v7495 = vrot.slane %v7452, 7
    %v7496 = vrot.slane %v7480, 7
    %v7497 = vrot.slane %v7458, 7
    %v7498 = vrot.slane %v7482, 7
    %v7499 = vrot.slane %v7464, 7
    %v7500 = vrot.slane %v7484, 7
    %v7501 = vrot.slane %v7470, 7
    %v7502 = vrot.slane %v7486, 7
    %vm7519 = vcmask 1040384
    %v7520 = vsel %vm7519, %v7308, %v7487
    %v7521 = vsel %vm7519, %v7352, %v7488
    %v7522 = vsel %vm7519, %v7314, %v7489
    %v7523 = vsel %vm7519, %v7355, %v7490
    %v7524 = vsel %vm7519, %v7320, %v7491
    %v7525 = vsel %vm7519, %v7358, %v7492
    %v7526 = vsel %vm7519, %v7326, %v7493
    %v7527 = vsel %vm7519, %v7361, %v7494
    %v7528 = vsel %vm7519, %v7332, %v7495
    %v7529 = vsel %vm7519, %v7364, %v7496
    %v7530 = vsel %vm7519, %v7338, %v7497
    %v7531 = vsel %vm7519, %v7367, %v7498
    %v7532 = vsel %vm7519, %v7344, %v7499
    %v7533 = vsel %vm7519, %v7370, %v7500
    %v7534 = vsel %vm7519, %v7350, %v7501
    %v7535 = vsel %vm7519, %v7373, %v7502
    %v7536 = vld [vmem:[%s10] sm:$0xff]
    %v7537 = vld [vmem:[%s10 + $0x8] sm:$0xff]
    %v7538 = vld [vmem:[%s10 + $0x10] sm:$0xff]
    %v7539 = vld [vmem:[%s10 + $0x18] sm:$0xff]
    %v7540 = vld [vmem:[%s10 + $0x20] sm:$0xff]
    %v7541 = vld [vmem:[%s10 + $0x28] sm:$0xff]
    %v7542 = vld [vmem:[%s10 + $0x30] sm:$0xff]
    %v7543 = vld [vmem:[%s10 + $0x38] sm:$0xff]
    %v7544 = vld [vmem:[%s10 + $0x40] sm:$0xff]
    %v7545 = vld [vmem:[%s10 + $0x48] sm:$0xff]
    %v7546 = vld [vmem:[%s10 + $0x50] sm:$0xff]
    %v7547 = vld [vmem:[%s10 + $0x58] sm:$0xff]
    %v7548 = vld [vmem:[%s10 + $0x60] sm:$0xff]
    %v7549 = vld [vmem:[%s10 + $0x68] sm:$0xff]
    %v7550 = vld [vmem:[%s10 + $0x70] sm:$0xff]
    %v7551 = vld [vmem:[%s10 + $0x78] sm:$0xff]
    %v7552 = vld [vmem:[%s10 + $0x80] sm:$0xff]
    %v7553 = vld [vmem:[%s10 + $0x88] sm:$0xff]
    %v7554 = vld [vmem:[%s10 + $0x90] sm:$0xff]
    %v7555 = vld [vmem:[%s10 + $0x98] sm:$0xff]
    %v7556 = vld [vmem:[%s10 + $0xa0] sm:$0xff]
    %v7557 = vld [vmem:[%s10 + $0xa8] sm:$0xff]
    %v7558 = vld [vmem:[%s10 + $0xb0] sm:$0xff]
    %v7559 = vld [vmem:[%s10 + $0xb8] sm:$0xff]
    %v7560 = vld [vmem:[%s10 + $0xc0] sm:$0xff]
    %v7561 = vld [vmem:[%s10 + $0xc8] sm:$0xff]
    %v7562 = vld [vmem:[%s10 + $0xd0] sm:$0xff]
    %v7563 = vld [vmem:[%s10 + $0xd8] sm:$0xff]
    %v7564 = vld [vmem:[%s10 + $0xe0] sm:$0xff]
    %v7565 = vld [vmem:[%s10 + $0xe8] sm:$0xff]
    %v7566 = vld [vmem:[%s10 + $0xf0] sm:$0xff]
    %v7567 = vld [vmem:[%s10 + $0xf8] sm:$0xff]
    %v7568 = vld [vmem:[%s10 + $0x100] sm:$0xff]
    %v7569 = vld [vmem:[%s10 + $0x108] sm:$0xff]
    %v7570 = vld [vmem:[%s10 + $0x110] sm:$0xff]
    %v7571 = vld [vmem:[%s10 + $0x118] sm:$0xff]
    %v7572 = vld [vmem:[%s10 + $0x120] sm:$0xff]
    %v7573 = vld [vmem:[%s10 + $0x128] sm:$0xff]
    %v7574 = vld [vmem:[%s10 + $0x130] sm:$0xff]
    %v7575 = vld [vmem:[%s10 + $0x138] sm:$0xff]
    %v7576 = vld [vmem:[%s10 + $0x140] sm:$0xff]
    %v7577 = vld [vmem:[%s10 + $0x148] sm:$0xff]
    %v7578 = vld [vmem:[%s10 + $0x150] sm:$0xff]
    %v7579 = vld [vmem:[%s10 + $0x158] sm:$0xff]
    %v7580 = vld [vmem:[%s10 + $0x160] sm:$0xff]
    %v7581 = vld [vmem:[%s10 + $0x168] sm:$0xff]
    %v7582 = vld [vmem:[%s10 + $0x170] sm:$0xff]
    %v7583 = vld [vmem:[%s10 + $0x178] sm:$0xff]
    %v7584 = vld [vmem:[%s10 + $0x180] sm:$0xff]
    %v7585 = vld [vmem:[%s10 + $0x188] sm:$0xff]
    %v7586 = vld [vmem:[%s10 + $0x190] sm:$0xff]
    %v7587 = vld [vmem:[%s10 + $0x198] sm:$0xff]
    %v7588 = vld [vmem:[%s10 + $0x1a0] sm:$0xff]
    %v7589 = vld [vmem:[%s10 + $0x1a8] sm:$0xff]
    %v7590 = vld [vmem:[%s10 + $0x1b0] sm:$0xff]
    %v7591 = vld [vmem:[%s10 + $0x1b8] sm:$0xff]
    %v7592 = vld [vmem:[%s10 + $0x1c0] sm:$0xff]
    %v7593 = vld [vmem:[%s10 + $0x1c8] sm:$0xff]
    %v7594 = vld [vmem:[%s10 + $0x1d0] sm:$0xff]
    %v7595 = vld [vmem:[%s10 + $0x1d8] sm:$0xff]
    %v7596 = vld [vmem:[%s10 + $0x1e0] sm:$0xff]
    %v7597 = vld [vmem:[%s10 + $0x1e8] sm:$0xff]
    %v7598 = vld [vmem:[%s10 + $0x1f0] sm:$0xff]
    %v7599 = vld [vmem:[%s10 + $0x1f8] sm:$0xff]
    %v7600 = vld [vmem:[%s10 + $0x200] sm:$0xff]
    %v7601 = vld [vmem:[%s10 + $0x208] sm:$0xff]
    %v7602 = vld [vmem:[%s10 + $0x210] sm:$0xff]
    %v7603 = vld [vmem:[%s10 + $0x218] sm:$0xff]
    %v7604 = vld [vmem:[%s10 + $0x220] sm:$0xff]
    %v7605 = vld [vmem:[%s10 + $0x228] sm:$0xff]
    %v7606 = vld [vmem:[%s10 + $0x230] sm:$0xff]
    %v7607 = vld [vmem:[%s10 + $0x238] sm:$0xff]
    %v7608 = vld [vmem:[%s10 + $0x240] sm:$0xff]
    %v7609 = vld [vmem:[%s10 + $0x248] sm:$0xff]
    %v7610 = vld [vmem:[%s10 + $0x250] sm:$0xff]
    %v7611 = vld [vmem:[%s10 + $0x258] sm:$0xff]
    %v7612 = vld [vmem:[%s10 + $0x260] sm:$0xff]
    %v7613 = vld [vmem:[%s10 + $0x268] sm:$0xff]
    %v7614 = vld [vmem:[%s10 + $0x270] sm:$0xff]
    %v7615 = vld [vmem:[%s10 + $0x278] sm:$0xff]
    %v7616 = vld [vmem:[%s10 + $0x280] sm:$0xff]
    %v7617 = vld [vmem:[%s10 + $0x288] sm:$0xff]
    %v7618 = vld [vmem:[%s10 + $0x290] sm:$0xff]
    %v7619 = vld [vmem:[%s10 + $0x298] sm:$0xff]
    %v7620 = vld [vmem:[%s10 + $0x2a0] sm:$0xff]
    %v7621 = vld [vmem:[%s10 + $0x2a8] sm:$0xff]
    %v7622 = vld [vmem:[%s10 + $0x2b0] sm:$0xff]
    %v7623 = vld [vmem:[%s10 + $0x2b8] sm:$0xff]
    %v7624 = vld [vmem:[%s10 + $0x2c0] sm:$0xff]
    %v7625 = vld [vmem:[%s10 + $0x2c8] sm:$0xff]
    %v7626 = vld [vmem:[%s10 + $0x2d0] sm:$0xff]
    %v7627 = vld [vmem:[%s10 + $0x2d8] sm:$0xff]
    %v7628 = vld [vmem:[%s10 + $0x2e0] sm:$0xff]
    %v7629 = vld [vmem:[%s10 + $0x2e8] sm:$0xff]
    %v7630 = vld [vmem:[%s10 + $0x2f0] sm:$0xff]
    %v7631 = vld [vmem:[%s10 + $0x2f8] sm:$0xff]
    %v7632 = vld [vmem:[%s10 + $0x300] sm:$0xff]
    %v7633 = vld [vmem:[%s10 + $0x308] sm:$0xff]
    %v7634 = vld [vmem:[%s10 + $0x310] sm:$0xff]
    %v7635 = vld [vmem:[%s10 + $0x318] sm:$0xff]
    %v7636 = vld [vmem:[%s10 + $0x320] sm:$0xff]
    %v7637 = vld [vmem:[%s10 + $0x328] sm:$0xff]
    %v7638 = vld [vmem:[%s10 + $0x330] sm:$0xff]
    %v7639 = vld [vmem:[%s10 + $0x338] sm:$0xff]
    %v7640 = vld [vmem:[%s10 + $0x340] sm:$0xff]
    %v7641 = vld [vmem:[%s10 + $0x348] sm:$0xff]
    %v7642 = vld [vmem:[%s10 + $0x350] sm:$0xff]
    %v7643 = vld [vmem:[%s10 + $0x358] sm:$0xff]
    %v7644 = vld [vmem:[%s10 + $0x360] sm:$0xff]
    %v7645 = vld [vmem:[%s10 + $0x368] sm:$0xff]
    %v7646 = vld [vmem:[%s10 + $0x370] sm:$0xff]
    %v7647 = vld [vmem:[%s10 + $0x378] sm:$0xff]
    %v7648 = vld [vmem:[%s10 + $0x380] sm:$0xff]
    %v7649 = vld [vmem:[%s10 + $0x388] sm:$0xff]
    %v7650 = vld [vmem:[%s10 + $0x390] sm:$0xff]
    %v7651 = vld [vmem:[%s10 + $0x398] sm:$0xff]
    %v7652 = vld [vmem:[%s10 + $0x3a0] sm:$0xff]
    %v7653 = vld [vmem:[%s10 + $0x3a8] sm:$0xff]
    %v7654 = vld [vmem:[%s10 + $0x3b0] sm:$0xff]
    %v7655 = vld [vmem:[%s10 + $0x3b8] sm:$0xff]
    %v7656 = vld [vmem:[%s10 + $0x3c0] sm:$0xff]
    %v7657 = vld [vmem:[%s10 + $0x3c8] sm:$0xff]
    %v7658 = vld [vmem:[%s10 + $0x3d0] sm:$0xff]
    %v7659 = vld [vmem:[%s10 + $0x3d8] sm:$0xff]
    %v7660 = vld [vmem:[%s10 + $0x3e0] sm:$0xff]
    %v7661 = vld [vmem:[%s10 + $0x3e8] sm:$0xff]
    %v7662 = vld [vmem:[%s10 + $0x3f0] sm:$0xff]
    %v7663 = vld [vmem:[%s10 + $0x3f8] sm:$0xff]
    %v7664 = vld [vmem:[%s10 + $0x400] sm:$0xff]
    %v7665 = vld [vmem:[%s10 + $0x408] sm:$0xff]
    %v7666 = vld [vmem:[%s10 + $0x410] sm:$0xff]
    %v7667 = vld [vmem:[%s10 + $0x418] sm:$0xff]
    %v7668 = vld [vmem:[%s10 + $0x420] sm:$0xff]
    %v7669 = vld [vmem:[%s10 + $0x428] sm:$0xff]
    %v7670 = vld [vmem:[%s10 + $0x430] sm:$0xff]
    %v7671 = vld [vmem:[%s10 + $0x438] sm:$0xff]
    %v7672 = vld [vmem:[%s10 + $0x440] sm:$0xff]
    %v7673 = vld [vmem:[%s10 + $0x448] sm:$0xff]
    %v7674 = vld [vmem:[%s10 + $0x450] sm:$0xff]
    %v7675 = vld [vmem:[%s10 + $0x458] sm:$0xff]
    %v7676 = vld [vmem:[%s10 + $0x460] sm:$0xff]
    %v7677 = vld [vmem:[%s10 + $0x468] sm:$0xff]
    %v7678 = vld [vmem:[%s10 + $0x470] sm:$0xff]
    %v7679 = vld [vmem:[%s10 + $0x478] sm:$0xff]
    %v7680 = vld [vmem:[%s10 + $0x480] sm:$0xff]
    %v7681 = vld [vmem:[%s10 + $0x488] sm:$0xff]
    %v7682 = vld [vmem:[%s10 + $0x490] sm:$0xff]
    %v7683 = vld [vmem:[%s10 + $0x498] sm:$0xff]
    %v7684 = vld [vmem:[%s10 + $0x4a0] sm:$0xff]
    %v7685 = vld [vmem:[%s10 + $0x4a8] sm:$0xff]
    %v7686 = vld [vmem:[%s10 + $0x4b0] sm:$0xff]
    %v7687 = vld [vmem:[%s10 + $0x4b8] sm:$0xff]
    %v7688 = vld [vmem:[%s10 + $0x4c0] sm:$0xff]
    %v7689 = vld [vmem:[%s10 + $0x4c8] sm:$0xff]
    %v7690 = vld [vmem:[%s10 + $0x4d0] sm:$0xff]
    %v7691 = vld [vmem:[%s10 + $0x4d8] sm:$0xff]
    %v7692 = vld [vmem:[%s10 + $0x4e0] sm:$0xff]
    %v7693 = vld [vmem:[%s10 + $0x4e8] sm:$0xff]
    %v7694 = vld [vmem:[%s10 + $0x4f0] sm:$0xff]
    %v7695 = vld [vmem:[%s10 + $0x4f8] sm:$0xff]
    %v7696 = vld [vmem:[%s10 + $0x500] sm:$0xff]
    %v7697 = vld [vmem:[%s10 + $0x508] sm:$0xff]
    %v7698 = vld [vmem:[%s10 + $0x510] sm:$0xff]
    %v7699 = vld [vmem:[%s10 + $0x518] sm:$0xff]
    %v7700 = vld [vmem:[%s10 + $0x520] sm:$0xff]
    %v7701 = vld [vmem:[%s10 + $0x528] sm:$0xff]
    %v7702 = vld [vmem:[%s10 + $0x530] sm:$0xff]
    %v7703 = vld [vmem:[%s10 + $0x538] sm:$0xff]
    %v7704 = vld [vmem:[%s10 + $0x540] sm:$0xff]
    %v7705 = vld [vmem:[%s10 + $0x548] sm:$0xff]
    %v7706 = vld [vmem:[%s10 + $0x550] sm:$0xff]
    %v7707 = vld [vmem:[%s10 + $0x558] sm:$0xff]
    %v7708 = vld [vmem:[%s10 + $0x560] sm:$0xff]
    %v7709 = vld [vmem:[%s10 + $0x568] sm:$0xff]
    %v7710 = vld [vmem:[%s10 + $0x570] sm:$0xff]
    %v7711 = vld [vmem:[%s10 + $0x578] sm:$0xff]
    %v7712 = vld [vmem:[%s10 + $0x580] sm:$0xff]
    %v7713 = vld [vmem:[%s10 + $0x588] sm:$0xff]
    %v7714 = vld [vmem:[%s10 + $0x590] sm:$0xff]
    %v7715 = vld [vmem:[%s10 + $0x598] sm:$0xff]
    %v7716 = vld [vmem:[%s10 + $0x5a0] sm:$0xff]
    %v7717 = vld [vmem:[%s10 + $0x5a8] sm:$0xff]
    %v7718 = vld [vmem:[%s10 + $0x5b0] sm:$0xff]
    %v7719 = vld [vmem:[%s10 + $0x5b8] sm:$0xff]
    %v7720 = vld [vmem:[%s10 + $0x5c0] sm:$0xff]
    %v7721 = vld [vmem:[%s10 + $0x5c8] sm:$0xff]
    %v7722 = vld [vmem:[%s10 + $0x5d0] sm:$0xff]
    %v7723 = vld [vmem:[%s10 + $0x5d8] sm:$0xff]
    %v7724 = vld [vmem:[%s10 + $0x5e0] sm:$0xff]
    %v7725 = vld [vmem:[%s10 + $0x5e8] sm:$0xff]
    %v7726 = vld [vmem:[%s10 + $0x5f0] sm:$0xff]
    %v7727 = vld [vmem:[%s10 + $0x5f8] sm:$0xff]
    %v7728 = vld [vmem:[%s10 + $0x600] sm:$0xff]
    %v7729 = vld [vmem:[%s10 + $0x608] sm:$0xff]
    %v7730 = vld [vmem:[%s10 + $0x610] sm:$0xff]
    %v7731 = vld [vmem:[%s10 + $0x618] sm:$0xff]
    %v7732 = vld [vmem:[%s10 + $0x620] sm:$0xff]
    %v7733 = vld [vmem:[%s10 + $0x628] sm:$0xff]
    %v7734 = vld [vmem:[%s10 + $0x630] sm:$0xff]
    %v7735 = vld [vmem:[%s10 + $0x638] sm:$0xff]
    %v7736 = vld [vmem:[%s10 + $0x640] sm:$0xff]
    %v7737 = vld [vmem:[%s10 + $0x648] sm:$0xff]
    %v7738 = vld [vmem:[%s10 + $0x650] sm:$0xff]
    %v7739 = vld [vmem:[%s10 + $0x658] sm:$0xff]
    %v7740 = vld [vmem:[%s10 + $0x660] sm:$0xff]
    %v7741 = vld [vmem:[%s10 + $0x668] sm:$0xff]
    %v7742 = vld [vmem:[%s10 + $0x670] sm:$0xff]
    %v7743 = vld [vmem:[%s10 + $0x678] sm:$0xff]
    %v7744 = vld [vmem:[%s10 + $0x680] sm:$0xff]
    %v7745 = vld [vmem:[%s10 + $0x688] sm:$0xff]
    %v7746 = vld [vmem:[%s10 + $0x690] sm:$0xff]
    %v7747 = vld [vmem:[%s10 + $0x698] sm:$0xff]
    %v7748 = vld [vmem:[%s10 + $0x6a0] sm:$0xff]
    %v7749 = vld [vmem:[%s10 + $0x6a8] sm:$0xff]
    %v7750 = vld [vmem:[%s10 + $0x6b0] sm:$0xff]
    %v7751 = vld [vmem:[%s10 + $0x6b8] sm:$0xff]
    %v7752 = vld [vmem:[%s10 + $0x6c0] sm:$0xff]
    %v7753 = vld [vmem:[%s10 + $0x6c8] sm:$0xff]
    %v7754 = vld [vmem:[%s10 + $0x6d0] sm:$0xff]
    %v7755 = vld [vmem:[%s10 + $0x6d8] sm:$0xff]
    %v7756 = vld [vmem:[%s10 + $0x6e0] sm:$0xff]
    %v7757 = vld [vmem:[%s10 + $0x6e8] sm:$0xff]
    %v7758 = vld [vmem:[%s10 + $0x6f0] sm:$0xff]
    %v7759 = vld [vmem:[%s10 + $0x6f8] sm:$0xff]
    %v7760 = vld [vmem:[%s10 + $0x700] sm:$0xff]
    %v7761 = vld [vmem:[%s10 + $0x708] sm:$0xff]
    %v7762 = vld [vmem:[%s10 + $0x710] sm:$0xff]
    %v7763 = vld [vmem:[%s10 + $0x718] sm:$0xff]
    %v7764 = vld [vmem:[%s10 + $0x720] sm:$0xff]
    %v7765 = vld [vmem:[%s10 + $0x728] sm:$0xff]
    %v7766 = vld [vmem:[%s10 + $0x730] sm:$0xff]
    %v7767 = vld [vmem:[%s10 + $0x738] sm:$0xff]
    %v7768 = vld [vmem:[%s10 + $0x740] sm:$0xff]
    %v7769 = vld [vmem:[%s10 + $0x748] sm:$0xff]
    %v7770 = vld [vmem:[%s10 + $0x750] sm:$0xff]
    %v7771 = vld [vmem:[%s10 + $0x758] sm:$0xff]
    %v7772 = vld [vmem:[%s10 + $0x760] sm:$0xff]
    %v7773 = vld [vmem:[%s10 + $0x768] sm:$0xff]
    %v7774 = vld [vmem:[%s10 + $0x770] sm:$0xff]
    %v7775 = vld [vmem:[%s10 + $0x778] sm:$0xff]
    %v7776 = vld [vmem:[%s10 + $0x780] sm:$0xff]
    %v7777 = vld [vmem:[%s10 + $0x788] sm:$0xff]
    %v7778 = vld [vmem:[%s10 + $0x790] sm:$0xff]
    %v7779 = vld [vmem:[%s10 + $0x798] sm:$0xff]
    %v7780 = vld [vmem:[%s10 + $0x7a0] sm:$0xff]
    %v7781 = vld [vmem:[%s10 + $0x7a8] sm:$0xff]
    %v7782 = vld [vmem:[%s10 + $0x7b0] sm:$0xff]
    %v7783 = vld [vmem:[%s10 + $0x7b8] sm:$0xff]
    %v7784 = vld [vmem:[%s10 + $0x7c0] sm:$0xff]
    %v7785 = vld [vmem:[%s10 + $0x7c8] sm:$0xff]
    %v7786 = vld [vmem:[%s10 + $0x7d0] sm:$0xff]
    %v7787 = vld [vmem:[%s10 + $0x7d8] sm:$0xff]
    %v7788 = vld [vmem:[%s10 + $0x7e0] sm:$0xff]
    %v7789 = vld [vmem:[%s10 + $0x7e8] sm:$0xff]
    %v7790 = vld [vmem:[%s10 + $0x7f0] sm:$0xff]
    %v7791 = vld [vmem:[%s10 + $0x7f8] sm:$0xff]
    %v7792 = vlaneseq
    %v7793 = vshrl.u32 %v7792, 7
    %v7794 = vsub.s32 0, %v7793
    %v7795 = vrot.slane %v7035, %v7794
    %7796 = vmatprep.subr.mxu0 0.0
    %7797 = vmatpush1.msra.mxu0 %v7551
    %7798 = vmatprep.subr.mxu0 0.0
    %7799 = vmatpush1.msra.mxu0 %v7550
    %7800 = vmatprep.subr.mxu0 0.0
    %7801 = vmatpush1.msra.mxu0 %v7549
    %7802 = vmatprep.subr.mxu0 0.0
    %7803 = vmatpush1.msra.mxu0 %v7548
    %7804 = vmatprep.subr.mxu0 0.0
    %7805 = vmatpush1.msra.mxu0 %v7547
    %7806 = vmatprep.subr.mxu0 0.0
    %7807 = vmatpush1.msra.mxu0 %v7546
    %7808 = vmatprep.subr.mxu0 0.0
    %7809 = vmatpush1.msra.mxu0 %v7545
    %7810 = vmatprep.subr.mxu0 0.0
    %7811 = vmatpush1.msra.mxu0 %v7544
    %7812 = vmatprep.subr.mxu0 0.0
    %7813 = vmatpush1.msra.mxu0 %v7543
    %7814 = vmatprep.subr.mxu0 0.0
    %7815 = vmatpush1.msra.mxu0 %v7542
    %7816 = vmatprep.subr.mxu0 0.0
    %7817 = vmatpush1.msra.mxu0 %v7541
    %7818 = vmatprep.subr.mxu0 0.0
    %7819 = vmatpush1.msra.mxu0 %v7540
    %7820 = vmatprep.subr.mxu0 0.0
    %7821 = vmatpush1.msra.mxu0 %v7539
    %7822 = vmatprep.subr.mxu0 0.0
    %7823 = vmatpush1.msra.mxu0 %v7538
    %7824 = vmatprep.subr.mxu0 0.0
    %7825 = vmatpush1.msra.mxu0 %v7537
    %7826 = vmatprep.subr.mxu0 0.0
    %7827 = vmatpush1.msra.mxu0 %v7536
    %7828 = vmatprep.subr.mxu0 0.0
    %7829 = vmatpush2.msra.mxu0 %v7567
    %7830 = vmatprep.subr.mxu0 0.0
    %7831 = vmatpush2.msra.mxu0 %v7566
    %7832 = vmatprep.subr.mxu0 0.0
    %7833 = vmatpush2.msra.mxu0 %v7565
    %7834 = vmatprep.subr.mxu0 0.0
    %7835 = vmatpush2.msra.mxu0 %v7564
    %7836 = vmatprep.subr.mxu0 0.0
    %7837 = vmatpush2.msra.mxu0 %v7563
    %7838 = vmatprep.subr.mxu0 0.0
    %7839 = vmatpush2.msra.mxu0 %v7562
    %7840 = vmatprep.subr.mxu0 0.0
    %7841 = vmatpush2.msra.mxu0 %v7561
    %7842 = vmatprep.subr.mxu0 0.0
    %7843 = vmatpush2.msra.mxu0 %v7560
    %7844 = vmatprep.subr.mxu0 0.0
    %7845 = vmatpush2.msra.mxu0 %v7559
    %7846 = vmatprep.subr.mxu0 0.0
    %7847 = vmatpush2.msra.mxu0 %v7558
    %7848 = vmatprep.subr.mxu0 0.0
    %7849 = vmatpush2.msra.mxu0 %v7557
    %7850 = vmatprep.subr.mxu0 0.0
    %7851 = vmatpush2.msra.mxu0 %v7556
    %7852 = vmatprep.subr.mxu0 0.0
    %7853 = vmatpush2.msra.mxu0 %v7555
    %7854 = vmatprep.subr.mxu0 0.0
    %7855 = vmatpush2.msra.mxu0 %v7554
    %7856 = vmatprep.subr.mxu0 0.0
    %7857 = vmatpush2.msra.mxu0 %v7553
    %7858 = vmatprep.subr.mxu0 0.0
    %7859 = vmatpush2.msra.mxu0 %v7552
    %7860 = vmatprep.mubr.f32.mxu0 %v7521
    %7861 = vmatmul.mubr.f32.gmra.mxu0 %v7520
    %v7862 = vpop.f32.mrf.mxu0
    %v7863 = vadd.f32 %v7795, %v7862
    %v7864 = vpop.f32.mrf.mxu0
    %7865 = vdwg.mxu0
    %7866 = vmatprep.subr.mxu0 0.0
    %7867 = vmatpush1.msra.mxu0 %v7583
    %7868 = vmatprep.subr.mxu0 0.0
    %7869 = vmatpush1.msra.mxu0 %v7582
    %7870 = vmatprep.subr.mxu0 0.0
    %7871 = vmatpush1.msra.mxu0 %v7581
    %7872 = vmatprep.subr.mxu0 0.0
    %7873 = vmatpush1.msra.mxu0 %v7580
    %7874 = vmatprep.subr.mxu0 0.0
    %7875 = vmatpush1.msra.mxu0 %v7579
    %7876 = vmatprep.subr.mxu0 0.0
    %7877 = vmatpush1.msra.mxu0 %v7578
    %7878 = vmatprep.subr.mxu0 0.0
    %7879 = vmatpush1.msra.mxu0 %v7577
    %7880 = vmatprep.subr.mxu0 0.0
    %7881 = vmatpush1.msra.mxu0 %v7576
    %7882 = vmatprep.subr.mxu0 0.0
    %7883 = vmatpush1.msra.mxu0 %v7575
    %7884 = vmatprep.subr.mxu0 0.0
    %7885 = vmatpush1.msra.mxu0 %v7574
    %7886 = vmatprep.subr.mxu0 0.0
    %7887 = vmatpush1.msra.mxu0 %v7573
    %7888 = vmatprep.subr.mxu0 0.0
    %7889 = vmatpush1.msra.mxu0 %v7572
    %7890 = vmatprep.subr.mxu0 0.0
    %7891 = vmatpush1.msra.mxu0 %v7571
    %7892 = vmatprep.subr.mxu0 0.0
    %7893 = vmatpush1.msra.mxu0 %v7570
    %7894 = vmatprep.subr.mxu0 0.0
    %7895 = vmatpush1.msra.mxu0 %v7569
    %7896 = vmatprep.subr.mxu0 0.0
    %7897 = vmatpush1.msra.mxu0 %v7568
    %7898 = vmatprep.subr.mxu0 0.0
    %7899 = vmatpush2.msra.mxu0 %v7599
    %7900 = vmatprep.subr.mxu0 0.0
    %7901 = vmatpush2.msra.mxu0 %v7598
    %7902 = vmatprep.subr.mxu0 0.0
    %7903 = vmatpush2.msra.mxu0 %v7597
    %7904 = vmatprep.subr.mxu0 0.0
    %7905 = vmatpush2.msra.mxu0 %v7596
    %7906 = vmatprep.subr.mxu0 0.0
    %7907 = vmatpush2.msra.mxu0 %v7595
    %7908 = vmatprep.subr.mxu0 0.0
    %7909 = vmatpush2.msra.mxu0 %v7594
    %7910 = vmatprep.subr.mxu0 0.0
    %7911 = vmatpush2.msra.mxu0 %v7593
    %7912 = vmatprep.subr.mxu0 0.0
    %7913 = vmatpush2.msra.mxu0 %v7592
    %7914 = vmatprep.subr.mxu0 0.0
    %7915 = vmatpush2.msra.mxu0 %v7591
    %7916 = vmatprep.subr.mxu0 0.0
    %7917 = vmatpush2.msra.mxu0 %v7590
    %7918 = vmatprep.subr.mxu0 0.0
    %7919 = vmatpush2.msra.mxu0 %v7589
    %7920 = vmatprep.subr.mxu0 0.0
    %7921 = vmatpush2.msra.mxu0 %v7588
    %7922 = vmatprep.subr.mxu0 0.0
    %7923 = vmatpush2.msra.mxu0 %v7587
    %7924 = vmatprep.subr.mxu0 0.0
    %7925 = vmatpush2.msra.mxu0 %v7586
    %7926 = vmatprep.subr.mxu0 0.0
    %7927 = vmatpush2.msra.mxu0 %v7585
    %7928 = vmatprep.subr.mxu0 0.0
    %7929 = vmatpush2.msra.mxu0 %v7584
    %7930 = vmatprep.mubr.f32.mxu0 %v7523
    %7931 = vmatmul.mubr.f32.gmra.mxu0 %v7522
    %v7932 = vpop.f32.mrf.mxu0
    %v7933 = vadd.f32 %v7863, %v7932
    %v7934 = vpop.f32.mrf.mxu0
    %7935 = vdwg.mxu0
    %7936 = vmatprep.subr.mxu0 0.0
    %7937 = vmatpush1.msra.mxu0 %v7615
    %7938 = vmatprep.subr.mxu0 0.0
    %7939 = vmatpush1.msra.mxu0 %v7614
    %7940 = vmatprep.subr.mxu0 0.0
    %7941 = vmatpush1.msra.mxu0 %v7613
    %7942 = vmatprep.subr.mxu0 0.0
    %7943 = vmatpush1.msra.mxu0 %v7612
    %7944 = vmatprep.subr.mxu0 0.0
    %7945 = vmatpush1.msra.mxu0 %v7611
    %7946 = vmatprep.subr.mxu0 0.0
    %7947 = vmatpush1.msra.mxu0 %v7610
    %7948 = vmatprep.subr.mxu0 0.0
    %7949 = vmatpush1.msra.mxu0 %v7609
    %7950 = vmatprep.subr.mxu0 0.0
    %7951 = vmatpush1.msra.mxu0 %v7608
    %7952 = vmatprep.subr.mxu0 0.0
    %7953 = vmatpush1.msra.mxu0 %v7607
    %7954 = vmatprep.subr.mxu0 0.0
    %7955 = vmatpush1.msra.mxu0 %v7606
    %7956 = vmatprep.subr.mxu0 0.0
    %7957 = vmatpush1.msra.mxu0 %v7605
    %7958 = vmatprep.subr.mxu0 0.0
    %7959 = vmatpush1.msra.mxu0 %v7604
    %7960 = vmatprep.subr.mxu0 0.0
    %7961 = vmatpush1.msra.mxu0 %v7603
    %7962 = vmatprep.subr.mxu0 0.0
    %7963 = vmatpush1.msra.mxu0 %v7602
    %7964 = vmatprep.subr.mxu0 0.0
    %7965 = vmatpush1.msra.mxu0 %v7601
    %7966 = vmatprep.subr.mxu0 0.0
    %7967 = vmatpush1.msra.mxu0 %v7600
    %7968 = vmatprep.subr.mxu0 0.0
    %7969 = vmatpush2.msra.mxu0 %v7631
    %7970 = vmatprep.subr.mxu0 0.0
    %7971 = vmatpush2.msra.mxu0 %v7630
    %7972 = vmatprep.subr.mxu0 0.0
    %7973 = vmatpush2.msra.mxu0 %v7629
    %7974 = vmatprep.subr.mxu0 0.0
    %7975 = vmatpush2.msra.mxu0 %v7628
    %7976 = vmatprep.subr.mxu0 0.0
    %7977 = vmatpush2.msra.mxu0 %v7627
    %7978 = vmatprep.subr.mxu0 0.0
    %7979 = vmatpush2.msra.mxu0 %v7626
    %7980 = vmatprep.subr.mxu0 0.0
    %7981 = vmatpush2.msra.mxu0 %v7625
    %7982 = vmatprep.subr.mxu0 0.0
    %7983 = vmatpush2.msra.mxu0 %v7624
    %7984 = vmatprep.subr.mxu0 0.0
    %7985 = vmatpush2.msra.mxu0 %v7623
    %7986 = vmatprep.subr.mxu0 0.0
    %7987 = vmatpush2.msra.mxu0 %v7622
    %7988 = vmatprep.subr.mxu0 0.0
    %7989 = vmatpush2.msra.mxu0 %v7621
    %7990 = vmatprep.subr.mxu0 0.0
    %7991 = vmatpush2.msra.mxu0 %v7620
    %7992 = vmatprep.subr.mxu0 0.0
    %7993 = vmatpush2.msra.mxu0 %v7619
    %7994 = vmatprep.subr.mxu0 0.0
    %7995 = vmatpush2.msra.mxu0 %v7618
    %7996 = vmatprep.subr.mxu0 0.0
    %7997 = vmatpush2.msra.mxu0 %v7617
    %7998 = vmatprep.subr.mxu0 0.0
    %7999 = vmatpush2.msra.mxu0 %v7616
    %8000 = vmatprep.mubr.f32.mxu0 %v7525
    %8001 = vmatmul.mubr.f32.gmra.mxu0 %v7524
    %v8002 = vpop.f32.mrf.mxu0
    %v8003 = vadd.f32 %v7933, %v8002
    %v8004 = vpop.f32.mrf.mxu0
    %8005 = vdwg.mxu0
    %8006 = vmatprep.subr.mxu0 0.0
    %8007 = vmatpush1.msra.mxu0 %v7647
    %8008 = vmatprep.subr.mxu0 0.0
    %8009 = vmatpush1.msra.mxu0 %v7646
    %8010 = vmatprep.subr.mxu0 0.0
    %8011 = vmatpush1.msra.mxu0 %v7645
    %8012 = vmatprep.subr.mxu0 0.0
    %8013 = vmatpush1.msra.mxu0 %v7644
    %8014 = vmatprep.subr.mxu0 0.0
    %8015 = vmatpush1.msra.mxu0 %v7643
    %8016 = vmatprep.subr.mxu0 0.0
    %8017 = vmatpush1.msra.mxu0 %v7642
    %8018 = vmatprep.subr.mxu0 0.0
    %8019 = vmatpush1.msra.mxu0 %v7641
    %8020 = vmatprep.subr.mxu0 0.0
    %8021 = vmatpush1.msra.mxu0 %v7640
    %8022 = vmatprep.subr.mxu0 0.0
    %8023 = vmatpush1.msra.mxu0 %v7639
    %8024 = vmatprep.subr.mxu0 0.0
    %8025 = vmatpush1.msra.mxu0 %v7638
    %8026 = vmatprep.subr.mxu0 0.0
    %8027 = vmatpush1.msra.mxu0 %v7637
    %8028 = vmatprep.subr.mxu0 0.0
    %8029 = vmatpush1.msra.mxu0 %v7636
    %8030 = vmatprep.subr.mxu0 0.0
    %8031 = vmatpush1.msra.mxu0 %v7635
    %8032 = vmatprep.subr.mxu0 0.0
    %8033 = vmatpush1.msra.mxu0 %v7634
    %8034 = vmatprep.subr.mxu0 0.0
    %8035 = vmatpush1.msra.mxu0 %v7633
    %8036 = vmatprep.subr.mxu0 0.0
    %8037 = vmatpush1.msra.mxu0 %v7632
    %8038 = vmatprep.subr.mxu0 0.0
    %8039 = vmatpush2.msra.mxu0 %v7663
    %8040 = vmatprep.subr.mxu0 0.0
    %8041 = vmatpush2.msra.mxu0 %v7662
    %8042 = vmatprep.subr.mxu0 0.0
    %8043 = vmatpush2.msra.mxu0 %v7661
    %8044 = vmatprep.subr.mxu0 0.0
    %8045 = vmatpush2.msra.mxu0 %v7660
    %8046 = vmatprep.subr.mxu0 0.0
    %8047 = vmatpush2.msra.mxu0 %v7659
    %8048 = vmatprep.subr.mxu0 0.0
    %8049 = vmatpush2.msra.mxu0 %v7658
    %8050 = vmatprep.subr.mxu0 0.0
    %8051 = vmatpush2.msra.mxu0 %v7657
    %8052 = vmatprep.subr.mxu0 0.0
    %8053 = vmatpush2.msra.mxu0 %v7656
    %8054 = vmatprep.subr.mxu0 0.0
    %8055 = vmatpush2.msra.mxu0 %v7655
    %8056 = vmatprep.subr.mxu0 0.0
    %8057 = vmatpush2.msra.mxu0 %v7654
    %8058 = vmatprep.subr.mxu0 0.0
    %8059 = vmatpush2.msra.mxu0 %v7653
    %8060 = vmatprep.subr.mxu0 0.0
    %8061 = vmatpush2.msra.mxu0 %v7652
    %8062 = vmatprep.subr.mxu0 0.0
    %8063 = vmatpush2.msra.mxu0 %v7651
    %8064 = vmatprep.subr.mxu0 0.0
    %8065 = vmatpush2.msra.mxu0 %v7650
    %8066 = vmatprep.subr.mxu0 0.0
    %8067 = vmatpush2.msra.mxu0 %v7649
    %8068 = vmatprep.subr.mxu0 0.0
    %8069 = vmatpush2.msra.mxu0 %v7648
    %8070 = vmatprep.mubr.f32.mxu0 %v7527
    %8071 = vmatmul.mubr.f32.gmra.mxu0 %v7526
    %v8072 = vpop.f32.mrf.mxu0
    %v8073 = vadd.f32 %v8003, %v8072
    %v8074 = vpop.f32.mrf.mxu0
    %8075 = vdwg.mxu0
    %8076 = vmatprep.subr.mxu0 0.0
    %8077 = vmatpush1.msra.mxu0 %v7679
    %8078 = vmatprep.subr.mxu0 0.0
    %8079 = vmatpush1.msra.mxu0 %v7678
    %8080 = vmatprep.subr.mxu0 0.0
    %8081 = vmatpush1.msra.mxu0 %v7677
    %8082 = vmatprep.subr.mxu0 0.0
    %8083 = vmatpush1.msra.mxu0 %v7676
    %8084 = vmatprep.subr.mxu0 0.0
    %8085 = vmatpush1.msra.mxu0 %v7675
    %8086 = vmatprep.subr.mxu0 0.0
    %8087 = vmatpush1.msra.mxu0 %v7674
    %8088 = vmatprep.subr.mxu0 0.0
    %8089 = vmatpush1.msra.mxu0 %v7673
    %8090 = vmatprep.subr.mxu0 0.0
    %8091 = vmatpush1.msra.mxu0 %v7672
    %8092 = vmatprep.subr.mxu0 0.0
    %8093 = vmatpush1.msra.mxu0 %v7671
    %8094 = vmatprep.subr.mxu0 0.0
    %8095 = vmatpush1.msra.mxu0 %v7670
    %8096 = vmatprep.subr.mxu0 0.0
    %8097 = vmatpush1.msra.mxu0 %v7669
    %8098 = vmatprep.subr.mxu0 0.0
    %8099 = vmatpush1.msra.mxu0 %v7668
    %8100 = vmatprep.subr.mxu0 0.0
    %8101 = vmatpush1.msra.mxu0 %v7667
    %8102 = vmatprep.subr.mxu0 0.0
    %8103 = vmatpush1.msra.mxu0 %v7666
    %8104 = vmatprep.subr.mxu0 0.0
    %8105 = vmatpush1.msra.mxu0 %v7665
    %8106 = vmatprep.subr.mxu0 0.0
    %8107 = vmatpush1.msra.mxu0 %v7664
    %8108 = vmatprep.subr.mxu0 0.0
    %8109 = vmatpush2.msra.mxu0 %v7695
    %8110 = vmatprep.subr.mxu0 0.0
    %8111 = vmatpush2.msra.mxu0 %v7694
    %8112 = vmatprep.subr.mxu0 0.0
    %8113 = vmatpush2.msra.mxu0 %v7693
    %8114 = vmatprep.subr.mxu0 0.0
    %8115 = vmatpush2.msra.mxu0 %v7692
    %8116 = vmatprep.subr.mxu0 0.0
    %8117 = vmatpush2.msra.mxu0 %v7691
    %8118 = vmatprep.subr.mxu0 0.0
    %8119 = vmatpush2.msra.mxu0 %v7690
    %8120 = vmatprep.subr.mxu0 0.0
    %8121 = vmatpush2.msra.mxu0 %v7689
    %8122 = vmatprep.subr.mxu0 0.0
    %8123 = vmatpush2.msra.mxu0 %v7688
    %8124 = vmatprep.subr.mxu0 0.0
    %8125 = vmatpush2.msra.mxu0 %v7687
    %8126 = vmatprep.subr.mxu0 0.0
    %8127 = vmatpush2.msra.mxu0 %v7686
    %8128 = vmatprep.subr.mxu0 0.0
    %8129 = vmatpush2.msra.mxu0 %v7685
    %8130 = vmatprep.subr.mxu0 0.0
    %8131 = vmatpush2.msra.mxu0 %v7684
    %8132 = vmatprep.subr.mxu0 0.0
    %8133 = vmatpush2.msra.mxu0 %v7683
    %8134 = vmatprep.subr.mxu0 0.0
    %8135 = vmatpush2.msra.mxu0 %v7682
    %8136 = vmatprep.subr.mxu0 0.0
    %8137 = vmatpush2.msra.mxu0 %v7681
    %8138 = vmatprep.subr.mxu0 0.0
    %8139 = vmatpush2.msra.mxu0 %v7680
    %8140 = vmatprep.mubr.f32.mxu0 %v7529
    %8141 = vmatmul.mubr.f32.gmra.mxu0 %v7528
    %v8142 = vpop.f32.mrf.mxu0
    %v8143 = vadd.f32 %v8073, %v8142
    %v8144 = vpop.f32.mrf.mxu0
    %8145 = vdwg.mxu0
    %8146 = vmatprep.subr.mxu0 0.0
    %8147 = vmatpush1.msra.mxu0 %v7711
    %8148 = vmatprep.subr.mxu0 0.0
    %8149 = vmatpush1.msra.mxu0 %v7710
    %8150 = vmatprep.subr.mxu0 0.0
    %8151 = vmatpush1.msra.mxu0 %v7709
    %8152 = vmatprep.subr.mxu0 0.0
    %8153 = vmatpush1.msra.mxu0 %v7708
    %8154 = vmatprep.subr.mxu0 0.0
    %8155 = vmatpush1.msra.mxu0 %v7707
    %8156 = vmatprep.subr.mxu0 0.0
    %8157 = vmatpush1.msra.mxu0 %v7706
    %8158 = vmatprep.subr.mxu0 0.0
    %8159 = vmatpush1.msra.mxu0 %v7705
    %8160 = vmatprep.subr.mxu0 0.0
    %8161 = vmatpush1.msra.mxu0 %v7704
    %8162 = vmatprep.subr.mxu0 0.0
    %8163 = vmatpush1.msra.mxu0 %v7703
    %8164 = vmatprep.subr.mxu0 0.0
    %8165 = vmatpush1.msra.mxu0 %v7702
    %8166 = vmatprep.subr.mxu0 0.0
    %8167 = vmatpush1.msra.mxu0 %v7701
    %8168 = vmatprep.subr.mxu0 0.0
    %8169 = vmatpush1.msra.mxu0 %v7700
    %8170 = vmatprep.subr.mxu0 0.0
    %8171 = vmatpush1.msra.mxu0 %v7699
    %8172 = vmatprep.subr.mxu0 0.0
    %8173 = vmatpush1.msra.mxu0 %v7698
    %8174 = vmatprep.subr.mxu0 0.0
    %8175 = vmatpush1.msra.mxu0 %v7697
    %8176 = vmatprep.subr.mxu0 0.0
    %8177 = vmatpush1.msra.mxu0 %v7696
    %8178 = vmatprep.subr.mxu0 0.0
    %8179 = vmatpush2.msra.mxu0 %v7727
    %8180 = vmatprep.subr.mxu0 0.0
    %8181 = vmatpush2.msra.mxu0 %v7726
    %8182 = vmatprep.subr.mxu0 0.0
    %8183 = vmatpush2.msra.mxu0 %v7725
    %8184 = vmatprep.subr.mxu0 0.0
    %8185 = vmatpush2.msra.mxu0 %v7724
    %8186 = vmatprep.subr.mxu0 0.0
    %8187 = vmatpush2.msra.mxu0 %v7723
    %8188 = vmatprep.subr.mxu0 0.0
    %8189 = vmatpush2.msra.mxu0 %v7722
    %8190 = vmatprep.subr.mxu0 0.0
    %8191 = vmatpush2.msra.mxu0 %v7721
    %8192 = vmatprep.subr.mxu0 0.0
    %8193 = vmatpush2.msra.mxu0 %v7720
    %8194 = vmatprep.subr.mxu0 0.0
    %8195 = vmatpush2.msra.mxu0 %v7719
    %8196 = vmatprep.subr.mxu0 0.0
    %8197 = vmatpush2.msra.mxu0 %v7718
    %8198 = vmatprep.subr.mxu0 0.0
    %8199 = vmatpush2.msra.mxu0 %v7717
    %8200 = vmatprep.subr.mxu0 0.0
    %8201 = vmatpush2.msra.mxu0 %v7716
    %8202 = vmatprep.subr.mxu0 0.0
    %8203 = vmatpush2.msra.mxu0 %v7715
    %8204 = vmatprep.subr.mxu0 0.0
    %8205 = vmatpush2.msra.mxu0 %v7714
    %8206 = vmatprep.subr.mxu0 0.0
    %8207 = vmatpush2.msra.mxu0 %v7713
    %8208 = vmatprep.subr.mxu0 0.0
    %8209 = vmatpush2.msra.mxu0 %v7712
    %8210 = vmatprep.mubr.f32.mxu0 %v7531
    %8211 = vmatmul.mubr.f32.gmra.mxu0 %v7530
    %v8212 = vpop.f32.mrf.mxu0
    %v8213 = vadd.f32 %v8143, %v8212
    %v8214 = vpop.f32.mrf.mxu0
    %8215 = vdwg.mxu0
    %8216 = vmatprep.subr.mxu0 0.0
    %8217 = vmatpush1.msra.mxu0 %v7743
    %8218 = vmatprep.subr.mxu0 0.0
    %8219 = vmatpush1.msra.mxu0 %v7742
    %8220 = vmatprep.subr.mxu0 0.0
    %8221 = vmatpush1.msra.mxu0 %v7741
    %8222 = vmatprep.subr.mxu0 0.0
    %8223 = vmatpush1.msra.mxu0 %v7740
    %8224 = vmatprep.subr.mxu0 0.0
    %8225 = vmatpush1.msra.mxu0 %v7739
    %8226 = vmatprep.subr.mxu0 0.0
    %8227 = vmatpush1.msra.mxu0 %v7738
    %8228 = vmatprep.subr.mxu0 0.0
    %8229 = vmatpush1.msra.mxu0 %v7737
    %8230 = vmatprep.subr.mxu0 0.0
    %8231 = vmatpush1.msra.mxu0 %v7736
    %8232 = vmatprep.subr.mxu0 0.0
    %8233 = vmatpush1.msra.mxu0 %v7735
    %8234 = vmatprep.subr.mxu0 0.0
    %8235 = vmatpush1.msra.mxu0 %v7734
    %8236 = vmatprep.subr.mxu0 0.0
    %8237 = vmatpush1.msra.mxu0 %v7733
    %8238 = vmatprep.subr.mxu0 0.0
    %8239 = vmatpush1.msra.mxu0 %v7732
    %8240 = vmatprep.subr.mxu0 0.0
    %8241 = vmatpush1.msra.mxu0 %v7731
    %8242 = vmatprep.subr.mxu0 0.0
    %8243 = vmatpush1.msra.mxu0 %v7730
    %8244 = vmatprep.subr.mxu0 0.0
    %8245 = vmatpush1.msra.mxu0 %v7729
    %8246 = vmatprep.subr.mxu0 0.0
    %8247 = vmatpush1.msra.mxu0 %v7728
    %8248 = vmatprep.subr.mxu0 0.0
    %8249 = vmatpush2.msra.mxu0 %v7759
    %8250 = vmatprep.subr.mxu0 0.0
    %8251 = vmatpush2.msra.mxu0 %v7758
    %8252 = vmatprep.subr.mxu0 0.0
    %8253 = vmatpush2.msra.mxu0 %v7757
    %8254 = vmatprep.subr.mxu0 0.0
    %8255 = vmatpush2.msra.mxu0 %v7756
    %8256 = vmatprep.subr.mxu0 0.0
    %8257 = vmatpush2.msra.mxu0 %v7755
    %8258 = vmatprep.subr.mxu0 0.0
    %8259 = vmatpush2.msra.mxu0 %v7754
    %8260 = vmatprep.subr.mxu0 0.0
    %8261 = vmatpush2.msra.mxu0 %v7753
    %8262 = vmatprep.subr.mxu0 0.0
    %8263 = vmatpush2.msra.mxu0 %v7752
    %8264 = vmatprep.subr.mxu0 0.0
    %8265 = vmatpush2.msra.mxu0 %v7751
    %8266 = vmatprep.subr.mxu0 0.0
    %8267 = vmatpush2.msra.mxu0 %v7750
    %8268 = vmatprep.subr.mxu0 0.0
    %8269 = vmatpush2.msra.mxu0 %v7749
    %8270 = vmatprep.subr.mxu0 0.0
    %8271 = vmatpush2.msra.mxu0 %v7748
    %8272 = vmatprep.subr.mxu0 0.0
    %8273 = vmatpush2.msra.mxu0 %v7747
    %8274 = vmatprep.subr.mxu0 0.0
    %8275 = vmatpush2.msra.mxu0 %v7746
    %8276 = vmatprep.subr.mxu0 0.0
    %8277 = vmatpush2.msra.mxu0 %v7745
    %8278 = vmatprep.subr.mxu0 0.0
    %8279 = vmatpush2.msra.mxu0 %v7744
    %8280 = vmatprep.mubr.f32.mxu0 %v7533
    %8281 = vmatmul.mubr.f32.gmra.mxu0 %v7532
    %v8282 = vpop.f32.mrf.mxu0
    %v8283 = vadd.f32 %v8213, %v8282
    %v8284 = vpop.f32.mrf.mxu0
    %8285 = vdwg.mxu0
    %8286 = vmatprep.subr.mxu0 0.0
    %8287 = vmatpush1.msra.mxu0 %v7775
    %8288 = vmatprep.subr.mxu0 0.0
    %8289 = vmatpush1.msra.mxu0 %v7774
    %8290 = vmatprep.subr.mxu0 0.0
    %8291 = vmatpush1.msra.mxu0 %v7773
    %8292 = vmatprep.subr.mxu0 0.0
    %8293 = vmatpush1.msra.mxu0 %v7772
    %8294 = vmatprep.subr.mxu0 0.0
    %8295 = vmatpush1.msra.mxu0 %v7771
    %8296 = vmatprep.subr.mxu0 0.0
    %8297 = vmatpush1.msra.mxu0 %v7770
    %8298 = vmatprep.subr.mxu0 0.0
    %8299 = vmatpush1.msra.mxu0 %v7769
    %8300 = vmatprep.subr.mxu0 0.0
    %8301 = vmatpush1.msra.mxu0 %v7768
    %8302 = vmatprep.subr.mxu0 0.0
    %8303 = vmatpush1.msra.mxu0 %v7767
    %8304 = vmatprep.subr.mxu0 0.0
    %8305 = vmatpush1.msra.mxu0 %v7766
    %8306 = vmatprep.subr.mxu0 0.0
    %8307 = vmatpush1.msra.mxu0 %v7765
    %8308 = vmatprep.subr.mxu0 0.0
    %8309 = vmatpush1.msra.mxu0 %v7764
    %8310 = vmatprep.subr.mxu0 0.0
    %8311 = vmatpush1.msra.mxu0 %v7763
    %8312 = vmatprep.subr.mxu0 0.0
    %8313 = vmatpush1.msra.mxu0 %v7762
    %8314 = vmatprep.subr.mxu0 0.0
    %8315 = vmatpush1.msra.mxu0 %v7761
    %8316 = vmatprep.subr.mxu0 0.0
    %8317 = vmatpush1.msra.mxu0 %v7760
    %8318 = vmatprep.subr.mxu0 0.0
    %8319 = vmatpush2.msra.mxu0 %v7791
    %8320 = vmatprep.subr.mxu0 0.0
    %8321 = vmatpush2.msra.mxu0 %v7790
    %8322 = vmatprep.subr.mxu0 0.0
    %8323 = vmatpush2.msra.mxu0 %v7789
    %8324 = vmatprep.subr.mxu0 0.0
    %8325 = vmatpush2.msra.mxu0 %v7788
    %8326 = vmatprep.subr.mxu0 0.0
    %8327 = vmatpush2.msra.mxu0 %v7787
    %8328 = vmatprep.subr.mxu0 0.0
    %8329 = vmatpush2.msra.mxu0 %v7786
    %8330 = vmatprep.subr.mxu0 0.0
    %8331 = vmatpush2.msra.mxu0 %v7785
    %8332 = vmatprep.subr.mxu0 0.0
    %8333 = vmatpush2.msra.mxu0 %v7784
    %8334 = vmatprep.subr.mxu0 0.0
    %8335 = vmatpush2.msra.mxu0 %v7783
    %8336 = vmatprep.subr.mxu0 0.0
    %8337 = vmatpush2.msra.mxu0 %v7782
    %8338 = vmatprep.subr.mxu0 0.0
    %8339 = vmatpush2.msra.mxu0 %v7781
    %8340 = vmatprep.subr.mxu0 0.0
    %8341 = vmatpush2.msra.mxu0 %v7780
    %8342 = vmatprep.subr.mxu0 0.0
    %8343 = vmatpush2.msra.mxu0 %v7779
    %8344 = vmatprep.subr.mxu0 0.0
    %8345 = vmatpush2.msra.mxu0 %v7778
    %8346 = vmatprep.subr.mxu0 0.0
    %8347 = vmatpush2.msra.mxu0 %v7777
    %8348 = vmatprep.subr.mxu0 0.0
    %8349 = vmatpush2.msra.mxu0 %v7776
    %8350 = vmatprep.mubr.f32.mxu0 %v7535
    %8351 = vmatmul.mubr.f32.gmra.mxu0 %v7534
    %v8352 = vpop.f32.mrf.mxu0
    %v8353 = vadd.f32 %v8283, %v8352
    %v8354 = vpop.f32.mrf.mxu0
    %8355 = vdwg.mxu0
    %v8356 = vmax.f32 %v8353, 0.0
    %vm8357 = vcmask 254976
    %v8358 = vsel %vm8357, %v8356, 0.0
    %8359 = vadd.xlane.f32.xlu0 %v8358
    %v8360 = vpop.xlane.xlu0 %8359
    %v8361 = vmul.f32 %v8360, %v2698
    %v8362 = vsub.f32 %v8356, %v8361
    %v8363 = vmul.f32 %v8362, %v8362
    %v8364 = vsel %vm8357, %v8363, 0.0
    %8365 = vadd.xlane.f32.xlu0 %v8364
    %v8366 = vpop.xlane.xlu0 %8365
    %v8367 = vmul.f32 %v8366, %v2698
    %v8368 = vadd.f32 %v8367, 1e-12
    %v8369 = vrsqrt.pop %v8368
    %v8370 = vmul.f32 %v8362, %v8369
    %v8371 = vlaneseq
    %v8372 = vshrl.u32 %v8371, 7
    %v8373 = vsub.s32 0, %v8372
    %v8374 = vrot.slane %v7036, %v8373
    %v8375 = vmul.f32 %v8374, %v8370
    %v8376 = vlaneseq
    %v8377 = vshrl.u32 %v8376, 7
    %v8378 = vsub.s32 0, %v8377
    %v8379 = vrot.slane %v7037, %v8378
    %v8380 = vadd.f32 %v8375, %v8379
    %v8381 = vld [vmem:[%s11] sm:$0xff]
    %v8382 = vld [vmem:[%s11 + $0x8] sm:$0xff]
    %v8383 = vld [vmem:[%s11 + $0x10] sm:$0xff]
    %v8384 = vld [vmem:[%s11 + $0x18] sm:$0xff]
    %v8385 = vld [vmem:[%s12] sm:$0x1]
    %v8387 = vlaneseq
    %v8388 = vshrl.u32 %v8387, 7
    %v8389 = vsub.s32 0, %v8388
    %v8390 = vrot.slane %v8385, %v8389
    %v8393 = vsel %vm125, %v8380, 0
    %8395 = vmatprep.subr.mxu0 0.0
    %8396 = vmatpush1.msra.mxu0 0.0
    %8397 = vmatprep.subr.mxu0 0.0
    %8398 = vmatpush1.msra.mxu0 0.0
    %8399 = vmatprep.subr.mxu0 0.0
    %8400 = vmatpush1.msra.mxu0 0.0
    %8401 = vmatprep.subr.mxu0 0.0
    %8402 = vmatpush1.msra.mxu0 0.0
    %8403 = vmatprep.subr.mxu0 0.0
    %8404 = vmatpush1.msra.mxu0 0.0
    %8405 = vmatprep.subr.mxu0 0.0
    %8406 = vmatpush1.msra.mxu0 0.0
    %8407 = vmatprep.subr.mxu0 0.0
    %8408 = vmatpush1.msra.mxu0 0.0
    %8409 = vmatprep.subr.mxu0 0.0
    %8410 = vmatpush1.msra.mxu0 0.0
    %8411 = vmatprep.subr.mxu0 0.0
    %8412 = vmatpush1.msra.mxu0 0.0
    %8413 = vmatprep.subr.mxu0 0.0
    %8414 = vmatpush1.msra.mxu0 0.0
    %8415 = vmatprep.subr.mxu0 0.0
    %8416 = vmatpush1.msra.mxu0 0.0
    %8417 = vmatprep.subr.mxu0 0.0
    %8418 = vmatpush1.msra.mxu0 0.0
    %8419 = vmatprep.subr.mxu0 0.0
    %8420 = vmatpush1.msra.mxu0 %v8384
    %8421 = vmatprep.subr.mxu0 0.0
    %8422 = vmatpush1.msra.mxu0 %v8383
    %8423 = vmatprep.subr.mxu0 0.0
    %8424 = vmatpush1.msra.mxu0 %v8382
    %8425 = vmatprep.subr.mxu0 0.0
    %8426 = vmatpush1.msra.mxu0 %v8381
    %8427 = vmatprep.subr.mxu0 0.0
    %8428 = vmatpush2.msra.mxu0 0.0
    %8429 = vmatprep.subr.mxu0 0.0
    %8430 = vmatpush2.msra.mxu0 0.0
    %8431 = vmatprep.subr.mxu0 0.0
    %8432 = vmatpush2.msra.mxu0 0.0
    %8433 = vmatprep.subr.mxu0 0.0
    %8434 = vmatpush2.msra.mxu0 0.0
    %8435 = vmatprep.subr.mxu0 0.0
    %8436 = vmatpush2.msra.mxu0 0.0
    %8437 = vmatprep.subr.mxu0 0.0
    %8438 = vmatpush2.msra.mxu0 0.0
    %8439 = vmatprep.subr.mxu0 0.0
    %8440 = vmatpush2.msra.mxu0 0.0
    %8441 = vmatprep.subr.mxu0 0.0
    %8442 = vmatpush2.msra.mxu0 0.0
    %8443 = vmatprep.subr.mxu0 0.0
    %8444 = vmatpush2.msra.mxu0 0.0
    %8445 = vmatprep.subr.mxu0 0.0
    %8446 = vmatpush2.msra.mxu0 0.0
    %8447 = vmatprep.subr.mxu0 0.0
    %8448 = vmatpush2.msra.mxu0 0.0
    %8449 = vmatprep.subr.mxu0 0.0
    %8450 = vmatpush2.msra.mxu0 0.0
    %8451 = vmatprep.subr.mxu0 0.0
    %8452 = vmatpush2.msra.mxu0 0.0
    %8453 = vmatprep.subr.mxu0 0.0
    %8454 = vmatpush2.msra.mxu0 0.0
    %8455 = vmatprep.subr.mxu0 0.0
    %8456 = vmatpush2.msra.mxu0 0.0
    %8457 = vmatprep.subr.mxu0 0.0
    %8458 = vmatpush2.msra.mxu0 0.0
    %8459 = vmatprep.mubr.f32.mxu0 0.0
    %8460 = vmatmul.mubr.f32.gmra.mxu0 %v8393
    %v8461 = vpop.f32.mrf.mxu0
    %v8462 = vadd.f32 %v8390, %v8461
    %v8463 = vpop.f32.mrf.mxu0
    %8464 = vdwg.mxu0
    %8465 = vst [vmem:[#allocation3] sm:$0x3] %v8462
    // Predicated region
    $region54: #{pixel_attention_forward.1} parent=1 // pred_check
      _
    $region55: #{pixel_attention_forward.1} parent=1 // pred_check_branch
      %8467 = sbr.rel (0) target = $region57
    $region56: #{pixel_attention_forward.1} parent=1 // pred_region
      %s8469 = ssub.s32 32, 32
      %8470 = vsyncadd [#allocation4], %s8469
      %s8472 = sshll.u32 [#allocation3], 4
      %s8473 = int_to_ptr.vmem [resolvable:$true] %s8472
      %8475 = dma.vmem_to_hbm [thread:$0]  %s8473, 32, %s13, [#allocation4]
    $region57: #{pixel_attention_forward.1} parent=1 // pred_fallthru
      _
    // Predicated region
    $region58: #{pixel_attention_forward.1} parent=1 // pred_check
      _
    $region59: #{pixel_attention_forward.1} parent=1 // pred_check_branch
      %8477 = sbr.rel (0) target = $region61
    $region60: #{pixel_attention_forward.1} parent=1 // pred_region
      %8478 = dma.done [#allocation4], 32
    $region61: #{pixel_attention_forward.1} parent=1 // pred_fallthru
      _
    %8479 = vsyncpa [#allocation4], 1

</llo_original>
